<compile_context>
chip_gen: v7x
topology: tpu7x:2x2x1
jax: 0.10.0
libtpu: 0.0.40
codegen_flags: <defaults>
</compile_context>

<pallas_src>
import functools

import jax
import jax.numpy as jnp
from jax import lax
from jax.experimental import pallas as pl
from jax.experimental.pallas import tpu as pltpu


# --------------------------------------------------------------------------
# Fused DnCNN kernel: all layers for NB images per grid step.
# --------------------------------------------------------------------------
def _dncnn_fused_kernel(xoff, x_ref, w0_ref, wmid_ref, bias_ref, wlast_ref,
                        o_ref, xpad_ref, buf_ref, patch_ref):
    NB, H, W, C = x_ref.shape
    F = buf_ref.shape[-1]
    n_mid = wmid_ref.shape[0]
    M = NB * H * W

    def zero_halo(slab_ref):
        """Zero only the halo ring (aligned bands); interior is rewritten."""
        nb, hp, wp, ch = slab_ref.shape
        dt = slab_ref.dtype
        # left / right halo column bands (sublane-aligned starts & widths)
        slab_ref[:, :, 0:xoff, :] = jnp.zeros((nb, hp, xoff, ch), dt)
        slab_ref[:, :, xoff + W:wp, :] = jnp.zeros((nb, hp, wp - xoff - W, ch), dt)
        # top / bottom halo rows over the interior columns
        slab_ref[:, 0:1, xoff:xoff + W, :] = jnp.zeros((nb, 1, W, ch), dt)
        slab_ref[:, hp - 1:hp, xoff:xoff + W, :] = jnp.zeros((nb, 1, W, ch), dt)

    def build_patch(slab_ref, cin):
        """im2col: assemble (M, 9*cin) bf16 patch in VMEM, one dot per layer."""
        for dy in range(3):
            for dx in range(3):
                t = dy * 3 + dx
                tap = slab_ref[:, dy:dy + H, xoff - 1 + dx:xoff - 1 + dx + W, :]
                patch_ref[:, t * cin:(t + 1) * cin] = tap.reshape(M, cin)
        return patch_ref[:, 0:9 * cin]

    zero_halo(xpad_ref)
    zero_halo(buf_ref)

    x_f32 = x_ref[...]                                           # (NB,H,W,C) f32
    xpad_ref[:, 1:H + 1, xoff:xoff + W, :] = x_f32.astype(jnp.bfloat16)

    # ---- layer 0: conv(C -> F) + ReLU;  K = 9*C ----------------------------
    h = jnp.dot(build_patch(xpad_ref, C), w0_ref[...],
                preferred_element_type=jnp.float32)              # (M, F)
    buf_ref[:, 1:H + 1, xoff:xoff + W, :] = (
        jnp.maximum(h, 0.0).astype(jnp.bfloat16).reshape(NB, H, W, F))

    # ---- middle layers: conv(F -> F) (BN scale folded into w) + bias + ReLU
    def mid_layer(j, carry):
        acc = jnp.dot(build_patch(buf_ref, F), wmid_ref[j],
                      preferred_element_type=jnp.float32)        # (M, F)
        acc = acc + bias_ref[j]                                  # (M,F) + (1,F)
        buf_ref[:, 1:H + 1, xoff:xoff + W, :] = (
            jnp.maximum(acc, 0.0).astype(jnp.bfloat16).reshape(NB, H, W, F))
        return carry

    lax.fori_loop(0, n_mid, mid_layer, 0)

    # ---- last layer: conv(F -> C); fused residual  out = x - conv(x) ------
    conv = jnp.dot(build_patch(buf_ref, F), wlast_ref[...],
                   preferred_element_type=jnp.float32)           # (M, C)
    o_ref[...] = (x_f32 - conv.reshape(NB, H, W, C)).astype(o_ref.dtype)


def dncnn_pallas(x_nhwc, w0, wmid, bias, wlast, *, images_per_step=1):
    N, H, W, C = x_nhwc.shape
    F = w0.shape[-1]
    n_mid = wmid.shape[0]
    NB = images_per_step
    assert N % NB == 0, (N, NB)

    XOFF = 8                      # sublane-aligned interior start in the slabs
    WP = XOFF + W + 8             # left halo of 8, right halo of 8 (1 needed)
    M = NB * H * W

    flops = 2 * N * H * W * 9 * (C * F + n_mid * F * F + F * C)
    bytes_accessed = (2 * x_nhwc.size * 4
                      + (w0.size + wmid.size + wlast.size) * 2
                      + bias.size * 4)

    kernel = functools.partial(_dncnn_fused_kernel, XOFF)

    return pl.pallas_call(
        kernel,
        out_shape=jax.ShapeDtypeStruct((N, H, W, C), jnp.float32),
        grid=(N // NB,),
        in_specs=[
            pl.BlockSpec((NB, H, W, C), lambda n: (n, 0, 0, 0)),   # x
            # Constant index_maps: weights/bias stay VMEM-resident across the
            # grid.  (pipeline_mode=pl.Buffered(1) once the model is deep.)
            pl.BlockSpec(w0.shape, lambda n: (0, 0)),              # (9C, F)
            pl.BlockSpec(wmid.shape, lambda n: (0, 0, 0)),         # (n_mid,9F,F)
            pl.BlockSpec(bias.shape, lambda n: (0, 0, 0)),         # (n_mid,1,F)
            pl.BlockSpec(wlast.shape, lambda n: (0, 0)),           # (9F, C)
        ],
        out_specs=pl.BlockSpec((NB, H, W, C), lambda n: (n, 0, 0, 0)),
        scratch_shapes=[
            pltpu.VMEM((NB, H + 2, WP, C), jnp.bfloat16),   # padded input slab
            pltpu.VMEM((NB, H + 2, WP, F), jnp.bfloat16),   # padded activation slab
            pltpu.VMEM((M, 9 * F), jnp.bfloat16),           # im2col patch
        ],
        compiler_params=pltpu.CompilerParams(
            dimension_semantics=("parallel",)),
        cost_estimate=pl.CostEstimate(flops=flops, transcendentals=0,
                                      bytes_accessed=bytes_accessed),
    )(x_nhwc, w0, wmid, bias, wlast)


# --------------------------------------------------------------------------
# Parameter init (deterministic, synthetic) and model forward.
# --------------------------------------------------------------------------
def init_dncnn_params(key, channels, num_of_layers=5, features=64):
    """Returns list of (w, scale, bias) per conv layer.

    w:     (3, 3, Cin, Cout)  HWIO conv weights (no conv bias, as in DnCNN).
    scale: (1, Cout)          folded BN gamma / sqrt(var + eps) (1.0 if no BN).
    bias:  (1, Cout)          folded BN beta - mean*scale       (0.0 if no BN).
    """
    eps = 1e-5
    params = []
    layer_dims = ([(channels, features)]
                  + [(features, features)] * (num_of_layers - 2)
                  + [(features, channels)])
    keys = jax.random.split(key, len(layer_dims) * 5)
    for i, (cin, cout) in enumerate(layer_dims):
        kw, kg, kb, km, kv = keys[5 * i:5 * i + 5]
        w = 0.1 * jax.random.normal(kw, (3, 3, cin, cout), jnp.float32)
        is_bn_layer = (0 < i < len(layer_dims) - 1)
        if is_bn_layer:
            gamma = 1.0 + 0.1 * jax.random.normal(kg, (cout,), jnp.float32)
            beta = 0.1 * jax.random.normal(kb, (cout,), jnp.float32)
            mean = 0.1 * jax.random.normal(km, (cout,), jnp.float32)
            var = jax.random.uniform(kv, (cout,), jnp.float32, 0.5, 1.5)
            scale = gamma / jnp.sqrt(var + eps)
            bias = beta - mean * scale
        else:
            scale = jnp.ones((cout,), jnp.float32)
            bias = jnp.zeros((cout,), jnp.float32)
        params.append((w, scale.reshape(1, cout), bias.reshape(1, cout)))
    return params


def dncnn_forward(params, x_nchw, *, images_per_step=1):
    """DnCNN forward: returns x - dncnn(x) in NCHW, like the PyTorch module."""
    L = len(params)
    assert L >= 3
    x = jnp.transpose(x_nchw, (0, 2, 3, 1)).astype(jnp.float32)   # -> NHWC
    C = x.shape[-1]
    F = params[0][0].shape[-1]

    # Pack weights for the fused kernel: tap-concatenated (9*cin, cout) bf16,
    # with the folded-BN per-channel scale multiplied into the mid weights.
    w0 = params[0][0].reshape(9 * C, F).astype(jnp.bfloat16)
    wmid = jnp.stack([(params[i][0] * params[i][1][0]).reshape(9 * F, F)
                      for i in range(1, L - 1)]).astype(jnp.bfloat16)
    bias = jnp.stack([params[i][2] for i in range(1, L - 1)])      # (L-2,1,F)
    wlast = params[-1][0].reshape(9 * F, C).astype(jnp.bfloat16)

    out = dncnn_pallas(x, w0, wmid, bias, wlast,
                       images_per_step=images_per_step)
    return jnp.transpose(out, (0, 3, 1, 2))                        # -> NCHW


# Pure-JAX reference (XLA conv, mirroring the kernel's bf16 weights with the
# BN scale folded in and f32 accumulation), used only to validate the kernel.
def _ref_forward(params, x_nchw):
    x = jnp.transpose(x_nchw, (0, 2, 3, 1)).astype(jnp.float32)
    h = x
    n = len(params)
    for i, (w, scale, bias) in enumerate(params):
        w_folded = (w * scale[0]).astype(jnp.bfloat16)   # same fold as kernel
        conv = lax.conv_general_dilated(
            h.astype(jnp.bfloat16), w_folded, (1, 1), "SAME",
            dimension_numbers=("NHWC", "HWIO", "NHWC"),
            preferred_element_type=jnp.float32)
        conv = conv + bias[0]
        h = jnp.maximum(conv, 0.0) if i < n - 1 else x - conv
    return jnp.transpose(h, (0, 3, 1, 2))


if __name__ == "__main__":
    key = jax.random.PRNGKey(0)
    k_param, k_x = jax.random.split(key)

    channels, num_of_layers, features = 4, 5, 64
    N, H, W = 2, 16, 16

    params = init_dncnn_params(k_param, channels, num_of_layers, features)
    x = jax.random.normal(k_x, (N, channels, H, W), jnp.float32)  # NCHW

    ref = jax.block_until_ready(_ref_forward(params, x))

    # v7x-style config: one image per grid step, grid=(N,) marked "parallel".
    out1 = jax.block_until_ready(
        jax.jit(functools.partial(dncnn_forward, images_per_step=1))(params, x))
    # v5e/v6e-style config: whole batch folded into the matmul M dimension.
    outN = jax.block_until_ready(
        jax.jit(functools.partial(dncnn_forward, images_per_step=N))(params, x))

    assert out1.shape == (N, channels, H, W)
    assert outN.shape == (N, channels, H, W)
    for out in (out1, outN):
        max_err = float(jnp.max(jnp.abs(out - ref)))
        assert jnp.allclose(out, ref, atol=2e-2, rtol=2e-2), max_err

    print("KERNEL_OK")
</pallas_src>

<mosaic_0001>
module attributes {stable_mosaic.version = 11 : i64} {
  func.func @_dncnn_fused_kernel(%arg0: i32, %arg1: memref<1x16x16x4xf32, #tpu.memory_space<vmem>>, %arg2: memref<36x64xbf16, #tpu.memory_space<vmem>>, %arg3: memref<3x576x64xbf16, #tpu.memory_space<vmem>>, %arg4: memref<3x1x64xf32, #tpu.memory_space<vmem>>, %arg5: memref<576x4xbf16, #tpu.memory_space<vmem>>, %arg6: memref<1x16x16x4xf32, #tpu.memory_space<vmem>>, %arg7: memref<1x18x32x4xbf16, #tpu.memory_space<vmem>>, %arg8: memref<1x18x32x64xbf16, #tpu.memory_space<vmem>>, %arg9: memref<256x576xbf16, #tpu.memory_space<vmem>>) attributes {dimension_semantics = [#tpu.dimension_semantics<parallel>], iteration_bounds = array<i64: 2>, scalar_prefetch = 0 : i64, scratch_operands = 3 : i64, tpu.core_type = #tpu.core_type<tc>, window_params = [{transform_indices = @transform_0, window_bounds = array<i64: 1, 16, 16, 4>}, {pipeline_mode = #tpu.pipeline_mode<synchronous>, transform_indices = @transform_1, window_bounds = array<i64: 36, 64>}, {pipeline_mode = #tpu.pipeline_mode<synchronous>, transform_indices = @transform_2, window_bounds = array<i64: 3, 576, 64>}, {pipeline_mode = #tpu.pipeline_mode<synchronous>, transform_indices = @transform_3, window_bounds = array<i64: 3, 1, 64>}, {pipeline_mode = #tpu.pipeline_mode<synchronous>, transform_indices = @transform_4, window_bounds = array<i64: 576, 4>}, {transform_indices = @transform_5, window_bounds = array<i64: 1, 16, 16, 4>}]} {
    %cst = arith.constant 0.000000e+00 : bf16
    %0 = vector.broadcast %cst : bf16 to vector<1x18x8x4xbf16>
    %c0 = arith.constant 0 : index
    %c0_0 = arith.constant 0 : index
    %c0_1 = arith.constant 0 : index
    %c0_2 = arith.constant 0 : index
    %1 = vector.load %arg7[%c0, %c0_0, %c0_1, %c0_2] : memref<1x18x32x4xbf16, #tpu.memory_space<vmem>>, vector<1x18x8x4xbf16>
    tpu.vector_store %arg7[%c0, %c0_0, %c0_1, %c0_2], %0 {strides = array<i32>} : memref<1x18x32x4xbf16, #tpu.memory_space<vmem>>, vector<1x18x8x4xbf16>,
    %cst_3 = arith.constant 0.000000e+00 : bf16
    %2 = vector.broadcast %cst_3 : bf16 to vector<1x18x8x4xbf16>
    %c0_4 = arith.constant 0 : index
    %c0_5 = arith.constant 0 : index
    %c24 = arith.constant 24 : index
    %c0_6 = arith.constant 0 : index
    %3 = vector.load %arg7[%c0_4, %c0_5, %c24, %c0_6] : memref<1x18x32x4xbf16, #tpu.memory_space<vmem>>, vector<1x18x8x4xbf16>
    tpu.vector_store %arg7[%c0_4, %c0_5, %c24, %c0_6], %2 {strides = array<i32>} : memref<1x18x32x4xbf16, #tpu.memory_space<vmem>>, vector<1x18x8x4xbf16>,
    %cst_7 = arith.constant 0.000000e+00 : bf16
    %4 = vector.broadcast %cst_7 : bf16 to vector<1x1x16x4xbf16>
    %c0_8 = arith.constant 0 : index
    %c0_9 = arith.constant 0 : index
    %c8 = arith.constant 8 : index
    %c0_10 = arith.constant 0 : index
    %5 = vector.load %arg7[%c0_8, %c0_9, %c8, %c0_10] : memref<1x18x32x4xbf16, #tpu.memory_space<vmem>>, vector<1x1x16x4xbf16>
    tpu.vector_store %arg7[%c0_8, %c0_9, %c8, %c0_10], %4 {strides = array<i32>} : memref<1x18x32x4xbf16, #tpu.memory_space<vmem>>, vector<1x1x16x4xbf16>,
    %cst_11 = arith.constant 0.000000e+00 : bf16
    %6 = vector.broadcast %cst_11 : bf16 to vector<1x1x16x4xbf16>
    %c0_12 = arith.constant 0 : index
    %c17 = arith.constant 17 : index
    %c8_13 = arith.constant 8 : index
    %c0_14 = arith.constant 0 : index
    %7 = vector.load %arg7[%c0_12, %c17, %c8_13, %c0_14] : memref<1x18x32x4xbf16, #tpu.memory_space<vmem>>, vector<1x1x16x4xbf16>
    tpu.vector_store %arg7[%c0_12, %c17, %c8_13, %c0_14], %6 {strides = array<i32>} : memref<1x18x32x4xbf16, #tpu.memory_space<vmem>>, vector<1x1x16x4xbf16>,
    %cst_15 = arith.constant 0.000000e+00 : bf16
    %8 = vector.broadcast %cst_15 : bf16 to vector<1x18x8x64xbf16>
    %c0_16 = arith.constant 0 : index
    %c0_17 = arith.constant 0 : index
    %c0_18 = arith.constant 0 : index
    %c0_19 = arith.constant 0 : index
    %9 = vector.load %arg8[%c0_16, %c0_17, %c0_18, %c0_19] : memref<1x18x32x64xbf16, #tpu.memory_space<vmem>>, vector<1x18x8x64xbf16>
    tpu.vector_store %arg8[%c0_16, %c0_17, %c0_18, %c0_19], %8 {strides = array<i32>} : memref<1x18x32x64xbf16, #tpu.memory_space<vmem>>, vector<1x18x8x64xbf16>,
    %cst_20 = arith.constant 0.000000e+00 : bf16
    %10 = vector.broadcast %cst_20 : bf16 to vector<1x18x8x64xbf16>
    %c0_21 = arith.constant 0 : index
    %c0_22 = arith.constant 0 : index
    %c24_23 = arith.constant 24 : index
    %c0_24 = arith.constant 0 : index
    %11 = vector.load %arg8[%c0_21, %c0_22, %c24_23, %c0_24] : memref<1x18x32x64xbf16, #tpu.memory_space<vmem>>, vector<1x18x8x64xbf16>
    tpu.vector_store %arg8[%c0_21, %c0_22, %c24_23, %c0_24], %10 {strides = array<i32>} : memref<1x18x32x64xbf16, #tpu.memory_space<vmem>>, vector<1x18x8x64xbf16>,
    %cst_25 = arith.constant 0.000000e+00 : bf16
    %12 = vector.broadcast %cst_25 : bf16 to vector<1x1x16x64xbf16>
    %c0_26 = arith.constant 0 : index
    %c0_27 = arith.constant 0 : index
    %c8_28 = arith.constant 8 : index
    %c0_29 = arith.constant 0 : index
    %13 = vector.load %arg8[%c0_26, %c0_27, %c8_28, %c0_29] : memref<1x18x32x64xbf16, #tpu.memory_space<vmem>>, vector<1x1x16x64xbf16>
    tpu.vector_store %arg8[%c0_26, %c0_27, %c8_28, %c0_29], %12 {strides = array<i32>} : memref<1x18x32x64xbf16, #tpu.memory_space<vmem>>, vector<1x1x16x64xbf16>,
    %cst_30 = arith.constant 0.000000e+00 : bf16
    %14 = vector.broadcast %cst_30 : bf16 to vector<1x1x16x64xbf16>
    %c0_31 = arith.constant 0 : index
    %c17_32 = arith.constant 17 : index
    %c8_33 = arith.constant 8 : index
    %c0_34 = arith.constant 0 : index
    %15 = vector.load %arg8[%c0_31, %c17_32, %c8_33, %c0_34] : memref<1x18x32x64xbf16, #tpu.memory_space<vmem>>, vector<1x1x16x64xbf16>
    tpu.vector_store %arg8[%c0_31, %c17_32, %c8_33, %c0_34], %14 {strides = array<i32>} : memref<1x18x32x64xbf16, #tpu.memory_space<vmem>>, vector<1x1x16x64xbf16>,
    %c0_35 = arith.constant 0 : index
    %c0_36 = arith.constant 0 : index
    %c0_37 = arith.constant 0 : index
    %c0_38 = arith.constant 0 : index
    %16 = vector.load %arg1[%c0_35, %c0_36, %c0_37, %c0_38] : memref<1x16x16x4xf32, #tpu.memory_space<vmem>>, vector<1x16x16x4xf32>
    %17 = arith.truncf %16 : vector<1x16x16x4xf32> to vector<1x16x16x4xbf16>
    %c0_39 = arith.constant 0 : index
    %c1 = arith.constant 1 : index
    %c8_40 = arith.constant 8 : index
    %c0_41 = arith.constant 0 : index
    %18 = vector.load %arg7[%c0_39, %c1, %c8_40, %c0_41] : memref<1x18x32x4xbf16, #tpu.memory_space<vmem>>, vector<1x16x16x4xbf16>
    tpu.vector_store %arg7[%c0_39, %c1, %c8_40, %c0_41], %17 {strides = array<i32>} : memref<1x18x32x4xbf16, #tpu.memory_space<vmem>>, vector<1x16x16x4xbf16>,
    %c0_42 = arith.constant 0 : index
    %c0_43 = arith.constant 0 : index
    %c7 = arith.constant 7 : index
    %c0_44 = arith.constant 0 : index
    %19 = vector.load %arg7[%c0_42, %c0_43, %c7, %c0_44] : memref<1x18x32x4xbf16, #tpu.memory_space<vmem>>, vector<1x16x16x4xbf16>
    %20 = vector.shape_cast %19 : vector<1x16x16x4xbf16> to vector<256x4xbf16>
    %c0_45 = arith.constant 0 : index
    %c0_46 = arith.constant 0 : index
    %21 = vector.load %arg9[%c0_45, %c0_46] : memref<256x576xbf16, #tpu.memory_space<vmem>>, vector<256x4xbf16>
    tpu.vector_store %arg9[%c0_45, %c0_46], %20 {strides = array<i32>} : memref<256x576xbf16, #tpu.memory_space<vmem>>, vector<256x4xbf16>,
    %c0_47 = arith.constant 0 : index
    %c0_48 = arith.constant 0 : index
    %c8_49 = arith.constant 8 : index
    %c0_50 = arith.constant 0 : index
    %22 = vector.load %arg7[%c0_47, %c0_48, %c8_49, %c0_50] : memref<1x18x32x4xbf16, #tpu.memory_space<vmem>>, vector<1x16x16x4xbf16>
    %23 = vector.shape_cast %22 : vector<1x16x16x4xbf16> to vector<256x4xbf16>
    %c0_51 = arith.constant 0 : index
    %c4 = arith.constant 4 : index
    %24 = vector.load %arg9[%c0_51, %c4] : memref<256x576xbf16, #tpu.memory_space<vmem>>, vector<256x4xbf16>
    tpu.vector_store %arg9[%c0_51, %c4], %23 {strides = array<i32>} : memref<256x576xbf16, #tpu.memory_space<vmem>>, vector<256x4xbf16>,
    %c0_52 = arith.constant 0 : index
    %c0_53 = arith.constant 0 : index
    %c9 = arith.constant 9 : index
    %c0_54 = arith.constant 0 : index
    %25 = vector.load %arg7[%c0_52, %c0_53, %c9, %c0_54] : memref<1x18x32x4xbf16, #tpu.memory_space<vmem>>, vector<1x16x16x4xbf16>
    %26 = vector.shape_cast %25 : vector<1x16x16x4xbf16> to vector<256x4xbf16>
    %c0_55 = arith.constant 0 : index
    %c8_56 = arith.constant 8 : index
    %27 = vector.load %arg9[%c0_55, %c8_56] : memref<256x576xbf16, #tpu.memory_space<vmem>>, vector<256x4xbf16>
    tpu.vector_store %arg9[%c0_55, %c8_56], %26 {strides = array<i32>} : memref<256x576xbf16, #tpu.memory_space<vmem>>, vector<256x4xbf16>,
    %c0_57 = arith.constant 0 : index
    %c1_58 = arith.constant 1 : index
    %c7_59 = arith.constant 7 : index
    %c0_60 = arith.constant 0 : index
    %28 = vector.load %arg7[%c0_57, %c1_58, %c7_59, %c0_60] : memref<1x18x32x4xbf16, #tpu.memory_space<vmem>>, vector<1x16x16x4xbf16>
    %29 = vector.shape_cast %28 : vector<1x16x16x4xbf16> to vector<256x4xbf16>
    %c0_61 = arith.constant 0 : index
    %c12 = arith.constant 12 : index
    %30 = vector.load %arg9[%c0_61, %c12] : memref<256x576xbf16, #tpu.memory_space<vmem>>, vector<256x4xbf16>
    tpu.vector_store %arg9[%c0_61, %c12], %29 {strides = array<i32>} : memref<256x576xbf16, #tpu.memory_space<vmem>>, vector<256x4xbf16>,
    %c0_62 = arith.constant 0 : index
    %c1_63 = arith.constant 1 : index
    %c8_64 = arith.constant 8 : index
    %c0_65 = arith.constant 0 : index
    %31 = vector.load %arg7[%c0_62, %c1_63, %c8_64, %c0_65] : memref<1x18x32x4xbf16, #tpu.memory_space<vmem>>, vector<1x16x16x4xbf16>
    %32 = vector.shape_cast %31 : vector<1x16x16x4xbf16> to vector<256x4xbf16>
    %c0_66 = arith.constant 0 : index
    %c16 = arith.constant 16 : index
    %33 = vector.load %arg9[%c0_66, %c16] : memref<256x576xbf16, #tpu.memory_space<vmem>>, vector<256x4xbf16>
    tpu.vector_store %arg9[%c0_66, %c16], %32 {strides = array<i32>} : memref<256x576xbf16, #tpu.memory_space<vmem>>, vector<256x4xbf16>,
    %c0_67 = arith.constant 0 : index
    %c1_68 = arith.constant 1 : index
    %c9_69 = arith.constant 9 : index
    %c0_70 = arith.constant 0 : index
    %34 = vector.load %arg7[%c0_67, %c1_68, %c9_69, %c0_70] : memref<1x18x32x4xbf16, #tpu.memory_space<vmem>>, vector<1x16x16x4xbf16>
    %35 = vector.shape_cast %34 : vector<1x16x16x4xbf16> to vector<256x4xbf16>
    %c0_71 = arith.constant 0 : index
    %c20 = arith.constant 20 : index
    %36 = vector.load %arg9[%c0_71, %c20] : memref<256x576xbf16, #tpu.memory_space<vmem>>, vector<256x4xbf16>
    tpu.vector_store %arg9[%c0_71, %c20], %35 {strides = array<i32>} : memref<256x576xbf16, #tpu.memory_space<vmem>>, vector<256x4xbf16>,
    %c0_72 = arith.constant 0 : index
    %c2 = arith.constant 2 : index
    %c7_73 = arith.constant 7 : index
    %c0_74 = arith.constant 0 : index
    %37 = vector.load %arg7[%c0_72, %c2, %c7_73, %c0_74] : memref<1x18x32x4xbf16, #tpu.memory_space<vmem>>, vector<1x16x16x4xbf16>
    %38 = vector.shape_cast %37 : vector<1x16x16x4xbf16> to vector<256x4xbf16>
    %c0_75 = arith.constant 0 : index
    %c24_76 = arith.constant 24 : index
    %39 = vector.load %arg9[%c0_75, %c24_76] : memref<256x576xbf16, #tpu.memory_space<vmem>>, vector<256x4xbf16>
    tpu.vector_store %arg9[%c0_75, %c24_76], %38 {strides = array<i32>} : memref<256x576xbf16, #tpu.memory_space<vmem>>, vector<256x4xbf16>,
    %c0_77 = arith.constant 0 : index
    %c2_78 = arith.constant 2 : index
    %c8_79 = arith.constant 8 : index
    %c0_80 = arith.constant 0 : index
    %40 = vector.load %arg7[%c0_77, %c2_78, %c8_79, %c0_80] : memref<1x18x32x4xbf16, #tpu.memory_space<vmem>>, vector<1x16x16x4xbf16>
    %41 = vector.shape_cast %40 : vector<1x16x16x4xbf16> to vector<256x4xbf16>
    %c0_81 = arith.constant 0 : index
    %c28 = arith.constant 28 : index
    %42 = vector.load %arg9[%c0_81, %c28] : memref<256x576xbf16, #tpu.memory_space<vmem>>, vector<256x4xbf16>
    tpu.vector_store %arg9[%c0_81, %c28], %41 {strides = array<i32>} : memref<256x576xbf16, #tpu.memory_space<vmem>>, vector<256x4xbf16>,
    %c0_82 = arith.constant 0 : index
    %c2_83 = arith.constant 2 : index
    %c9_84 = arith.constant 9 : index
    %c0_85 = arith.constant 0 : index
    %43 = vector.load %arg7[%c0_82, %c2_83, %c9_84, %c0_85] : memref<1x18x32x4xbf16, #tpu.memory_space<vmem>>, vector<1x16x16x4xbf16>
    %44 = vector.shape_cast %43 : vector<1x16x16x4xbf16> to vector<256x4xbf16>
    %c0_86 = arith.constant 0 : index
    %c32 = arith.constant 32 : index
    %45 = vector.load %arg9[%c0_86, %c32] : memref<256x576xbf16, #tpu.memory_space<vmem>>, vector<256x4xbf16>
    tpu.vector_store %arg9[%c0_86, %c32], %44 {strides = array<i32>} : memref<256x576xbf16, #tpu.memory_space<vmem>>, vector<256x4xbf16>,
    %c0_87 = arith.constant 0 : index
    %c0_88 = arith.constant 0 : index
    %46 = vector.load %arg9[%c0_87, %c0_88] : memref<256x576xbf16, #tpu.memory_space<vmem>>, vector<256x36xbf16>
    %c0_89 = arith.constant 0 : index
    %c0_90 = arith.constant 0 : index
    %47 = vector.load %arg2[%c0_89, %c0_90] : memref<36x64xbf16, #tpu.memory_space<vmem>>, vector<36x64xbf16>
    %cst_91 = arith.constant dense<0.000000e+00> : vector<256x64xf32>
    %48 = tpu.matmul %46, %47, %cst_91 {dimension_numbers = #tpu.dot_dimension_numbers<[1], [0], [0], [1], [0, 0, 1, 1], [], []>} : vector<256x36xbf16>, vector<36x64xbf16>, vector<256x64xf32> -> vector<256x64xf32>
    %cst_92 = arith.constant 0.000000e+00 : f32
    %49 = vector.broadcast %cst_92 : f32 to vector<256x64xf32>
    %50 = arith.maximumf %48, %49 : vector<256x64xf32>
    %51 = arith.truncf %50 : vector<256x64xf32> to vector<256x64xbf16>
    %52 = vector.shape_cast %51 : vector<256x64xbf16> to vector<1x16x16x64xbf16>
    %c0_93 = arith.constant 0 : index
    %c1_94 = arith.constant 1 : index
    %c8_95 = arith.constant 8 : index
    %c0_96 = arith.constant 0 : index
    %53 = vector.load %arg8[%c0_93, %c1_94, %c8_95, %c0_96] : memref<1x18x32x64xbf16, #tpu.memory_space<vmem>>, vector<1x16x16x64xbf16>
    tpu.vector_store %arg8[%c0_93, %c1_94, %c8_95, %c0_96], %52 {strides = array<i32>} : memref<1x18x32x64xbf16, #tpu.memory_space<vmem>>, vector<1x16x16x64xbf16>,
    %c0_i32 = arith.constant 0 : i32
    %c3_i32 = arith.constant 3 : i32
    %54 = arith.addi %c0_i32, %c3_i32 : i32
    %c1_i32 = arith.constant 1 : i32
    scf.for %arg10 = %c0_i32 to %54 step %c1_i32  : i32 {
      %c0_153 = arith.constant 0 : index
      %c0_154 = arith.constant 0 : index
      %c7_155 = arith.constant 7 : index
      %c0_156 = arith.constant 0 : index
      %88 = vector.load %arg8[%c0_153, %c0_154, %c7_155, %c0_156] : memref<1x18x32x64xbf16, #tpu.memory_space<vmem>>, vector<1x16x16x64xbf16>
      %89 = vector.shape_cast %88 : vector<1x16x16x64xbf16> to vector<256x64xbf16>
      %c0_157 = arith.constant 0 : index
      %c0_158 = arith.constant 0 : index
      %90 = vector.load %arg9[%c0_157, %c0_158] : memref<256x576xbf16, #tpu.memory_space<vmem>>, vector<256x64xbf16>
      tpu.vector_store %arg9[%c0_157, %c0_158], %89 {strides = array<i32>} : memref<256x576xbf16, #tpu.memory_space<vmem>>, vector<256x64xbf16>,
      %c0_159 = arith.constant 0 : index
      %c0_160 = arith.constant 0 : index
      %c8_161 = arith.constant 8 : index
      %c0_162 = arith.constant 0 : index
      %91 = vector.load %arg8[%c0_159, %c0_160, %c8_161, %c0_162] : memref<1x18x32x64xbf16, #tpu.memory_space<vmem>>, vector<1x16x16x64xbf16>
      %92 = vector.shape_cast %91 : vector<1x16x16x64xbf16> to vector<256x64xbf16>
      %c0_163 = arith.constant 0 : index
      %c64_164 = arith.constant 64 : index
      %93 = vector.load %arg9[%c0_163, %c64_164] : memref<256x576xbf16, #tpu.memory_space<vmem>>, vector<256x64xbf16>
      tpu.vector_store %arg9[%c0_163, %c64_164], %92 {strides = array<i32>} : memref<256x576xbf16, #tpu.memory_space<vmem>>, vector<256x64xbf16>,
      %c0_165 = arith.constant 0 : index
      %c0_166 = arith.constant 0 : index
      %c9_167 = arith.constant 9 : index
      %c0_168 = arith.constant 0 : index
      %94 = vector.load %arg8[%c0_165, %c0_166, %c9_167, %c0_168] : memref<1x18x32x64xbf16, #tpu.memory_space<vmem>>, vector<1x16x16x64xbf16>
      %95 = vector.shape_cast %94 : vector<1x16x16x64xbf16> to vector<256x64xbf16>
      %c0_169 = arith.constant 0 : index
      %c128_170 = arith.constant 128 : index
      %96 = vector.load %arg9[%c0_169, %c128_170] : memref<256x576xbf16, #tpu.memory_space<vmem>>, vector<256x64xbf16>
      tpu.vector_store %arg9[%c0_169, %c128_170], %95 {strides = array<i32>} : memref<256x576xbf16, #tpu.memory_space<vmem>>, vector<256x64xbf16>,
      %c0_171 = arith.constant 0 : index
      %c1_172 = arith.constant 1 : index
      %c7_173 = arith.constant 7 : index
      %c0_174 = arith.constant 0 : index
      %97 = vector.load %arg8[%c0_171, %c1_172, %c7_173, %c0_174] : memref<1x18x32x64xbf16, #tpu.memory_space<vmem>>, vector<1x16x16x64xbf16>
      %98 = vector.shape_cast %97 : vector<1x16x16x64xbf16> to vector<256x64xbf16>
      %c0_175 = arith.constant 0 : index
      %c192_176 = arith.constant 192 : index
      %99 = vector.load %arg9[%c0_175, %c192_176] : memref<256x576xbf16, #tpu.memory_space<vmem>>, vector<256x64xbf16>
      tpu.vector_store %arg9[%c0_175, %c192_176], %98 {strides = array<i32>} : memref<256x576xbf16, #tpu.memory_space<vmem>>, vector<256x64xbf16>,
      %c0_177 = arith.constant 0 : index
      %c1_178 = arith.constant 1 : index
      %c8_179 = arith.constant 8 : index
      %c0_180 = arith.constant 0 : index
      %100 = vector.load %arg8[%c0_177, %c1_178, %c8_179, %c0_180] : memref<1x18x32x64xbf16, #tpu.memory_space<vmem>>, vector<1x16x16x64xbf16>
      %101 = vector.shape_cast %100 : vector<1x16x16x64xbf16> to vector<256x64xbf16>
      %c0_181 = arith.constant 0 : index
      %c256_182 = arith.constant 256 : index
      %102 = vector.load %arg9[%c0_181, %c256_182] : memref<256x576xbf16, #tpu.memory_space<vmem>>, vector<256x64xbf16>
      tpu.vector_store %arg9[%c0_181, %c256_182], %101 {strides = array<i32>} : memref<256x576xbf16, #tpu.memory_space<vmem>>, vector<256x64xbf16>,
      %c0_183 = arith.constant 0 : index
      %c1_184 = arith.constant 1 : index
      %c9_185 = arith.constant 9 : index
      %c0_186 = arith.constant 0 : index
      %103 = vector.load %arg8[%c0_183, %c1_184, %c9_185, %c0_186] : memref<1x18x32x64xbf16, #tpu.memory_space<vmem>>, vector<1x16x16x64xbf16>
      %104 = vector.shape_cast %103 : vector<1x16x16x64xbf16> to vector<256x64xbf16>
      %c0_187 = arith.constant 0 : index
      %c320_188 = arith.constant 320 : index
      %105 = vector.load %arg9[%c0_187, %c320_188] : memref<256x576xbf16, #tpu.memory_space<vmem>>, vector<256x64xbf16>
      tpu.vector_store %arg9[%c0_187, %c320_188], %104 {strides = array<i32>} : memref<256x576xbf16, #tpu.memory_space<vmem>>, vector<256x64xbf16>,
      %c0_189 = arith.constant 0 : index
      %c2_190 = arith.constant 2 : index
      %c7_191 = arith.constant 7 : index
      %c0_192 = arith.constant 0 : index
      %106 = vector.load %arg8[%c0_189, %c2_190, %c7_191, %c0_192] : memref<1x18x32x64xbf16, #tpu.memory_space<vmem>>, vector<1x16x16x64xbf16>
      %107 = vector.shape_cast %106 : vector<1x16x16x64xbf16> to vector<256x64xbf16>
      %c0_193 = arith.constant 0 : index
      %c384_194 = arith.constant 384 : index
      %108 = vector.load %arg9[%c0_193, %c384_194] : memref<256x576xbf16, #tpu.memory_space<vmem>>, vector<256x64xbf16>
      tpu.vector_store %arg9[%c0_193, %c384_194], %107 {strides = array<i32>} : memref<256x576xbf16, #tpu.memory_space<vmem>>, vector<256x64xbf16>,
      %c0_195 = arith.constant 0 : index
      %c2_196 = arith.constant 2 : index
      %c8_197 = arith.constant 8 : index
      %c0_198 = arith.constant 0 : index
      %109 = vector.load %arg8[%c0_195, %c2_196, %c8_197, %c0_198] : memref<1x18x32x64xbf16, #tpu.memory_space<vmem>>, vector<1x16x16x64xbf16>
      %110 = vector.shape_cast %109 : vector<1x16x16x64xbf16> to vector<256x64xbf16>
      %c0_199 = arith.constant 0 : index
      %c448_200 = arith.constant 448 : index
      %111 = vector.load %arg9[%c0_199, %c448_200] : memref<256x576xbf16, #tpu.memory_space<vmem>>, vector<256x64xbf16>
      tpu.vector_store %arg9[%c0_199, %c448_200], %110 {strides = array<i32>} : memref<256x576xbf16, #tpu.memory_space<vmem>>, vector<256x64xbf16>,
      %c0_201 = arith.constant 0 : index
      %c2_202 = arith.constant 2 : index
      %c9_203 = arith.constant 9 : index
      %c0_204 = arith.constant 0 : index
      %112 = vector.load %arg8[%c0_201, %c2_202, %c9_203, %c0_204] : memref<1x18x32x64xbf16, #tpu.memory_space<vmem>>, vector<1x16x16x64xbf16>
      %113 = vector.shape_cast %112 : vector<1x16x16x64xbf16> to vector<256x64xbf16>
      %c0_205 = arith.constant 0 : index
      %c512_206 = arith.constant 512 : index
      %114 = vector.load %arg9[%c0_205, %c512_206] : memref<256x576xbf16, #tpu.memory_space<vmem>>, vector<256x64xbf16>
      tpu.vector_store %arg9[%c0_205, %c512_206], %113 {strides = array<i32>} : memref<256x576xbf16, #tpu.memory_space<vmem>>, vector<256x64xbf16>,
      %c0_207 = arith.constant 0 : index
      %c0_208 = arith.constant 0 : index
      %115 = vector.load %arg9[%c0_207, %c0_208] : memref<256x576xbf16, #tpu.memory_space<vmem>>, vector<256x576xbf16>
      %116 = arith.index_cast %arg10 : i32 to index
      %c0_209 = arith.constant 0 : index
      %c0_210 = arith.constant 0 : index
      %117 = vector.load %arg3[%116, %c0_209, %c0_210] : memref<3x576x64xbf16, #tpu.memory_space<vmem>>, vector<1x576x64xbf16>
      %118 = vector.shape_cast %117 : vector<1x576x64xbf16> to vector<576x64xbf16>
      %cst_211 = arith.constant dense<0.000000e+00> : vector<256x64xf32>
      %119 = tpu.matmul %115, %118, %cst_211 {dimension_numbers = #tpu.dot_dimension_numbers<[1], [0], [0], [1], [0, 0, 1, 1], [], []>} : vector<256x576xbf16>, vector<576x64xbf16>, vector<256x64xf32> -> vector<256x64xf32>
      %120 = arith.index_cast %arg10 : i32 to index
      %c0_212 = arith.constant 0 : index
      %c0_213 = arith.constant 0 : index
      %121 = vector.load %arg4[%120, %c0_212, %c0_213] : memref<3x1x64xf32, #tpu.memory_space<vmem>>, vector<1x1x64xf32>
      %122 = vector.shape_cast %121 : vector<1x1x64xf32> to vector<1x64xf32>
      %123 = vector.broadcast %122 : vector<1x64xf32> to vector<256x64xf32>
      %124 = arith.addf %119, %123 : vector<256x64xf32>
      %cst_214 = arith.constant 0.000000e+00 : f32
      %125 = vector.broadcast %cst_214 : f32 to vector<256x64xf32>
      %126 = arith.maximumf %124, %125 : vector<256x64xf32>
      %127 = arith.truncf %126 : vector<256x64xf32> to vector<256x64xbf16>
      %128 = vector.shape_cast %127 : vector<256x64xbf16> to vector<1x16x16x64xbf16>
      %c0_215 = arith.constant 0 : index
      %c1_216 = arith.constant 1 : index
      %c8_217 = arith.constant 8 : index
      %c0_218 = arith.constant 0 : index
      %129 = vector.load %arg8[%c0_215, %c1_216, %c8_217, %c0_218] : memref<1x18x32x64xbf16, #tpu.memory_space<vmem>>, vector<1x16x16x64xbf16>
      tpu.vector_store %arg8[%c0_215, %c1_216, %c8_217, %c0_218], %128 {strides = array<i32>} : memref<1x18x32x64xbf16, #tpu.memory_space<vmem>>, vector<1x16x16x64xbf16>,
    }
    %c3_i32_97 = arith.constant 3 : i32
    %c0_98 = arith.constant 0 : index
    %c0_99 = arith.constant 0 : index
    %c7_100 = arith.constant 7 : index
    %c0_101 = arith.constant 0 : index
    %55 = vector.load %arg8[%c0_98, %c0_99, %c7_100, %c0_101] : memref<1x18x32x64xbf16, #tpu.memory_space<vmem>>, vector<1x16x16x64xbf16>
    %56 = vector.shape_cast %55 : vector<1x16x16x64xbf16> to vector<256x64xbf16>
    %c0_102 = arith.constant 0 : index
    %c0_103 = arith.constant 0 : index
    %57 = vector.load %arg9[%c0_102, %c0_103] : memref<256x576xbf16, #tpu.memory_space<vmem>>, vector<256x64xbf16>
    tpu.vector_store %arg9[%c0_102, %c0_103], %56 {strides = array<i32>} : memref<256x576xbf16, #tpu.memory_space<vmem>>, vector<256x64xbf16>,
    %c0_104 = arith.constant 0 : index
    %c0_105 = arith.constant 0 : index
    %c8_106 = arith.constant 8 : index
    %c0_107 = arith.constant 0 : index
    %58 = vector.load %arg8[%c0_104, %c0_105, %c8_106, %c0_107] : memref<1x18x32x64xbf16, #tpu.memory_space<vmem>>, vector<1x16x16x64xbf16>
    %59 = vector.shape_cast %58 : vector<1x16x16x64xbf16> to vector<256x64xbf16>
    %c0_108 = arith.constant 0 : index
    %c64 = arith.constant 64 : index
    %60 = vector.load %arg9[%c0_108, %c64] : memref<256x576xbf16, #tpu.memory_space<vmem>>, vector<256x64xbf16>
    tpu.vector_store %arg9[%c0_108, %c64], %59 {strides = array<i32>} : memref<256x576xbf16, #tpu.memory_space<vmem>>, vector<256x64xbf16>,
    %c0_109 = arith.constant 0 : index
    %c0_110 = arith.constant 0 : index
    %c9_111 = arith.constant 9 : index
    %c0_112 = arith.constant 0 : index
    %61 = vector.load %arg8[%c0_109, %c0_110, %c9_111, %c0_112] : memref<1x18x32x64xbf16, #tpu.memory_space<vmem>>, vector<1x16x16x64xbf16>
    %62 = vector.shape_cast %61 : vector<1x16x16x64xbf16> to vector<256x64xbf16>
    %c0_113 = arith.constant 0 : index
    %c128 = arith.constant 128 : index
    %63 = vector.load %arg9[%c0_113, %c128] : memref<256x576xbf16, #tpu.memory_space<vmem>>, vector<256x64xbf16>
    tpu.vector_store %arg9[%c0_113, %c128], %62 {strides = array<i32>} : memref<256x576xbf16, #tpu.memory_space<vmem>>, vector<256x64xbf16>,
    %c0_114 = arith.constant 0 : index
    %c1_115 = arith.constant 1 : index
    %c7_116 = arith.constant 7 : index
    %c0_117 = arith.constant 0 : index
    %64 = vector.load %arg8[%c0_114, %c1_115, %c7_116, %c0_117] : memref<1x18x32x64xbf16, #tpu.memory_space<vmem>>, vector<1x16x16x64xbf16>
    %65 = vector.shape_cast %64 : vector<1x16x16x64xbf16> to vector<256x64xbf16>
    %c0_118 = arith.constant 0 : index
    %c192 = arith.constant 192 : index
    %66 = vector.load %arg9[%c0_118, %c192] : memref<256x576xbf16, #tpu.memory_space<vmem>>, vector<256x64xbf16>
    tpu.vector_store %arg9[%c0_118, %c192], %65 {strides = array<i32>} : memref<256x576xbf16, #tpu.memory_space<vmem>>, vector<256x64xbf16>,
    %c0_119 = arith.constant 0 : index
    %c1_120 = arith.constant 1 : index
    %c8_121 = arith.constant 8 : index
    %c0_122 = arith.constant 0 : index
    %67 = vector.load %arg8[%c0_119, %c1_120, %c8_121, %c0_122] : memref<1x18x32x64xbf16, #tpu.memory_space<vmem>>, vector<1x16x16x64xbf16>
    %68 = vector.shape_cast %67 : vector<1x16x16x64xbf16> to vector<256x64xbf16>
    %c0_123 = arith.constant 0 : index
    %c256 = arith.constant 256 : index
    %69 = vector.load %arg9[%c0_123, %c256] : memref<256x576xbf16, #tpu.memory_space<vmem>>, vector<256x64xbf16>
    tpu.vector_store %arg9[%c0_123, %c256], %68 {strides = array<i32>} : memref<256x576xbf16, #tpu.memory_space<vmem>>, vector<256x64xbf16>,
    %c0_124 = arith.constant 0 : index
    %c1_125 = arith.constant 1 : index
    %c9_126 = arith.constant 9 : index
    %c0_127 = arith.constant 0 : index
    %70 = vector.load %arg8[%c0_124, %c1_125, %c9_126, %c0_127] : memref<1x18x32x64xbf16, #tpu.memory_space<vmem>>, vector<1x16x16x64xbf16>
    %71 = vector.shape_cast %70 : vector<1x16x16x64xbf16> to vector<256x64xbf16>
    %c0_128 = arith.constant 0 : index
    %c320 = arith.constant 320 : index
    %72 = vector.load %arg9[%c0_128, %c320] : memref<256x576xbf16, #tpu.memory_space<vmem>>, vector<256x64xbf16>
    tpu.vector_store %arg9[%c0_128, %c320], %71 {strides = array<i32>} : memref<256x576xbf16, #tpu.memory_space<vmem>>, vector<256x64xbf16>,
    %c0_129 = arith.constant 0 : index
    %c2_130 = arith.constant 2 : index
    %c7_131 = arith.constant 7 : index
    %c0_132 = arith.constant 0 : index
    %73 = vector.load %arg8[%c0_129, %c2_130, %c7_131, %c0_132] : memref<1x18x32x64xbf16, #tpu.memory_space<vmem>>, vector<1x16x16x64xbf16>
    %74 = vector.shape_cast %73 : vector<1x16x16x64xbf16> to vector<256x64xbf16>
    %c0_133 = arith.constant 0 : index
    %c384 = arith.constant 384 : index
    %75 = vector.load %arg9[%c0_133, %c384] : memref<256x576xbf16, #tpu.memory_space<vmem>>, vector<256x64xbf16>
    tpu.vector_store %arg9[%c0_133, %c384], %74 {strides = array<i32>} : memref<256x576xbf16, #tpu.memory_space<vmem>>, vector<256x64xbf16>,
    %c0_134 = arith.constant 0 : index
    %c2_135 = arith.constant 2 : index
    %c8_136 = arith.constant 8 : index
    %c0_137 = arith.constant 0 : index
    %76 = vector.load %arg8[%c0_134, %c2_135, %c8_136, %c0_137] : memref<1x18x32x64xbf16, #tpu.memory_space<vmem>>, vector<1x16x16x64xbf16>
    %77 = vector.shape_cast %76 : vector<1x16x16x64xbf16> to vector<256x64xbf16>
    %c0_138 = arith.constant 0 : index
    %c448 = arith.constant 448 : index
    %78 = vector.load %arg9[%c0_138, %c448] : memref<256x576xbf16, #tpu.memory_space<vmem>>, vector<256x64xbf16>
    tpu.vector_store %arg9[%c0_138, %c448], %77 {strides = array<i32>} : memref<256x576xbf16, #tpu.memory_space<vmem>>, vector<256x64xbf16>,
    %c0_139 = arith.constant 0 : index
    %c2_140 = arith.constant 2 : index
    %c9_141 = arith.constant 9 : index
    %c0_142 = arith.constant 0 : index
    %79 = vector.load %arg8[%c0_139, %c2_140, %c9_141, %c0_142] : memref<1x18x32x64xbf16, #tpu.memory_space<vmem>>, vector<1x16x16x64xbf16>
    %80 = vector.shape_cast %79 : vector<1x16x16x64xbf16> to vector<256x64xbf16>
    %c0_143 = arith.constant 0 : index
    %c512 = arith.constant 512 : index
    %81 = vector.load %arg9[%c0_143, %c512] : memref<256x576xbf16, #tpu.memory_space<vmem>>, vector<256x64xbf16>
    tpu.vector_store %arg9[%c0_143, %c512], %80 {strides = array<i32>} : memref<256x576xbf16, #tpu.memory_space<vmem>>, vector<256x64xbf16>,
    %c0_144 = arith.constant 0 : index
    %c0_145 = arith.constant 0 : index
    %82 = vector.load %arg9[%c0_144, %c0_145] : memref<256x576xbf16, #tpu.memory_space<vmem>>, vector<256x576xbf16>
    %c0_146 = arith.constant 0 : index
    %c0_147 = arith.constant 0 : index
    %83 = vector.load %arg5[%c0_146, %c0_147] : memref<576x4xbf16, #tpu.memory_space<vmem>>, vector<576x4xbf16>
    %cst_148 = arith.constant dense<0.000000e+00> : vector<256x4xf32>
    %84 = tpu.matmul %82, %83, %cst_148 {dimension_numbers = #tpu.dot_dimension_numbers<[1], [0], [0], [1], [0, 0, 1, 1], [], []>} : vector<256x576xbf16>, vector<576x4xbf16>, vector<256x4xf32> -> vector<256x4xf32>
    %85 = vector.shape_cast %84 : vector<256x4xf32> to vector<1x16x16x4xf32>
    %86 = arith.subf %16, %85 : vector<1x16x16x4xf32>
    %c0_149 = arith.constant 0 : index
    %c0_150 = arith.constant 0 : index
    %c0_151 = arith.constant 0 : index
    %c0_152 = arith.constant 0 : index
    %87 = vector.load %arg6[%c0_149, %c0_150, %c0_151, %c0_152] : memref<1x16x16x4xf32, #tpu.memory_space<vmem>>, vector<1x16x16x4xf32>
    tpu.vector_store %arg6[%c0_149, %c0_150, %c0_151, %c0_152], %86 {strides = array<i32>} : memref<1x16x16x4xf32, #tpu.memory_space<vmem>>, vector<1x16x16x4xf32>,
    return
  }
  func.func @transform_0(%arg0: i32) -> (i32, i32, i32, i32) {
    %c0_i32 = arith.constant 0 : i32
    %c0_i32_0 = arith.constant 0 : i32
    %c0_i32_1 = arith.constant 0 : i32
    %c0_i32_2 = arith.constant 0 : i32
    return %arg0, %c0_i32, %c0_i32_0, %c0_i32_1 : i32, i32, i32, i32
  }
  func.func @transform_1(%arg0: i32) -> (i32, i32) {
    %c0_i32 = arith.constant 0 : i32
    %c0_i32_0 = arith.constant 0 : i32
    %c0_i32_1 = arith.constant 0 : i32
    return %c0_i32, %c0_i32_0 : i32, i32
  }
  func.func @transform_2(%arg0: i32) -> (i32, i32, i32) {
    %c0_i32 = arith.constant 0 : i32
    %c0_i32_0 = arith.constant 0 : i32
    %c0_i32_1 = arith.constant 0 : i32
    %c0_i32_2 = arith.constant 0 : i32
    return %c0_i32, %c0_i32_0, %c0_i32_1 : i32, i32, i32
  }
  func.func @transform_3(%arg0: i32) -> (i32, i32, i32) {
    %c0_i32 = arith.constant 0 : i32
    %c0_i32_0 = arith.constant 0 : i32
    %c0_i32_1 = arith.constant 0 : i32
    %c0_i32_2 = arith.constant 0 : i32
    return %c0_i32, %c0_i32_0, %c0_i32_1 : i32, i32, i32
  }
  func.func @transform_4(%arg0: i32) -> (i32, i32) {
    %c0_i32 = arith.constant 0 : i32
    %c0_i32_0 = arith.constant 0 : i32
    %c0_i32_1 = arith.constant 0 : i32
    return %c0_i32, %c0_i32_0 : i32, i32
  }
  func.func @transform_5(%arg0: i32) -> (i32, i32, i32, i32) {
    %c0_i32 = arith.constant 0 : i32
    %c0_i32_0 = arith.constant 0 : i32
    %c0_i32_1 = arith.constant 0 : i32
    %c0_i32_2 = arith.constant 0 : i32
    return %arg0, %c0_i32, %c0_i32_0, %c0_i32_1 : i32, i32, i32, i32
  }
}

</mosaic_0001>

<llo_original>
// kernel: dncnn_forward.1
$region0: #{dncnn_forward.1}
  #allocation0 [shape = 'u32[]', space=smem, size = 0x4, offset = 0x4, fixed_abs, tag = 'smem constant byte address 0x4 - core index']
  #allocation1 [shape = 'u32[144,128]{1,0:T(1,128)}', space=vmem, size = 0x12000, scoped, tag = 'internal scratch']
  #allocation2 [shape = 'bf16[1,18,32,4]{3,2,1,0:T(16,128)(2,1)}', space=vmem, size = 0x24000, scoped, tag = 'scratch operand']
  #allocation3 [shape = 'bf16[1,18,32,64]{3,2,1,0:T(16,128)(2,1)}', space=vmem, size = 0x24000, scoped, tag = 'scratch operand']
  #allocation4 [shape = 'bf16[256,576]{1,0:T(16,128)(2,1)}', space=vmem, size = 0x50000, scoped, tag = 'scratch operand']
  %s0 = inlined_call_operand.vmem [shape: f32[2,16,16,4], index: 0, kind: input, shape index: {}]
  %s1 = inlined_call_operand.vmem [shape: bf16[36,64], index: 1, kind: input, shape index: {}]
  %s2 = inlined_call_operand.vmem [shape: bf16[3,576,64], index: 2, kind: input, shape index: {}]
  %s3 = inlined_call_operand.vmem [shape: f32[3,1,64], index: 3, kind: input, shape index: {}]
  %s4 = inlined_call_operand.vmem [shape: bf16[576,4], index: 4, kind: input, shape index: {}]
  %s5 = inlined_call_operand.vmem [shape: f32[2,16,16,4], index: 5, kind: output, shape index: {}]
  %s6 = sld [smem:[#allocation0]]
  $region60: #{dncnn_forward.1} parent=0
    _
  %s8 = ssub.s32 1, %s6
  %s9 = scalar_select 0, %s8, %s6
  loop: start=0, step=1, limit=4
  $region2: #{dncnn_forward.1} parent=0 // loop_pre_header
    _
  $region3: #{dncnn_forward.1} parent=0 // loop_header
    %s11 = sphi 0, %s15
    %p12 = scmp.ge.s32.totalorder %s11, 4
    %s21 = sphi 0, %s23
    %s24 = sphi 0, %s21
    %s25 = sphi 0, %s24
    %s41 = sphi 0, %s25
    %s45 = sphi 0, %s45
    %s47 = sphi 0, %s45
    %s48 = sphi 0, %s47
    %s62 = sphi 0, %s48
    %s66 = sphi 0, %s66
    %s68 = sphi 0, %s66
    %s69 = sphi 0, %s68
    %s83 = sphi 0, %s69
    %s87 = sphi 0, %s87
    %s89 = sphi 0, %s87
    %s90 = sphi 0, %s89
    %s104 = sphi 0, %s90
    %s108 = sphi 0, %s108
    %s110 = sphi 0, %s108
    %s111 = sphi 0, %s110
    %s125 = sphi 0, %s111
    %s131 = sphi 0, %s133
    %s134 = sphi 0, %s131
    %s135 = sphi 0, %s134
    %s151 = sphi 0, %s135
  $region4: #{dncnn_forward.1} parent=0 // loop_header_branch
    %14 = sbr.rel (%p12) target = $region8
  $region5: #{dncnn_forward.1} parent=0 // loop_body
    %s16 = ssub.s32 %s11, 1
    %s17 = ssub.s32 %s11, 2
    %s18 = sadd.s32 %s11, 1
    %s19 = ssub.s32 %s11, %s18
    %p20 = scmp.eq.s32.totalorder %s19, 0
    %s22 = sadd.s32 %s21, 1
    %s23 = scalar_select %p20, %s21, %s22
    %p26 = pneg %p20
    %p27 = scmp.eq.s32.totalorder %s11, 1
    %p28 = por %p26, %p27
    %p29 = scmp.ne.s32.totalorder %s21, %s24
    %p30 = scmp.eq.s32.totalorder %s11, 0
    %p31 = por %p29, %p30
    %p32 = scmp.ne.s32.totalorder %s21, %s24
    %p33 = scmp.eq.s32.totalorder %s16, 1
    %p34 = por %p32, %p33
    %p35 = scmp.ne.s32.totalorder %s24, %s25
    %p36 = scmp.eq.s32.totalorder %s16, 0
    %p37 = por %p35, %p36
    %p38 = scmp.ne.s32.totalorder %s24, %s25
    %p39 = scmp.eq.s32.totalorder %s17, 1
    %p40 = por %p38, %p39
    %p42 = scmp.ne.s32.totalorder %s25, %s41
    %p43 = scmp.eq.s32.totalorder %s17, 0
    %p44 = por %p42, %p43
    %s46 = sadd.s32 %s45, 1
    %p49 = scmp.eq.s32.totalorder %s11, 1
    %p50 = scmp.ne.s32.totalorder %s45, %s47
    %p51 = scmp.eq.s32.totalorder %s11, 0
    %p52 = por %p50, %p51
    %p53 = scmp.ne.s32.totalorder %s45, %s47
    %p54 = scmp.eq.s32.totalorder %s16, 1
    %p55 = por %p53, %p54
    %p56 = scmp.ne.s32.totalorder %s47, %s48
    %p57 = scmp.eq.s32.totalorder %s16, 0
    %p58 = por %p56, %p57
    %p59 = scmp.ne.s32.totalorder %s47, %s48
    %p60 = scmp.eq.s32.totalorder %s17, 1
    %p61 = por %p59, %p60
    %p63 = scmp.ne.s32.totalorder %s48, %s62
    %p64 = scmp.eq.s32.totalorder %s17, 0
    %p65 = por %p63, %p64
    %s67 = sadd.s32 %s66, 1
    %p70 = scmp.eq.s32.totalorder %s11, 1
    %p71 = scmp.ne.s32.totalorder %s66, %s68
    %p72 = scmp.eq.s32.totalorder %s11, 0
    %p73 = por %p71, %p72
    %p74 = scmp.ne.s32.totalorder %s66, %s68
    %p75 = scmp.eq.s32.totalorder %s16, 1
    %p76 = por %p74, %p75
    %p77 = scmp.ne.s32.totalorder %s68, %s69
    %p78 = scmp.eq.s32.totalorder %s16, 0
    %p79 = por %p77, %p78
    %p80 = scmp.ne.s32.totalorder %s68, %s69
    %p81 = scmp.eq.s32.totalorder %s17, 1
    %p82 = por %p80, %p81
    %p84 = scmp.ne.s32.totalorder %s69, %s83
    %p85 = scmp.eq.s32.totalorder %s17, 0
    %p86 = por %p84, %p85
    %s88 = sadd.s32 %s87, 1
    %p91 = scmp.eq.s32.totalorder %s11, 1
    %p92 = scmp.ne.s32.totalorder %s87, %s89
    %p93 = scmp.eq.s32.totalorder %s11, 0
    %p94 = por %p92, %p93
    %p95 = scmp.ne.s32.totalorder %s87, %s89
    %p96 = scmp.eq.s32.totalorder %s16, 1
    %p97 = por %p95, %p96
    %p98 = scmp.ne.s32.totalorder %s89, %s90
    %p99 = scmp.eq.s32.totalorder %s16, 0
    %p100 = por %p98, %p99
    %p101 = scmp.ne.s32.totalorder %s89, %s90
    %p102 = scmp.eq.s32.totalorder %s17, 1
    %p103 = por %p101, %p102
    %p105 = scmp.ne.s32.totalorder %s90, %s104
    %p106 = scmp.eq.s32.totalorder %s17, 0
    %p107 = por %p105, %p106
    %s109 = sadd.s32 %s108, 1
    %p112 = scmp.eq.s32.totalorder %s11, 1
    %p113 = scmp.ne.s32.totalorder %s108, %s110
    %p114 = scmp.eq.s32.totalorder %s11, 0
    %p115 = por %p113, %p114
    %p116 = scmp.ne.s32.totalorder %s108, %s110
    %p117 = scmp.eq.s32.totalorder %s16, 1
    %p118 = por %p116, %p117
    %p119 = scmp.ne.s32.totalorder %s110, %s111
    %p120 = scmp.eq.s32.totalorder %s16, 0
    %p121 = por %p119, %p120
    %p122 = scmp.ne.s32.totalorder %s110, %s111
    %p123 = scmp.eq.s32.totalorder %s17, 1
    %p124 = por %p122, %p123
    %p126 = scmp.ne.s32.totalorder %s111, %s125
    %p127 = scmp.eq.s32.totalorder %s17, 0
    %p128 = por %p126, %p127
    %s129 = ssub.s32 %s11, %s18
    %p130 = scmp.eq.s32.totalorder %s129, 0
    %s132 = sadd.s32 %s131, 1
    %s133 = scalar_select %p130, %s131, %s132
    %p136 = pneg %p130
    %p137 = scmp.eq.s32.totalorder %s11, 1
    %p138 = por %p136, %p137
    %p139 = scmp.ne.s32.totalorder %s131, %s134
    %p140 = scmp.eq.s32.totalorder %s11, 0
    %p141 = por %p139, %p140
    %p142 = scmp.ne.s32.totalorder %s131, %s134
    %p143 = scmp.eq.s32.totalorder %s16, 1
    %p144 = por %p142, %p143
    %p145 = scmp.ne.s32.totalorder %s134, %s135
    %p146 = scmp.eq.s32.totalorder %s16, 0
    %p147 = por %p145, %p146
    %p148 = scmp.ne.s32.totalorder %s134, %s135
    %p149 = scmp.eq.s32.totalorder %s17, 1
    %p150 = por %p148, %p149
    %p152 = scmp.ne.s32.totalorder %s135, %s151
    %p153 = scmp.eq.s32.totalorder %s17, 0
    %p154 = por %p152, %p153
    %p155 = scmp.le.s32.totalorder 1, %s11
    %p156 = scmp.lt.s32.totalorder %s11, 3
    %p157 = pnand %p155, %p156
    %p158 = pneg %p157
    // Predicated region
    $region9: #{dncnn_forward.1} parent=5 // pred_check
      _
    $region10: #{dncnn_forward.1} parent=5 // pred_check_branch
      %160 = sbr.rel (%p157) target = $region12
    $region11: #{dncnn_forward.1} parent=5 // pred_region
      %s161 = ssub.s32 %s11, 1
      // Predicated region
      $region13: #{dncnn_forward.1} parent=11 // pred_check
        %p162 = pneg %p58
      $region14: #{dncnn_forward.1} parent=11 // pred_check_branch
        %164 = sbr.rel (%p162) target = $region16
      $region15: #{dncnn_forward.1} parent=11 // pred_region
        _
      $region16: #{dncnn_forward.1} parent=11 // pred_fallthru
        _
      // Predicated region
      $region17: #{dncnn_forward.1} parent=11 // pred_check
        %p165 = pneg %p79
      $region18: #{dncnn_forward.1} parent=11 // pred_check_branch
        %167 = sbr.rel (%p165) target = $region20
      $region19: #{dncnn_forward.1} parent=11 // pred_region
        _
      $region20: #{dncnn_forward.1} parent=11 // pred_fallthru
        _
      // Predicated region
      $region21: #{dncnn_forward.1} parent=11 // pred_check
        %p168 = pneg %p100
      $region22: #{dncnn_forward.1} parent=11 // pred_check_branch
        %170 = sbr.rel (%p168) target = $region24
      $region23: #{dncnn_forward.1} parent=11 // pred_region
        _
      $region24: #{dncnn_forward.1} parent=11 // pred_fallthru
        _
      // Predicated region
      $region25: #{dncnn_forward.1} parent=11 // pred_check
        %p171 = pneg %p121
      $region26: #{dncnn_forward.1} parent=11 // pred_check_branch
        %173 = sbr.rel (%p171) target = $region28
      $region27: #{dncnn_forward.1} parent=11 // pred_region
        _
      $region28: #{dncnn_forward.1} parent=11 // pred_fallthru
        _
    $region12: #{dncnn_forward.1} parent=5 // pred_fallthru
      _
    %p174 = scmp.lt.s32.totalorder %s11, 2
    // Predicated region
    $region29: #{dncnn_forward.1} parent=5 // pred_check
      %p175 = pneg %p174
    $region30: #{dncnn_forward.1} parent=5 // pred_check_branch
      %177 = sbr.rel (%p175) target = $region32
    $region31: #{dncnn_forward.1} parent=5 // pred_region
      // Predicated region
      $region33: #{dncnn_forward.1} parent=31 // pred_check
        %p178 = pneg %p31
      $region34: #{dncnn_forward.1} parent=31 // pred_check_branch
        %180 = sbr.rel (%p178) target = $region36
      $region35: #{dncnn_forward.1} parent=31 // pred_region
        %p181 = scmp.lt.s32.totalorder %s11, 1
        %s182 = scalar_select %p181, %s11, 1
        %s183 = smul.addr %s182, 32
        %s184 = smul.addr %s183, 8
        %s185 = scalar_lea.vmem %s0, %s184
      $region36: #{dncnn_forward.1} parent=31 // pred_fallthru
        _
    $region32: #{dncnn_forward.1} parent=5 // pred_fallthru
      _
    %p186 = scmp.le.s32.totalorder 1, %s11
    %p187 = scmp.lt.s32.totalorder %s11, 3
    %p188 = pnand %p186, %p187
    %p189 = pneg %p188
    // Predicated region
    $region37: #{dncnn_forward.1} parent=5 // pred_check
      _
    $region38: #{dncnn_forward.1} parent=5 // pred_check_branch
      %191 = sbr.rel (%p188) target = $region40
    $region39: #{dncnn_forward.1} parent=5 // pred_region
      %s192 = ssub.s32 %s11, 1
      %p193 = scmp.lt.s32.totalorder %s16, 1
      %s194 = scalar_select %p193, %s16, 1
      %s195 = smul.addr %s194, 32
      %s196 = smul.addr %s195, 8
      %s197 = scalar_lea.vmem %s0, %s196
      %p198 = pneg %p37
      %p199 = pneg %p34
      %p200 = pneg %p58
      %p201 = pneg %p55
      %p202 = pneg %p79
      %p203 = pneg %p76
      %p204 = pneg %p100
      %p205 = pneg %p97
      %p206 = pneg %p121
      %p207 = pneg %p118
      %p208 = pneg %p147
      %p209 = pneg %p144
      %p210 = scmp.lt.s32.totalorder %s16, 1
      %s211 = scalar_select %p210, %s16, 1
      %s212 = smul.addr %s211, 32
      %s213 = smul.addr %s212, 8
      %s214 = scalar_lea.vmem %s5, %s213
      %p215 = scmp.lt.s32.totalorder %s16, 1
      %s216 = scalar_select %p215, %s16, 1
      %s217 = smul.addr %s216, 32
      %s218 = smul.addr %s217, 8
      %s219 = scalar_lea.vmem %s0, %s218
      %p220 = scmp.lt.s32.totalorder %s16, 1
      %s221 = scalar_select %p220, %s16, 1
      %s222 = smul.addr %s221, 32
      %s223 = smul.addr %s222, 8
      %s224 = scalar_lea.vmem %s5, %s223
      %vm226 = vcmask 27648
      %227 = vst.msk [vmem:[#allocation2] sm:$0xf] %vm226, 0
      %228 = vst.msk [vmem:[#allocation2 + $0x10] sm:$0xf] %vm226, 0
      %229 = vst.msk [vmem:[#allocation2 + $0x20] sm:$0xf] %vm226, 0
      %230 = vst.msk [vmem:[#allocation2 + $0x30] sm:$0xf] %vm226, 0
      %231 = vst.msk [vmem:[#allocation2 + $0x40] sm:$0xf] %vm226, 0
      %232 = vst.msk [vmem:[#allocation2 + $0x50] sm:$0xf] %vm226, 0
      %233 = vst.msk [vmem:[#allocation2 + $0x60] sm:$0xf] %vm226, 0
      %234 = vst.msk [vmem:[#allocation2 + $0x70] sm:$0xf] %vm226, 0
      %235 = vst.msk [vmem:[#allocation2 + $0x80] sm:$0xf] %vm226, 0
      %236 = vst.msk [vmem:[#allocation2 + $0x90] sm:$0xf] %vm226, 0
      %237 = vst.msk [vmem:[#allocation2 + $0xa0] sm:$0xf] %vm226, 0
      %238 = vst.msk [vmem:[#allocation2 + $0xb0] sm:$0xf] %vm226, 0
      %239 = vst.msk [vmem:[#allocation2 + $0xc0] sm:$0xf] %vm226, 0
      %240 = vst.msk [vmem:[#allocation2 + $0xd0] sm:$0xf] %vm226, 0
      %241 = vst.msk [vmem:[#allocation2 + $0xe0] sm:$0xf] %vm226, 0
      %242 = vst.msk [vmem:[#allocation2 + $0xf0] sm:$0xf] %vm226, 0
      %243 = vst.msk [vmem:[#allocation2 + $0x100] sm:$0xf] %vm226, 0
      %244 = vst.msk [vmem:[#allocation2 + $0x110] sm:$0xf] %vm226, 0
      %vm245 = vcmask 31748
      %246 = vst.msk [vmem:[#allocation2 + $0x8] sm:$0xf0] %vm245, 0
      %247 = vst.msk [vmem:[#allocation2 + $0x18] sm:$0xf0] %vm245, 0
      %248 = vst.msk [vmem:[#allocation2 + $0x28] sm:$0xf0] %vm245, 0
      %249 = vst.msk [vmem:[#allocation2 + $0x38] sm:$0xf0] %vm245, 0
      %250 = vst.msk [vmem:[#allocation2 + $0x48] sm:$0xf0] %vm245, 0
      %251 = vst.msk [vmem:[#allocation2 + $0x58] sm:$0xf0] %vm245, 0
      %252 = vst.msk [vmem:[#allocation2 + $0x68] sm:$0xf0] %vm245, 0
      %253 = vst.msk [vmem:[#allocation2 + $0x78] sm:$0xf0] %vm245, 0
      %254 = vst.msk [vmem:[#allocation2 + $0x88] sm:$0xf0] %vm245, 0
      %255 = vst.msk [vmem:[#allocation2 + $0x98] sm:$0xf0] %vm245, 0
      %256 = vst.msk [vmem:[#allocation2 + $0xa8] sm:$0xf0] %vm245, 0
      %257 = vst.msk [vmem:[#allocation2 + $0xb8] sm:$0xf0] %vm245, 0
      %258 = vst.msk [vmem:[#allocation2 + $0xc8] sm:$0xf0] %vm245, 0
      %259 = vst.msk [vmem:[#allocation2 + $0xd8] sm:$0xf0] %vm245, 0
      %260 = vst.msk [vmem:[#allocation2 + $0xe8] sm:$0xf0] %vm245, 0
      %261 = vst.msk [vmem:[#allocation2 + $0xf8] sm:$0xf0] %vm245, 0
      %262 = vst.msk [vmem:[#allocation2 + $0x108] sm:$0xf0] %vm245, 0
      %263 = vst.msk [vmem:[#allocation2 + $0x118] sm:$0xf0] %vm245, 0
      %264 = vst.msk [vmem:[#allocation2] sm:$0xf0] %vm245, 0
      %265 = vst.msk [vmem:[#allocation2 + $0x8] sm:$0xf] %vm226, 0
      %s266 = scalar_lea.vmem [#allocation2], 272
      %267 = vst.msk [vmem:[%s266] sm:$0xf0] %vm245, 0
      %268 = vst.msk [vmem:[%s266 + $0x8] sm:$0xf] %vm226, 0
      %vm269 = vcmask 519168
      %270 = vst.msk [vmem:[#allocation3] sm:$0xf] %vm269, 0
      %271 = vst.msk [vmem:[#allocation3 + $0x10] sm:$0xf] %vm269, 0
      %272 = vst.msk [vmem:[#allocation3 + $0x20] sm:$0xf] %vm269, 0
      %273 = vst.msk [vmem:[#allocation3 + $0x30] sm:$0xf] %vm269, 0
      %274 = vst.msk [vmem:[#allocation3 + $0x40] sm:$0xf] %vm269, 0
      %275 = vst.msk [vmem:[#allocation3 + $0x50] sm:$0xf] %vm269, 0
      %276 = vst.msk [vmem:[#allocation3 + $0x60] sm:$0xf] %vm269, 0
      %277 = vst.msk [vmem:[#allocation3 + $0x70] sm:$0xf] %vm269, 0
      %278 = vst.msk [vmem:[#allocation3 + $0x80] sm:$0xf] %vm269, 0
      %279 = vst.msk [vmem:[#allocation3 + $0x90] sm:$0xf] %vm269, 0
      %280 = vst.msk [vmem:[#allocation3 + $0xa0] sm:$0xf] %vm269, 0
      %281 = vst.msk [vmem:[#allocation3 + $0xb0] sm:$0xf] %vm269, 0
      %282 = vst.msk [vmem:[#allocation3 + $0xc0] sm:$0xf] %vm269, 0
      %283 = vst.msk [vmem:[#allocation3 + $0xd0] sm:$0xf] %vm269, 0
      %284 = vst.msk [vmem:[#allocation3 + $0xe0] sm:$0xf] %vm269, 0
      %285 = vst.msk [vmem:[#allocation3 + $0xf0] sm:$0xf] %vm269, 0
      %286 = vst.msk [vmem:[#allocation3 + $0x100] sm:$0xf] %vm269, 0
      %287 = vst.msk [vmem:[#allocation3 + $0x110] sm:$0xf] %vm269, 0
      %vm288 = vcmask 523268
      %289 = vst.msk [vmem:[#allocation3 + $0x8] sm:$0xf0] %vm288, 0
      %290 = vst.msk [vmem:[#allocation3 + $0x18] sm:$0xf0] %vm288, 0
      %291 = vst.msk [vmem:[#allocation3 + $0x28] sm:$0xf0] %vm288, 0
      %292 = vst.msk [vmem:[#allocation3 + $0x38] sm:$0xf0] %vm288, 0
      %293 = vst.msk [vmem:[#allocation3 + $0x48] sm:$0xf0] %vm288, 0
      %294 = vst.msk [vmem:[#allocation3 + $0x58] sm:$0xf0] %vm288, 0
      %295 = vst.msk [vmem:[#allocation3 + $0x68] sm:$0xf0] %vm288, 0
      %296 = vst.msk [vmem:[#allocation3 + $0x78] sm:$0xf0] %vm288, 0
      %297 = vst.msk [vmem:[#allocation3 + $0x88] sm:$0xf0] %vm288, 0
      %298 = vst.msk [vmem:[#allocation3 + $0x98] sm:$0xf0] %vm288, 0
      %299 = vst.msk [vmem:[#allocation3 + $0xa8] sm:$0xf0] %vm288, 0
      %300 = vst.msk [vmem:[#allocation3 + $0xb8] sm:$0xf0] %vm288, 0
      %301 = vst.msk [vmem:[#allocation3 + $0xc8] sm:$0xf0] %vm288, 0
      %302 = vst.msk [vmem:[#allocation3 + $0xd8] sm:$0xf0] %vm288, 0
      %303 = vst.msk [vmem:[#allocation3 + $0xe8] sm:$0xf0] %vm288, 0
      %304 = vst.msk [vmem:[#allocation3 + $0xf8] sm:$0xf0] %vm288, 0
      %305 = vst.msk [vmem:[#allocation3 + $0x108] sm:$0xf0] %vm288, 0
      %306 = vst.msk [vmem:[#allocation3 + $0x118] sm:$0xf0] %vm288, 0
      %307 = vst.msk [vmem:[#allocation3] sm:$0xf0] %vm288, 0
      %308 = vst.msk [vmem:[#allocation3 + $0x8] sm:$0xf] %vm269, 0
      %s309 = scalar_lea.vmem [#allocation3], 272
      %310 = vst.msk [vmem:[%s309] sm:$0xf0] %vm288, 0
      %311 = vst.msk [vmem:[%s309 + $0x8] sm:$0xf] %vm269, 0
      %v312 = vld [vmem:[%s219] sm:$0xff]
      %v313 = vld [vmem:[%s219 + $0x8] sm:$0xff]
      %v314 = vld [vmem:[%s219 + $0x10] sm:$0xff]
      %v315 = vld [vmem:[%s219 + $0x18] sm:$0xff]
      %v316 = vld [vmem:[%s219 + $0x20] sm:$0xff]
      %v317 = vld [vmem:[%s219 + $0x28] sm:$0xff]
      %v318 = vld [vmem:[%s219 + $0x30] sm:$0xff]
      %v319 = vld [vmem:[%s219 + $0x38] sm:$0xff]
      %v320 = vld [vmem:[%s219 + $0x40] sm:$0xff]
      %v321 = vld [vmem:[%s219 + $0x48] sm:$0xff]
      %v322 = vld [vmem:[%s219 + $0x50] sm:$0xff]
      %v323 = vld [vmem:[%s219 + $0x58] sm:$0xff]
      %v324 = vld [vmem:[%s219 + $0x60] sm:$0xff]
      %v325 = vld [vmem:[%s219 + $0x68] sm:$0xff]
      %v326 = vld [vmem:[%s219 + $0x70] sm:$0xff]
      %v327 = vld [vmem:[%s219 + $0x78] sm:$0xff]
      %v328 = vld [vmem:[%s219 + $0x80] sm:$0xff]
      %v329 = vld [vmem:[%s219 + $0x88] sm:$0xff]
      %v330 = vld [vmem:[%s219 + $0x90] sm:$0xff]
      %v331 = vld [vmem:[%s219 + $0x98] sm:$0xff]
      %v332 = vld [vmem:[%s219 + $0xa0] sm:$0xff]
      %v333 = vld [vmem:[%s219 + $0xa8] sm:$0xff]
      %v334 = vld [vmem:[%s219 + $0xb0] sm:$0xff]
      %v335 = vld [vmem:[%s219 + $0xb8] sm:$0xff]
      %v336 = vld [vmem:[%s219 + $0xc0] sm:$0xff]
      %v337 = vld [vmem:[%s219 + $0xc8] sm:$0xff]
      %v338 = vld [vmem:[%s219 + $0xd0] sm:$0xff]
      %v339 = vld [vmem:[%s219 + $0xd8] sm:$0xff]
      %v340 = vld [vmem:[%s219 + $0xe0] sm:$0xff]
      %v341 = vld [vmem:[%s219 + $0xe8] sm:$0xff]
      %v342 = vld [vmem:[%s219 + $0xf0] sm:$0xff]
      %v343 = vld [vmem:[%s219 + $0xf8] sm:$0xff]
      %v344 = vpack.c.bf16 %v313, %v312
      %v345 = vpack.c.bf16 %v315, %v314
      %v346 = vpack.c.bf16 %v317, %v316
      %v347 = vpack.c.bf16 %v319, %v318
      %v348 = vpack.c.bf16 %v321, %v320
      %v349 = vpack.c.bf16 %v323, %v322
      %v350 = vpack.c.bf16 %v325, %v324
      %v351 = vpack.c.bf16 %v327, %v326
      %v352 = vpack.c.bf16 %v329, %v328
      %v353 = vpack.c.bf16 %v331, %v330
      %v354 = vpack.c.bf16 %v333, %v332
      %v355 = vpack.c.bf16 %v335, %v334
      %v356 = vpack.c.bf16 %v337, %v336
      %v357 = vpack.c.bf16 %v339, %v338
      %v358 = vpack.c.bf16 %v341, %v340
      %v359 = vpack.c.bf16 %v343, %v342
      %v376 = vrot.slane %v344, 4
      %v377 = vrot.slane %v345, 4
      %v378 = vrot.slane %v346, 4
      %v379 = vrot.slane %v347, 4
      %v380 = vrot.slane %v348, 4
      %v381 = vrot.slane %v349, 4
      %v382 = vrot.slane %v350, 4
      %v383 = vrot.slane %v351, 4
      %v384 = vrot.slane %v352, 4
      %v385 = vrot.slane %v353, 4
      %v386 = vrot.slane %v354, 4
      %v387 = vrot.slane %v355, 4
      %v388 = vrot.slane %v356, 4
      %v389 = vrot.slane %v357, 4
      %v390 = vrot.slane %v358, 4
      %v391 = vrot.slane %v359, 4
      %s408 = scalar_lea.vmem [#allocation2], 16
      %409 = vst.msk [vmem:[%s408] sm:$0xf0] %vm245, %v376
      %410 = vst.msk [vmem:[%s408 + $0x8] sm:$0xf] %vm226, %v376
      %411 = vst.msk [vmem:[%s408 + $0x10] sm:$0xf0] %vm245, %v377
      %412 = vst.msk [vmem:[%s408 + $0x18] sm:$0xf] %vm226, %v377
      %413 = vst.msk [vmem:[%s408 + $0x20] sm:$0xf0] %vm245, %v378
      %414 = vst.msk [vmem:[%s408 + $0x28] sm:$0xf] %vm226, %v378
      %415 = vst.msk [vmem:[%s408 + $0x30] sm:$0xf0] %vm245, %v379
      %416 = vst.msk [vmem:[%s408 + $0x38] sm:$0xf] %vm226, %v379
      %417 = vst.msk [vmem:[%s408 + $0x40] sm:$0xf0] %vm245, %v380
      %418 = vst.msk [vmem:[%s408 + $0x48] sm:$0xf] %vm226, %v380
      %419 = vst.msk [vmem:[%s408 + $0x50] sm:$0xf0] %vm245, %v381
      %420 = vst.msk [vmem:[%s408 + $0x58] sm:$0xf] %vm226, %v381
      %421 = vst.msk [vmem:[%s408 + $0x60] sm:$0xf0] %vm245, %v382
      %422 = vst.msk [vmem:[%s408 + $0x68] sm:$0xf] %vm226, %v382
      %423 = vst.msk [vmem:[%s408 + $0x70] sm:$0xf0] %vm245, %v383
      %424 = vst.msk [vmem:[%s408 + $0x78] sm:$0xf] %vm226, %v383
      %425 = vst.msk [vmem:[%s408 + $0x80] sm:$0xf0] %vm245, %v384
      %426 = vst.msk [vmem:[%s408 + $0x88] sm:$0xf] %vm226, %v384
      %427 = vst.msk [vmem:[%s408 + $0x90] sm:$0xf0] %vm245, %v385
      %428 = vst.msk [vmem:[%s408 + $0x98] sm:$0xf] %vm226, %v385
      %429 = vst.msk [vmem:[%s408 + $0xa0] sm:$0xf0] %vm245, %v386
      %430 = vst.msk [vmem:[%s408 + $0xa8] sm:$0xf] %vm226, %v386
      %431 = vst.msk [vmem:[%s408 + $0xb0] sm:$0xf0] %vm245, %v387
      %432 = vst.msk [vmem:[%s408 + $0xb8] sm:$0xf] %vm226, %v387
      %433 = vst.msk [vmem:[%s408 + $0xc0] sm:$0xf0] %vm245, %v388
      %434 = vst.msk [vmem:[%s408 + $0xc8] sm:$0xf] %vm226, %v388
      %435 = vst.msk [vmem:[%s408 + $0xd0] sm:$0xf0] %vm245, %v389
      %436 = vst.msk [vmem:[%s408 + $0xd8] sm:$0xf] %vm226, %v389
      %437 = vst.msk [vmem:[%s408 + $0xe0] sm:$0xf0] %vm245, %v390
      %438 = vst.msk [vmem:[%s408 + $0xe8] sm:$0xf] %vm226, %v390
      %439 = vst.msk [vmem:[%s408 + $0xf0] sm:$0xf0] %vm245, %v391
      %440 = vst.msk [vmem:[%s408 + $0xf8] sm:$0xf] %vm226, %v391
      %v441 = vld [vmem:[#allocation2] sm:$0xf8]
      %v442 = vld [vmem:[#allocation2 + $0x8] sm:$0xf]
      %v443 = vld [vmem:[#allocation2 + $0x10] sm:$0xf8]
      %v444 = vld [vmem:[#allocation2 + $0x18] sm:$0xf]
      %v445 = vld [vmem:[#allocation2 + $0x20] sm:$0xf8]
      %v446 = vld [vmem:[#allocation2 + $0x28] sm:$0xf]
      %v447 = vld [vmem:[#allocation2 + $0x30] sm:$0xf8]
      %v448 = vld [vmem:[#allocation2 + $0x38] sm:$0xf]
      %v449 = vld [vmem:[#allocation2 + $0x40] sm:$0xf8]
      %v450 = vld [vmem:[#allocation2 + $0x48] sm:$0xf]
      %v451 = vld [vmem:[#allocation2 + $0x50] sm:$0xf8]
      %v452 = vld [vmem:[#allocation2 + $0x58] sm:$0xf]
      %v453 = vld [vmem:[#allocation2 + $0x60] sm:$0xf8]
      %v454 = vld [vmem:[#allocation2 + $0x68] sm:$0xf]
      %v455 = vld [vmem:[#allocation2 + $0x70] sm:$0xf8]
      %v456 = vld [vmem:[#allocation2 + $0x78] sm:$0xf]
      %v457 = vld [vmem:[#allocation2 + $0x80] sm:$0xf8]
      %v458 = vld [vmem:[#allocation2 + $0x88] sm:$0xf]
      %v459 = vld [vmem:[#allocation2 + $0x90] sm:$0xf8]
      %v460 = vld [vmem:[#allocation2 + $0x98] sm:$0xf]
      %v461 = vld [vmem:[#allocation2 + $0xa0] sm:$0xf8]
      %v462 = vld [vmem:[#allocation2 + $0xa8] sm:$0xf]
      %v463 = vld [vmem:[#allocation2 + $0xb0] sm:$0xf8]
      %v464 = vld [vmem:[#allocation2 + $0xb8] sm:$0xf]
      %v465 = vld [vmem:[#allocation2 + $0xc0] sm:$0xf8]
      %v466 = vld [vmem:[#allocation2 + $0xc8] sm:$0xf]
      %v467 = vld [vmem:[#allocation2 + $0xd0] sm:$0xf8]
      %v468 = vld [vmem:[#allocation2 + $0xd8] sm:$0xf]
      %v469 = vld [vmem:[#allocation2 + $0xe0] sm:$0xf8]
      %v470 = vld [vmem:[#allocation2 + $0xe8] sm:$0xf]
      %v471 = vld [vmem:[#allocation2 + $0xf0] sm:$0xf8]
      %v472 = vld [vmem:[#allocation2 + $0xf8] sm:$0xf]
      %vm473 = vsmask.f32 4352
      %v475 = vshrl.u32 %v441, 16
      %v477 = vrot.slane %v475, 3
      %v478 = vshll.u32 %v441, 16
      %v480 = vrot.slane %v478, 4
      %v481 = vor.u32 %v477, %v480
      %v483 = vshrl.u32 %v442, 16
      %v485 = vrot.slane %v483, 3
      %v486 = vshll.u32 %v442, 16
      %v488 = vrot.slane %v486, 4
      %v489 = vor.u32 %v485, %v488
      %v490 = vsel %vm473, %v481, %v489
      %v492 = vshrl.u32 %v443, 16
      %v494 = vrot.slane %v492, 3
      %v495 = vshll.u32 %v443, 16
      %v497 = vrot.slane %v495, 4
      %v498 = vor.u32 %v494, %v497
      %v500 = vshrl.u32 %v444, 16
      %v502 = vrot.slane %v500, 3
      %v503 = vshll.u32 %v444, 16
      %v505 = vrot.slane %v503, 4
      %v506 = vor.u32 %v502, %v505
      %v507 = vsel %vm473, %v498, %v506
      %v509 = vshrl.u32 %v445, 16
      %v511 = vrot.slane %v509, 3
      %v512 = vshll.u32 %v445, 16
      %v514 = vrot.slane %v512, 4
      %v515 = vor.u32 %v511, %v514
      %v517 = vshrl.u32 %v446, 16
      %v519 = vrot.slane %v517, 3
      %v520 = vshll.u32 %v446, 16
      %v522 = vrot.slane %v520, 4
      %v523 = vor.u32 %v519, %v522
      %v524 = vsel %vm473, %v515, %v523
      %v526 = vshrl.u32 %v447, 16
      %v528 = vrot.slane %v526, 3
      %v529 = vshll.u32 %v447, 16
      %v531 = vrot.slane %v529, 4
      %v532 = vor.u32 %v528, %v531
      %v534 = vshrl.u32 %v448, 16
      %v536 = vrot.slane %v534, 3
      %v537 = vshll.u32 %v448, 16
      %v539 = vrot.slane %v537, 4
      %v540 = vor.u32 %v536, %v539
      %v541 = vsel %vm473, %v532, %v540
      %v543 = vshrl.u32 %v449, 16
      %v545 = vrot.slane %v543, 3
      %v546 = vshll.u32 %v449, 16
      %v548 = vrot.slane %v546, 4
      %v549 = vor.u32 %v545, %v548
      %v551 = vshrl.u32 %v450, 16
      %v553 = vrot.slane %v551, 3
      %v554 = vshll.u32 %v450, 16
      %v556 = vrot.slane %v554, 4
      %v557 = vor.u32 %v553, %v556
      %v558 = vsel %vm473, %v549, %v557
      %v560 = vshrl.u32 %v451, 16
      %v562 = vrot.slane %v560, 3
      %v563 = vshll.u32 %v451, 16
      %v565 = vrot.slane %v563, 4
      %v566 = vor.u32 %v562, %v565
      %v568 = vshrl.u32 %v452, 16
      %v570 = vrot.slane %v568, 3
      %v571 = vshll.u32 %v452, 16
      %v573 = vrot.slane %v571, 4
      %v574 = vor.u32 %v570, %v573
      %v575 = vsel %vm473, %v566, %v574
      %v577 = vshrl.u32 %v453, 16
      %v579 = vrot.slane %v577, 3
      %v580 = vshll.u32 %v453, 16
      %v582 = vrot.slane %v580, 4
      %v583 = vor.u32 %v579, %v582
      %v585 = vshrl.u32 %v454, 16
      %v587 = vrot.slane %v585, 3
      %v588 = vshll.u32 %v454, 16
      %v590 = vrot.slane %v588, 4
      %v591 = vor.u32 %v587, %v590
      %v592 = vsel %vm473, %v583, %v591
      %v594 = vshrl.u32 %v455, 16
      %v596 = vrot.slane %v594, 3
      %v597 = vshll.u32 %v455, 16
      %v599 = vrot.slane %v597, 4
      %v600 = vor.u32 %v596, %v599
      %v602 = vshrl.u32 %v456, 16
      %v604 = vrot.slane %v602, 3
      %v605 = vshll.u32 %v456, 16
      %v607 = vrot.slane %v605, 4
      %v608 = vor.u32 %v604, %v607
      %v609 = vsel %vm473, %v600, %v608
      %v611 = vshrl.u32 %v457, 16
      %v613 = vrot.slane %v611, 3
      %v614 = vshll.u32 %v457, 16
      %v616 = vrot.slane %v614, 4
      %v617 = vor.u32 %v613, %v616
      %v619 = vshrl.u32 %v458, 16
      %v621 = vrot.slane %v619, 3
      %v622 = vshll.u32 %v458, 16
      %v624 = vrot.slane %v622, 4
      %v625 = vor.u32 %v621, %v624
      %v626 = vsel %vm473, %v617, %v625
      %v628 = vshrl.u32 %v459, 16
      %v630 = vrot.slane %v628, 3
      %v631 = vshll.u32 %v459, 16
      %v633 = vrot.slane %v631, 4
      %v634 = vor.u32 %v630, %v633
      %v636 = vshrl.u32 %v460, 16
      %v638 = vrot.slane %v636, 3
      %v639 = vshll.u32 %v460, 16
      %v641 = vrot.slane %v639, 4
      %v642 = vor.u32 %v638, %v641
      %v643 = vsel %vm473, %v634, %v642
      %v645 = vshrl.u32 %v461, 16
      %v647 = vrot.slane %v645, 3
      %v648 = vshll.u32 %v461, 16
      %v650 = vrot.slane %v648, 4
      %v651 = vor.u32 %v647, %v650
      %v653 = vshrl.u32 %v462, 16
      %v655 = vrot.slane %v653, 3
      %v656 = vshll.u32 %v462, 16
      %v658 = vrot.slane %v656, 4
      %v659 = vor.u32 %v655, %v658
      %v660 = vsel %vm473, %v651, %v659
      %v662 = vshrl.u32 %v463, 16
      %v664 = vrot.slane %v662, 3
      %v665 = vshll.u32 %v463, 16
      %v667 = vrot.slane %v665, 4
      %v668 = vor.u32 %v664, %v667
      %v670 = vshrl.u32 %v464, 16
      %v672 = vrot.slane %v670, 3
      %v673 = vshll.u32 %v464, 16
      %v675 = vrot.slane %v673, 4
      %v676 = vor.u32 %v672, %v675
      %v677 = vsel %vm473, %v668, %v676
      %v679 = vshrl.u32 %v465, 16
      %v681 = vrot.slane %v679, 3
      %v682 = vshll.u32 %v465, 16
      %v684 = vrot.slane %v682, 4
      %v685 = vor.u32 %v681, %v684
      %v687 = vshrl.u32 %v466, 16
      %v689 = vrot.slane %v687, 3
      %v690 = vshll.u32 %v466, 16
      %v692 = vrot.slane %v690, 4
      %v693 = vor.u32 %v689, %v692
      %v694 = vsel %vm473, %v685, %v693
      %v696 = vshrl.u32 %v467, 16
      %v698 = vrot.slane %v696, 3
      %v699 = vshll.u32 %v467, 16
      %v701 = vrot.slane %v699, 4
      %v702 = vor.u32 %v698, %v701
      %v704 = vshrl.u32 %v468, 16
      %v706 = vrot.slane %v704, 3
      %v707 = vshll.u32 %v468, 16
      %v709 = vrot.slane %v707, 4
      %v710 = vor.u32 %v706, %v709
      %v711 = vsel %vm473, %v702, %v710
      %v713 = vshrl.u32 %v469, 16
      %v715 = vrot.slane %v713, 3
      %v716 = vshll.u32 %v469, 16
      %v718 = vrot.slane %v716, 4
      %v719 = vor.u32 %v715, %v718
      %v721 = vshrl.u32 %v470, 16
      %v723 = vrot.slane %v721, 3
      %v724 = vshll.u32 %v470, 16
      %v726 = vrot.slane %v724, 4
      %v727 = vor.u32 %v723, %v726
      %v728 = vsel %vm473, %v719, %v727
      %v730 = vshrl.u32 %v471, 16
      %v732 = vrot.slane %v730, 3
      %v733 = vshll.u32 %v471, 16
      %v735 = vrot.slane %v733, 4
      %v736 = vor.u32 %v732, %v735
      %v738 = vshrl.u32 %v472, 16
      %v740 = vrot.slane %v738, 3
      %v741 = vshll.u32 %v472, 16
      %v743 = vrot.slane %v741, 4
      %v744 = vor.u32 %v740, %v743
      %v745 = vsel %vm473, %v736, %v744
      %vm762 = vcmask 31744
      %763 = vst.msk [vmem:[#allocation4] sm:$0xff] %vm762, %v490
      %764 = vst.msk [vmem:[#allocation4 + $0x28] sm:$0xff] %vm762, %v507
      %765 = vst.msk [vmem:[#allocation4 + $0x50] sm:$0xff] %vm762, %v524
      %766 = vst.msk [vmem:[#allocation4 + $0x78] sm:$0xff] %vm762, %v541
      %767 = vst.msk [vmem:[#allocation4 + $0xa0] sm:$0xff] %vm762, %v558
      %768 = vst.msk [vmem:[#allocation4 + $0xc8] sm:$0xff] %vm762, %v575
      %769 = vst.msk [vmem:[#allocation4 + $0xf0] sm:$0xff] %vm762, %v592
      %770 = vst.msk [vmem:[#allocation4 + $0x118] sm:$0xff] %vm762, %v609
      %771 = vst.msk [vmem:[#allocation4 + $0x140] sm:$0xff] %vm762, %v626
      %772 = vst.msk [vmem:[#allocation4 + $0x168] sm:$0xff] %vm762, %v643
      %773 = vst.msk [vmem:[#allocation4 + $0x190] sm:$0xff] %vm762, %v660
      %774 = vst.msk [vmem:[#allocation4 + $0x1b8] sm:$0xff] %vm762, %v677
      %775 = vst.msk [vmem:[#allocation4 + $0x1e0] sm:$0xff] %vm762, %v694
      %776 = vst.msk [vmem:[#allocation4 + $0x208] sm:$0xff] %vm762, %v711
      %777 = vst.msk [vmem:[#allocation4 + $0x230] sm:$0xff] %vm762, %v728
      %778 = vst.msk [vmem:[#allocation4 + $0x258] sm:$0xff] %vm762, %v745
      %v779 = vld [vmem:[#allocation2] sm:$0xf0]
      %v780 = vld [vmem:[#allocation2 + $0x8] sm:$0xf]
      %v781 = vld [vmem:[#allocation2 + $0x10] sm:$0xf0]
      %v782 = vld [vmem:[#allocation2 + $0x18] sm:$0xf]
      %v783 = vld [vmem:[#allocation2 + $0x20] sm:$0xf0]
      %v784 = vld [vmem:[#allocation2 + $0x28] sm:$0xf]
      %v785 = vld [vmem:[#allocation2 + $0x30] sm:$0xf0]
      %v786 = vld [vmem:[#allocation2 + $0x38] sm:$0xf]
      %v787 = vld [vmem:[#allocation2 + $0x40] sm:$0xf0]
      %v788 = vld [vmem:[#allocation2 + $0x48] sm:$0xf]
      %v789 = vld [vmem:[#allocation2 + $0x50] sm:$0xf0]
      %v790 = vld [vmem:[#allocation2 + $0x58] sm:$0xf]
      %v791 = vld [vmem:[#allocation2 + $0x60] sm:$0xf0]
      %v792 = vld [vmem:[#allocation2 + $0x68] sm:$0xf]
      %v793 = vld [vmem:[#allocation2 + $0x70] sm:$0xf0]
      %v794 = vld [vmem:[#allocation2 + $0x78] sm:$0xf]
      %v795 = vld [vmem:[#allocation2 + $0x80] sm:$0xf0]
      %v796 = vld [vmem:[#allocation2 + $0x88] sm:$0xf]
      %v797 = vld [vmem:[#allocation2 + $0x90] sm:$0xf0]
      %v798 = vld [vmem:[#allocation2 + $0x98] sm:$0xf]
      %v799 = vld [vmem:[#allocation2 + $0xa0] sm:$0xf0]
      %v800 = vld [vmem:[#allocation2 + $0xa8] sm:$0xf]
      %v801 = vld [vmem:[#allocation2 + $0xb0] sm:$0xf0]
      %v802 = vld [vmem:[#allocation2 + $0xb8] sm:$0xf]
      %v803 = vld [vmem:[#allocation2 + $0xc0] sm:$0xf0]
      %v804 = vld [vmem:[#allocation2 + $0xc8] sm:$0xf]
      %v805 = vld [vmem:[#allocation2 + $0xd0] sm:$0xf0]
      %v806 = vld [vmem:[#allocation2 + $0xd8] sm:$0xf]
      %v807 = vld [vmem:[#allocation2 + $0xe0] sm:$0xf0]
      %v808 = vld [vmem:[#allocation2 + $0xe8] sm:$0xf]
      %v809 = vld [vmem:[#allocation2 + $0xf0] sm:$0xf0]
      %v810 = vld [vmem:[#allocation2 + $0xf8] sm:$0xf]
      %vm843 = vcmask 1043456
      %v844 = vrot.slane %v779, 4
      %v845 = vrot.slane %v780, 4
      %v846 = vsel %vm843, %v844, %v845
      %v847 = vrot.slane %v781, 4
      %v848 = vrot.slane %v782, 4
      %v849 = vsel %vm843, %v847, %v848
      %v850 = vrot.slane %v783, 4
      %v851 = vrot.slane %v784, 4
      %v852 = vsel %vm843, %v850, %v851
      %v853 = vrot.slane %v785, 4
      %v854 = vrot.slane %v786, 4
      %v855 = vsel %vm843, %v853, %v854
      %v856 = vrot.slane %v787, 4
      %v857 = vrot.slane %v788, 4
      %v858 = vsel %vm843, %v856, %v857
      %v859 = vrot.slane %v789, 4
      %v860 = vrot.slane %v790, 4
      %v861 = vsel %vm843, %v859, %v860
      %v862 = vrot.slane %v791, 4
      %v863 = vrot.slane %v792, 4
      %v864 = vsel %vm843, %v862, %v863
      %v865 = vrot.slane %v793, 4
      %v866 = vrot.slane %v794, 4
      %v867 = vsel %vm843, %v865, %v866
      %v868 = vrot.slane %v795, 4
      %v869 = vrot.slane %v796, 4
      %v870 = vsel %vm843, %v868, %v869
      %v871 = vrot.slane %v797, 4
      %v872 = vrot.slane %v798, 4
      %v873 = vsel %vm843, %v871, %v872
      %v874 = vrot.slane %v799, 4
      %v875 = vrot.slane %v800, 4
      %v876 = vsel %vm843, %v874, %v875
      %v877 = vrot.slane %v801, 4
      %v878 = vrot.slane %v802, 4
      %v879 = vsel %vm843, %v877, %v878
      %v880 = vrot.slane %v803, 4
      %v881 = vrot.slane %v804, 4
      %v882 = vsel %vm843, %v880, %v881
      %v883 = vrot.slane %v805, 4
      %v884 = vrot.slane %v806, 4
      %v885 = vsel %vm843, %v883, %v884
      %v886 = vrot.slane %v807, 4
      %v887 = vrot.slane %v808, 4
      %v888 = vsel %vm843, %v886, %v887
      %v889 = vrot.slane %v809, 4
      %v890 = vrot.slane %v810, 4
      %v891 = vsel %vm843, %v889, %v890
      %892 = vrot.lane.b32.xlu0 %v846, 4
      %v893 = vpop.permute.xlu0 %892
      %894 = vrot.lane.b32.xlu0 %v849, 4
      %v895 = vpop.permute.xlu0 %894
      %896 = vrot.lane.b32.xlu0 %v852, 4
      %v897 = vpop.permute.xlu0 %896
      %898 = vrot.lane.b32.xlu0 %v855, 4
      %v899 = vpop.permute.xlu0 %898
      %900 = vrot.lane.b32.xlu0 %v858, 4
      %v901 = vpop.permute.xlu0 %900
      %902 = vrot.lane.b32.xlu0 %v861, 4
      %v903 = vpop.permute.xlu0 %902
      %904 = vrot.lane.b32.xlu0 %v864, 4
      %v905 = vpop.permute.xlu0 %904
      %906 = vrot.lane.b32.xlu0 %v867, 4
      %v907 = vpop.permute.xlu0 %906
      %908 = vrot.lane.b32.xlu0 %v870, 4
      %v909 = vpop.permute.xlu0 %908
      %910 = vrot.lane.b32.xlu0 %v873, 4
      %v911 = vpop.permute.xlu0 %910
      %912 = vrot.lane.b32.xlu0 %v876, 4
      %v913 = vpop.permute.xlu0 %912
      %914 = vrot.lane.b32.xlu0 %v879, 4
      %v915 = vpop.permute.xlu0 %914
      %916 = vrot.lane.b32.xlu0 %v882, 4
      %v917 = vpop.permute.xlu0 %916
      %918 = vrot.lane.b32.xlu0 %v885, 4
      %v919 = vpop.permute.xlu0 %918
      %920 = vrot.lane.b32.xlu0 %v888, 4
      %v921 = vpop.permute.xlu0 %920
      %922 = vrot.lane.b32.xlu0 %v891, 4
      %v923 = vpop.permute.xlu0 %922
      %vm940 = vcmask 64544
      %941 = vst.msk [vmem:[#allocation4] sm:$0xff] %vm940, %v893
      %942 = vst.msk [vmem:[#allocation4 + $0x28] sm:$0xff] %vm940, %v895
      %943 = vst.msk [vmem:[#allocation4 + $0x50] sm:$0xff] %vm940, %v897
      %944 = vst.msk [vmem:[#allocation4 + $0x78] sm:$0xff] %vm940, %v899
      %945 = vst.msk [vmem:[#allocation4 + $0xa0] sm:$0xff] %vm940, %v901
      %946 = vst.msk [vmem:[#allocation4 + $0xc8] sm:$0xff] %vm940, %v903
      %947 = vst.msk [vmem:[#allocation4 + $0xf0] sm:$0xff] %vm940, %v905
      %948 = vst.msk [vmem:[#allocation4 + $0x118] sm:$0xff] %vm940, %v907
      %949 = vst.msk [vmem:[#allocation4 + $0x140] sm:$0xff] %vm940, %v909
      %950 = vst.msk [vmem:[#allocation4 + $0x168] sm:$0xff] %vm940, %v911
      %951 = vst.msk [vmem:[#allocation4 + $0x190] sm:$0xff] %vm940, %v913
      %952 = vst.msk [vmem:[#allocation4 + $0x1b8] sm:$0xff] %vm940, %v915
      %953 = vst.msk [vmem:[#allocation4 + $0x1e0] sm:$0xff] %vm940, %v917
      %954 = vst.msk [vmem:[#allocation4 + $0x208] sm:$0xff] %vm940, %v919
      %955 = vst.msk [vmem:[#allocation4 + $0x230] sm:$0xff] %vm940, %v921
      %956 = vst.msk [vmem:[#allocation4 + $0x258] sm:$0xff] %vm940, %v923
      %v957 = vld [vmem:[#allocation2] sm:$0xf0]
      %v958 = vld [vmem:[#allocation2 + $0x8] sm:$0x1f]
      %v959 = vld [vmem:[#allocation2 + $0x10] sm:$0xf0]
      %v960 = vld [vmem:[#allocation2 + $0x18] sm:$0x1f]
      %v961 = vld [vmem:[#allocation2 + $0x20] sm:$0xf0]
      %v962 = vld [vmem:[#allocation2 + $0x28] sm:$0x1f]
      %v963 = vld [vmem:[#allocation2 + $0x30] sm:$0xf0]
      %v964 = vld [vmem:[#allocation2 + $0x38] sm:$0x1f]
      %v965 = vld [vmem:[#allocation2 + $0x40] sm:$0xf0]
      %v966 = vld [vmem:[#allocation2 + $0x48] sm:$0x1f]
      %v967 = vld [vmem:[#allocation2 + $0x50] sm:$0xf0]
      %v968 = vld [vmem:[#allocation2 + $0x58] sm:$0x1f]
      %v969 = vld [vmem:[#allocation2 + $0x60] sm:$0xf0]
      %v970 = vld [vmem:[#allocation2 + $0x68] sm:$0x1f]
      %v971 = vld [vmem:[#allocation2 + $0x70] sm:$0xf0]
      %v972 = vld [vmem:[#allocation2 + $0x78] sm:$0x1f]
      %v973 = vld [vmem:[#allocation2 + $0x80] sm:$0xf0]
      %v974 = vld [vmem:[#allocation2 + $0x88] sm:$0x1f]
      %v975 = vld [vmem:[#allocation2 + $0x90] sm:$0xf0]
      %v976 = vld [vmem:[#allocation2 + $0x98] sm:$0x1f]
      %v977 = vld [vmem:[#allocation2 + $0xa0] sm:$0xf0]
      %v978 = vld [vmem:[#allocation2 + $0xa8] sm:$0x1f]
      %v979 = vld [vmem:[#allocation2 + $0xb0] sm:$0xf0]
      %v980 = vld [vmem:[#allocation2 + $0xb8] sm:$0x1f]
      %v981 = vld [vmem:[#allocation2 + $0xc0] sm:$0xf0]
      %v982 = vld [vmem:[#allocation2 + $0xc8] sm:$0x1f]
      %v983 = vld [vmem:[#allocation2 + $0xd0] sm:$0xf0]
      %v984 = vld [vmem:[#allocation2 + $0xd8] sm:$0x1f]
      %v985 = vld [vmem:[#allocation2 + $0xe0] sm:$0xf0]
      %v986 = vld [vmem:[#allocation2 + $0xe8] sm:$0x1f]
      %v987 = vld [vmem:[#allocation2 + $0xf0] sm:$0xf0]
      %v988 = vld [vmem:[#allocation2 + $0xf8] sm:$0x1f]
      %vm989 = vsmask.f32 3328
      %v991 = vshrl.u32 %v957, 16
      %v993 = vrot.slane %v991, 4
      %v994 = vshll.u32 %v957, 16
      %v996 = vrot.slane %v994, 5
      %v997 = vor.u32 %v993, %v996
      %v999 = vshrl.u32 %v958, 16
      %v1001 = vrot.slane %v999, 4
      %v1002 = vshll.u32 %v958, 16
      %v1004 = vrot.slane %v1002, 5
      %v1005 = vor.u32 %v1001, %v1004
      %v1006 = vsel %vm989, %v997, %v1005
      %v1008 = vshrl.u32 %v959, 16
      %v1010 = vrot.slane %v1008, 4
      %v1011 = vshll.u32 %v959, 16
      %v1013 = vrot.slane %v1011, 5
      %v1014 = vor.u32 %v1010, %v1013
      %v1016 = vshrl.u32 %v960, 16
      %v1018 = vrot.slane %v1016, 4
      %v1019 = vshll.u32 %v960, 16
      %v1021 = vrot.slane %v1019, 5
      %v1022 = vor.u32 %v1018, %v1021
      %v1023 = vsel %vm989, %v1014, %v1022
      %v1025 = vshrl.u32 %v961, 16
      %v1027 = vrot.slane %v1025, 4
      %v1028 = vshll.u32 %v961, 16
      %v1030 = vrot.slane %v1028, 5
      %v1031 = vor.u32 %v1027, %v1030
      %v1033 = vshrl.u32 %v962, 16
      %v1035 = vrot.slane %v1033, 4
      %v1036 = vshll.u32 %v962, 16
      %v1038 = vrot.slane %v1036, 5
      %v1039 = vor.u32 %v1035, %v1038
      %v1040 = vsel %vm989, %v1031, %v1039
      %v1042 = vshrl.u32 %v963, 16
      %v1044 = vrot.slane %v1042, 4
      %v1045 = vshll.u32 %v963, 16
      %v1047 = vrot.slane %v1045, 5
      %v1048 = vor.u32 %v1044, %v1047
      %v1050 = vshrl.u32 %v964, 16
      %v1052 = vrot.slane %v1050, 4
      %v1053 = vshll.u32 %v964, 16
      %v1055 = vrot.slane %v1053, 5
      %v1056 = vor.u32 %v1052, %v1055
      %v1057 = vsel %vm989, %v1048, %v1056
      %v1059 = vshrl.u32 %v965, 16
      %v1061 = vrot.slane %v1059, 4
      %v1062 = vshll.u32 %v965, 16
      %v1064 = vrot.slane %v1062, 5
      %v1065 = vor.u32 %v1061, %v1064
      %v1067 = vshrl.u32 %v966, 16
      %v1069 = vrot.slane %v1067, 4
      %v1070 = vshll.u32 %v966, 16
      %v1072 = vrot.slane %v1070, 5
      %v1073 = vor.u32 %v1069, %v1072
      %v1074 = vsel %vm989, %v1065, %v1073
      %v1076 = vshrl.u32 %v967, 16
      %v1078 = vrot.slane %v1076, 4
      %v1079 = vshll.u32 %v967, 16
      %v1081 = vrot.slane %v1079, 5
      %v1082 = vor.u32 %v1078, %v1081
      %v1084 = vshrl.u32 %v968, 16
      %v1086 = vrot.slane %v1084, 4
      %v1087 = vshll.u32 %v968, 16
      %v1089 = vrot.slane %v1087, 5
      %v1090 = vor.u32 %v1086, %v1089
      %v1091 = vsel %vm989, %v1082, %v1090
      %v1093 = vshrl.u32 %v969, 16
      %v1095 = vrot.slane %v1093, 4
      %v1096 = vshll.u32 %v969, 16
      %v1098 = vrot.slane %v1096, 5
      %v1099 = vor.u32 %v1095, %v1098
      %v1101 = vshrl.u32 %v970, 16
      %v1103 = vrot.slane %v1101, 4
      %v1104 = vshll.u32 %v970, 16
      %v1106 = vrot.slane %v1104, 5
      %v1107 = vor.u32 %v1103, %v1106
      %v1108 = vsel %vm989, %v1099, %v1107
      %v1110 = vshrl.u32 %v971, 16
      %v1112 = vrot.slane %v1110, 4
      %v1113 = vshll.u32 %v971, 16
      %v1115 = vrot.slane %v1113, 5
      %v1116 = vor.u32 %v1112, %v1115
      %v1118 = vshrl.u32 %v972, 16
      %v1120 = vrot.slane %v1118, 4
      %v1121 = vshll.u32 %v972, 16
      %v1123 = vrot.slane %v1121, 5
      %v1124 = vor.u32 %v1120, %v1123
      %v1125 = vsel %vm989, %v1116, %v1124
      %v1127 = vshrl.u32 %v973, 16
      %v1129 = vrot.slane %v1127, 4
      %v1130 = vshll.u32 %v973, 16
      %v1132 = vrot.slane %v1130, 5
      %v1133 = vor.u32 %v1129, %v1132
      %v1135 = vshrl.u32 %v974, 16
      %v1137 = vrot.slane %v1135, 4
      %v1138 = vshll.u32 %v974, 16
      %v1140 = vrot.slane %v1138, 5
      %v1141 = vor.u32 %v1137, %v1140
      %v1142 = vsel %vm989, %v1133, %v1141
      %v1144 = vshrl.u32 %v975, 16
      %v1146 = vrot.slane %v1144, 4
      %v1147 = vshll.u32 %v975, 16
      %v1149 = vrot.slane %v1147, 5
      %v1150 = vor.u32 %v1146, %v1149
      %v1152 = vshrl.u32 %v976, 16
      %v1154 = vrot.slane %v1152, 4
      %v1155 = vshll.u32 %v976, 16
      %v1157 = vrot.slane %v1155, 5
      %v1158 = vor.u32 %v1154, %v1157
      %v1159 = vsel %vm989, %v1150, %v1158
      %v1161 = vshrl.u32 %v977, 16
      %v1163 = vrot.slane %v1161, 4
      %v1164 = vshll.u32 %v977, 16
      %v1166 = vrot.slane %v1164, 5
      %v1167 = vor.u32 %v1163, %v1166
      %v1169 = vshrl.u32 %v978, 16
      %v1171 = vrot.slane %v1169, 4
      %v1172 = vshll.u32 %v978, 16
      %v1174 = vrot.slane %v1172, 5
      %v1175 = vor.u32 %v1171, %v1174
      %v1176 = vsel %vm989, %v1167, %v1175
      %v1178 = vshrl.u32 %v979, 16
      %v1180 = vrot.slane %v1178, 4
      %v1181 = vshll.u32 %v979, 16
      %v1183 = vrot.slane %v1181, 5
      %v1184 = vor.u32 %v1180, %v1183
      %v1186 = vshrl.u32 %v980, 16
      %v1188 = vrot.slane %v1186, 4
      %v1189 = vshll.u32 %v980, 16
      %v1191 = vrot.slane %v1189, 5
      %v1192 = vor.u32 %v1188, %v1191
      %v1193 = vsel %vm989, %v1184, %v1192
      %v1195 = vshrl.u32 %v981, 16
      %v1197 = vrot.slane %v1195, 4
      %v1198 = vshll.u32 %v981, 16
      %v1200 = vrot.slane %v1198, 5
      %v1201 = vor.u32 %v1197, %v1200
      %v1203 = vshrl.u32 %v982, 16
      %v1205 = vrot.slane %v1203, 4
      %v1206 = vshll.u32 %v982, 16
      %v1208 = vrot.slane %v1206, 5
      %v1209 = vor.u32 %v1205, %v1208
      %v1210 = vsel %vm989, %v1201, %v1209
      %v1212 = vshrl.u32 %v983, 16
      %v1214 = vrot.slane %v1212, 4
      %v1215 = vshll.u32 %v983, 16
      %v1217 = vrot.slane %v1215, 5
      %v1218 = vor.u32 %v1214, %v1217
      %v1220 = vshrl.u32 %v984, 16
      %v1222 = vrot.slane %v1220, 4
      %v1223 = vshll.u32 %v984, 16
      %v1225 = vrot.slane %v1223, 5
      %v1226 = vor.u32 %v1222, %v1225
      %v1227 = vsel %vm989, %v1218, %v1226
      %v1229 = vshrl.u32 %v985, 16
      %v1231 = vrot.slane %v1229, 4
      %v1232 = vshll.u32 %v985, 16
      %v1234 = vrot.slane %v1232, 5
      %v1235 = vor.u32 %v1231, %v1234
      %v1237 = vshrl.u32 %v986, 16
      %v1239 = vrot.slane %v1237, 4
      %v1240 = vshll.u32 %v986, 16
      %v1242 = vrot.slane %v1240, 5
      %v1243 = vor.u32 %v1239, %v1242
      %v1244 = vsel %vm989, %v1235, %v1243
      %v1246 = vshrl.u32 %v987, 16
      %v1248 = vrot.slane %v1246, 4
      %v1249 = vshll.u32 %v987, 16
      %v1251 = vrot.slane %v1249, 5
      %v1252 = vor.u32 %v1248, %v1251
      %v1254 = vshrl.u32 %v988, 16
      %v1256 = vrot.slane %v1254, 4
      %v1257 = vshll.u32 %v988, 16
      %v1259 = vrot.slane %v1257, 5
      %v1260 = vor.u32 %v1256, %v1259
      %v1261 = vsel %vm989, %v1252, %v1260
      %1262 = vrot.lane.b32.xlu0 %v1006, 8
      %v1263 = vpop.permute.xlu0 %1262
      %1264 = vrot.lane.b32.xlu0 %v1023, 8
      %v1265 = vpop.permute.xlu0 %1264
      %1266 = vrot.lane.b32.xlu0 %v1040, 8
      %v1267 = vpop.permute.xlu0 %1266
      %1268 = vrot.lane.b32.xlu0 %v1057, 8
      %v1269 = vpop.permute.xlu0 %1268
      %1270 = vrot.lane.b32.xlu0 %v1074, 8
      %v1271 = vpop.permute.xlu0 %1270
      %1272 = vrot.lane.b32.xlu0 %v1091, 8
      %v1273 = vpop.permute.xlu0 %1272
      %1274 = vrot.lane.b32.xlu0 %v1108, 8
      %v1275 = vpop.permute.xlu0 %1274
      %1276 = vrot.lane.b32.xlu0 %v1125, 8
      %v1277 = vpop.permute.xlu0 %1276
      %1278 = vrot.lane.b32.xlu0 %v1142, 8
      %v1279 = vpop.permute.xlu0 %1278
      %1280 = vrot.lane.b32.xlu0 %v1159, 8
      %v1281 = vpop.permute.xlu0 %1280
      %1282 = vrot.lane.b32.xlu0 %v1176, 8
      %v1283 = vpop.permute.xlu0 %1282
      %1284 = vrot.lane.b32.xlu0 %v1193, 8
      %v1285 = vpop.permute.xlu0 %1284
      %1286 = vrot.lane.b32.xlu0 %v1210, 8
      %v1287 = vpop.permute.xlu0 %1286
      %1288 = vrot.lane.b32.xlu0 %v1227, 8
      %v1289 = vpop.permute.xlu0 %1288
      %1290 = vrot.lane.b32.xlu0 %v1244, 8
      %v1291 = vpop.permute.xlu0 %1290
      %1292 = vrot.lane.b32.xlu0 %v1261, 8
      %v1293 = vpop.permute.xlu0 %1292
      %vm1310 = vcmask 97344
      %1311 = vst.msk [vmem:[#allocation4] sm:$0xff] %vm1310, %v1263
      %1312 = vst.msk [vmem:[#allocation4 + $0x28] sm:$0xff] %vm1310, %v1265
      %1313 = vst.msk [vmem:[#allocation4 + $0x50] sm:$0xff] %vm1310, %v1267
      %1314 = vst.msk [vmem:[#allocation4 + $0x78] sm:$0xff] %vm1310, %v1269
      %1315 = vst.msk [vmem:[#allocation4 + $0xa0] sm:$0xff] %vm1310, %v1271
      %1316 = vst.msk [vmem:[#allocation4 + $0xc8] sm:$0xff] %vm1310, %v1273
      %1317 = vst.msk [vmem:[#allocation4 + $0xf0] sm:$0xff] %vm1310, %v1275
      %1318 = vst.msk [vmem:[#allocation4 + $0x118] sm:$0xff] %vm1310, %v1277
      %1319 = vst.msk [vmem:[#allocation4 + $0x140] sm:$0xff] %vm1310, %v1279
      %1320 = vst.msk [vmem:[#allocation4 + $0x168] sm:$0xff] %vm1310, %v1281
      %1321 = vst.msk [vmem:[#allocation4 + $0x190] sm:$0xff] %vm1310, %v1283
      %1322 = vst.msk [vmem:[#allocation4 + $0x1b8] sm:$0xff] %vm1310, %v1285
      %1323 = vst.msk [vmem:[#allocation4 + $0x1e0] sm:$0xff] %vm1310, %v1287
      %1324 = vst.msk [vmem:[#allocation4 + $0x208] sm:$0xff] %vm1310, %v1289
      %1325 = vst.msk [vmem:[#allocation4 + $0x230] sm:$0xff] %vm1310, %v1291
      %1326 = vst.msk [vmem:[#allocation4 + $0x258] sm:$0xff] %vm1310, %v1293
      %v1327 = vld [vmem:[%s408] sm:$0xf8]
      %v1328 = vld [vmem:[%s408 + $0x8] sm:$0xf]
      %v1329 = vld [vmem:[%s408 + $0x10] sm:$0xf8]
      %v1330 = vld [vmem:[%s408 + $0x18] sm:$0xf]
      %v1331 = vld [vmem:[%s408 + $0x20] sm:$0xf8]
      %v1332 = vld [vmem:[%s408 + $0x28] sm:$0xf]
      %v1333 = vld [vmem:[%s408 + $0x30] sm:$0xf8]
      %v1334 = vld [vmem:[%s408 + $0x38] sm:$0xf]
      %v1335 = vld [vmem:[%s408 + $0x40] sm:$0xf8]
      %v1336 = vld [vmem:[%s408 + $0x48] sm:$0xf]
      %v1337 = vld [vmem:[%s408 + $0x50] sm:$0xf8]
      %v1338 = vld [vmem:[%s408 + $0x58] sm:$0xf]
      %v1339 = vld [vmem:[%s408 + $0x60] sm:$0xf8]
      %v1340 = vld [vmem:[%s408 + $0x68] sm:$0xf]
      %v1341 = vld [vmem:[%s408 + $0x70] sm:$0xf8]
      %v1342 = vld [vmem:[%s408 + $0x78] sm:$0xf]
      %v1343 = vld [vmem:[%s408 + $0x80] sm:$0xf8]
      %v1344 = vld [vmem:[%s408 + $0x88] sm:$0xf]
      %v1345 = vld [vmem:[%s408 + $0x90] sm:$0xf8]
      %v1346 = vld [vmem:[%s408 + $0x98] sm:$0xf]
      %v1347 = vld [vmem:[%s408 + $0xa0] sm:$0xf8]
      %v1348 = vld [vmem:[%s408 + $0xa8] sm:$0xf]
      %v1349 = vld [vmem:[%s408 + $0xb0] sm:$0xf8]
      %v1350 = vld [vmem:[%s408 + $0xb8] sm:$0xf]
      %v1351 = vld [vmem:[%s408 + $0xc0] sm:$0xf8]
      %v1352 = vld [vmem:[%s408 + $0xc8] sm:$0xf]
      %v1353 = vld [vmem:[%s408 + $0xd0] sm:$0xf8]
      %v1354 = vld [vmem:[%s408 + $0xd8] sm:$0xf]
      %v1355 = vld [vmem:[%s408 + $0xe0] sm:$0xf8]
      %v1356 = vld [vmem:[%s408 + $0xe8] sm:$0xf]
      %v1357 = vld [vmem:[%s408 + $0xf0] sm:$0xf8]
      %v1358 = vld [vmem:[%s408 + $0xf8] sm:$0xf]
      %v1360 = vshrl.u32 %v1327, 16
      %v1362 = vrot.slane %v1360, 3
      %v1363 = vshll.u32 %v1327, 16
      %v1365 = vrot.slane %v1363, 4
      %v1366 = vor.u32 %v1362, %v1365
      %v1368 = vshrl.u32 %v1328, 16
      %v1370 = vrot.slane %v1368, 3
      %v1371 = vshll.u32 %v1328, 16
      %v1373 = vrot.slane %v1371, 4
      %v1374 = vor.u32 %v1370, %v1373
      %v1375 = vsel %vm473, %v1366, %v1374
      %v1377 = vshrl.u32 %v1329, 16
      %v1379 = vrot.slane %v1377, 3
      %v1380 = vshll.u32 %v1329, 16
      %v1382 = vrot.slane %v1380, 4
      %v1383 = vor.u32 %v1379, %v1382
      %v1385 = vshrl.u32 %v1330, 16
      %v1387 = vrot.slane %v1385, 3
      %v1388 = vshll.u32 %v1330, 16
      %v1390 = vrot.slane %v1388, 4
      %v1391 = vor.u32 %v1387, %v1390
      %v1392 = vsel %vm473, %v1383, %v1391
      %v1394 = vshrl.u32 %v1331, 16
      %v1396 = vrot.slane %v1394, 3
      %v1397 = vshll.u32 %v1331, 16
      %v1399 = vrot.slane %v1397, 4
      %v1400 = vor.u32 %v1396, %v1399
      %v1402 = vshrl.u32 %v1332, 16
      %v1404 = vrot.slane %v1402, 3
      %v1405 = vshll.u32 %v1332, 16
      %v1407 = vrot.slane %v1405, 4
      %v1408 = vor.u32 %v1404, %v1407
      %v1409 = vsel %vm473, %v1400, %v1408
      %v1411 = vshrl.u32 %v1333, 16
      %v1413 = vrot.slane %v1411, 3
      %v1414 = vshll.u32 %v1333, 16
      %v1416 = vrot.slane %v1414, 4
      %v1417 = vor.u32 %v1413, %v1416
      %v1419 = vshrl.u32 %v1334, 16
      %v1421 = vrot.slane %v1419, 3
      %v1422 = vshll.u32 %v1334, 16
      %v1424 = vrot.slane %v1422, 4
      %v1425 = vor.u32 %v1421, %v1424
      %v1426 = vsel %vm473, %v1417, %v1425
      %v1428 = vshrl.u32 %v1335, 16
      %v1430 = vrot.slane %v1428, 3
      %v1431 = vshll.u32 %v1335, 16
      %v1433 = vrot.slane %v1431, 4
      %v1434 = vor.u32 %v1430, %v1433
      %v1436 = vshrl.u32 %v1336, 16
      %v1438 = vrot.slane %v1436, 3
      %v1439 = vshll.u32 %v1336, 16
      %v1441 = vrot.slane %v1439, 4
      %v1442 = vor.u32 %v1438, %v1441
      %v1443 = vsel %vm473, %v1434, %v1442
      %v1445 = vshrl.u32 %v1337, 16
      %v1447 = vrot.slane %v1445, 3
      %v1448 = vshll.u32 %v1337, 16
      %v1450 = vrot.slane %v1448, 4
      %v1451 = vor.u32 %v1447, %v1450
      %v1453 = vshrl.u32 %v1338, 16
      %v1455 = vrot.slane %v1453, 3
      %v1456 = vshll.u32 %v1338, 16
      %v1458 = vrot.slane %v1456, 4
      %v1459 = vor.u32 %v1455, %v1458
      %v1460 = vsel %vm473, %v1451, %v1459
      %v1462 = vshrl.u32 %v1339, 16
      %v1464 = vrot.slane %v1462, 3
      %v1465 = vshll.u32 %v1339, 16
      %v1467 = vrot.slane %v1465, 4
      %v1468 = vor.u32 %v1464, %v1467
      %v1470 = vshrl.u32 %v1340, 16
      %v1472 = vrot.slane %v1470, 3
      %v1473 = vshll.u32 %v1340, 16
      %v1475 = vrot.slane %v1473, 4
      %v1476 = vor.u32 %v1472, %v1475
      %v1477 = vsel %vm473, %v1468, %v1476
      %v1479 = vshrl.u32 %v1341, 16
      %v1481 = vrot.slane %v1479, 3
      %v1482 = vshll.u32 %v1341, 16
      %v1484 = vrot.slane %v1482, 4
      %v1485 = vor.u32 %v1481, %v1484
      %v1487 = vshrl.u32 %v1342, 16
      %v1489 = vrot.slane %v1487, 3
      %v1490 = vshll.u32 %v1342, 16
      %v1492 = vrot.slane %v1490, 4
      %v1493 = vor.u32 %v1489, %v1492
      %v1494 = vsel %vm473, %v1485, %v1493
      %v1496 = vshrl.u32 %v1343, 16
      %v1498 = vrot.slane %v1496, 3
      %v1499 = vshll.u32 %v1343, 16
      %v1501 = vrot.slane %v1499, 4
      %v1502 = vor.u32 %v1498, %v1501
      %v1504 = vshrl.u32 %v1344, 16
      %v1506 = vrot.slane %v1504, 3
      %v1507 = vshll.u32 %v1344, 16
      %v1509 = vrot.slane %v1507, 4
      %v1510 = vor.u32 %v1506, %v1509
      %v1511 = vsel %vm473, %v1502, %v1510
      %v1513 = vshrl.u32 %v1345, 16
      %v1515 = vrot.slane %v1513, 3
      %v1516 = vshll.u32 %v1345, 16
      %v1518 = vrot.slane %v1516, 4
      %v1519 = vor.u32 %v1515, %v1518
      %v1521 = vshrl.u32 %v1346, 16
      %v1523 = vrot.slane %v1521, 3
      %v1524 = vshll.u32 %v1346, 16
      %v1526 = vrot.slane %v1524, 4
      %v1527 = vor.u32 %v1523, %v1526
      %v1528 = vsel %vm473, %v1519, %v1527
      %v1530 = vshrl.u32 %v1347, 16
      %v1532 = vrot.slane %v1530, 3
      %v1533 = vshll.u32 %v1347, 16
      %v1535 = vrot.slane %v1533, 4
      %v1536 = vor.u32 %v1532, %v1535
      %v1538 = vshrl.u32 %v1348, 16
      %v1540 = vrot.slane %v1538, 3
      %v1541 = vshll.u32 %v1348, 16
      %v1543 = vrot.slane %v1541, 4
      %v1544 = vor.u32 %v1540, %v1543
      %v1545 = vsel %vm473, %v1536, %v1544
      %v1547 = vshrl.u32 %v1349, 16
      %v1549 = vrot.slane %v1547, 3
      %v1550 = vshll.u32 %v1349, 16
      %v1552 = vrot.slane %v1550, 4
      %v1553 = vor.u32 %v1549, %v1552
      %v1555 = vshrl.u32 %v1350, 16
      %v1557 = vrot.slane %v1555, 3
      %v1558 = vshll.u32 %v1350, 16
      %v1560 = vrot.slane %v1558, 4
      %v1561 = vor.u32 %v1557, %v1560
      %v1562 = vsel %vm473, %v1553, %v1561
      %v1564 = vshrl.u32 %v1351, 16
      %v1566 = vrot.slane %v1564, 3
      %v1567 = vshll.u32 %v1351, 16
      %v1569 = vrot.slane %v1567, 4
      %v1570 = vor.u32 %v1566, %v1569
      %v1572 = vshrl.u32 %v1352, 16
      %v1574 = vrot.slane %v1572, 3
      %v1575 = vshll.u32 %v1352, 16
      %v1577 = vrot.slane %v1575, 4
      %v1578 = vor.u32 %v1574, %v1577
      %v1579 = vsel %vm473, %v1570, %v1578
      %v1581 = vshrl.u32 %v1353, 16
      %v1583 = vrot.slane %v1581, 3
      %v1584 = vshll.u32 %v1353, 16
      %v1586 = vrot.slane %v1584, 4
      %v1587 = vor.u32 %v1583, %v1586
      %v1589 = vshrl.u32 %v1354, 16
      %v1591 = vrot.slane %v1589, 3
      %v1592 = vshll.u32 %v1354, 16
      %v1594 = vrot.slane %v1592, 4
      %v1595 = vor.u32 %v1591, %v1594
      %v1596 = vsel %vm473, %v1587, %v1595
      %v1598 = vshrl.u32 %v1355, 16
      %v1600 = vrot.slane %v1598, 3
      %v1601 = vshll.u32 %v1355, 16
      %v1603 = vrot.slane %v1601, 4
      %v1604 = vor.u32 %v1600, %v1603
      %v1606 = vshrl.u32 %v1356, 16
      %v1608 = vrot.slane %v1606, 3
      %v1609 = vshll.u32 %v1356, 16
      %v1611 = vrot.slane %v1609, 4
      %v1612 = vor.u32 %v1608, %v1611
      %v1613 = vsel %vm473, %v1604, %v1612
      %v1615 = vshrl.u32 %v1357, 16
      %v1617 = vrot.slane %v1615, 3
      %v1618 = vshll.u32 %v1357, 16
      %v1620 = vrot.slane %v1618, 4
      %v1621 = vor.u32 %v1617, %v1620
      %v1623 = vshrl.u32 %v1358, 16
      %v1625 = vrot.slane %v1623, 3
      %v1626 = vshll.u32 %v1358, 16
      %v1628 = vrot.slane %v1626, 4
      %v1629 = vor.u32 %v1625, %v1628
      %v1630 = vsel %vm473, %v1621, %v1629
      %1631 = vrot.lane.b32.xlu0 %v1375, 12
      %v1632 = vpop.permute.xlu0 %1631
      %1633 = vrot.lane.b32.xlu0 %v1392, 12
      %v1634 = vpop.permute.xlu0 %1633
      %1635 = vrot.lane.b32.xlu0 %v1409, 12
      %v1636 = vpop.permute.xlu0 %1635
      %1637 = vrot.lane.b32.xlu0 %v1426, 12
      %v1638 = vpop.permute.xlu0 %1637
      %1639 = vrot.lane.b32.xlu0 %v1443, 12
      %v1640 = vpop.permute.xlu0 %1639
      %1641 = vrot.lane.b32.xlu0 %v1460, 12
      %v1642 = vpop.permute.xlu0 %1641
      %1643 = vrot.lane.b32.xlu0 %v1477, 12
      %v1644 = vpop.permute.xlu0 %1643
      %1645 = vrot.lane.b32.xlu0 %v1494, 12
      %v1646 = vpop.permute.xlu0 %1645
      %1647 = vrot.lane.b32.xlu0 %v1511, 12
      %v1648 = vpop.permute.xlu0 %1647
      %1649 = vrot.lane.b32.xlu0 %v1528, 12
      %v1650 = vpop.permute.xlu0 %1649
      %1651 = vrot.lane.b32.xlu0 %v1545, 12
      %v1652 = vpop.permute.xlu0 %1651
      %1653 = vrot.lane.b32.xlu0 %v1562, 12
      %v1654 = vpop.permute.xlu0 %1653
      %1655 = vrot.lane.b32.xlu0 %v1579, 12
      %v1656 = vpop.permute.xlu0 %1655
      %1657 = vrot.lane.b32.xlu0 %v1596, 12
      %v1658 = vpop.permute.xlu0 %1657
      %1659 = vrot.lane.b32.xlu0 %v1613, 12
      %v1660 = vpop.permute.xlu0 %1659
      %1661 = vrot.lane.b32.xlu0 %v1630, 12
      %v1662 = vpop.permute.xlu0 %1661
      %vm1679 = vcmask 130144
      %1680 = vst.msk [vmem:[#allocation4] sm:$0xff] %vm1679, %v1632
      %1681 = vst.msk [vmem:[#allocation4 + $0x28] sm:$0xff] %vm1679, %v1634
      %1682 = vst.msk [vmem:[#allocation4 + $0x50] sm:$0xff] %vm1679, %v1636
      %1683 = vst.msk [vmem:[#allocation4 + $0x78] sm:$0xff] %vm1679, %v1638
      %1684 = vst.msk [vmem:[#allocation4 + $0xa0] sm:$0xff] %vm1679, %v1640
      %1685 = vst.msk [vmem:[#allocation4 + $0xc8] sm:$0xff] %vm1679, %v1642
      %1686 = vst.msk [vmem:[#allocation4 + $0xf0] sm:$0xff] %vm1679, %v1644
      %1687 = vst.msk [vmem:[#allocation4 + $0x118] sm:$0xff] %vm1679, %v1646
      %1688 = vst.msk [vmem:[#allocation4 + $0x140] sm:$0xff] %vm1679, %v1648
      %1689 = vst.msk [vmem:[#allocation4 + $0x168] sm:$0xff] %vm1679, %v1650
      %1690 = vst.msk [vmem:[#allocation4 + $0x190] sm:$0xff] %vm1679, %v1652
      %1691 = vst.msk [vmem:[#allocation4 + $0x1b8] sm:$0xff] %vm1679, %v1654
      %1692 = vst.msk [vmem:[#allocation4 + $0x1e0] sm:$0xff] %vm1679, %v1656
      %1693 = vst.msk [vmem:[#allocation4 + $0x208] sm:$0xff] %vm1679, %v1658
      %1694 = vst.msk [vmem:[#allocation4 + $0x230] sm:$0xff] %vm1679, %v1660
      %1695 = vst.msk [vmem:[#allocation4 + $0x258] sm:$0xff] %vm1679, %v1662
      %v1696 = vld [vmem:[%s408] sm:$0xf0]
      %v1697 = vld [vmem:[%s408 + $0x8] sm:$0xf]
      %v1698 = vld [vmem:[%s408 + $0x10] sm:$0xf0]
      %v1699 = vld [vmem:[%s408 + $0x18] sm:$0xf]
      %v1700 = vld [vmem:[%s408 + $0x20] sm:$0xf0]
      %v1701 = vld [vmem:[%s408 + $0x28] sm:$0xf]
      %v1702 = vld [vmem:[%s408 + $0x30] sm:$0xf0]
      %v1703 = vld [vmem:[%s408 + $0x38] sm:$0xf]
      %v1704 = vld [vmem:[%s408 + $0x40] sm:$0xf0]
      %v1705 = vld [vmem:[%s408 + $0x48] sm:$0xf]
      %v1706 = vld [vmem:[%s408 + $0x50] sm:$0xf0]
      %v1707 = vld [vmem:[%s408 + $0x58] sm:$0xf]
      %v1708 = vld [vmem:[%s408 + $0x60] sm:$0xf0]
      %v1709 = vld [vmem:[%s408 + $0x68] sm:$0xf]
      %v1710 = vld [vmem:[%s408 + $0x70] sm:$0xf0]
      %v1711 = vld [vmem:[%s408 + $0x78] sm:$0xf]
      %v1712 = vld [vmem:[%s408 + $0x80] sm:$0xf0]
      %v1713 = vld [vmem:[%s408 + $0x88] sm:$0xf]
      %v1714 = vld [vmem:[%s408 + $0x90] sm:$0xf0]
      %v1715 = vld [vmem:[%s408 + $0x98] sm:$0xf]
      %v1716 = vld [vmem:[%s408 + $0xa0] sm:$0xf0]
      %v1717 = vld [vmem:[%s408 + $0xa8] sm:$0xf]
      %v1718 = vld [vmem:[%s408 + $0xb0] sm:$0xf0]
      %v1719 = vld [vmem:[%s408 + $0xb8] sm:$0xf]
      %v1720 = vld [vmem:[%s408 + $0xc0] sm:$0xf0]
      %v1721 = vld [vmem:[%s408 + $0xc8] sm:$0xf]
      %v1722 = vld [vmem:[%s408 + $0xd0] sm:$0xf0]
      %v1723 = vld [vmem:[%s408 + $0xd8] sm:$0xf]
      %v1724 = vld [vmem:[%s408 + $0xe0] sm:$0xf0]
      %v1725 = vld [vmem:[%s408 + $0xe8] sm:$0xf]
      %v1726 = vld [vmem:[%s408 + $0xf0] sm:$0xf0]
      %v1727 = vld [vmem:[%s408 + $0xf8] sm:$0xf]
      %v1760 = vrot.slane %v1696, 4
      %v1761 = vrot.slane %v1697, 4
      %v1762 = vsel %vm843, %v1760, %v1761
      %v1763 = vrot.slane %v1698, 4
      %v1764 = vrot.slane %v1699, 4
      %v1765 = vsel %vm843, %v1763, %v1764
      %v1766 = vrot.slane %v1700, 4
      %v1767 = vrot.slane %v1701, 4
      %v1768 = vsel %vm843, %v1766, %v1767
      %v1769 = vrot.slane %v1702, 4
      %v1770 = vrot.slane %v1703, 4
      %v1771 = vsel %vm843, %v1769, %v1770
      %v1772 = vrot.slane %v1704, 4
      %v1773 = vrot.slane %v1705, 4
      %v1774 = vsel %vm843, %v1772, %v1773
      %v1775 = vrot.slane %v1706, 4
      %v1776 = vrot.slane %v1707, 4
      %v1777 = vsel %vm843, %v1775, %v1776
      %v1778 = vrot.slane %v1708, 4
      %v1779 = vrot.slane %v1709, 4
      %v1780 = vsel %vm843, %v1778, %v1779
      %v1781 = vrot.slane %v1710, 4
      %v1782 = vrot.slane %v1711, 4
      %v1783 = vsel %vm843, %v1781, %v1782
      %v1784 = vrot.slane %v1712, 4
      %v1785 = vrot.slane %v1713, 4
      %v1786 = vsel %vm843, %v1784, %v1785
      %v1787 = vrot.slane %v1714, 4
      %v1788 = vrot.slane %v1715, 4
      %v1789 = vsel %vm843, %v1787, %v1788
      %v1790 = vrot.slane %v1716, 4
      %v1791 = vrot.slane %v1717, 4
      %v1792 = vsel %vm843, %v1790, %v1791
      %v1793 = vrot.slane %v1718, 4
      %v1794 = vrot.slane %v1719, 4
      %v1795 = vsel %vm843, %v1793, %v1794
      %v1796 = vrot.slane %v1720, 4
      %v1797 = vrot.slane %v1721, 4
      %v1798 = vsel %vm843, %v1796, %v1797
      %v1799 = vrot.slane %v1722, 4
      %v1800 = vrot.slane %v1723, 4
      %v1801 = vsel %vm843, %v1799, %v1800
      %v1802 = vrot.slane %v1724, 4
      %v1803 = vrot.slane %v1725, 4
      %v1804 = vsel %vm843, %v1802, %v1803
      %v1805 = vrot.slane %v1726, 4
      %v1806 = vrot.slane %v1727, 4
      %v1807 = vsel %vm843, %v1805, %v1806
      %1808 = vrot.lane.b32.xlu0 %v1762, 16
      %v1809 = vpop.permute.xlu0 %1808
      %1810 = vrot.lane.b32.xlu0 %v1765, 16
      %v1811 = vpop.permute.xlu0 %1810
      %1812 = vrot.lane.b32.xlu0 %v1768, 16
      %v1813 = vpop.permute.xlu0 %1812
      %1814 = vrot.lane.b32.xlu0 %v1771, 16
      %v1815 = vpop.permute.xlu0 %1814
      %1816 = vrot.lane.b32.xlu0 %v1774, 16
      %v1817 = vpop.permute.xlu0 %1816
      %1818 = vrot.lane.b32.xlu0 %v1777, 16
      %v1819 = vpop.permute.xlu0 %1818
      %1820 = vrot.lane.b32.xlu0 %v1780, 16
      %v1821 = vpop.permute.xlu0 %1820
      %1822 = vrot.lane.b32.xlu0 %v1783, 16
      %v1823 = vpop.permute.xlu0 %1822
      %1824 = vrot.lane.b32.xlu0 %v1786, 16
      %v1825 = vpop.permute.xlu0 %1824
      %1826 = vrot.lane.b32.xlu0 %v1789, 16
      %v1827 = vpop.permute.xlu0 %1826
      %1828 = vrot.lane.b32.xlu0 %v1792, 16
      %v1829 = vpop.permute.xlu0 %1828
      %1830 = vrot.lane.b32.xlu0 %v1795, 16
      %v1831 = vpop.permute.xlu0 %1830
      %1832 = vrot.lane.b32.xlu0 %v1798, 16
      %v1833 = vpop.permute.xlu0 %1832
      %1834 = vrot.lane.b32.xlu0 %v1801, 16
      %v1835 = vpop.permute.xlu0 %1834
      %1836 = vrot.lane.b32.xlu0 %v1804, 16
      %v1837 = vpop.permute.xlu0 %1836
      %1838 = vrot.lane.b32.xlu0 %v1807, 16
      %v1839 = vpop.permute.xlu0 %1838
      %vm1856 = vcmask 162944
      %1857 = vst.msk [vmem:[#allocation4] sm:$0xff] %vm1856, %v1809
      %1858 = vst.msk [vmem:[#allocation4 + $0x28] sm:$0xff] %vm1856, %v1811
      %1859 = vst.msk [vmem:[#allocation4 + $0x50] sm:$0xff] %vm1856, %v1813
      %1860 = vst.msk [vmem:[#allocation4 + $0x78] sm:$0xff] %vm1856, %v1815
      %1861 = vst.msk [vmem:[#allocation4 + $0xa0] sm:$0xff] %vm1856, %v1817
      %1862 = vst.msk [vmem:[#allocation4 + $0xc8] sm:$0xff] %vm1856, %v1819
      %1863 = vst.msk [vmem:[#allocation4 + $0xf0] sm:$0xff] %vm1856, %v1821
      %1864 = vst.msk [vmem:[#allocation4 + $0x118] sm:$0xff] %vm1856, %v1823
      %1865 = vst.msk [vmem:[#allocation4 + $0x140] sm:$0xff] %vm1856, %v1825
      %1866 = vst.msk [vmem:[#allocation4 + $0x168] sm:$0xff] %vm1856, %v1827
      %1867 = vst.msk [vmem:[#allocation4 + $0x190] sm:$0xff] %vm1856, %v1829
      %1868 = vst.msk [vmem:[#allocation4 + $0x1b8] sm:$0xff] %vm1856, %v1831
      %1869 = vst.msk [vmem:[#allocation4 + $0x1e0] sm:$0xff] %vm1856, %v1833
      %1870 = vst.msk [vmem:[#allocation4 + $0x208] sm:$0xff] %vm1856, %v1835
      %1871 = vst.msk [vmem:[#allocation4 + $0x230] sm:$0xff] %vm1856, %v1837
      %1872 = vst.msk [vmem:[#allocation4 + $0x258] sm:$0xff] %vm1856, %v1839
      %v1873 = vld [vmem:[%s408] sm:$0xf0]
      %v1874 = vld [vmem:[%s408 + $0x8] sm:$0x1f]
      %v1875 = vld [vmem:[%s408 + $0x10] sm:$0xf0]
      %v1876 = vld [vmem:[%s408 + $0x18] sm:$0x1f]
      %v1877 = vld [vmem:[%s408 + $0x20] sm:$0xf0]
      %v1878 = vld [vmem:[%s408 + $0x28] sm:$0x1f]
      %v1879 = vld [vmem:[%s408 + $0x30] sm:$0xf0]
      %v1880 = vld [vmem:[%s408 + $0x38] sm:$0x1f]
      %v1881 = vld [vmem:[%s408 + $0x40] sm:$0xf0]
      %v1882 = vld [vmem:[%s408 + $0x48] sm:$0x1f]
      %v1883 = vld [vmem:[%s408 + $0x50] sm:$0xf0]
      %v1884 = vld [vmem:[%s408 + $0x58] sm:$0x1f]
      %v1885 = vld [vmem:[%s408 + $0x60] sm:$0xf0]
      %v1886 = vld [vmem:[%s408 + $0x68] sm:$0x1f]
      %v1887 = vld [vmem:[%s408 + $0x70] sm:$0xf0]
      %v1888 = vld [vmem:[%s408 + $0x78] sm:$0x1f]
      %v1889 = vld [vmem:[%s408 + $0x80] sm:$0xf0]
      %v1890 = vld [vmem:[%s408 + $0x88] sm:$0x1f]
      %v1891 = vld [vmem:[%s408 + $0x90] sm:$0xf0]
      %v1892 = vld [vmem:[%s408 + $0x98] sm:$0x1f]
      %v1893 = vld [vmem:[%s408 + $0xa0] sm:$0xf0]
      %v1894 = vld [vmem:[%s408 + $0xa8] sm:$0x1f]
      %v1895 = vld [vmem:[%s408 + $0xb0] sm:$0xf0]
      %v1896 = vld [vmem:[%s408 + $0xb8] sm:$0x1f]
      %v1897 = vld [vmem:[%s408 + $0xc0] sm:$0xf0]
      %v1898 = vld [vmem:[%s408 + $0xc8] sm:$0x1f]
      %v1899 = vld [vmem:[%s408 + $0xd0] sm:$0xf0]
      %v1900 = vld [vmem:[%s408 + $0xd8] sm:$0x1f]
      %v1901 = vld [vmem:[%s408 + $0xe0] sm:$0xf0]
      %v1902 = vld [vmem:[%s408 + $0xe8] sm:$0x1f]
      %v1903 = vld [vmem:[%s408 + $0xf0] sm:$0xf0]
      %v1904 = vld [vmem:[%s408 + $0xf8] sm:$0x1f]
      %v1906 = vshrl.u32 %v1873, 16
      %v1908 = vrot.slane %v1906, 4
      %v1909 = vshll.u32 %v1873, 16
      %v1911 = vrot.slane %v1909, 5
      %v1912 = vor.u32 %v1908, %v1911
      %v1914 = vshrl.u32 %v1874, 16
      %v1916 = vrot.slane %v1914, 4
      %v1917 = vshll.u32 %v1874, 16
      %v1919 = vrot.slane %v1917, 5
      %v1920 = vor.u32 %v1916, %v1919
      %v1921 = vsel %vm989, %v1912, %v1920
      %v1923 = vshrl.u32 %v1875, 16
      %v1925 = vrot.slane %v1923, 4
      %v1926 = vshll.u32 %v1875, 16
      %v1928 = vrot.slane %v1926, 5
      %v1929 = vor.u32 %v1925, %v1928
      %v1931 = vshrl.u32 %v1876, 16
      %v1933 = vrot.slane %v1931, 4
      %v1934 = vshll.u32 %v1876, 16
      %v1936 = vrot.slane %v1934, 5
      %v1937 = vor.u32 %v1933, %v1936
      %v1938 = vsel %vm989, %v1929, %v1937
      %v1940 = vshrl.u32 %v1877, 16
      %v1942 = vrot.slane %v1940, 4
      %v1943 = vshll.u32 %v1877, 16
      %v1945 = vrot.slane %v1943, 5
      %v1946 = vor.u32 %v1942, %v1945
      %v1948 = vshrl.u32 %v1878, 16
      %v1950 = vrot.slane %v1948, 4
      %v1951 = vshll.u32 %v1878, 16
      %v1953 = vrot.slane %v1951, 5
      %v1954 = vor.u32 %v1950, %v1953
      %v1955 = vsel %vm989, %v1946, %v1954
      %v1957 = vshrl.u32 %v1879, 16
      %v1959 = vrot.slane %v1957, 4
      %v1960 = vshll.u32 %v1879, 16
      %v1962 = vrot.slane %v1960, 5
      %v1963 = vor.u32 %v1959, %v1962
      %v1965 = vshrl.u32 %v1880, 16
      %v1967 = vrot.slane %v1965, 4
      %v1968 = vshll.u32 %v1880, 16
      %v1970 = vrot.slane %v1968, 5
      %v1971 = vor.u32 %v1967, %v1970
      %v1972 = vsel %vm989, %v1963, %v1971
      %v1974 = vshrl.u32 %v1881, 16
      %v1976 = vrot.slane %v1974, 4
      %v1977 = vshll.u32 %v1881, 16
      %v1979 = vrot.slane %v1977, 5
      %v1980 = vor.u32 %v1976, %v1979
      %v1982 = vshrl.u32 %v1882, 16
      %v1984 = vrot.slane %v1982, 4
      %v1985 = vshll.u32 %v1882, 16
      %v1987 = vrot.slane %v1985, 5
      %v1988 = vor.u32 %v1984, %v1987
      %v1989 = vsel %vm989, %v1980, %v1988
      %v1991 = vshrl.u32 %v1883, 16
      %v1993 = vrot.slane %v1991, 4
      %v1994 = vshll.u32 %v1883, 16
      %v1996 = vrot.slane %v1994, 5
      %v1997 = vor.u32 %v1993, %v1996
      %v1999 = vshrl.u32 %v1884, 16
      %v2001 = vrot.slane %v1999, 4
      %v2002 = vshll.u32 %v1884, 16
      %v2004 = vrot.slane %v2002, 5
      %v2005 = vor.u32 %v2001, %v2004
      %v2006 = vsel %vm989, %v1997, %v2005
      %v2008 = vshrl.u32 %v1885, 16
      %v2010 = vrot.slane %v2008, 4
      %v2011 = vshll.u32 %v1885, 16
      %v2013 = vrot.slane %v2011, 5
      %v2014 = vor.u32 %v2010, %v2013
      %v2016 = vshrl.u32 %v1886, 16
      %v2018 = vrot.slane %v2016, 4
      %v2019 = vshll.u32 %v1886, 16
      %v2021 = vrot.slane %v2019, 5
      %v2022 = vor.u32 %v2018, %v2021
      %v2023 = vsel %vm989, %v2014, %v2022
      %v2025 = vshrl.u32 %v1887, 16
      %v2027 = vrot.slane %v2025, 4
      %v2028 = vshll.u32 %v1887, 16
      %v2030 = vrot.slane %v2028, 5
      %v2031 = vor.u32 %v2027, %v2030
      %v2033 = vshrl.u32 %v1888, 16
      %v2035 = vrot.slane %v2033, 4
      %v2036 = vshll.u32 %v1888, 16
      %v2038 = vrot.slane %v2036, 5
      %v2039 = vor.u32 %v2035, %v2038
      %v2040 = vsel %vm989, %v2031, %v2039
      %v2042 = vshrl.u32 %v1889, 16
      %v2044 = vrot.slane %v2042, 4
      %v2045 = vshll.u32 %v1889, 16
      %v2047 = vrot.slane %v2045, 5
      %v2048 = vor.u32 %v2044, %v2047
      %v2050 = vshrl.u32 %v1890, 16
      %v2052 = vrot.slane %v2050, 4
      %v2053 = vshll.u32 %v1890, 16
      %v2055 = vrot.slane %v2053, 5
      %v2056 = vor.u32 %v2052, %v2055
      %v2057 = vsel %vm989, %v2048, %v2056
      %v2059 = vshrl.u32 %v1891, 16
      %v2061 = vrot.slane %v2059, 4
      %v2062 = vshll.u32 %v1891, 16
      %v2064 = vrot.slane %v2062, 5
      %v2065 = vor.u32 %v2061, %v2064
      %v2067 = vshrl.u32 %v1892, 16
      %v2069 = vrot.slane %v2067, 4
      %v2070 = vshll.u32 %v1892, 16
      %v2072 = vrot.slane %v2070, 5
      %v2073 = vor.u32 %v2069, %v2072
      %v2074 = vsel %vm989, %v2065, %v2073
      %v2076 = vshrl.u32 %v1893, 16
      %v2078 = vrot.slane %v2076, 4
      %v2079 = vshll.u32 %v1893, 16
      %v2081 = vrot.slane %v2079, 5
      %v2082 = vor.u32 %v2078, %v2081
      %v2084 = vshrl.u32 %v1894, 16
      %v2086 = vrot.slane %v2084, 4
      %v2087 = vshll.u32 %v1894, 16
      %v2089 = vrot.slane %v2087, 5
      %v2090 = vor.u32 %v2086, %v2089
      %v2091 = vsel %vm989, %v2082, %v2090
      %v2093 = vshrl.u32 %v1895, 16
      %v2095 = vrot.slane %v2093, 4
      %v2096 = vshll.u32 %v1895, 16
      %v2098 = vrot.slane %v2096, 5
      %v2099 = vor.u32 %v2095, %v2098
      %v2101 = vshrl.u32 %v1896, 16
      %v2103 = vrot.slane %v2101, 4
      %v2104 = vshll.u32 %v1896, 16
      %v2106 = vrot.slane %v2104, 5
      %v2107 = vor.u32 %v2103, %v2106
      %v2108 = vsel %vm989, %v2099, %v2107
      %v2110 = vshrl.u32 %v1897, 16
      %v2112 = vrot.slane %v2110, 4
      %v2113 = vshll.u32 %v1897, 16
      %v2115 = vrot.slane %v2113, 5
      %v2116 = vor.u32 %v2112, %v2115
      %v2118 = vshrl.u32 %v1898, 16
      %v2120 = vrot.slane %v2118, 4
      %v2121 = vshll.u32 %v1898, 16
      %v2123 = vrot.slane %v2121, 5
      %v2124 = vor.u32 %v2120, %v2123
      %v2125 = vsel %vm989, %v2116, %v2124
      %v2127 = vshrl.u32 %v1899, 16
      %v2129 = vrot.slane %v2127, 4
      %v2130 = vshll.u32 %v1899, 16
      %v2132 = vrot.slane %v2130, 5
      %v2133 = vor.u32 %v2129, %v2132
      %v2135 = vshrl.u32 %v1900, 16
      %v2137 = vrot.slane %v2135, 4
      %v2138 = vshll.u32 %v1900, 16
      %v2140 = vrot.slane %v2138, 5
      %v2141 = vor.u32 %v2137, %v2140
      %v2142 = vsel %vm989, %v2133, %v2141
      %v2144 = vshrl.u32 %v1901, 16
      %v2146 = vrot.slane %v2144, 4
      %v2147 = vshll.u32 %v1901, 16
      %v2149 = vrot.slane %v2147, 5
      %v2150 = vor.u32 %v2146, %v2149
      %v2152 = vshrl.u32 %v1902, 16
      %v2154 = vrot.slane %v2152, 4
      %v2155 = vshll.u32 %v1902, 16
      %v2157 = vrot.slane %v2155, 5
      %v2158 = vor.u32 %v2154, %v2157
      %v2159 = vsel %vm989, %v2150, %v2158
      %v2161 = vshrl.u32 %v1903, 16
      %v2163 = vrot.slane %v2161, 4
      %v2164 = vshll.u32 %v1903, 16
      %v2166 = vrot.slane %v2164, 5
      %v2167 = vor.u32 %v2163, %v2166
      %v2169 = vshrl.u32 %v1904, 16
      %v2171 = vrot.slane %v2169, 4
      %v2172 = vshll.u32 %v1904, 16
      %v2174 = vrot.slane %v2172, 5
      %v2175 = vor.u32 %v2171, %v2174
      %v2176 = vsel %vm989, %v2167, %v2175
      %2177 = vrot.lane.b32.xlu0 %v1921, 20
      %v2178 = vpop.permute.xlu0 %2177
      %2179 = vrot.lane.b32.xlu0 %v1938, 20
      %v2180 = vpop.permute.xlu0 %2179
      %2181 = vrot.lane.b32.xlu0 %v1955, 20
      %v2182 = vpop.permute.xlu0 %2181
      %2183 = vrot.lane.b32.xlu0 %v1972, 20
      %v2184 = vpop.permute.xlu0 %2183
      %2185 = vrot.lane.b32.xlu0 %v1989, 20
      %v2186 = vpop.permute.xlu0 %2185
      %2187 = vrot.lane.b32.xlu0 %v2006, 20
      %v2188 = vpop.permute.xlu0 %2187
      %2189 = vrot.lane.b32.xlu0 %v2023, 20
      %v2190 = vpop.permute.xlu0 %2189
      %2191 = vrot.lane.b32.xlu0 %v2040, 20
      %v2192 = vpop.permute.xlu0 %2191
      %2193 = vrot.lane.b32.xlu0 %v2057, 20
      %v2194 = vpop.permute.xlu0 %2193
      %2195 = vrot.lane.b32.xlu0 %v2074, 20
      %v2196 = vpop.permute.xlu0 %2195
      %2197 = vrot.lane.b32.xlu0 %v2091, 20
      %v2198 = vpop.permute.xlu0 %2197
      %2199 = vrot.lane.b32.xlu0 %v2108, 20
      %v2200 = vpop.permute.xlu0 %2199
      %2201 = vrot.lane.b32.xlu0 %v2125, 20
      %v2202 = vpop.permute.xlu0 %2201
      %2203 = vrot.lane.b32.xlu0 %v2142, 20
      %v2204 = vpop.permute.xlu0 %2203
      %2205 = vrot.lane.b32.xlu0 %v2159, 20
      %v2206 = vpop.permute.xlu0 %2205
      %2207 = vrot.lane.b32.xlu0 %v2176, 20
      %v2208 = vpop.permute.xlu0 %2207
      %vm2225 = vcmask 195744
      %2226 = vst.msk [vmem:[#allocation4] sm:$0xff] %vm2225, %v2178
      %2227 = vst.msk [vmem:[#allocation4 + $0x28] sm:$0xff] %vm2225, %v2180
      %2228 = vst.msk [vmem:[#allocation4 + $0x50] sm:$0xff] %vm2225, %v2182
      %2229 = vst.msk [vmem:[#allocation4 + $0x78] sm:$0xff] %vm2225, %v2184
      %2230 = vst.msk [vmem:[#allocation4 + $0xa0] sm:$0xff] %vm2225, %v2186
      %2231 = vst.msk [vmem:[#allocation4 + $0xc8] sm:$0xff] %vm2225, %v2188
      %2232 = vst.msk [vmem:[#allocation4 + $0xf0] sm:$0xff] %vm2225, %v2190
      %2233 = vst.msk [vmem:[#allocation4 + $0x118] sm:$0xff] %vm2225, %v2192
      %2234 = vst.msk [vmem:[#allocation4 + $0x140] sm:$0xff] %vm2225, %v2194
      %2235 = vst.msk [vmem:[#allocation4 + $0x168] sm:$0xff] %vm2225, %v2196
      %2236 = vst.msk [vmem:[#allocation4 + $0x190] sm:$0xff] %vm2225, %v2198
      %2237 = vst.msk [vmem:[#allocation4 + $0x1b8] sm:$0xff] %vm2225, %v2200
      %2238 = vst.msk [vmem:[#allocation4 + $0x1e0] sm:$0xff] %vm2225, %v2202
      %2239 = vst.msk [vmem:[#allocation4 + $0x208] sm:$0xff] %vm2225, %v2204
      %2240 = vst.msk [vmem:[#allocation4 + $0x230] sm:$0xff] %vm2225, %v2206
      %2241 = vst.msk [vmem:[#allocation4 + $0x258] sm:$0xff] %vm2225, %v2208
      %s2242 = scalar_lea.vmem [#allocation2], 32
      %v2243 = vld [vmem:[%s2242] sm:$0xf8]
      %v2244 = vld [vmem:[%s2242 + $0x8] sm:$0xf]
      %v2245 = vld [vmem:[%s2242 + $0x10] sm:$0xf8]
      %v2246 = vld [vmem:[%s2242 + $0x18] sm:$0xf]
      %v2247 = vld [vmem:[%s2242 + $0x20] sm:$0xf8]
      %v2248 = vld [vmem:[%s2242 + $0x28] sm:$0xf]
      %v2249 = vld [vmem:[%s2242 + $0x30] sm:$0xf8]
      %v2250 = vld [vmem:[%s2242 + $0x38] sm:$0xf]
      %v2251 = vld [vmem:[%s2242 + $0x40] sm:$0xf8]
      %v2252 = vld [vmem:[%s2242 + $0x48] sm:$0xf]
      %v2253 = vld [vmem:[%s2242 + $0x50] sm:$0xf8]
      %v2254 = vld [vmem:[%s2242 + $0x58] sm:$0xf]
      %v2255 = vld [vmem:[%s2242 + $0x60] sm:$0xf8]
      %v2256 = vld [vmem:[%s2242 + $0x68] sm:$0xf]
      %v2257 = vld [vmem:[%s2242 + $0x70] sm:$0xf8]
      %v2258 = vld [vmem:[%s2242 + $0x78] sm:$0xf]
      %v2259 = vld [vmem:[%s2242 + $0x80] sm:$0xf8]
      %v2260 = vld [vmem:[%s2242 + $0x88] sm:$0xf]
      %v2261 = vld [vmem:[%s2242 + $0x90] sm:$0xf8]
      %v2262 = vld [vmem:[%s2242 + $0x98] sm:$0xf]
      %v2263 = vld [vmem:[%s2242 + $0xa0] sm:$0xf8]
      %v2264 = vld [vmem:[%s2242 + $0xa8] sm:$0xf]
      %v2265 = vld [vmem:[%s2242 + $0xb0] sm:$0xf8]
      %v2266 = vld [vmem:[%s2242 + $0xb8] sm:$0xf]
      %v2267 = vld [vmem:[%s2242 + $0xc0] sm:$0xf8]
      %v2268 = vld [vmem:[%s2242 + $0xc8] sm:$0xf]
      %v2269 = vld [vmem:[%s2242 + $0xd0] sm:$0xf8]
      %v2270 = vld [vmem:[%s2242 + $0xd8] sm:$0xf]
      %v2271 = vld [vmem:[%s2242 + $0xe0] sm:$0xf8]
      %v2272 = vld [vmem:[%s2242 + $0xe8] sm:$0xf]
      %v2273 = vld [vmem:[%s2242 + $0xf0] sm:$0xf8]
      %v2274 = vld [vmem:[%s2242 + $0xf8] sm:$0xf]
      %v2276 = vshrl.u32 %v2243, 16
      %v2278 = vrot.slane %v2276, 3
      %v2279 = vshll.u32 %v2243, 16
      %v2281 = vrot.slane %v2279, 4
      %v2282 = vor.u32 %v2278, %v2281
      %v2284 = vshrl.u32 %v2244, 16
      %v2286 = vrot.slane %v2284, 3
      %v2287 = vshll.u32 %v2244, 16
      %v2289 = vrot.slane %v2287, 4
      %v2290 = vor.u32 %v2286, %v2289
      %v2291 = vsel %vm473, %v2282, %v2290
      %v2293 = vshrl.u32 %v2245, 16
      %v2295 = vrot.slane %v2293, 3
      %v2296 = vshll.u32 %v2245, 16
      %v2298 = vrot.slane %v2296, 4
      %v2299 = vor.u32 %v2295, %v2298
      %v2301 = vshrl.u32 %v2246, 16
      %v2303 = vrot.slane %v2301, 3
      %v2304 = vshll.u32 %v2246, 16
      %v2306 = vrot.slane %v2304, 4
      %v2307 = vor.u32 %v2303, %v2306
      %v2308 = vsel %vm473, %v2299, %v2307
      %v2310 = vshrl.u32 %v2247, 16
      %v2312 = vrot.slane %v2310, 3
      %v2313 = vshll.u32 %v2247, 16
      %v2315 = vrot.slane %v2313, 4
      %v2316 = vor.u32 %v2312, %v2315
      %v2318 = vshrl.u32 %v2248, 16
      %v2320 = vrot.slane %v2318, 3
      %v2321 = vshll.u32 %v2248, 16
      %v2323 = vrot.slane %v2321, 4
      %v2324 = vor.u32 %v2320, %v2323
      %v2325 = vsel %vm473, %v2316, %v2324
      %v2327 = vshrl.u32 %v2249, 16
      %v2329 = vrot.slane %v2327, 3
      %v2330 = vshll.u32 %v2249, 16
      %v2332 = vrot.slane %v2330, 4
      %v2333 = vor.u32 %v2329, %v2332
      %v2335 = vshrl.u32 %v2250, 16
      %v2337 = vrot.slane %v2335, 3
      %v2338 = vshll.u32 %v2250, 16
      %v2340 = vrot.slane %v2338, 4
      %v2341 = vor.u32 %v2337, %v2340
      %v2342 = vsel %vm473, %v2333, %v2341
      %v2344 = vshrl.u32 %v2251, 16
      %v2346 = vrot.slane %v2344, 3
      %v2347 = vshll.u32 %v2251, 16
      %v2349 = vrot.slane %v2347, 4
      %v2350 = vor.u32 %v2346, %v2349
      %v2352 = vshrl.u32 %v2252, 16
      %v2354 = vrot.slane %v2352, 3
      %v2355 = vshll.u32 %v2252, 16
      %v2357 = vrot.slane %v2355, 4
      %v2358 = vor.u32 %v2354, %v2357
      %v2359 = vsel %vm473, %v2350, %v2358
      %v2361 = vshrl.u32 %v2253, 16
      %v2363 = vrot.slane %v2361, 3
      %v2364 = vshll.u32 %v2253, 16
      %v2366 = vrot.slane %v2364, 4
      %v2367 = vor.u32 %v2363, %v2366
      %v2369 = vshrl.u32 %v2254, 16
      %v2371 = vrot.slane %v2369, 3
      %v2372 = vshll.u32 %v2254, 16
      %v2374 = vrot.slane %v2372, 4
      %v2375 = vor.u32 %v2371, %v2374
      %v2376 = vsel %vm473, %v2367, %v2375
      %v2378 = vshrl.u32 %v2255, 16
      %v2380 = vrot.slane %v2378, 3
      %v2381 = vshll.u32 %v2255, 16
      %v2383 = vrot.slane %v2381, 4
      %v2384 = vor.u32 %v2380, %v2383
      %v2386 = vshrl.u32 %v2256, 16
      %v2388 = vrot.slane %v2386, 3
      %v2389 = vshll.u32 %v2256, 16
      %v2391 = vrot.slane %v2389, 4
      %v2392 = vor.u32 %v2388, %v2391
      %v2393 = vsel %vm473, %v2384, %v2392
      %v2395 = vshrl.u32 %v2257, 16
      %v2397 = vrot.slane %v2395, 3
      %v2398 = vshll.u32 %v2257, 16
      %v2400 = vrot.slane %v2398, 4
      %v2401 = vor.u32 %v2397, %v2400
      %v2403 = vshrl.u32 %v2258, 16
      %v2405 = vrot.slane %v2403, 3
      %v2406 = vshll.u32 %v2258, 16
      %v2408 = vrot.slane %v2406, 4
      %v2409 = vor.u32 %v2405, %v2408
      %v2410 = vsel %vm473, %v2401, %v2409
      %v2412 = vshrl.u32 %v2259, 16
      %v2414 = vrot.slane %v2412, 3
      %v2415 = vshll.u32 %v2259, 16
      %v2417 = vrot.slane %v2415, 4
      %v2418 = vor.u32 %v2414, %v2417
      %v2420 = vshrl.u32 %v2260, 16
      %v2422 = vrot.slane %v2420, 3
      %v2423 = vshll.u32 %v2260, 16
      %v2425 = vrot.slane %v2423, 4
      %v2426 = vor.u32 %v2422, %v2425
      %v2427 = vsel %vm473, %v2418, %v2426
      %v2429 = vshrl.u32 %v2261, 16
      %v2431 = vrot.slane %v2429, 3
      %v2432 = vshll.u32 %v2261, 16
      %v2434 = vrot.slane %v2432, 4
      %v2435 = vor.u32 %v2431, %v2434
      %v2437 = vshrl.u32 %v2262, 16
      %v2439 = vrot.slane %v2437, 3
      %v2440 = vshll.u32 %v2262, 16
      %v2442 = vrot.slane %v2440, 4
      %v2443 = vor.u32 %v2439, %v2442
      %v2444 = vsel %vm473, %v2435, %v2443
      %v2446 = vshrl.u32 %v2263, 16
      %v2448 = vrot.slane %v2446, 3
      %v2449 = vshll.u32 %v2263, 16
      %v2451 = vrot.slane %v2449, 4
      %v2452 = vor.u32 %v2448, %v2451
      %v2454 = vshrl.u32 %v2264, 16
      %v2456 = vrot.slane %v2454, 3
      %v2457 = vshll.u32 %v2264, 16
      %v2459 = vrot.slane %v2457, 4
      %v2460 = vor.u32 %v2456, %v2459
      %v2461 = vsel %vm473, %v2452, %v2460
      %v2463 = vshrl.u32 %v2265, 16
      %v2465 = vrot.slane %v2463, 3
      %v2466 = vshll.u32 %v2265, 16
      %v2468 = vrot.slane %v2466, 4
      %v2469 = vor.u32 %v2465, %v2468
      %v2471 = vshrl.u32 %v2266, 16
      %v2473 = vrot.slane %v2471, 3
      %v2474 = vshll.u32 %v2266, 16
      %v2476 = vrot.slane %v2474, 4
      %v2477 = vor.u32 %v2473, %v2476
      %v2478 = vsel %vm473, %v2469, %v2477
      %v2480 = vshrl.u32 %v2267, 16
      %v2482 = vrot.slane %v2480, 3
      %v2483 = vshll.u32 %v2267, 16
      %v2485 = vrot.slane %v2483, 4
      %v2486 = vor.u32 %v2482, %v2485
      %v2488 = vshrl.u32 %v2268, 16
      %v2490 = vrot.slane %v2488, 3
      %v2491 = vshll.u32 %v2268, 16
      %v2493 = vrot.slane %v2491, 4
      %v2494 = vor.u32 %v2490, %v2493
      %v2495 = vsel %vm473, %v2486, %v2494
      %v2497 = vshrl.u32 %v2269, 16
      %v2499 = vrot.slane %v2497, 3
      %v2500 = vshll.u32 %v2269, 16
      %v2502 = vrot.slane %v2500, 4
      %v2503 = vor.u32 %v2499, %v2502
      %v2505 = vshrl.u32 %v2270, 16
      %v2507 = vrot.slane %v2505, 3
      %v2508 = vshll.u32 %v2270, 16
      %v2510 = vrot.slane %v2508, 4
      %v2511 = vor.u32 %v2507, %v2510
      %v2512 = vsel %vm473, %v2503, %v2511
      %v2514 = vshrl.u32 %v2271, 16
      %v2516 = vrot.slane %v2514, 3
      %v2517 = vshll.u32 %v2271, 16
      %v2519 = vrot.slane %v2517, 4
      %v2520 = vor.u32 %v2516, %v2519
      %v2522 = vshrl.u32 %v2272, 16
      %v2524 = vrot.slane %v2522, 3
      %v2525 = vshll.u32 %v2272, 16
      %v2527 = vrot.slane %v2525, 4
      %v2528 = vor.u32 %v2524, %v2527
      %v2529 = vsel %vm473, %v2520, %v2528
      %v2531 = vshrl.u32 %v2273, 16
      %v2533 = vrot.slane %v2531, 3
      %v2534 = vshll.u32 %v2273, 16
      %v2536 = vrot.slane %v2534, 4
      %v2537 = vor.u32 %v2533, %v2536
      %v2539 = vshrl.u32 %v2274, 16
      %v2541 = vrot.slane %v2539, 3
      %v2542 = vshll.u32 %v2274, 16
      %v2544 = vrot.slane %v2542, 4
      %v2545 = vor.u32 %v2541, %v2544
      %v2546 = vsel %vm473, %v2537, %v2545
      %2547 = vrot.lane.b32.xlu0 %v2291, 24
      %v2548 = vpop.permute.xlu0 %2547
      %2549 = vrot.lane.b32.xlu0 %v2308, 24
      %v2550 = vpop.permute.xlu0 %2549
      %2551 = vrot.lane.b32.xlu0 %v2325, 24
      %v2552 = vpop.permute.xlu0 %2551
      %2553 = vrot.lane.b32.xlu0 %v2342, 24
      %v2554 = vpop.permute.xlu0 %2553
      %2555 = vrot.lane.b32.xlu0 %v2359, 24
      %v2556 = vpop.permute.xlu0 %2555
      %2557 = vrot.lane.b32.xlu0 %v2376, 24
      %v2558 = vpop.permute.xlu0 %2557
      %2559 = vrot.lane.b32.xlu0 %v2393, 24
      %v2560 = vpop.permute.xlu0 %2559
      %2561 = vrot.lane.b32.xlu0 %v2410, 24
      %v2562 = vpop.permute.xlu0 %2561
      %2563 = vrot.lane.b32.xlu0 %v2427, 24
      %v2564 = vpop.permute.xlu0 %2563
      %2565 = vrot.lane.b32.xlu0 %v2444, 24
      %v2566 = vpop.permute.xlu0 %2565
      %2567 = vrot.lane.b32.xlu0 %v2461, 24
      %v2568 = vpop.permute.xlu0 %2567
      %2569 = vrot.lane.b32.xlu0 %v2478, 24
      %v2570 = vpop.permute.xlu0 %2569
      %2571 = vrot.lane.b32.xlu0 %v2495, 24
      %v2572 = vpop.permute.xlu0 %2571
      %2573 = vrot.lane.b32.xlu0 %v2512, 24
      %v2574 = vpop.permute.xlu0 %2573
      %2575 = vrot.lane.b32.xlu0 %v2529, 24
      %v2576 = vpop.permute.xlu0 %2575
      %2577 = vrot.lane.b32.xlu0 %v2546, 24
      %v2578 = vpop.permute.xlu0 %2577
      %vm2595 = vcmask 228544
      %2596 = vst.msk [vmem:[#allocation4] sm:$0xff] %vm2595, %v2548
      %2597 = vst.msk [vmem:[#allocation4 + $0x28] sm:$0xff] %vm2595, %v2550
      %2598 = vst.msk [vmem:[#allocation4 + $0x50] sm:$0xff] %vm2595, %v2552
      %2599 = vst.msk [vmem:[#allocation4 + $0x78] sm:$0xff] %vm2595, %v2554
      %2600 = vst.msk [vmem:[#allocation4 + $0xa0] sm:$0xff] %vm2595, %v2556
      %2601 = vst.msk [vmem:[#allocation4 + $0xc8] sm:$0xff] %vm2595, %v2558
      %2602 = vst.msk [vmem:[#allocation4 + $0xf0] sm:$0xff] %vm2595, %v2560
      %2603 = vst.msk [vmem:[#allocation4 + $0x118] sm:$0xff] %vm2595, %v2562
      %2604 = vst.msk [vmem:[#allocation4 + $0x140] sm:$0xff] %vm2595, %v2564
      %2605 = vst.msk [vmem:[#allocation4 + $0x168] sm:$0xff] %vm2595, %v2566
      %2606 = vst.msk [vmem:[#allocation4 + $0x190] sm:$0xff] %vm2595, %v2568
      %2607 = vst.msk [vmem:[#allocation4 + $0x1b8] sm:$0xff] %vm2595, %v2570
      %2608 = vst.msk [vmem:[#allocation4 + $0x1e0] sm:$0xff] %vm2595, %v2572
      %2609 = vst.msk [vmem:[#allocation4 + $0x208] sm:$0xff] %vm2595, %v2574
      %2610 = vst.msk [vmem:[#allocation4 + $0x230] sm:$0xff] %vm2595, %v2576
      %2611 = vst.msk [vmem:[#allocation4 + $0x258] sm:$0xff] %vm2595, %v2578
      %v2612 = vld [vmem:[%s2242] sm:$0xf0]
      %v2613 = vld [vmem:[%s2242 + $0x8] sm:$0xf]
      %v2614 = vld [vmem:[%s2242 + $0x10] sm:$0xf0]
      %v2615 = vld [vmem:[%s2242 + $0x18] sm:$0xf]
      %v2616 = vld [vmem:[%s2242 + $0x20] sm:$0xf0]
      %v2617 = vld [vmem:[%s2242 + $0x28] sm:$0xf]
      %v2618 = vld [vmem:[%s2242 + $0x30] sm:$0xf0]
      %v2619 = vld [vmem:[%s2242 + $0x38] sm:$0xf]
      %v2620 = vld [vmem:[%s2242 + $0x40] sm:$0xf0]
      %v2621 = vld [vmem:[%s2242 + $0x48] sm:$0xf]
      %v2622 = vld [vmem:[%s2242 + $0x50] sm:$0xf0]
      %v2623 = vld [vmem:[%s2242 + $0x58] sm:$0xf]
      %v2624 = vld [vmem:[%s2242 + $0x60] sm:$0xf0]
      %v2625 = vld [vmem:[%s2242 + $0x68] sm:$0xf]
      %v2626 = vld [vmem:[%s2242 + $0x70] sm:$0xf0]
      %v2627 = vld [vmem:[%s2242 + $0x78] sm:$0xf]
      %v2628 = vld [vmem:[%s2242 + $0x80] sm:$0xf0]
      %v2629 = vld [vmem:[%s2242 + $0x88] sm:$0xf]
      %v2630 = vld [vmem:[%s2242 + $0x90] sm:$0xf0]
      %v2631 = vld [vmem:[%s2242 + $0x98] sm:$0xf]
      %v2632 = vld [vmem:[%s2242 + $0xa0] sm:$0xf0]
      %v2633 = vld [vmem:[%s2242 + $0xa8] sm:$0xf]
      %v2634 = vld [vmem:[%s2242 + $0xb0] sm:$0xf0]
      %v2635 = vld [vmem:[%s2242 + $0xb8] sm:$0xf]
      %v2636 = vld [vmem:[%s2242 + $0xc0] sm:$0xf0]
      %v2637 = vld [vmem:[%s2242 + $0xc8] sm:$0xf]
      %v2638 = vld [vmem:[%s2242 + $0xd0] sm:$0xf0]
      %v2639 = vld [vmem:[%s2242 + $0xd8] sm:$0xf]
      %v2640 = vld [vmem:[%s2242 + $0xe0] sm:$0xf0]
      %v2641 = vld [vmem:[%s2242 + $0xe8] sm:$0xf]
      %v2642 = vld [vmem:[%s2242 + $0xf0] sm:$0xf0]
      %v2643 = vld [vmem:[%s2242 + $0xf8] sm:$0xf]
      %v2676 = vrot.slane %v2612, 4
      %v2677 = vrot.slane %v2613, 4
      %v2678 = vsel %vm843, %v2676, %v2677
      %v2679 = vrot.slane %v2614, 4
      %v2680 = vrot.slane %v2615, 4
      %v2681 = vsel %vm843, %v2679, %v2680
      %v2682 = vrot.slane %v2616, 4
      %v2683 = vrot.slane %v2617, 4
      %v2684 = vsel %vm843, %v2682, %v2683
      %v2685 = vrot.slane %v2618, 4
      %v2686 = vrot.slane %v2619, 4
      %v2687 = vsel %vm843, %v2685, %v2686
      %v2688 = vrot.slane %v2620, 4
      %v2689 = vrot.slane %v2621, 4
      %v2690 = vsel %vm843, %v2688, %v2689
      %v2691 = vrot.slane %v2622, 4
      %v2692 = vrot.slane %v2623, 4
      %v2693 = vsel %vm843, %v2691, %v2692
      %v2694 = vrot.slane %v2624, 4
      %v2695 = vrot.slane %v2625, 4
      %v2696 = vsel %vm843, %v2694, %v2695
      %v2697 = vrot.slane %v2626, 4
      %v2698 = vrot.slane %v2627, 4
      %v2699 = vsel %vm843, %v2697, %v2698
      %v2700 = vrot.slane %v2628, 4
      %v2701 = vrot.slane %v2629, 4
      %v2702 = vsel %vm843, %v2700, %v2701
      %v2703 = vrot.slane %v2630, 4
      %v2704 = vrot.slane %v2631, 4
      %v2705 = vsel %vm843, %v2703, %v2704
      %v2706 = vrot.slane %v2632, 4
      %v2707 = vrot.slane %v2633, 4
      %v2708 = vsel %vm843, %v2706, %v2707
      %v2709 = vrot.slane %v2634, 4
      %v2710 = vrot.slane %v2635, 4
      %v2711 = vsel %vm843, %v2709, %v2710
      %v2712 = vrot.slane %v2636, 4
      %v2713 = vrot.slane %v2637, 4
      %v2714 = vsel %vm843, %v2712, %v2713
      %v2715 = vrot.slane %v2638, 4
      %v2716 = vrot.slane %v2639, 4
      %v2717 = vsel %vm843, %v2715, %v2716
      %v2718 = vrot.slane %v2640, 4
      %v2719 = vrot.slane %v2641, 4
      %v2720 = vsel %vm843, %v2718, %v2719
      %v2721 = vrot.slane %v2642, 4
      %v2722 = vrot.slane %v2643, 4
      %v2723 = vsel %vm843, %v2721, %v2722
      %2724 = vrot.lane.b32.xlu0 %v2678, 28
      %v2725 = vpop.permute.xlu0 %2724
      %2726 = vrot.lane.b32.xlu0 %v2681, 28
      %v2727 = vpop.permute.xlu0 %2726
      %2728 = vrot.lane.b32.xlu0 %v2684, 28
      %v2729 = vpop.permute.xlu0 %2728
      %2730 = vrot.lane.b32.xlu0 %v2687, 28
      %v2731 = vpop.permute.xlu0 %2730
      %2732 = vrot.lane.b32.xlu0 %v2690, 28
      %v2733 = vpop.permute.xlu0 %2732
      %2734 = vrot.lane.b32.xlu0 %v2693, 28
      %v2735 = vpop.permute.xlu0 %2734
      %2736 = vrot.lane.b32.xlu0 %v2696, 28
      %v2737 = vpop.permute.xlu0 %2736
      %2738 = vrot.lane.b32.xlu0 %v2699, 28
      %v2739 = vpop.permute.xlu0 %2738
      %2740 = vrot.lane.b32.xlu0 %v2702, 28
      %v2741 = vpop.permute.xlu0 %2740
      %2742 = vrot.lane.b32.xlu0 %v2705, 28
      %v2743 = vpop.permute.xlu0 %2742
      %2744 = vrot.lane.b32.xlu0 %v2708, 28
      %v2745 = vpop.permute.xlu0 %2744
      %2746 = vrot.lane.b32.xlu0 %v2711, 28
      %v2747 = vpop.permute.xlu0 %2746
      %2748 = vrot.lane.b32.xlu0 %v2714, 28
      %v2749 = vpop.permute.xlu0 %2748
      %2750 = vrot.lane.b32.xlu0 %v2717, 28
      %v2751 = vpop.permute.xlu0 %2750
      %2752 = vrot.lane.b32.xlu0 %v2720, 28
      %v2753 = vpop.permute.xlu0 %2752
      %2754 = vrot.lane.b32.xlu0 %v2723, 28
      %v2755 = vpop.permute.xlu0 %2754
      %vm2772 = vcmask 261344
      %2773 = vst.msk [vmem:[#allocation4] sm:$0xff] %vm2772, %v2725
      %2774 = vst.msk [vmem:[#allocation4 + $0x28] sm:$0xff] %vm2772, %v2727
      %2775 = vst.msk [vmem:[#allocation4 + $0x50] sm:$0xff] %vm2772, %v2729
      %2776 = vst.msk [vmem:[#allocation4 + $0x78] sm:$0xff] %vm2772, %v2731
      %2777 = vst.msk [vmem:[#allocation4 + $0xa0] sm:$0xff] %vm2772, %v2733
      %2778 = vst.msk [vmem:[#allocation4 + $0xc8] sm:$0xff] %vm2772, %v2735
      %2779 = vst.msk [vmem:[#allocation4 + $0xf0] sm:$0xff] %vm2772, %v2737
      %2780 = vst.msk [vmem:[#allocation4 + $0x118] sm:$0xff] %vm2772, %v2739
      %2781 = vst.msk [vmem:[#allocation4 + $0x140] sm:$0xff] %vm2772, %v2741
      %2782 = vst.msk [vmem:[#allocation4 + $0x168] sm:$0xff] %vm2772, %v2743
      %2783 = vst.msk [vmem:[#allocation4 + $0x190] sm:$0xff] %vm2772, %v2745
      %2784 = vst.msk [vmem:[#allocation4 + $0x1b8] sm:$0xff] %vm2772, %v2747
      %2785 = vst.msk [vmem:[#allocation4 + $0x1e0] sm:$0xff] %vm2772, %v2749
      %2786 = vst.msk [vmem:[#allocation4 + $0x208] sm:$0xff] %vm2772, %v2751
      %2787 = vst.msk [vmem:[#allocation4 + $0x230] sm:$0xff] %vm2772, %v2753
      %2788 = vst.msk [vmem:[#allocation4 + $0x258] sm:$0xff] %vm2772, %v2755
      %v2789 = vld [vmem:[%s2242] sm:$0xf0]
      %v2790 = vld [vmem:[%s2242 + $0x8] sm:$0x1f]
      %v2791 = vld [vmem:[%s2242 + $0x10] sm:$0xf0]
      %v2792 = vld [vmem:[%s2242 + $0x18] sm:$0x1f]
      %v2793 = vld [vmem:[%s2242 + $0x20] sm:$0xf0]
      %v2794 = vld [vmem:[%s2242 + $0x28] sm:$0x1f]
      %v2795 = vld [vmem:[%s2242 + $0x30] sm:$0xf0]
      %v2796 = vld [vmem:[%s2242 + $0x38] sm:$0x1f]
      %v2797 = vld [vmem:[%s2242 + $0x40] sm:$0xf0]
      %v2798 = vld [vmem:[%s2242 + $0x48] sm:$0x1f]
      %v2799 = vld [vmem:[%s2242 + $0x50] sm:$0xf0]
      %v2800 = vld [vmem:[%s2242 + $0x58] sm:$0x1f]
      %v2801 = vld [vmem:[%s2242 + $0x60] sm:$0xf0]
      %v2802 = vld [vmem:[%s2242 + $0x68] sm:$0x1f]
      %v2803 = vld [vmem:[%s2242 + $0x70] sm:$0xf0]
      %v2804 = vld [vmem:[%s2242 + $0x78] sm:$0x1f]
      %v2805 = vld [vmem:[%s2242 + $0x80] sm:$0xf0]
      %v2806 = vld [vmem:[%s2242 + $0x88] sm:$0x1f]
      %v2807 = vld [vmem:[%s2242 + $0x90] sm:$0xf0]
      %v2808 = vld [vmem:[%s2242 + $0x98] sm:$0x1f]
      %v2809 = vld [vmem:[%s2242 + $0xa0] sm:$0xf0]
      %v2810 = vld [vmem:[%s2242 + $0xa8] sm:$0x1f]
      %v2811 = vld [vmem:[%s2242 + $0xb0] sm:$0xf0]
      %v2812 = vld [vmem:[%s2242 + $0xb8] sm:$0x1f]
      %v2813 = vld [vmem:[%s2242 + $0xc0] sm:$0xf0]
      %v2814 = vld [vmem:[%s2242 + $0xc8] sm:$0x1f]
      %v2815 = vld [vmem:[%s2242 + $0xd0] sm:$0xf0]
      %v2816 = vld [vmem:[%s2242 + $0xd8] sm:$0x1f]
      %v2817 = vld [vmem:[%s2242 + $0xe0] sm:$0xf0]
      %v2818 = vld [vmem:[%s2242 + $0xe8] sm:$0x1f]
      %v2819 = vld [vmem:[%s2242 + $0xf0] sm:$0xf0]
      %v2820 = vld [vmem:[%s2242 + $0xf8] sm:$0x1f]
      %v2822 = vshrl.u32 %v2789, 16
      %v2824 = vrot.slane %v2822, 4
      %v2825 = vshll.u32 %v2789, 16
      %v2827 = vrot.slane %v2825, 5
      %v2828 = vor.u32 %v2824, %v2827
      %v2830 = vshrl.u32 %v2790, 16
      %v2832 = vrot.slane %v2830, 4
      %v2833 = vshll.u32 %v2790, 16
      %v2835 = vrot.slane %v2833, 5
      %v2836 = vor.u32 %v2832, %v2835
      %v2837 = vsel %vm989, %v2828, %v2836
      %v2839 = vshrl.u32 %v2791, 16
      %v2841 = vrot.slane %v2839, 4
      %v2842 = vshll.u32 %v2791, 16
      %v2844 = vrot.slane %v2842, 5
      %v2845 = vor.u32 %v2841, %v2844
      %v2847 = vshrl.u32 %v2792, 16
      %v2849 = vrot.slane %v2847, 4
      %v2850 = vshll.u32 %v2792, 16
      %v2852 = vrot.slane %v2850, 5
      %v2853 = vor.u32 %v2849, %v2852
      %v2854 = vsel %vm989, %v2845, %v2853
      %v2856 = vshrl.u32 %v2793, 16
      %v2858 = vrot.slane %v2856, 4
      %v2859 = vshll.u32 %v2793, 16
      %v2861 = vrot.slane %v2859, 5
      %v2862 = vor.u32 %v2858, %v2861
      %v2864 = vshrl.u32 %v2794, 16
      %v2866 = vrot.slane %v2864, 4
      %v2867 = vshll.u32 %v2794, 16
      %v2869 = vrot.slane %v2867, 5
      %v2870 = vor.u32 %v2866, %v2869
      %v2871 = vsel %vm989, %v2862, %v2870
      %v2873 = vshrl.u32 %v2795, 16
      %v2875 = vrot.slane %v2873, 4
      %v2876 = vshll.u32 %v2795, 16
      %v2878 = vrot.slane %v2876, 5
      %v2879 = vor.u32 %v2875, %v2878
      %v2881 = vshrl.u32 %v2796, 16
      %v2883 = vrot.slane %v2881, 4
      %v2884 = vshll.u32 %v2796, 16
      %v2886 = vrot.slane %v2884, 5
      %v2887 = vor.u32 %v2883, %v2886
      %v2888 = vsel %vm989, %v2879, %v2887
      %v2890 = vshrl.u32 %v2797, 16
      %v2892 = vrot.slane %v2890, 4
      %v2893 = vshll.u32 %v2797, 16
      %v2895 = vrot.slane %v2893, 5
      %v2896 = vor.u32 %v2892, %v2895
      %v2898 = vshrl.u32 %v2798, 16
      %v2900 = vrot.slane %v2898, 4
      %v2901 = vshll.u32 %v2798, 16
      %v2903 = vrot.slane %v2901, 5
      %v2904 = vor.u32 %v2900, %v2903
      %v2905 = vsel %vm989, %v2896, %v2904
      %v2907 = vshrl.u32 %v2799, 16
      %v2909 = vrot.slane %v2907, 4
      %v2910 = vshll.u32 %v2799, 16
      %v2912 = vrot.slane %v2910, 5
      %v2913 = vor.u32 %v2909, %v2912
      %v2915 = vshrl.u32 %v2800, 16
      %v2917 = vrot.slane %v2915, 4
      %v2918 = vshll.u32 %v2800, 16
      %v2920 = vrot.slane %v2918, 5
      %v2921 = vor.u32 %v2917, %v2920
      %v2922 = vsel %vm989, %v2913, %v2921
      %v2924 = vshrl.u32 %v2801, 16
      %v2926 = vrot.slane %v2924, 4
      %v2927 = vshll.u32 %v2801, 16
      %v2929 = vrot.slane %v2927, 5
      %v2930 = vor.u32 %v2926, %v2929
      %v2932 = vshrl.u32 %v2802, 16
      %v2934 = vrot.slane %v2932, 4
      %v2935 = vshll.u32 %v2802, 16
      %v2937 = vrot.slane %v2935, 5
      %v2938 = vor.u32 %v2934, %v2937
      %v2939 = vsel %vm989, %v2930, %v2938
      %v2941 = vshrl.u32 %v2803, 16
      %v2943 = vrot.slane %v2941, 4
      %v2944 = vshll.u32 %v2803, 16
      %v2946 = vrot.slane %v2944, 5
      %v2947 = vor.u32 %v2943, %v2946
      %v2949 = vshrl.u32 %v2804, 16
      %v2951 = vrot.slane %v2949, 4
      %v2952 = vshll.u32 %v2804, 16
      %v2954 = vrot.slane %v2952, 5
      %v2955 = vor.u32 %v2951, %v2954
      %v2956 = vsel %vm989, %v2947, %v2955
      %v2958 = vshrl.u32 %v2805, 16
      %v2960 = vrot.slane %v2958, 4
      %v2961 = vshll.u32 %v2805, 16
      %v2963 = vrot.slane %v2961, 5
      %v2964 = vor.u32 %v2960, %v2963
      %v2966 = vshrl.u32 %v2806, 16
      %v2968 = vrot.slane %v2966, 4
      %v2969 = vshll.u32 %v2806, 16
      %v2971 = vrot.slane %v2969, 5
      %v2972 = vor.u32 %v2968, %v2971
      %v2973 = vsel %vm989, %v2964, %v2972
      %v2975 = vshrl.u32 %v2807, 16
      %v2977 = vrot.slane %v2975, 4
      %v2978 = vshll.u32 %v2807, 16
      %v2980 = vrot.slane %v2978, 5
      %v2981 = vor.u32 %v2977, %v2980
      %v2983 = vshrl.u32 %v2808, 16
      %v2985 = vrot.slane %v2983, 4
      %v2986 = vshll.u32 %v2808, 16
      %v2988 = vrot.slane %v2986, 5
      %v2989 = vor.u32 %v2985, %v2988
      %v2990 = vsel %vm989, %v2981, %v2989
      %v2992 = vshrl.u32 %v2809, 16
      %v2994 = vrot.slane %v2992, 4
      %v2995 = vshll.u32 %v2809, 16
      %v2997 = vrot.slane %v2995, 5
      %v2998 = vor.u32 %v2994, %v2997
      %v3000 = vshrl.u32 %v2810, 16
      %v3002 = vrot.slane %v3000, 4
      %v3003 = vshll.u32 %v2810, 16
      %v3005 = vrot.slane %v3003, 5
      %v3006 = vor.u32 %v3002, %v3005
      %v3007 = vsel %vm989, %v2998, %v3006
      %v3009 = vshrl.u32 %v2811, 16
      %v3011 = vrot.slane %v3009, 4
      %v3012 = vshll.u32 %v2811, 16
      %v3014 = vrot.slane %v3012, 5
      %v3015 = vor.u32 %v3011, %v3014
      %v3017 = vshrl.u32 %v2812, 16
      %v3019 = vrot.slane %v3017, 4
      %v3020 = vshll.u32 %v2812, 16
      %v3022 = vrot.slane %v3020, 5
      %v3023 = vor.u32 %v3019, %v3022
      %v3024 = vsel %vm989, %v3015, %v3023
      %v3026 = vshrl.u32 %v2813, 16
      %v3028 = vrot.slane %v3026, 4
      %v3029 = vshll.u32 %v2813, 16
      %v3031 = vrot.slane %v3029, 5
      %v3032 = vor.u32 %v3028, %v3031
      %v3034 = vshrl.u32 %v2814, 16
      %v3036 = vrot.slane %v3034, 4
      %v3037 = vshll.u32 %v2814, 16
      %v3039 = vrot.slane %v3037, 5
      %v3040 = vor.u32 %v3036, %v3039
      %v3041 = vsel %vm989, %v3032, %v3040
      %v3043 = vshrl.u32 %v2815, 16
      %v3045 = vrot.slane %v3043, 4
      %v3046 = vshll.u32 %v2815, 16
      %v3048 = vrot.slane %v3046, 5
      %v3049 = vor.u32 %v3045, %v3048
      %v3051 = vshrl.u32 %v2816, 16
      %v3053 = vrot.slane %v3051, 4
      %v3054 = vshll.u32 %v2816, 16
      %v3056 = vrot.slane %v3054, 5
      %v3057 = vor.u32 %v3053, %v3056
      %v3058 = vsel %vm989, %v3049, %v3057
      %v3060 = vshrl.u32 %v2817, 16
      %v3062 = vrot.slane %v3060, 4
      %v3063 = vshll.u32 %v2817, 16
      %v3065 = vrot.slane %v3063, 5
      %v3066 = vor.u32 %v3062, %v3065
      %v3068 = vshrl.u32 %v2818, 16
      %v3070 = vrot.slane %v3068, 4
      %v3071 = vshll.u32 %v2818, 16
      %v3073 = vrot.slane %v3071, 5
      %v3074 = vor.u32 %v3070, %v3073
      %v3075 = vsel %vm989, %v3066, %v3074
      %v3077 = vshrl.u32 %v2819, 16
      %v3079 = vrot.slane %v3077, 4
      %v3080 = vshll.u32 %v2819, 16
      %v3082 = vrot.slane %v3080, 5
      %v3083 = vor.u32 %v3079, %v3082
      %v3085 = vshrl.u32 %v2820, 16
      %v3087 = vrot.slane %v3085, 4
      %v3088 = vshll.u32 %v2820, 16
      %v3090 = vrot.slane %v3088, 5
      %v3091 = vor.u32 %v3087, %v3090
      %v3092 = vsel %vm989, %v3083, %v3091
      %3093 = vrot.lane.b32.xlu0 %v2837, 32
      %v3094 = vpop.permute.xlu0 %3093
      %3095 = vrot.lane.b32.xlu0 %v2854, 32
      %v3096 = vpop.permute.xlu0 %3095
      %3097 = vrot.lane.b32.xlu0 %v2871, 32
      %v3098 = vpop.permute.xlu0 %3097
      %3099 = vrot.lane.b32.xlu0 %v2888, 32
      %v3100 = vpop.permute.xlu0 %3099
      %3101 = vrot.lane.b32.xlu0 %v2905, 32
      %v3102 = vpop.permute.xlu0 %3101
      %3103 = vrot.lane.b32.xlu0 %v2922, 32
      %v3104 = vpop.permute.xlu0 %3103
      %3105 = vrot.lane.b32.xlu0 %v2939, 32
      %v3106 = vpop.permute.xlu0 %3105
      %3107 = vrot.lane.b32.xlu0 %v2956, 32
      %v3108 = vpop.permute.xlu0 %3107
      %3109 = vrot.lane.b32.xlu0 %v2973, 32
      %v3110 = vpop.permute.xlu0 %3109
      %3111 = vrot.lane.b32.xlu0 %v2990, 32
      %v3112 = vpop.permute.xlu0 %3111
      %3113 = vrot.lane.b32.xlu0 %v3007, 32
      %v3114 = vpop.permute.xlu0 %3113
      %3115 = vrot.lane.b32.xlu0 %v3024, 32
      %v3116 = vpop.permute.xlu0 %3115
      %3117 = vrot.lane.b32.xlu0 %v3041, 32
      %v3118 = vpop.permute.xlu0 %3117
      %3119 = vrot.lane.b32.xlu0 %v3058, 32
      %v3120 = vpop.permute.xlu0 %3119
      %3121 = vrot.lane.b32.xlu0 %v3075, 32
      %v3122 = vpop.permute.xlu0 %3121
      %3123 = vrot.lane.b32.xlu0 %v3092, 32
      %v3124 = vpop.permute.xlu0 %3123
      %vm3141 = vcmask 294144
      %3142 = vst.msk [vmem:[#allocation4] sm:$0xff] %vm3141, %v3094
      %3143 = vst.msk [vmem:[#allocation4 + $0x28] sm:$0xff] %vm3141, %v3096
      %3144 = vst.msk [vmem:[#allocation4 + $0x50] sm:$0xff] %vm3141, %v3098
      %3145 = vst.msk [vmem:[#allocation4 + $0x78] sm:$0xff] %vm3141, %v3100
      %3146 = vst.msk [vmem:[#allocation4 + $0xa0] sm:$0xff] %vm3141, %v3102
      %3147 = vst.msk [vmem:[#allocation4 + $0xc8] sm:$0xff] %vm3141, %v3104
      %3148 = vst.msk [vmem:[#allocation4 + $0xf0] sm:$0xff] %vm3141, %v3106
      %3149 = vst.msk [vmem:[#allocation4 + $0x118] sm:$0xff] %vm3141, %v3108
      %3150 = vst.msk [vmem:[#allocation4 + $0x140] sm:$0xff] %vm3141, %v3110
      %3151 = vst.msk [vmem:[#allocation4 + $0x168] sm:$0xff] %vm3141, %v3112
      %3152 = vst.msk [vmem:[#allocation4 + $0x190] sm:$0xff] %vm3141, %v3114
      %3153 = vst.msk [vmem:[#allocation4 + $0x1b8] sm:$0xff] %vm3141, %v3116
      %3154 = vst.msk [vmem:[#allocation4 + $0x1e0] sm:$0xff] %vm3141, %v3118
      %3155 = vst.msk [vmem:[#allocation4 + $0x208] sm:$0xff] %vm3141, %v3120
      %3156 = vst.msk [vmem:[#allocation4 + $0x230] sm:$0xff] %vm3141, %v3122
      %3157 = vst.msk [vmem:[#allocation4 + $0x258] sm:$0xff] %vm3141, %v3124
      %v3158 = vld [vmem:[#allocation4] sm:$0xff]
      %v3159 = vld [vmem:[#allocation4 + $0x28] sm:$0xff]
      %v3160 = vld [vmem:[#allocation4 + $0x50] sm:$0xff]
      %v3161 = vld [vmem:[#allocation4 + $0x78] sm:$0xff]
      %v3162 = vld [vmem:[#allocation4 + $0xa0] sm:$0xff]
      %v3163 = vld [vmem:[#allocation4 + $0xc8] sm:$0xff]
      %v3164 = vld [vmem:[#allocation4 + $0xf0] sm:$0xff]
      %v3165 = vld [vmem:[#allocation4 + $0x118] sm:$0xff]
      %v3166 = vld [vmem:[#allocation4 + $0x140] sm:$0xff]
      %v3167 = vld [vmem:[#allocation4 + $0x168] sm:$0xff]
      %v3168 = vld [vmem:[#allocation4 + $0x190] sm:$0xff]
      %v3169 = vld [vmem:[#allocation4 + $0x1b8] sm:$0xff]
      %v3170 = vld [vmem:[#allocation4 + $0x1e0] sm:$0xff]
      %v3171 = vld [vmem:[#allocation4 + $0x208] sm:$0xff]
      %v3172 = vld [vmem:[#allocation4 + $0x230] sm:$0xff]
      %v3173 = vld [vmem:[#allocation4 + $0x258] sm:$0xff]
      %v3174 = vld [vmem:[%s1] sm:$0xf]
      %v3175 = vld [vmem:[%s1 + $0x4] sm:$0xf]
      %v3176 = vld [vmem:[%s1 + $0x8] sm:$0xf]
      %v3177 = vld [vmem:[%s1 + $0xc] sm:$0xf]
      %v3178 = vld [vmem:[%s1 + $0x10] sm:$0x3]
      %v3184 = vunpack.c.l.b16 %v3174
      %v3185 = vunpack.c.l.b16 %v3175
      %v3186 = vunpack.c.l.b16 %v3176
      %v3187 = vunpack.c.l.b16 %v3177
      %v3188 = vunpack.c.l.b16 %v3178
      %v3189 = vpack.c.b16 %v3185, %v3184
      %v3190 = vpack.c.b16 %v3187, %v3186
      %v3191 = vpack.c.b16 %v3188, %v3188
      %vm3194 = vcmask 293888
      %v3196 = vsel %vm3194, %v3158, 0
      %v3199 = vsel %vm3194, %v3159, 0
      %v3202 = vsel %vm3194, %v3160, 0
      %v3205 = vsel %vm3194, %v3161, 0
      %v3208 = vsel %vm3194, %v3162, 0
      %v3211 = vsel %vm3194, %v3163, 0
      %v3214 = vsel %vm3194, %v3164, 0
      %v3217 = vsel %vm3194, %v3165, 0
      %v3220 = vsel %vm3194, %v3166, 0
      %v3223 = vsel %vm3194, %v3167, 0
      %v3226 = vsel %vm3194, %v3168, 0
      %v3229 = vsel %vm3194, %v3169, 0
      %v3232 = vsel %vm3194, %v3170, 0
      %v3235 = vsel %vm3194, %v3171, 0
      %v3238 = vsel %vm3194, %v3172, 0
      %v3241 = vsel %vm3194, %v3173, 0
      %vm3243 = vcmask 1041408
      %v3245 = vsel %vm3243, %v3191, 0
      %3247 = vmatprep.subr.bf16.mxu0 0
      %3248 = vmatpush1.bf16.msra.mxu0 %v3189
      %3249 = vmatprep.subr.bf16.mxu0 0
      %3250 = vmatpush1.bf16.msra.mxu0 %v3190
      %3251 = vmatprep.subr.bf16.mxu0 0
      %3252 = vmatpush1.bf16.msra.mxu0 %v3245
      %3253 = vmatprep.subr.bf16.mxu0 0
      %3254 = vmatpush1.bf16.msra.mxu0 0
      %3255 = vmatprep.subr.bf16.mxu0 0
      %3256 = vmatpush1.bf16.msra.mxu0 0
      %3257 = vmatprep.subr.bf16.mxu0 0
      %3258 = vmatpush1.bf16.msra.mxu0 0
      %3259 = vmatprep.subr.bf16.mxu0 0
      %3260 = vmatpush1.bf16.msra.mxu0 0
      %3261 = vmatprep.subr.bf16.mxu0 0
      %3262 = vmatpush1.bf16.msra.mxu0 0
      %3263 = vmatprep.subr.bf16.mxu0 0
      %3264 = vmatpush1.bf16.msra.mxu0 0
      %3265 = vmatprep.subr.bf16.mxu0 0
      %3266 = vmatpush1.bf16.msra.mxu0 0
      %3267 = vmatprep.subr.bf16.mxu0 0
      %3268 = vmatpush1.bf16.msra.mxu0 0
      %3269 = vmatprep.subr.bf16.mxu0 0
      %3270 = vmatpush1.bf16.msra.mxu0 0
      %3271 = vmatprep.subr.bf16.mxu0 0
      %3272 = vmatpush1.bf16.msra.mxu0 0
      %3273 = vmatprep.subr.bf16.mxu0 0
      %3274 = vmatpush1.bf16.msra.mxu0 0
      %3275 = vmatprep.subr.bf16.mxu0 0
      %3276 = vmatpush1.bf16.msra.mxu0 0
      %3277 = vmatprep.subr.bf16.mxu0 0
      %3278 = vmatpush1.bf16.msra.mxu0 0
      %3279 = vmatprep.mubr.bf16.mxu0 0
      %3280 = vmatmul.mubr.bf16.gmra.mrb[0].mxu0 %v3196
      %v3281 = vpop.f32.mrb[0].mxu0
      %v3282 = vadd.f32 0.0, %v3281
      %v3283 = vpop.f32.mrb[0].mxu0
      %v3284 = vpop.f32.mrb[0].mxu0
      %v3285 = vadd.f32 0.0, %v3284
      %v3286 = vpop.f32.mrb[0].mxu0
      %3287 = vmatprep.mubr.bf16.mxu0 0
      %3288 = vmatmul.mubr.bf16.gmra.mrb[0].mxu0 %v3199
      %v3289 = vpop.f32.mrb[0].mxu0
      %v3290 = vadd.f32 0.0, %v3289
      %v3291 = vpop.f32.mrb[0].mxu0
      %v3292 = vpop.f32.mrb[0].mxu0
      %v3293 = vadd.f32 0.0, %v3292
      %v3294 = vpop.f32.mrb[0].mxu0
      %3295 = vmatprep.mubr.bf16.mxu0 0
      %3296 = vmatmul.mubr.bf16.gmra.mrb[0].mxu0 %v3202
      %v3297 = vpop.f32.mrb[0].mxu0
      %v3298 = vadd.f32 0.0, %v3297
      %v3299 = vpop.f32.mrb[0].mxu0
      %v3300 = vpop.f32.mrb[0].mxu0
      %v3301 = vadd.f32 0.0, %v3300
      %v3302 = vpop.f32.mrb[0].mxu0
      %3303 = vmatprep.mubr.bf16.mxu0 0
      %3304 = vmatmul.mubr.bf16.gmra.mrb[0].mxu0 %v3205
      %v3305 = vpop.f32.mrb[0].mxu0
      %v3306 = vadd.f32 0.0, %v3305
      %v3307 = vpop.f32.mrb[0].mxu0
      %v3308 = vpop.f32.mrb[0].mxu0
      %v3309 = vadd.f32 0.0, %v3308
      %v3310 = vpop.f32.mrb[0].mxu0
      %3311 = vmatprep.mubr.bf16.mxu0 0
      %3312 = vmatmul.mubr.bf16.gmra.mrb[0].mxu0 %v3208
      %v3313 = vpop.f32.mrb[0].mxu0
      %v3314 = vadd.f32 0.0, %v3313
      %v3315 = vpop.f32.mrb[0].mxu0
      %v3316 = vpop.f32.mrb[0].mxu0
      %v3317 = vadd.f32 0.0, %v3316
      %v3318 = vpop.f32.mrb[0].mxu0
      %3319 = vmatprep.mubr.bf16.mxu0 0
      %3320 = vmatmul.mubr.bf16.gmra.mrb[0].mxu0 %v3211
      %v3321 = vpop.f32.mrb[0].mxu0
      %v3322 = vadd.f32 0.0, %v3321
      %v3323 = vpop.f32.mrb[0].mxu0
      %v3324 = vpop.f32.mrb[0].mxu0
      %v3325 = vadd.f32 0.0, %v3324
      %v3326 = vpop.f32.mrb[0].mxu0
      %3327 = vmatprep.mubr.bf16.mxu0 0
      %3328 = vmatmul.mubr.bf16.gmra.mrb[0].mxu0 %v3214
      %v3329 = vpop.f32.mrb[0].mxu0
      %v3330 = vadd.f32 0.0, %v3329
      %v3331 = vpop.f32.mrb[0].mxu0
      %v3332 = vpop.f32.mrb[0].mxu0
      %v3333 = vadd.f32 0.0, %v3332
      %v3334 = vpop.f32.mrb[0].mxu0
      %3335 = vmatprep.mubr.bf16.mxu0 0
      %3336 = vmatmul.mubr.bf16.gmra.mrb[0].mxu0 %v3217
      %v3337 = vpop.f32.mrb[0].mxu0
      %v3338 = vadd.f32 0.0, %v3337
      %v3339 = vpop.f32.mrb[0].mxu0
      %v3340 = vpop.f32.mrb[0].mxu0
      %v3341 = vadd.f32 0.0, %v3340
      %v3342 = vpop.f32.mrb[0].mxu0
      %3343 = vmatprep.mubr.bf16.mxu0 0
      %3344 = vmatmul.mubr.bf16.gmra.mrb[0].mxu0 %v3220
      %v3345 = vpop.f32.mrb[0].mxu0
      %v3346 = vadd.f32 0.0, %v3345
      %v3347 = vpop.f32.mrb[0].mxu0
      %v3348 = vpop.f32.mrb[0].mxu0
      %v3349 = vadd.f32 0.0, %v3348
      %v3350 = vpop.f32.mrb[0].mxu0
      %3351 = vmatprep.mubr.bf16.mxu0 0
      %3352 = vmatmul.mubr.bf16.gmra.mrb[0].mxu0 %v3223
      %v3353 = vpop.f32.mrb[0].mxu0
      %v3354 = vadd.f32 0.0, %v3353
      %v3355 = vpop.f32.mrb[0].mxu0
      %v3356 = vpop.f32.mrb[0].mxu0
      %v3357 = vadd.f32 0.0, %v3356
      %v3358 = vpop.f32.mrb[0].mxu0
      %3359 = vmatprep.mubr.bf16.mxu0 0
      %3360 = vmatmul.mubr.bf16.gmra.mrb[0].mxu0 %v3226
      %v3361 = vpop.f32.mrb[0].mxu0
      %v3362 = vadd.f32 0.0, %v3361
      %v3363 = vpop.f32.mrb[0].mxu0
      %v3364 = vpop.f32.mrb[0].mxu0
      %v3365 = vadd.f32 0.0, %v3364
      %v3366 = vpop.f32.mrb[0].mxu0
      %3367 = vmatprep.mubr.bf16.mxu0 0
      %3368 = vmatmul.mubr.bf16.gmra.mrb[0].mxu0 %v3229
      %v3369 = vpop.f32.mrb[0].mxu0
      %v3370 = vadd.f32 0.0, %v3369
      %v3371 = vpop.f32.mrb[0].mxu0
      %v3372 = vpop.f32.mrb[0].mxu0
      %v3373 = vadd.f32 0.0, %v3372
      %v3374 = vpop.f32.mrb[0].mxu0
      %3375 = vmatprep.mubr.bf16.mxu0 0
      %3376 = vmatmul.mubr.bf16.gmra.mrb[0].mxu0 %v3232
      %v3377 = vpop.f32.mrb[0].mxu0
      %v3378 = vadd.f32 0.0, %v3377
      %v3379 = vpop.f32.mrb[0].mxu0
      %v3380 = vpop.f32.mrb[0].mxu0
      %v3381 = vadd.f32 0.0, %v3380
      %v3382 = vpop.f32.mrb[0].mxu0
      %3383 = vmatprep.mubr.bf16.mxu0 0
      %3384 = vmatmul.mubr.bf16.gmra.mrb[0].mxu0 %v3235
      %v3385 = vpop.f32.mrb[0].mxu0
      %v3386 = vadd.f32 0.0, %v3385
      %v3387 = vpop.f32.mrb[0].mxu0
      %v3388 = vpop.f32.mrb[0].mxu0
      %v3389 = vadd.f32 0.0, %v3388
      %v3390 = vpop.f32.mrb[0].mxu0
      %3391 = vmatprep.mubr.bf16.mxu0 0
      %3392 = vmatmul.mubr.bf16.gmra.mrb[0].mxu0 %v3238
      %v3393 = vpop.f32.mrb[0].mxu0
      %v3394 = vadd.f32 0.0, %v3393
      %v3395 = vpop.f32.mrb[0].mxu0
      %v3396 = vpop.f32.mrb[0].mxu0
      %v3397 = vadd.f32 0.0, %v3396
      %v3398 = vpop.f32.mrb[0].mxu0
      %3399 = vmatprep.mubr.bf16.mxu0 0
      %3400 = vmatmul.mubr.bf16.gmra.mrb[0].mxu0 %v3241
      %v3401 = vpop.f32.mrb[0].mxu0
      %v3402 = vadd.f32 0.0, %v3401
      %v3403 = vpop.f32.mrb[0].mxu0
      %v3404 = vpop.f32.mrb[0].mxu0
      %v3405 = vadd.f32 0.0, %v3404
      %v3406 = vpop.f32.mrb[0].mxu0
      %3407 = vdwg.mxu0
      %v3408 = vmax.f32 %v3282, 0.0
      %v3409 = vmax.f32 %v3285, 0.0
      %v3410 = vmax.f32 %v3290, 0.0
      %v3411 = vmax.f32 %v3293, 0.0
      %v3412 = vmax.f32 %v3298, 0.0
      %v3413 = vmax.f32 %v3301, 0.0
      %v3414 = vmax.f32 %v3306, 0.0
      %v3415 = vmax.f32 %v3309, 0.0
      %v3416 = vmax.f32 %v3314, 0.0
      %v3417 = vmax.f32 %v3317, 0.0
      %v3418 = vmax.f32 %v3322, 0.0
      %v3419 = vmax.f32 %v3325, 0.0
      %v3420 = vmax.f32 %v3330, 0.0
      %v3421 = vmax.f32 %v3333, 0.0
      %v3422 = vmax.f32 %v3338, 0.0
      %v3423 = vmax.f32 %v3341, 0.0
      %v3424 = vmax.f32 %v3346, 0.0
      %v3425 = vmax.f32 %v3349, 0.0
      %v3426 = vmax.f32 %v3354, 0.0
      %v3427 = vmax.f32 %v3357, 0.0
      %v3428 = vmax.f32 %v3362, 0.0
      %v3429 = vmax.f32 %v3365, 0.0
      %v3430 = vmax.f32 %v3370, 0.0
      %v3431 = vmax.f32 %v3373, 0.0
      %v3432 = vmax.f32 %v3378, 0.0
      %v3433 = vmax.f32 %v3381, 0.0
      %v3434 = vmax.f32 %v3386, 0.0
      %v3435 = vmax.f32 %v3389, 0.0
      %v3436 = vmax.f32 %v3394, 0.0
      %v3437 = vmax.f32 %v3397, 0.0
      %v3438 = vmax.f32 %v3402, 0.0
      %v3439 = vmax.f32 %v3405, 0.0
      %v3440 = vpack.c.bf16 %v3409, %v3408
      %v3441 = vpack.c.bf16 %v3411, %v3410
      %v3442 = vpack.c.bf16 %v3413, %v3412
      %v3443 = vpack.c.bf16 %v3415, %v3414
      %v3444 = vpack.c.bf16 %v3417, %v3416
      %v3445 = vpack.c.bf16 %v3419, %v3418
      %v3446 = vpack.c.bf16 %v3421, %v3420
      %v3447 = vpack.c.bf16 %v3423, %v3422
      %v3448 = vpack.c.bf16 %v3425, %v3424
      %v3449 = vpack.c.bf16 %v3427, %v3426
      %v3450 = vpack.c.bf16 %v3429, %v3428
      %v3451 = vpack.c.bf16 %v3431, %v3430
      %v3452 = vpack.c.bf16 %v3433, %v3432
      %v3453 = vpack.c.bf16 %v3435, %v3434
      %v3454 = vpack.c.bf16 %v3437, %v3436
      %v3455 = vpack.c.bf16 %v3439, %v3438
      %v3472 = vrot.slane %v3440, 4
      %v3473 = vrot.slane %v3441, 4
      %v3474 = vrot.slane %v3442, 4
      %v3475 = vrot.slane %v3443, 4
      %v3476 = vrot.slane %v3444, 4
      %v3477 = vrot.slane %v3445, 4
      %v3478 = vrot.slane %v3446, 4
      %v3479 = vrot.slane %v3447, 4
      %v3480 = vrot.slane %v3448, 4
      %v3481 = vrot.slane %v3449, 4
      %v3482 = vrot.slane %v3450, 4
      %v3483 = vrot.slane %v3451, 4
      %v3484 = vrot.slane %v3452, 4
      %v3485 = vrot.slane %v3453, 4
      %v3486 = vrot.slane %v3454, 4
      %v3487 = vrot.slane %v3455, 4
      %s3504 = scalar_lea.vmem [#allocation3], 16
      %3505 = vst.msk [vmem:[%s3504] sm:$0xf0] %vm288, %v3472
      %3506 = vst.msk [vmem:[%s3504 + $0x8] sm:$0xf] %vm269, %v3472
      %3507 = vst.msk [vmem:[%s3504 + $0x10] sm:$0xf0] %vm288, %v3473
      %3508 = vst.msk [vmem:[%s3504 + $0x18] sm:$0xf] %vm269, %v3473
      %3509 = vst.msk [vmem:[%s3504 + $0x20] sm:$0xf0] %vm288, %v3474
      %3510 = vst.msk [vmem:[%s3504 + $0x28] sm:$0xf] %vm269, %v3474
      %3511 = vst.msk [vmem:[%s3504 + $0x30] sm:$0xf0] %vm288, %v3475
      %3512 = vst.msk [vmem:[%s3504 + $0x38] sm:$0xf] %vm269, %v3475
      %3513 = vst.msk [vmem:[%s3504 + $0x40] sm:$0xf0] %vm288, %v3476
      %3514 = vst.msk [vmem:[%s3504 + $0x48] sm:$0xf] %vm269, %v3476
      %3515 = vst.msk [vmem:[%s3504 + $0x50] sm:$0xf0] %vm288, %v3477
      %3516 = vst.msk [vmem:[%s3504 + $0x58] sm:$0xf] %vm269, %v3477
      %3517 = vst.msk [vmem:[%s3504 + $0x60] sm:$0xf0] %vm288, %v3478
      %3518 = vst.msk [vmem:[%s3504 + $0x68] sm:$0xf] %vm269, %v3478
      %3519 = vst.msk [vmem:[%s3504 + $0x70] sm:$0xf0] %vm288, %v3479
      %3520 = vst.msk [vmem:[%s3504 + $0x78] sm:$0xf] %vm269, %v3479
      %3521 = vst.msk [vmem:[%s3504 + $0x80] sm:$0xf0] %vm288, %v3480
      %3522 = vst.msk [vmem:[%s3504 + $0x88] sm:$0xf] %vm269, %v3480
      %3523 = vst.msk [vmem:[%s3504 + $0x90] sm:$0xf0] %vm288, %v3481
      %3524 = vst.msk [vmem:[%s3504 + $0x98] sm:$0xf] %vm269, %v3481
      %3525 = vst.msk [vmem:[%s3504 + $0xa0] sm:$0xf0] %vm288, %v3482
      %3526 = vst.msk [vmem:[%s3504 + $0xa8] sm:$0xf] %vm269, %v3482
      %3527 = vst.msk [vmem:[%s3504 + $0xb0] sm:$0xf0] %vm288, %v3483
      %3528 = vst.msk [vmem:[%s3504 + $0xb8] sm:$0xf] %vm269, %v3483
      %3529 = vst.msk [vmem:[%s3504 + $0xc0] sm:$0xf0] %vm288, %v3484
      %3530 = vst.msk [vmem:[%s3504 + $0xc8] sm:$0xf] %vm269, %v3484
      %3531 = vst.msk [vmem:[%s3504 + $0xd0] sm:$0xf0] %vm288, %v3485
      %3532 = vst.msk [vmem:[%s3504 + $0xd8] sm:$0xf] %vm269, %v3485
      %3533 = vst.msk [vmem:[%s3504 + $0xe0] sm:$0xf0] %vm288, %v3486
      %3534 = vst.msk [vmem:[%s3504 + $0xe8] sm:$0xf] %vm269, %v3486
      %3535 = vst.msk [vmem:[%s3504 + $0xf0] sm:$0xf0] %vm288, %v3487
      %3536 = vst.msk [vmem:[%s3504 + $0xf8] sm:$0xf] %vm269, %v3487
      loop: start=0, step=1, limit=3
      $region41: #{dncnn_forward.1} parent=39 // loop_pre_header
        _
      $region42: #{dncnn_forward.1} parent=39 // loop_header
        %s3538 = sphi 0, %s3542
        %p3539 = scmp.ge.s32.totalorder %s3538, 3
      $region43: #{dncnn_forward.1} parent=39 // loop_header_branch
        %3541 = sbr.rel (%p3539) target = $region47
      $region44: #{dncnn_forward.1} parent=39 // loop_body
        %v3543 = vld [vmem:[#allocation3] sm:$0xf8]
        %v3544 = vld [vmem:[#allocation3 + $0x8] sm:$0xf]
        %v3545 = vld [vmem:[#allocation3 + $0x10] sm:$0xf8]
        %v3546 = vld [vmem:[#allocation3 + $0x18] sm:$0xf]
        %v3547 = vld [vmem:[#allocation3 + $0x20] sm:$0xf8]
        %v3548 = vld [vmem:[#allocation3 + $0x28] sm:$0xf]
        %v3549 = vld [vmem:[#allocation3 + $0x30] sm:$0xf8]
        %v3550 = vld [vmem:[#allocation3 + $0x38] sm:$0xf]
        %v3551 = vld [vmem:[#allocation3 + $0x40] sm:$0xf8]
        %v3552 = vld [vmem:[#allocation3 + $0x48] sm:$0xf]
        %v3553 = vld [vmem:[#allocation3 + $0x50] sm:$0xf8]
        %v3554 = vld [vmem:[#allocation3 + $0x58] sm:$0xf]
        %v3555 = vld [vmem:[#allocation3 + $0x60] sm:$0xf8]
        %v3556 = vld [vmem:[#allocation3 + $0x68] sm:$0xf]
        %v3557 = vld [vmem:[#allocation3 + $0x70] sm:$0xf8]
        %v3558 = vld [vmem:[#allocation3 + $0x78] sm:$0xf]
        %v3559 = vld [vmem:[#allocation3 + $0x80] sm:$0xf8]
        %v3560 = vld [vmem:[#allocation3 + $0x88] sm:$0xf]
        %v3561 = vld [vmem:[#allocation3 + $0x90] sm:$0xf8]
        %v3562 = vld [vmem:[#allocation3 + $0x98] sm:$0xf]
        %v3563 = vld [vmem:[#allocation3 + $0xa0] sm:$0xf8]
        %v3564 = vld [vmem:[#allocation3 + $0xa8] sm:$0xf]
        %v3565 = vld [vmem:[#allocation3 + $0xb0] sm:$0xf8]
        %v3566 = vld [vmem:[#allocation3 + $0xb8] sm:$0xf]
        %v3567 = vld [vmem:[#allocation3 + $0xc0] sm:$0xf8]
        %v3568 = vld [vmem:[#allocation3 + $0xc8] sm:$0xf]
        %v3569 = vld [vmem:[#allocation3 + $0xd0] sm:$0xf8]
        %v3570 = vld [vmem:[#allocation3 + $0xd8] sm:$0xf]
        %v3571 = vld [vmem:[#allocation3 + $0xe0] sm:$0xf8]
        %v3572 = vld [vmem:[#allocation3 + $0xe8] sm:$0xf]
        %v3573 = vld [vmem:[#allocation3 + $0xf0] sm:$0xf8]
        %v3574 = vld [vmem:[#allocation3 + $0xf8] sm:$0xf]
        %v3576 = vshrl.u32 %v3543, 16
        %v3578 = vrot.slane %v3576, 3
        %v3579 = vshll.u32 %v3543, 16
        %v3581 = vrot.slane %v3579, 4
        %v3582 = vor.u32 %v3578, %v3581
        %v3584 = vshrl.u32 %v3544, 16
        %v3586 = vrot.slane %v3584, 3
        %v3587 = vshll.u32 %v3544, 16
        %v3589 = vrot.slane %v3587, 4
        %v3590 = vor.u32 %v3586, %v3589
        %v3591 = vsel %vm473, %v3582, %v3590
        %v3593 = vshrl.u32 %v3545, 16
        %v3595 = vrot.slane %v3593, 3
        %v3596 = vshll.u32 %v3545, 16
        %v3598 = vrot.slane %v3596, 4
        %v3599 = vor.u32 %v3595, %v3598
        %v3601 = vshrl.u32 %v3546, 16
        %v3603 = vrot.slane %v3601, 3
        %v3604 = vshll.u32 %v3546, 16
        %v3606 = vrot.slane %v3604, 4
        %v3607 = vor.u32 %v3603, %v3606
        %v3608 = vsel %vm473, %v3599, %v3607
        %v3610 = vshrl.u32 %v3547, 16
        %v3612 = vrot.slane %v3610, 3
        %v3613 = vshll.u32 %v3547, 16
        %v3615 = vrot.slane %v3613, 4
        %v3616 = vor.u32 %v3612, %v3615
        %v3618 = vshrl.u32 %v3548, 16
        %v3620 = vrot.slane %v3618, 3
        %v3621 = vshll.u32 %v3548, 16
        %v3623 = vrot.slane %v3621, 4
        %v3624 = vor.u32 %v3620, %v3623
        %v3625 = vsel %vm473, %v3616, %v3624
        %v3627 = vshrl.u32 %v3549, 16
        %v3629 = vrot.slane %v3627, 3
        %v3630 = vshll.u32 %v3549, 16
        %v3632 = vrot.slane %v3630, 4
        %v3633 = vor.u32 %v3629, %v3632
        %v3635 = vshrl.u32 %v3550, 16
        %v3637 = vrot.slane %v3635, 3
        %v3638 = vshll.u32 %v3550, 16
        %v3640 = vrot.slane %v3638, 4
        %v3641 = vor.u32 %v3637, %v3640
        %v3642 = vsel %vm473, %v3633, %v3641
        %v3644 = vshrl.u32 %v3551, 16
        %v3646 = vrot.slane %v3644, 3
        %v3647 = vshll.u32 %v3551, 16
        %v3649 = vrot.slane %v3647, 4
        %v3650 = vor.u32 %v3646, %v3649
        %v3652 = vshrl.u32 %v3552, 16
        %v3654 = vrot.slane %v3652, 3
        %v3655 = vshll.u32 %v3552, 16
        %v3657 = vrot.slane %v3655, 4
        %v3658 = vor.u32 %v3654, %v3657
        %v3659 = vsel %vm473, %v3650, %v3658
        %v3661 = vshrl.u32 %v3553, 16
        %v3663 = vrot.slane %v3661, 3
        %v3664 = vshll.u32 %v3553, 16
        %v3666 = vrot.slane %v3664, 4
        %v3667 = vor.u32 %v3663, %v3666
        %v3669 = vshrl.u32 %v3554, 16
        %v3671 = vrot.slane %v3669, 3
        %v3672 = vshll.u32 %v3554, 16
        %v3674 = vrot.slane %v3672, 4
        %v3675 = vor.u32 %v3671, %v3674
        %v3676 = vsel %vm473, %v3667, %v3675
        %v3678 = vshrl.u32 %v3555, 16
        %v3680 = vrot.slane %v3678, 3
        %v3681 = vshll.u32 %v3555, 16
        %v3683 = vrot.slane %v3681, 4
        %v3684 = vor.u32 %v3680, %v3683
        %v3686 = vshrl.u32 %v3556, 16
        %v3688 = vrot.slane %v3686, 3
        %v3689 = vshll.u32 %v3556, 16
        %v3691 = vrot.slane %v3689, 4
        %v3692 = vor.u32 %v3688, %v3691
        %v3693 = vsel %vm473, %v3684, %v3692
        %v3695 = vshrl.u32 %v3557, 16
        %v3697 = vrot.slane %v3695, 3
        %v3698 = vshll.u32 %v3557, 16
        %v3700 = vrot.slane %v3698, 4
        %v3701 = vor.u32 %v3697, %v3700
        %v3703 = vshrl.u32 %v3558, 16
        %v3705 = vrot.slane %v3703, 3
        %v3706 = vshll.u32 %v3558, 16
        %v3708 = vrot.slane %v3706, 4
        %v3709 = vor.u32 %v3705, %v3708
        %v3710 = vsel %vm473, %v3701, %v3709
        %v3712 = vshrl.u32 %v3559, 16
        %v3714 = vrot.slane %v3712, 3
        %v3715 = vshll.u32 %v3559, 16
        %v3717 = vrot.slane %v3715, 4
        %v3718 = vor.u32 %v3714, %v3717
        %v3720 = vshrl.u32 %v3560, 16
        %v3722 = vrot.slane %v3720, 3
        %v3723 = vshll.u32 %v3560, 16
        %v3725 = vrot.slane %v3723, 4
        %v3726 = vor.u32 %v3722, %v3725
        %v3727 = vsel %vm473, %v3718, %v3726
        %v3729 = vshrl.u32 %v3561, 16
        %v3731 = vrot.slane %v3729, 3
        %v3732 = vshll.u32 %v3561, 16
        %v3734 = vrot.slane %v3732, 4
        %v3735 = vor.u32 %v3731, %v3734
        %v3737 = vshrl.u32 %v3562, 16
        %v3739 = vrot.slane %v3737, 3
        %v3740 = vshll.u32 %v3562, 16
        %v3742 = vrot.slane %v3740, 4
        %v3743 = vor.u32 %v3739, %v3742
        %v3744 = vsel %vm473, %v3735, %v3743
        %v3746 = vshrl.u32 %v3563, 16
        %v3748 = vrot.slane %v3746, 3
        %v3749 = vshll.u32 %v3563, 16
        %v3751 = vrot.slane %v3749, 4
        %v3752 = vor.u32 %v3748, %v3751
        %v3754 = vshrl.u32 %v3564, 16
        %v3756 = vrot.slane %v3754, 3
        %v3757 = vshll.u32 %v3564, 16
        %v3759 = vrot.slane %v3757, 4
        %v3760 = vor.u32 %v3756, %v3759
        %v3761 = vsel %vm473, %v3752, %v3760
        %v3763 = vshrl.u32 %v3565, 16
        %v3765 = vrot.slane %v3763, 3
        %v3766 = vshll.u32 %v3565, 16
        %v3768 = vrot.slane %v3766, 4
        %v3769 = vor.u32 %v3765, %v3768
        %v3771 = vshrl.u32 %v3566, 16
        %v3773 = vrot.slane %v3771, 3
        %v3774 = vshll.u32 %v3566, 16
        %v3776 = vrot.slane %v3774, 4
        %v3777 = vor.u32 %v3773, %v3776
        %v3778 = vsel %vm473, %v3769, %v3777
        %v3780 = vshrl.u32 %v3567, 16
        %v3782 = vrot.slane %v3780, 3
        %v3783 = vshll.u32 %v3567, 16
        %v3785 = vrot.slane %v3783, 4
        %v3786 = vor.u32 %v3782, %v3785
        %v3788 = vshrl.u32 %v3568, 16
        %v3790 = vrot.slane %v3788, 3
        %v3791 = vshll.u32 %v3568, 16
        %v3793 = vrot.slane %v3791, 4
        %v3794 = vor.u32 %v3790, %v3793
        %v3795 = vsel %vm473, %v3786, %v3794
        %v3797 = vshrl.u32 %v3569, 16
        %v3799 = vrot.slane %v3797, 3
        %v3800 = vshll.u32 %v3569, 16
        %v3802 = vrot.slane %v3800, 4
        %v3803 = vor.u32 %v3799, %v3802
        %v3805 = vshrl.u32 %v3570, 16
        %v3807 = vrot.slane %v3805, 3
        %v3808 = vshll.u32 %v3570, 16
        %v3810 = vrot.slane %v3808, 4
        %v3811 = vor.u32 %v3807, %v3810
        %v3812 = vsel %vm473, %v3803, %v3811
        %v3814 = vshrl.u32 %v3571, 16
        %v3816 = vrot.slane %v3814, 3
        %v3817 = vshll.u32 %v3571, 16
        %v3819 = vrot.slane %v3817, 4
        %v3820 = vor.u32 %v3816, %v3819
        %v3822 = vshrl.u32 %v3572, 16
        %v3824 = vrot.slane %v3822, 3
        %v3825 = vshll.u32 %v3572, 16
        %v3827 = vrot.slane %v3825, 4
        %v3828 = vor.u32 %v3824, %v3827
        %v3829 = vsel %vm473, %v3820, %v3828
        %v3831 = vshrl.u32 %v3573, 16
        %v3833 = vrot.slane %v3831, 3
        %v3834 = vshll.u32 %v3573, 16
        %v3836 = vrot.slane %v3834, 4
        %v3837 = vor.u32 %v3833, %v3836
        %v3839 = vshrl.u32 %v3574, 16
        %v3841 = vrot.slane %v3839, 3
        %v3842 = vshll.u32 %v3574, 16
        %v3844 = vrot.slane %v3842, 4
        %v3845 = vor.u32 %v3841, %v3844
        %v3846 = vsel %vm473, %v3837, %v3845
        %vm3863 = vcmask 523264
        %3864 = vst.msk [vmem:[#allocation4] sm:$0xff] %vm3863, %v3591
        %3865 = vst.msk [vmem:[#allocation4 + $0x28] sm:$0xff] %vm3863, %v3608
        %3866 = vst.msk [vmem:[#allocation4 + $0x50] sm:$0xff] %vm3863, %v3625
        %3867 = vst.msk [vmem:[#allocation4 + $0x78] sm:$0xff] %vm3863, %v3642
        %3868 = vst.msk [vmem:[#allocation4 + $0xa0] sm:$0xff] %vm3863, %v3659
        %3869 = vst.msk [vmem:[#allocation4 + $0xc8] sm:$0xff] %vm3863, %v3676
        %3870 = vst.msk [vmem:[#allocation4 + $0xf0] sm:$0xff] %vm3863, %v3693
        %3871 = vst.msk [vmem:[#allocation4 + $0x118] sm:$0xff] %vm3863, %v3710
        %3872 = vst.msk [vmem:[#allocation4 + $0x140] sm:$0xff] %vm3863, %v3727
        %3873 = vst.msk [vmem:[#allocation4 + $0x168] sm:$0xff] %vm3863, %v3744
        %3874 = vst.msk [vmem:[#allocation4 + $0x190] sm:$0xff] %vm3863, %v3761
        %3875 = vst.msk [vmem:[#allocation4 + $0x1b8] sm:$0xff] %vm3863, %v3778
        %3876 = vst.msk [vmem:[#allocation4 + $0x1e0] sm:$0xff] %vm3863, %v3795
        %3877 = vst.msk [vmem:[#allocation4 + $0x208] sm:$0xff] %vm3863, %v3812
        %3878 = vst.msk [vmem:[#allocation4 + $0x230] sm:$0xff] %vm3863, %v3829
        %3879 = vst.msk [vmem:[#allocation4 + $0x258] sm:$0xff] %vm3863, %v3846
        %v3880 = vld [vmem:[#allocation3] sm:$0xf0]
        %v3881 = vld [vmem:[#allocation3 + $0x8] sm:$0xf]
        %v3882 = vld [vmem:[#allocation3 + $0x10] sm:$0xf0]
        %v3883 = vld [vmem:[#allocation3 + $0x18] sm:$0xf]
        %v3884 = vld [vmem:[#allocation3 + $0x20] sm:$0xf0]
        %v3885 = vld [vmem:[#allocation3 + $0x28] sm:$0xf]
        %v3886 = vld [vmem:[#allocation3 + $0x30] sm:$0xf0]
        %v3887 = vld [vmem:[#allocation3 + $0x38] sm:$0xf]
        %v3888 = vld [vmem:[#allocation3 + $0x40] sm:$0xf0]
        %v3889 = vld [vmem:[#allocation3 + $0x48] sm:$0xf]
        %v3890 = vld [vmem:[#allocation3 + $0x50] sm:$0xf0]
        %v3891 = vld [vmem:[#allocation3 + $0x58] sm:$0xf]
        %v3892 = vld [vmem:[#allocation3 + $0x60] sm:$0xf0]
        %v3893 = vld [vmem:[#allocation3 + $0x68] sm:$0xf]
        %v3894 = vld [vmem:[#allocation3 + $0x70] sm:$0xf0]
        %v3895 = vld [vmem:[#allocation3 + $0x78] sm:$0xf]
        %v3896 = vld [vmem:[#allocation3 + $0x80] sm:$0xf0]
        %v3897 = vld [vmem:[#allocation3 + $0x88] sm:$0xf]
        %v3898 = vld [vmem:[#allocation3 + $0x90] sm:$0xf0]
        %v3899 = vld [vmem:[#allocation3 + $0x98] sm:$0xf]
        %v3900 = vld [vmem:[#allocation3 + $0xa0] sm:$0xf0]
        %v3901 = vld [vmem:[#allocation3 + $0xa8] sm:$0xf]
        %v3902 = vld [vmem:[#allocation3 + $0xb0] sm:$0xf0]
        %v3903 = vld [vmem:[#allocation3 + $0xb8] sm:$0xf]
        %v3904 = vld [vmem:[#allocation3 + $0xc0] sm:$0xf0]
        %v3905 = vld [vmem:[#allocation3 + $0xc8] sm:$0xf]
        %v3906 = vld [vmem:[#allocation3 + $0xd0] sm:$0xf0]
        %v3907 = vld [vmem:[#allocation3 + $0xd8] sm:$0xf]
        %v3908 = vld [vmem:[#allocation3 + $0xe0] sm:$0xf0]
        %v3909 = vld [vmem:[#allocation3 + $0xe8] sm:$0xf]
        %v3910 = vld [vmem:[#allocation3 + $0xf0] sm:$0xf0]
        %v3911 = vld [vmem:[#allocation3 + $0xf8] sm:$0xf]
        %v3944 = vrot.slane %v3880, 4
        %v3945 = vrot.slane %v3881, 4
        %v3946 = vsel %vm843, %v3944, %v3945
        %v3947 = vrot.slane %v3882, 4
        %v3948 = vrot.slane %v3883, 4
        %v3949 = vsel %vm843, %v3947, %v3948
        %v3950 = vrot.slane %v3884, 4
        %v3951 = vrot.slane %v3885, 4
        %v3952 = vsel %vm843, %v3950, %v3951
        %v3953 = vrot.slane %v3886, 4
        %v3954 = vrot.slane %v3887, 4
        %v3955 = vsel %vm843, %v3953, %v3954
        %v3956 = vrot.slane %v3888, 4
        %v3957 = vrot.slane %v3889, 4
        %v3958 = vsel %vm843, %v3956, %v3957
        %v3959 = vrot.slane %v3890, 4
        %v3960 = vrot.slane %v3891, 4
        %v3961 = vsel %vm843, %v3959, %v3960
        %v3962 = vrot.slane %v3892, 4
        %v3963 = vrot.slane %v3893, 4
        %v3964 = vsel %vm843, %v3962, %v3963
        %v3965 = vrot.slane %v3894, 4
        %v3966 = vrot.slane %v3895, 4
        %v3967 = vsel %vm843, %v3965, %v3966
        %v3968 = vrot.slane %v3896, 4
        %v3969 = vrot.slane %v3897, 4
        %v3970 = vsel %vm843, %v3968, %v3969
        %v3971 = vrot.slane %v3898, 4
        %v3972 = vrot.slane %v3899, 4
        %v3973 = vsel %vm843, %v3971, %v3972
        %v3974 = vrot.slane %v3900, 4
        %v3975 = vrot.slane %v3901, 4
        %v3976 = vsel %vm843, %v3974, %v3975
        %v3977 = vrot.slane %v3902, 4
        %v3978 = vrot.slane %v3903, 4
        %v3979 = vsel %vm843, %v3977, %v3978
        %v3980 = vrot.slane %v3904, 4
        %v3981 = vrot.slane %v3905, 4
        %v3982 = vsel %vm843, %v3980, %v3981
        %v3983 = vrot.slane %v3906, 4
        %v3984 = vrot.slane %v3907, 4
        %v3985 = vsel %vm843, %v3983, %v3984
        %v3986 = vrot.slane %v3908, 4
        %v3987 = vrot.slane %v3909, 4
        %v3988 = vsel %vm843, %v3986, %v3987
        %v3989 = vrot.slane %v3910, 4
        %v3990 = vrot.slane %v3911, 4
        %v3991 = vsel %vm843, %v3989, %v3990
        %3992 = vrot.lane.b32.xlu0 %v3946, 64
        %v3993 = vpop.permute.xlu0 %3992
        %3994 = vrot.lane.b32.xlu0 %v3949, 64
        %v3995 = vpop.permute.xlu0 %3994
        %3996 = vrot.lane.b32.xlu0 %v3952, 64
        %v3997 = vpop.permute.xlu0 %3996
        %3998 = vrot.lane.b32.xlu0 %v3955, 64
        %v3999 = vpop.permute.xlu0 %3998
        %4000 = vrot.lane.b32.xlu0 %v3958, 64
        %v4001 = vpop.permute.xlu0 %4000
        %4002 = vrot.lane.b32.xlu0 %v3961, 64
        %v4003 = vpop.permute.xlu0 %4002
        %4004 = vrot.lane.b32.xlu0 %v3964, 64
        %v4005 = vpop.permute.xlu0 %4004
        %4006 = vrot.lane.b32.xlu0 %v3967, 64
        %v4007 = vpop.permute.xlu0 %4006
        %4008 = vrot.lane.b32.xlu0 %v3970, 64
        %v4009 = vpop.permute.xlu0 %4008
        %4010 = vrot.lane.b32.xlu0 %v3973, 64
        %v4011 = vpop.permute.xlu0 %4010
        %4012 = vrot.lane.b32.xlu0 %v3976, 64
        %v4013 = vpop.permute.xlu0 %4012
        %4014 = vrot.lane.b32.xlu0 %v3979, 64
        %v4015 = vpop.permute.xlu0 %4014
        %4016 = vrot.lane.b32.xlu0 %v3982, 64
        %v4017 = vpop.permute.xlu0 %4016
        %4018 = vrot.lane.b32.xlu0 %v3985, 64
        %v4019 = vpop.permute.xlu0 %4018
        %4020 = vrot.lane.b32.xlu0 %v3988, 64
        %v4021 = vpop.permute.xlu0 %4020
        %4022 = vrot.lane.b32.xlu0 %v3991, 64
        %v4023 = vpop.permute.xlu0 %4022
        %vm4040 = vcmask 1048064
        %4041 = vst.msk [vmem:[#allocation4] sm:$0xff] %vm4040, %v3993
        %4042 = vst.msk [vmem:[#allocation4 + $0x28] sm:$0xff] %vm4040, %v3995
        %4043 = vst.msk [vmem:[#allocation4 + $0x50] sm:$0xff] %vm4040, %v3997
        %4044 = vst.msk [vmem:[#allocation4 + $0x78] sm:$0xff] %vm4040, %v3999
        %4045 = vst.msk [vmem:[#allocation4 + $0xa0] sm:$0xff] %vm4040, %v4001
        %4046 = vst.msk [vmem:[#allocation4 + $0xc8] sm:$0xff] %vm4040, %v4003
        %4047 = vst.msk [vmem:[#allocation4 + $0xf0] sm:$0xff] %vm4040, %v4005
        %4048 = vst.msk [vmem:[#allocation4 + $0x118] sm:$0xff] %vm4040, %v4007
        %4049 = vst.msk [vmem:[#allocation4 + $0x140] sm:$0xff] %vm4040, %v4009
        %4050 = vst.msk [vmem:[#allocation4 + $0x168] sm:$0xff] %vm4040, %v4011
        %4051 = vst.msk [vmem:[#allocation4 + $0x190] sm:$0xff] %vm4040, %v4013
        %4052 = vst.msk [vmem:[#allocation4 + $0x1b8] sm:$0xff] %vm4040, %v4015
        %4053 = vst.msk [vmem:[#allocation4 + $0x1e0] sm:$0xff] %vm4040, %v4017
        %4054 = vst.msk [vmem:[#allocation4 + $0x208] sm:$0xff] %vm4040, %v4019
        %4055 = vst.msk [vmem:[#allocation4 + $0x230] sm:$0xff] %vm4040, %v4021
        %4056 = vst.msk [vmem:[#allocation4 + $0x258] sm:$0xff] %vm4040, %v4023
        %v4057 = vld [vmem:[#allocation3] sm:$0xf0]
        %v4058 = vld [vmem:[#allocation3 + $0x8] sm:$0x1f]
        %v4059 = vld [vmem:[#allocation3 + $0x10] sm:$0xf0]
        %v4060 = vld [vmem:[#allocation3 + $0x18] sm:$0x1f]
        %v4061 = vld [vmem:[#allocation3 + $0x20] sm:$0xf0]
        %v4062 = vld [vmem:[#allocation3 + $0x28] sm:$0x1f]
        %v4063 = vld [vmem:[#allocation3 + $0x30] sm:$0xf0]
        %v4064 = vld [vmem:[#allocation3 + $0x38] sm:$0x1f]
        %v4065 = vld [vmem:[#allocation3 + $0x40] sm:$0xf0]
        %v4066 = vld [vmem:[#allocation3 + $0x48] sm:$0x1f]
        %v4067 = vld [vmem:[#allocation3 + $0x50] sm:$0xf0]
        %v4068 = vld [vmem:[#allocation3 + $0x58] sm:$0x1f]
        %v4069 = vld [vmem:[#allocation3 + $0x60] sm:$0xf0]
        %v4070 = vld [vmem:[#allocation3 + $0x68] sm:$0x1f]
        %v4071 = vld [vmem:[#allocation3 + $0x70] sm:$0xf0]
        %v4072 = vld [vmem:[#allocation3 + $0x78] sm:$0x1f]
        %v4073 = vld [vmem:[#allocation3 + $0x80] sm:$0xf0]
        %v4074 = vld [vmem:[#allocation3 + $0x88] sm:$0x1f]
        %v4075 = vld [vmem:[#allocation3 + $0x90] sm:$0xf0]
        %v4076 = vld [vmem:[#allocation3 + $0x98] sm:$0x1f]
        %v4077 = vld [vmem:[#allocation3 + $0xa0] sm:$0xf0]
        %v4078 = vld [vmem:[#allocation3 + $0xa8] sm:$0x1f]
        %v4079 = vld [vmem:[#allocation3 + $0xb0] sm:$0xf0]
        %v4080 = vld [vmem:[#allocation3 + $0xb8] sm:$0x1f]
        %v4081 = vld [vmem:[#allocation3 + $0xc0] sm:$0xf0]
        %v4082 = vld [vmem:[#allocation3 + $0xc8] sm:$0x1f]
        %v4083 = vld [vmem:[#allocation3 + $0xd0] sm:$0xf0]
        %v4084 = vld [vmem:[#allocation3 + $0xd8] sm:$0x1f]
        %v4085 = vld [vmem:[#allocation3 + $0xe0] sm:$0xf0]
        %v4086 = vld [vmem:[#allocation3 + $0xe8] sm:$0x1f]
        %v4087 = vld [vmem:[#allocation3 + $0xf0] sm:$0xf0]
        %v4088 = vld [vmem:[#allocation3 + $0xf8] sm:$0x1f]
        %v4090 = vshrl.u32 %v4057, 16
        %v4092 = vrot.slane %v4090, 4
        %v4093 = vshll.u32 %v4057, 16
        %v4095 = vrot.slane %v4093, 5
        %v4096 = vor.u32 %v4092, %v4095
        %v4098 = vshrl.u32 %v4058, 16
        %v4100 = vrot.slane %v4098, 4
        %v4101 = vshll.u32 %v4058, 16
        %v4103 = vrot.slane %v4101, 5
        %v4104 = vor.u32 %v4100, %v4103
        %v4105 = vsel %vm989, %v4096, %v4104
        %v4107 = vshrl.u32 %v4059, 16
        %v4109 = vrot.slane %v4107, 4
        %v4110 = vshll.u32 %v4059, 16
        %v4112 = vrot.slane %v4110, 5
        %v4113 = vor.u32 %v4109, %v4112
        %v4115 = vshrl.u32 %v4060, 16
        %v4117 = vrot.slane %v4115, 4
        %v4118 = vshll.u32 %v4060, 16
        %v4120 = vrot.slane %v4118, 5
        %v4121 = vor.u32 %v4117, %v4120
        %v4122 = vsel %vm989, %v4113, %v4121
        %v4124 = vshrl.u32 %v4061, 16
        %v4126 = vrot.slane %v4124, 4
        %v4127 = vshll.u32 %v4061, 16
        %v4129 = vrot.slane %v4127, 5
        %v4130 = vor.u32 %v4126, %v4129
        %v4132 = vshrl.u32 %v4062, 16
        %v4134 = vrot.slane %v4132, 4
        %v4135 = vshll.u32 %v4062, 16
        %v4137 = vrot.slane %v4135, 5
        %v4138 = vor.u32 %v4134, %v4137
        %v4139 = vsel %vm989, %v4130, %v4138
        %v4141 = vshrl.u32 %v4063, 16
        %v4143 = vrot.slane %v4141, 4
        %v4144 = vshll.u32 %v4063, 16
        %v4146 = vrot.slane %v4144, 5
        %v4147 = vor.u32 %v4143, %v4146
        %v4149 = vshrl.u32 %v4064, 16
        %v4151 = vrot.slane %v4149, 4
        %v4152 = vshll.u32 %v4064, 16
        %v4154 = vrot.slane %v4152, 5
        %v4155 = vor.u32 %v4151, %v4154
        %v4156 = vsel %vm989, %v4147, %v4155
        %v4158 = vshrl.u32 %v4065, 16
        %v4160 = vrot.slane %v4158, 4
        %v4161 = vshll.u32 %v4065, 16
        %v4163 = vrot.slane %v4161, 5
        %v4164 = vor.u32 %v4160, %v4163
        %v4166 = vshrl.u32 %v4066, 16
        %v4168 = vrot.slane %v4166, 4
        %v4169 = vshll.u32 %v4066, 16
        %v4171 = vrot.slane %v4169, 5
        %v4172 = vor.u32 %v4168, %v4171
        %v4173 = vsel %vm989, %v4164, %v4172
        %v4175 = vshrl.u32 %v4067, 16
        %v4177 = vrot.slane %v4175, 4
        %v4178 = vshll.u32 %v4067, 16
        %v4180 = vrot.slane %v4178, 5
        %v4181 = vor.u32 %v4177, %v4180
        %v4183 = vshrl.u32 %v4068, 16
        %v4185 = vrot.slane %v4183, 4
        %v4186 = vshll.u32 %v4068, 16
        %v4188 = vrot.slane %v4186, 5
        %v4189 = vor.u32 %v4185, %v4188
        %v4190 = vsel %vm989, %v4181, %v4189
        %v4192 = vshrl.u32 %v4069, 16
        %v4194 = vrot.slane %v4192, 4
        %v4195 = vshll.u32 %v4069, 16
        %v4197 = vrot.slane %v4195, 5
        %v4198 = vor.u32 %v4194, %v4197
        %v4200 = vshrl.u32 %v4070, 16
        %v4202 = vrot.slane %v4200, 4
        %v4203 = vshll.u32 %v4070, 16
        %v4205 = vrot.slane %v4203, 5
        %v4206 = vor.u32 %v4202, %v4205
        %v4207 = vsel %vm989, %v4198, %v4206
        %v4209 = vshrl.u32 %v4071, 16
        %v4211 = vrot.slane %v4209, 4
        %v4212 = vshll.u32 %v4071, 16
        %v4214 = vrot.slane %v4212, 5
        %v4215 = vor.u32 %v4211, %v4214
        %v4217 = vshrl.u32 %v4072, 16
        %v4219 = vrot.slane %v4217, 4
        %v4220 = vshll.u32 %v4072, 16
        %v4222 = vrot.slane %v4220, 5
        %v4223 = vor.u32 %v4219, %v4222
        %v4224 = vsel %vm989, %v4215, %v4223
        %v4226 = vshrl.u32 %v4073, 16
        %v4228 = vrot.slane %v4226, 4
        %v4229 = vshll.u32 %v4073, 16
        %v4231 = vrot.slane %v4229, 5
        %v4232 = vor.u32 %v4228, %v4231
        %v4234 = vshrl.u32 %v4074, 16
        %v4236 = vrot.slane %v4234, 4
        %v4237 = vshll.u32 %v4074, 16
        %v4239 = vrot.slane %v4237, 5
        %v4240 = vor.u32 %v4236, %v4239
        %v4241 = vsel %vm989, %v4232, %v4240
        %v4243 = vshrl.u32 %v4075, 16
        %v4245 = vrot.slane %v4243, 4
        %v4246 = vshll.u32 %v4075, 16
        %v4248 = vrot.slane %v4246, 5
        %v4249 = vor.u32 %v4245, %v4248
        %v4251 = vshrl.u32 %v4076, 16
        %v4253 = vrot.slane %v4251, 4
        %v4254 = vshll.u32 %v4076, 16
        %v4256 = vrot.slane %v4254, 5
        %v4257 = vor.u32 %v4253, %v4256
        %v4258 = vsel %vm989, %v4249, %v4257
        %v4260 = vshrl.u32 %v4077, 16
        %v4262 = vrot.slane %v4260, 4
        %v4263 = vshll.u32 %v4077, 16
        %v4265 = vrot.slane %v4263, 5
        %v4266 = vor.u32 %v4262, %v4265
        %v4268 = vshrl.u32 %v4078, 16
        %v4270 = vrot.slane %v4268, 4
        %v4271 = vshll.u32 %v4078, 16
        %v4273 = vrot.slane %v4271, 5
        %v4274 = vor.u32 %v4270, %v4273
        %v4275 = vsel %vm989, %v4266, %v4274
        %v4277 = vshrl.u32 %v4079, 16
        %v4279 = vrot.slane %v4277, 4
        %v4280 = vshll.u32 %v4079, 16
        %v4282 = vrot.slane %v4280, 5
        %v4283 = vor.u32 %v4279, %v4282
        %v4285 = vshrl.u32 %v4080, 16
        %v4287 = vrot.slane %v4285, 4
        %v4288 = vshll.u32 %v4080, 16
        %v4290 = vrot.slane %v4288, 5
        %v4291 = vor.u32 %v4287, %v4290
        %v4292 = vsel %vm989, %v4283, %v4291
        %v4294 = vshrl.u32 %v4081, 16
        %v4296 = vrot.slane %v4294, 4
        %v4297 = vshll.u32 %v4081, 16
        %v4299 = vrot.slane %v4297, 5
        %v4300 = vor.u32 %v4296, %v4299
        %v4302 = vshrl.u32 %v4082, 16
        %v4304 = vrot.slane %v4302, 4
        %v4305 = vshll.u32 %v4082, 16
        %v4307 = vrot.slane %v4305, 5
        %v4308 = vor.u32 %v4304, %v4307
        %v4309 = vsel %vm989, %v4300, %v4308
        %v4311 = vshrl.u32 %v4083, 16
        %v4313 = vrot.slane %v4311, 4
        %v4314 = vshll.u32 %v4083, 16
        %v4316 = vrot.slane %v4314, 5
        %v4317 = vor.u32 %v4313, %v4316
        %v4319 = vshrl.u32 %v4084, 16
        %v4321 = vrot.slane %v4319, 4
        %v4322 = vshll.u32 %v4084, 16
        %v4324 = vrot.slane %v4322, 5
        %v4325 = vor.u32 %v4321, %v4324
        %v4326 = vsel %vm989, %v4317, %v4325
        %v4328 = vshrl.u32 %v4085, 16
        %v4330 = vrot.slane %v4328, 4
        %v4331 = vshll.u32 %v4085, 16
        %v4333 = vrot.slane %v4331, 5
        %v4334 = vor.u32 %v4330, %v4333
        %v4336 = vshrl.u32 %v4086, 16
        %v4338 = vrot.slane %v4336, 4
        %v4339 = vshll.u32 %v4086, 16
        %v4341 = vrot.slane %v4339, 5
        %v4342 = vor.u32 %v4338, %v4341
        %v4343 = vsel %vm989, %v4334, %v4342
        %v4345 = vshrl.u32 %v4087, 16
        %v4347 = vrot.slane %v4345, 4
        %v4348 = vshll.u32 %v4087, 16
        %v4350 = vrot.slane %v4348, 5
        %v4351 = vor.u32 %v4347, %v4350
        %v4353 = vshrl.u32 %v4088, 16
        %v4355 = vrot.slane %v4353, 4
        %v4356 = vshll.u32 %v4088, 16
        %v4358 = vrot.slane %v4356, 5
        %v4359 = vor.u32 %v4355, %v4358
        %v4360 = vsel %vm989, %v4351, %v4359
        %4377 = vst.msk [vmem:[#allocation4 + $0x8] sm:$0xff] %vm3863, %v4105
        %4378 = vst.msk [vmem:[#allocation4 + $0x30] sm:$0xff] %vm3863, %v4122
        %4379 = vst.msk [vmem:[#allocation4 + $0x58] sm:$0xff] %vm3863, %v4139
        %4380 = vst.msk [vmem:[#allocation4 + $0x80] sm:$0xff] %vm3863, %v4156
        %4381 = vst.msk [vmem:[#allocation4 + $0xa8] sm:$0xff] %vm3863, %v4173
        %4382 = vst.msk [vmem:[#allocation4 + $0xd0] sm:$0xff] %vm3863, %v4190
        %4383 = vst.msk [vmem:[#allocation4 + $0xf8] sm:$0xff] %vm3863, %v4207
        %4384 = vst.msk [vmem:[#allocation4 + $0x120] sm:$0xff] %vm3863, %v4224
        %4385 = vst.msk [vmem:[#allocation4 + $0x148] sm:$0xff] %vm3863, %v4241
        %4386 = vst.msk [vmem:[#allocation4 + $0x170] sm:$0xff] %vm3863, %v4258
        %4387 = vst.msk [vmem:[#allocation4 + $0x198] sm:$0xff] %vm3863, %v4275
        %4388 = vst.msk [vmem:[#allocation4 + $0x1c0] sm:$0xff] %vm3863, %v4292
        %4389 = vst.msk [vmem:[#allocation4 + $0x1e8] sm:$0xff] %vm3863, %v4309
        %4390 = vst.msk [vmem:[#allocation4 + $0x210] sm:$0xff] %vm3863, %v4326
        %4391 = vst.msk [vmem:[#allocation4 + $0x238] sm:$0xff] %vm3863, %v4343
        %4392 = vst.msk [vmem:[#allocation4 + $0x260] sm:$0xff] %vm3863, %v4360
        %v4393 = vld [vmem:[%s3504] sm:$0xf8]
        %v4394 = vld [vmem:[%s3504 + $0x8] sm:$0xf]
        %v4395 = vld [vmem:[%s3504 + $0x10] sm:$0xf8]
        %v4396 = vld [vmem:[%s3504 + $0x18] sm:$0xf]
        %v4397 = vld [vmem:[%s3504 + $0x20] sm:$0xf8]
        %v4398 = vld [vmem:[%s3504 + $0x28] sm:$0xf]
        %v4399 = vld [vmem:[%s3504 + $0x30] sm:$0xf8]
        %v4400 = vld [vmem:[%s3504 + $0x38] sm:$0xf]
        %v4401 = vld [vmem:[%s3504 + $0x40] sm:$0xf8]
        %v4402 = vld [vmem:[%s3504 + $0x48] sm:$0xf]
        %v4403 = vld [vmem:[%s3504 + $0x50] sm:$0xf8]
        %v4404 = vld [vmem:[%s3504 + $0x58] sm:$0xf]
        %v4405 = vld [vmem:[%s3504 + $0x60] sm:$0xf8]
        %v4406 = vld [vmem:[%s3504 + $0x68] sm:$0xf]
        %v4407 = vld [vmem:[%s3504 + $0x70] sm:$0xf8]
        %v4408 = vld [vmem:[%s3504 + $0x78] sm:$0xf]
        %v4409 = vld [vmem:[%s3504 + $0x80] sm:$0xf8]
        %v4410 = vld [vmem:[%s3504 + $0x88] sm:$0xf]
        %v4411 = vld [vmem:[%s3504 + $0x90] sm:$0xf8]
        %v4412 = vld [vmem:[%s3504 + $0x98] sm:$0xf]
        %v4413 = vld [vmem:[%s3504 + $0xa0] sm:$0xf8]
        %v4414 = vld [vmem:[%s3504 + $0xa8] sm:$0xf]
        %v4415 = vld [vmem:[%s3504 + $0xb0] sm:$0xf8]
        %v4416 = vld [vmem:[%s3504 + $0xb8] sm:$0xf]
        %v4417 = vld [vmem:[%s3504 + $0xc0] sm:$0xf8]
        %v4418 = vld [vmem:[%s3504 + $0xc8] sm:$0xf]
        %v4419 = vld [vmem:[%s3504 + $0xd0] sm:$0xf8]
        %v4420 = vld [vmem:[%s3504 + $0xd8] sm:$0xf]
        %v4421 = vld [vmem:[%s3504 + $0xe0] sm:$0xf8]
        %v4422 = vld [vmem:[%s3504 + $0xe8] sm:$0xf]
        %v4423 = vld [vmem:[%s3504 + $0xf0] sm:$0xf8]
        %v4424 = vld [vmem:[%s3504 + $0xf8] sm:$0xf]
        %v4426 = vshrl.u32 %v4393, 16
        %v4428 = vrot.slane %v4426, 3
        %v4429 = vshll.u32 %v4393, 16
        %v4431 = vrot.slane %v4429, 4
        %v4432 = vor.u32 %v4428, %v4431
        %v4434 = vshrl.u32 %v4394, 16
        %v4436 = vrot.slane %v4434, 3
        %v4437 = vshll.u32 %v4394, 16
        %v4439 = vrot.slane %v4437, 4
        %v4440 = vor.u32 %v4436, %v4439
        %v4441 = vsel %vm473, %v4432, %v4440
        %v4443 = vshrl.u32 %v4395, 16
        %v4445 = vrot.slane %v4443, 3
        %v4446 = vshll.u32 %v4395, 16
        %v4448 = vrot.slane %v4446, 4
        %v4449 = vor.u32 %v4445, %v4448
        %v4451 = vshrl.u32 %v4396, 16
        %v4453 = vrot.slane %v4451, 3
        %v4454 = vshll.u32 %v4396, 16
        %v4456 = vrot.slane %v4454, 4
        %v4457 = vor.u32 %v4453, %v4456
        %v4458 = vsel %vm473, %v4449, %v4457
        %v4460 = vshrl.u32 %v4397, 16
        %v4462 = vrot.slane %v4460, 3
        %v4463 = vshll.u32 %v4397, 16
        %v4465 = vrot.slane %v4463, 4
        %v4466 = vor.u32 %v4462, %v4465
        %v4468 = vshrl.u32 %v4398, 16
        %v4470 = vrot.slane %v4468, 3
        %v4471 = vshll.u32 %v4398, 16
        %v4473 = vrot.slane %v4471, 4
        %v4474 = vor.u32 %v4470, %v4473
        %v4475 = vsel %vm473, %v4466, %v4474
        %v4477 = vshrl.u32 %v4399, 16
        %v4479 = vrot.slane %v4477, 3
        %v4480 = vshll.u32 %v4399, 16
        %v4482 = vrot.slane %v4480, 4
        %v4483 = vor.u32 %v4479, %v4482
        %v4485 = vshrl.u32 %v4400, 16
        %v4487 = vrot.slane %v4485, 3
        %v4488 = vshll.u32 %v4400, 16
        %v4490 = vrot.slane %v4488, 4
        %v4491 = vor.u32 %v4487, %v4490
        %v4492 = vsel %vm473, %v4483, %v4491
        %v4494 = vshrl.u32 %v4401, 16
        %v4496 = vrot.slane %v4494, 3
        %v4497 = vshll.u32 %v4401, 16
        %v4499 = vrot.slane %v4497, 4
        %v4500 = vor.u32 %v4496, %v4499
        %v4502 = vshrl.u32 %v4402, 16
        %v4504 = vrot.slane %v4502, 3
        %v4505 = vshll.u32 %v4402, 16
        %v4507 = vrot.slane %v4505, 4
        %v4508 = vor.u32 %v4504, %v4507
        %v4509 = vsel %vm473, %v4500, %v4508
        %v4511 = vshrl.u32 %v4403, 16
        %v4513 = vrot.slane %v4511, 3
        %v4514 = vshll.u32 %v4403, 16
        %v4516 = vrot.slane %v4514, 4
        %v4517 = vor.u32 %v4513, %v4516
        %v4519 = vshrl.u32 %v4404, 16
        %v4521 = vrot.slane %v4519, 3
        %v4522 = vshll.u32 %v4404, 16
        %v4524 = vrot.slane %v4522, 4
        %v4525 = vor.u32 %v4521, %v4524
        %v4526 = vsel %vm473, %v4517, %v4525
        %v4528 = vshrl.u32 %v4405, 16
        %v4530 = vrot.slane %v4528, 3
        %v4531 = vshll.u32 %v4405, 16
        %v4533 = vrot.slane %v4531, 4
        %v4534 = vor.u32 %v4530, %v4533
        %v4536 = vshrl.u32 %v4406, 16
        %v4538 = vrot.slane %v4536, 3
        %v4539 = vshll.u32 %v4406, 16
        %v4541 = vrot.slane %v4539, 4
        %v4542 = vor.u32 %v4538, %v4541
        %v4543 = vsel %vm473, %v4534, %v4542
        %v4545 = vshrl.u32 %v4407, 16
        %v4547 = vrot.slane %v4545, 3
        %v4548 = vshll.u32 %v4407, 16
        %v4550 = vrot.slane %v4548, 4
        %v4551 = vor.u32 %v4547, %v4550
        %v4553 = vshrl.u32 %v4408, 16
        %v4555 = vrot.slane %v4553, 3
        %v4556 = vshll.u32 %v4408, 16
        %v4558 = vrot.slane %v4556, 4
        %v4559 = vor.u32 %v4555, %v4558
        %v4560 = vsel %vm473, %v4551, %v4559
        %v4562 = vshrl.u32 %v4409, 16
        %v4564 = vrot.slane %v4562, 3
        %v4565 = vshll.u32 %v4409, 16
        %v4567 = vrot.slane %v4565, 4
        %v4568 = vor.u32 %v4564, %v4567
        %v4570 = vshrl.u32 %v4410, 16
        %v4572 = vrot.slane %v4570, 3
        %v4573 = vshll.u32 %v4410, 16
        %v4575 = vrot.slane %v4573, 4
        %v4576 = vor.u32 %v4572, %v4575
        %v4577 = vsel %vm473, %v4568, %v4576
        %v4579 = vshrl.u32 %v4411, 16
        %v4581 = vrot.slane %v4579, 3
        %v4582 = vshll.u32 %v4411, 16
        %v4584 = vrot.slane %v4582, 4
        %v4585 = vor.u32 %v4581, %v4584
        %v4587 = vshrl.u32 %v4412, 16
        %v4589 = vrot.slane %v4587, 3
        %v4590 = vshll.u32 %v4412, 16
        %v4592 = vrot.slane %v4590, 4
        %v4593 = vor.u32 %v4589, %v4592
        %v4594 = vsel %vm473, %v4585, %v4593
        %v4596 = vshrl.u32 %v4413, 16
        %v4598 = vrot.slane %v4596, 3
        %v4599 = vshll.u32 %v4413, 16
        %v4601 = vrot.slane %v4599, 4
        %v4602 = vor.u32 %v4598, %v4601
        %v4604 = vshrl.u32 %v4414, 16
        %v4606 = vrot.slane %v4604, 3
        %v4607 = vshll.u32 %v4414, 16
        %v4609 = vrot.slane %v4607, 4
        %v4610 = vor.u32 %v4606, %v4609
        %v4611 = vsel %vm473, %v4602, %v4610
        %v4613 = vshrl.u32 %v4415, 16
        %v4615 = vrot.slane %v4613, 3
        %v4616 = vshll.u32 %v4415, 16
        %v4618 = vrot.slane %v4616, 4
        %v4619 = vor.u32 %v4615, %v4618
        %v4621 = vshrl.u32 %v4416, 16
        %v4623 = vrot.slane %v4621, 3
        %v4624 = vshll.u32 %v4416, 16
        %v4626 = vrot.slane %v4624, 4
        %v4627 = vor.u32 %v4623, %v4626
        %v4628 = vsel %vm473, %v4619, %v4627
        %v4630 = vshrl.u32 %v4417, 16
        %v4632 = vrot.slane %v4630, 3
        %v4633 = vshll.u32 %v4417, 16
        %v4635 = vrot.slane %v4633, 4
        %v4636 = vor.u32 %v4632, %v4635
        %v4638 = vshrl.u32 %v4418, 16
        %v4640 = vrot.slane %v4638, 3
        %v4641 = vshll.u32 %v4418, 16
        %v4643 = vrot.slane %v4641, 4
        %v4644 = vor.u32 %v4640, %v4643
        %v4645 = vsel %vm473, %v4636, %v4644
        %v4647 = vshrl.u32 %v4419, 16
        %v4649 = vrot.slane %v4647, 3
        %v4650 = vshll.u32 %v4419, 16
        %v4652 = vrot.slane %v4650, 4
        %v4653 = vor.u32 %v4649, %v4652
        %v4655 = vshrl.u32 %v4420, 16
        %v4657 = vrot.slane %v4655, 3
        %v4658 = vshll.u32 %v4420, 16
        %v4660 = vrot.slane %v4658, 4
        %v4661 = vor.u32 %v4657, %v4660
        %v4662 = vsel %vm473, %v4653, %v4661
        %v4664 = vshrl.u32 %v4421, 16
        %v4666 = vrot.slane %v4664, 3
        %v4667 = vshll.u32 %v4421, 16
        %v4669 = vrot.slane %v4667, 4
        %v4670 = vor.u32 %v4666, %v4669
        %v4672 = vshrl.u32 %v4422, 16
        %v4674 = vrot.slane %v4672, 3
        %v4675 = vshll.u32 %v4422, 16
        %v4677 = vrot.slane %v4675, 4
        %v4678 = vor.u32 %v4674, %v4677
        %v4679 = vsel %vm473, %v4670, %v4678
        %v4681 = vshrl.u32 %v4423, 16
        %v4683 = vrot.slane %v4681, 3
        %v4684 = vshll.u32 %v4423, 16
        %v4686 = vrot.slane %v4684, 4
        %v4687 = vor.u32 %v4683, %v4686
        %v4689 = vshrl.u32 %v4424, 16
        %v4691 = vrot.slane %v4689, 3
        %v4692 = vshll.u32 %v4424, 16
        %v4694 = vrot.slane %v4692, 4
        %v4695 = vor.u32 %v4691, %v4694
        %v4696 = vsel %vm473, %v4687, %v4695
        %4697 = vrot.lane.b32.xlu0 %v4441, 64
        %v4698 = vpop.permute.xlu0 %4697
        %4699 = vrot.lane.b32.xlu0 %v4458, 64
        %v4700 = vpop.permute.xlu0 %4699
        %4701 = vrot.lane.b32.xlu0 %v4475, 64
        %v4702 = vpop.permute.xlu0 %4701
        %4703 = vrot.lane.b32.xlu0 %v4492, 64
        %v4704 = vpop.permute.xlu0 %4703
        %4705 = vrot.lane.b32.xlu0 %v4509, 64
        %v4706 = vpop.permute.xlu0 %4705
        %4707 = vrot.lane.b32.xlu0 %v4526, 64
        %v4708 = vpop.permute.xlu0 %4707
        %4709 = vrot.lane.b32.xlu0 %v4543, 64
        %v4710 = vpop.permute.xlu0 %4709
        %4711 = vrot.lane.b32.xlu0 %v4560, 64
        %v4712 = vpop.permute.xlu0 %4711
        %4713 = vrot.lane.b32.xlu0 %v4577, 64
        %v4714 = vpop.permute.xlu0 %4713
        %4715 = vrot.lane.b32.xlu0 %v4594, 64
        %v4716 = vpop.permute.xlu0 %4715
        %4717 = vrot.lane.b32.xlu0 %v4611, 64
        %v4718 = vpop.permute.xlu0 %4717
        %4719 = vrot.lane.b32.xlu0 %v4628, 64
        %v4720 = vpop.permute.xlu0 %4719
        %4721 = vrot.lane.b32.xlu0 %v4645, 64
        %v4722 = vpop.permute.xlu0 %4721
        %4723 = vrot.lane.b32.xlu0 %v4662, 64
        %v4724 = vpop.permute.xlu0 %4723
        %4725 = vrot.lane.b32.xlu0 %v4679, 64
        %v4726 = vpop.permute.xlu0 %4725
        %4727 = vrot.lane.b32.xlu0 %v4696, 64
        %v4728 = vpop.permute.xlu0 %4727
        %4745 = vst.msk [vmem:[#allocation4 + $0x8] sm:$0xff] %vm4040, %v4698
        %4746 = vst.msk [vmem:[#allocation4 + $0x30] sm:$0xff] %vm4040, %v4700
        %4747 = vst.msk [vmem:[#allocation4 + $0x58] sm:$0xff] %vm4040, %v4702
        %4748 = vst.msk [vmem:[#allocation4 + $0x80] sm:$0xff] %vm4040, %v4704
        %4749 = vst.msk [vmem:[#allocation4 + $0xa8] sm:$0xff] %vm4040, %v4706
        %4750 = vst.msk [vmem:[#allocation4 + $0xd0] sm:$0xff] %vm4040, %v4708
        %4751 = vst.msk [vmem:[#allocation4 + $0xf8] sm:$0xff] %vm4040, %v4710
        %4752 = vst.msk [vmem:[#allocation4 + $0x120] sm:$0xff] %vm4040, %v4712
        %4753 = vst.msk [vmem:[#allocation4 + $0x148] sm:$0xff] %vm4040, %v4714
        %4754 = vst.msk [vmem:[#allocation4 + $0x170] sm:$0xff] %vm4040, %v4716
        %4755 = vst.msk [vmem:[#allocation4 + $0x198] sm:$0xff] %vm4040, %v4718
        %4756 = vst.msk [vmem:[#allocation4 + $0x1c0] sm:$0xff] %vm4040, %v4720
        %4757 = vst.msk [vmem:[#allocation4 + $0x1e8] sm:$0xff] %vm4040, %v4722
        %4758 = vst.msk [vmem:[#allocation4 + $0x210] sm:$0xff] %vm4040, %v4724
        %4759 = vst.msk [vmem:[#allocation4 + $0x238] sm:$0xff] %vm4040, %v4726
        %4760 = vst.msk [vmem:[#allocation4 + $0x260] sm:$0xff] %vm4040, %v4728
        %v4761 = vld [vmem:[%s3504] sm:$0xf0]
        %v4762 = vld [vmem:[%s3504 + $0x8] sm:$0xf]
        %v4763 = vld [vmem:[%s3504 + $0x10] sm:$0xf0]
        %v4764 = vld [vmem:[%s3504 + $0x18] sm:$0xf]
        %v4765 = vld [vmem:[%s3504 + $0x20] sm:$0xf0]
        %v4766 = vld [vmem:[%s3504 + $0x28] sm:$0xf]
        %v4767 = vld [vmem:[%s3504 + $0x30] sm:$0xf0]
        %v4768 = vld [vmem:[%s3504 + $0x38] sm:$0xf]
        %v4769 = vld [vmem:[%s3504 + $0x40] sm:$0xf0]
        %v4770 = vld [vmem:[%s3504 + $0x48] sm:$0xf]
        %v4771 = vld [vmem:[%s3504 + $0x50] sm:$0xf0]
        %v4772 = vld [vmem:[%s3504 + $0x58] sm:$0xf]
        %v4773 = vld [vmem:[%s3504 + $0x60] sm:$0xf0]
        %v4774 = vld [vmem:[%s3504 + $0x68] sm:$0xf]
        %v4775 = vld [vmem:[%s3504 + $0x70] sm:$0xf0]
        %v4776 = vld [vmem:[%s3504 + $0x78] sm:$0xf]
        %v4777 = vld [vmem:[%s3504 + $0x80] sm:$0xf0]
        %v4778 = vld [vmem:[%s3504 + $0x88] sm:$0xf]
        %v4779 = vld [vmem:[%s3504 + $0x90] sm:$0xf0]
        %v4780 = vld [vmem:[%s3504 + $0x98] sm:$0xf]
        %v4781 = vld [vmem:[%s3504 + $0xa0] sm:$0xf0]
        %v4782 = vld [vmem:[%s3504 + $0xa8] sm:$0xf]
        %v4783 = vld [vmem:[%s3504 + $0xb0] sm:$0xf0]
        %v4784 = vld [vmem:[%s3504 + $0xb8] sm:$0xf]
        %v4785 = vld [vmem:[%s3504 + $0xc0] sm:$0xf0]
        %v4786 = vld [vmem:[%s3504 + $0xc8] sm:$0xf]
        %v4787 = vld [vmem:[%s3504 + $0xd0] sm:$0xf0]
        %v4788 = vld [vmem:[%s3504 + $0xd8] sm:$0xf]
        %v4789 = vld [vmem:[%s3504 + $0xe0] sm:$0xf0]
        %v4790 = vld [vmem:[%s3504 + $0xe8] sm:$0xf]
        %v4791 = vld [vmem:[%s3504 + $0xf0] sm:$0xf0]
        %v4792 = vld [vmem:[%s3504 + $0xf8] sm:$0xf]
        %v4825 = vrot.slane %v4761, 4
        %v4826 = vrot.slane %v4762, 4
        %v4827 = vsel %vm843, %v4825, %v4826
        %v4828 = vrot.slane %v4763, 4
        %v4829 = vrot.slane %v4764, 4
        %v4830 = vsel %vm843, %v4828, %v4829
        %v4831 = vrot.slane %v4765, 4
        %v4832 = vrot.slane %v4766, 4
        %v4833 = vsel %vm843, %v4831, %v4832
        %v4834 = vrot.slane %v4767, 4
        %v4835 = vrot.slane %v4768, 4
        %v4836 = vsel %vm843, %v4834, %v4835
        %v4837 = vrot.slane %v4769, 4
        %v4838 = vrot.slane %v4770, 4
        %v4839 = vsel %vm843, %v4837, %v4838
        %v4840 = vrot.slane %v4771, 4
        %v4841 = vrot.slane %v4772, 4
        %v4842 = vsel %vm843, %v4840, %v4841
        %v4843 = vrot.slane %v4773, 4
        %v4844 = vrot.slane %v4774, 4
        %v4845 = vsel %vm843, %v4843, %v4844
        %v4846 = vrot.slane %v4775, 4
        %v4847 = vrot.slane %v4776, 4
        %v4848 = vsel %vm843, %v4846, %v4847
        %v4849 = vrot.slane %v4777, 4
        %v4850 = vrot.slane %v4778, 4
        %v4851 = vsel %vm843, %v4849, %v4850
        %v4852 = vrot.slane %v4779, 4
        %v4853 = vrot.slane %v4780, 4
        %v4854 = vsel %vm843, %v4852, %v4853
        %v4855 = vrot.slane %v4781, 4
        %v4856 = vrot.slane %v4782, 4
        %v4857 = vsel %vm843, %v4855, %v4856
        %v4858 = vrot.slane %v4783, 4
        %v4859 = vrot.slane %v4784, 4
        %v4860 = vsel %vm843, %v4858, %v4859
        %v4861 = vrot.slane %v4785, 4
        %v4862 = vrot.slane %v4786, 4
        %v4863 = vsel %vm843, %v4861, %v4862
        %v4864 = vrot.slane %v4787, 4
        %v4865 = vrot.slane %v4788, 4
        %v4866 = vsel %vm843, %v4864, %v4865
        %v4867 = vrot.slane %v4789, 4
        %v4868 = vrot.slane %v4790, 4
        %v4869 = vsel %vm843, %v4867, %v4868
        %v4870 = vrot.slane %v4791, 4
        %v4871 = vrot.slane %v4792, 4
        %v4872 = vsel %vm843, %v4870, %v4871
        %4889 = vst.msk [vmem:[#allocation4 + $0x10] sm:$0xff] %vm3863, %v4827
        %4890 = vst.msk [vmem:[#allocation4 + $0x38] sm:$0xff] %vm3863, %v4830
        %4891 = vst.msk [vmem:[#allocation4 + $0x60] sm:$0xff] %vm3863, %v4833
        %4892 = vst.msk [vmem:[#allocation4 + $0x88] sm:$0xff] %vm3863, %v4836
        %4893 = vst.msk [vmem:[#allocation4 + $0xb0] sm:$0xff] %vm3863, %v4839
        %4894 = vst.msk [vmem:[#allocation4 + $0xd8] sm:$0xff] %vm3863, %v4842
        %4895 = vst.msk [vmem:[#allocation4 + $0x100] sm:$0xff] %vm3863, %v4845
        %4896 = vst.msk [vmem:[#allocation4 + $0x128] sm:$0xff] %vm3863, %v4848
        %4897 = vst.msk [vmem:[#allocation4 + $0x150] sm:$0xff] %vm3863, %v4851
        %4898 = vst.msk [vmem:[#allocation4 + $0x178] sm:$0xff] %vm3863, %v4854
        %4899 = vst.msk [vmem:[#allocation4 + $0x1a0] sm:$0xff] %vm3863, %v4857
        %4900 = vst.msk [vmem:[#allocation4 + $0x1c8] sm:$0xff] %vm3863, %v4860
        %4901 = vst.msk [vmem:[#allocation4 + $0x1f0] sm:$0xff] %vm3863, %v4863
        %4902 = vst.msk [vmem:[#allocation4 + $0x218] sm:$0xff] %vm3863, %v4866
        %4903 = vst.msk [vmem:[#allocation4 + $0x240] sm:$0xff] %vm3863, %v4869
        %4904 = vst.msk [vmem:[#allocation4 + $0x268] sm:$0xff] %vm3863, %v4872
        %v4905 = vld [vmem:[%s3504] sm:$0xf0]
        %v4906 = vld [vmem:[%s3504 + $0x8] sm:$0x1f]
        %v4907 = vld [vmem:[%s3504 + $0x10] sm:$0xf0]
        %v4908 = vld [vmem:[%s3504 + $0x18] sm:$0x1f]
        %v4909 = vld [vmem:[%s3504 + $0x20] sm:$0xf0]
        %v4910 = vld [vmem:[%s3504 + $0x28] sm:$0x1f]
        %v4911 = vld [vmem:[%s3504 + $0x30] sm:$0xf0]
        %v4912 = vld [vmem:[%s3504 + $0x38] sm:$0x1f]
        %v4913 = vld [vmem:[%s3504 + $0x40] sm:$0xf0]
        %v4914 = vld [vmem:[%s3504 + $0x48] sm:$0x1f]
        %v4915 = vld [vmem:[%s3504 + $0x50] sm:$0xf0]
        %v4916 = vld [vmem:[%s3504 + $0x58] sm:$0x1f]
        %v4917 = vld [vmem:[%s3504 + $0x60] sm:$0xf0]
        %v4918 = vld [vmem:[%s3504 + $0x68] sm:$0x1f]
        %v4919 = vld [vmem:[%s3504 + $0x70] sm:$0xf0]
        %v4920 = vld [vmem:[%s3504 + $0x78] sm:$0x1f]
        %v4921 = vld [vmem:[%s3504 + $0x80] sm:$0xf0]
        %v4922 = vld [vmem:[%s3504 + $0x88] sm:$0x1f]
        %v4923 = vld [vmem:[%s3504 + $0x90] sm:$0xf0]
        %v4924 = vld [vmem:[%s3504 + $0x98] sm:$0x1f]
        %v4925 = vld [vmem:[%s3504 + $0xa0] sm:$0xf0]
        %v4926 = vld [vmem:[%s3504 + $0xa8] sm:$0x1f]
        %v4927 = vld [vmem:[%s3504 + $0xb0] sm:$0xf0]
        %v4928 = vld [vmem:[%s3504 + $0xb8] sm:$0x1f]
        %v4929 = vld [vmem:[%s3504 + $0xc0] sm:$0xf0]
        %v4930 = vld [vmem:[%s3504 + $0xc8] sm:$0x1f]
        %v4931 = vld [vmem:[%s3504 + $0xd0] sm:$0xf0]
        %v4932 = vld [vmem:[%s3504 + $0xd8] sm:$0x1f]
        %v4933 = vld [vmem:[%s3504 + $0xe0] sm:$0xf0]
        %v4934 = vld [vmem:[%s3504 + $0xe8] sm:$0x1f]
        %v4935 = vld [vmem:[%s3504 + $0xf0] sm:$0xf0]
        %v4936 = vld [vmem:[%s3504 + $0xf8] sm:$0x1f]
        %v4938 = vshrl.u32 %v4905, 16
        %v4940 = vrot.slane %v4938, 4
        %v4941 = vshll.u32 %v4905, 16
        %v4943 = vrot.slane %v4941, 5
        %v4944 = vor.u32 %v4940, %v4943
        %v4946 = vshrl.u32 %v4906, 16
        %v4948 = vrot.slane %v4946, 4
        %v4949 = vshll.u32 %v4906, 16
        %v4951 = vrot.slane %v4949, 5
        %v4952 = vor.u32 %v4948, %v4951
        %v4953 = vsel %vm989, %v4944, %v4952
        %v4955 = vshrl.u32 %v4907, 16
        %v4957 = vrot.slane %v4955, 4
        %v4958 = vshll.u32 %v4907, 16
        %v4960 = vrot.slane %v4958, 5
        %v4961 = vor.u32 %v4957, %v4960
        %v4963 = vshrl.u32 %v4908, 16
        %v4965 = vrot.slane %v4963, 4
        %v4966 = vshll.u32 %v4908, 16
        %v4968 = vrot.slane %v4966, 5
        %v4969 = vor.u32 %v4965, %v4968
        %v4970 = vsel %vm989, %v4961, %v4969
        %v4972 = vshrl.u32 %v4909, 16
        %v4974 = vrot.slane %v4972, 4
        %v4975 = vshll.u32 %v4909, 16
        %v4977 = vrot.slane %v4975, 5
        %v4978 = vor.u32 %v4974, %v4977
        %v4980 = vshrl.u32 %v4910, 16
        %v4982 = vrot.slane %v4980, 4
        %v4983 = vshll.u32 %v4910, 16
        %v4985 = vrot.slane %v4983, 5
        %v4986 = vor.u32 %v4982, %v4985
        %v4987 = vsel %vm989, %v4978, %v4986
        %v4989 = vshrl.u32 %v4911, 16
        %v4991 = vrot.slane %v4989, 4
        %v4992 = vshll.u32 %v4911, 16
        %v4994 = vrot.slane %v4992, 5
        %v4995 = vor.u32 %v4991, %v4994
        %v4997 = vshrl.u32 %v4912, 16
        %v4999 = vrot.slane %v4997, 4
        %v5000 = vshll.u32 %v4912, 16
        %v5002 = vrot.slane %v5000, 5
        %v5003 = vor.u32 %v4999, %v5002
        %v5004 = vsel %vm989, %v4995, %v5003
        %v5006 = vshrl.u32 %v4913, 16
        %v5008 = vrot.slane %v5006, 4
        %v5009 = vshll.u32 %v4913, 16
        %v5011 = vrot.slane %v5009, 5
        %v5012 = vor.u32 %v5008, %v5011
        %v5014 = vshrl.u32 %v4914, 16
        %v5016 = vrot.slane %v5014, 4
        %v5017 = vshll.u32 %v4914, 16
        %v5019 = vrot.slane %v5017, 5
        %v5020 = vor.u32 %v5016, %v5019
        %v5021 = vsel %vm989, %v5012, %v5020
        %v5023 = vshrl.u32 %v4915, 16
        %v5025 = vrot.slane %v5023, 4
        %v5026 = vshll.u32 %v4915, 16
        %v5028 = vrot.slane %v5026, 5
        %v5029 = vor.u32 %v5025, %v5028
        %v5031 = vshrl.u32 %v4916, 16
        %v5033 = vrot.slane %v5031, 4
        %v5034 = vshll.u32 %v4916, 16
        %v5036 = vrot.slane %v5034, 5
        %v5037 = vor.u32 %v5033, %v5036
        %v5038 = vsel %vm989, %v5029, %v5037
        %v5040 = vshrl.u32 %v4917, 16
        %v5042 = vrot.slane %v5040, 4
        %v5043 = vshll.u32 %v4917, 16
        %v5045 = vrot.slane %v5043, 5
        %v5046 = vor.u32 %v5042, %v5045
        %v5048 = vshrl.u32 %v4918, 16
        %v5050 = vrot.slane %v5048, 4
        %v5051 = vshll.u32 %v4918, 16
        %v5053 = vrot.slane %v5051, 5
        %v5054 = vor.u32 %v5050, %v5053
        %v5055 = vsel %vm989, %v5046, %v5054
        %v5057 = vshrl.u32 %v4919, 16
        %v5059 = vrot.slane %v5057, 4
        %v5060 = vshll.u32 %v4919, 16
        %v5062 = vrot.slane %v5060, 5
        %v5063 = vor.u32 %v5059, %v5062
        %v5065 = vshrl.u32 %v4920, 16
        %v5067 = vrot.slane %v5065, 4
        %v5068 = vshll.u32 %v4920, 16
        %v5070 = vrot.slane %v5068, 5
        %v5071 = vor.u32 %v5067, %v5070
        %v5072 = vsel %vm989, %v5063, %v5071
        %v5074 = vshrl.u32 %v4921, 16
        %v5076 = vrot.slane %v5074, 4
        %v5077 = vshll.u32 %v4921, 16
        %v5079 = vrot.slane %v5077, 5
        %v5080 = vor.u32 %v5076, %v5079
        %v5082 = vshrl.u32 %v4922, 16
        %v5084 = vrot.slane %v5082, 4
        %v5085 = vshll.u32 %v4922, 16
        %v5087 = vrot.slane %v5085, 5
        %v5088 = vor.u32 %v5084, %v5087
        %v5089 = vsel %vm989, %v5080, %v5088
        %v5091 = vshrl.u32 %v4923, 16
        %v5093 = vrot.slane %v5091, 4
        %v5094 = vshll.u32 %v4923, 16
        %v5096 = vrot.slane %v5094, 5
        %v5097 = vor.u32 %v5093, %v5096
        %v5099 = vshrl.u32 %v4924, 16
        %v5101 = vrot.slane %v5099, 4
        %v5102 = vshll.u32 %v4924, 16
        %v5104 = vrot.slane %v5102, 5
        %v5105 = vor.u32 %v5101, %v5104
        %v5106 = vsel %vm989, %v5097, %v5105
        %v5108 = vshrl.u32 %v4925, 16
        %v5110 = vrot.slane %v5108, 4
        %v5111 = vshll.u32 %v4925, 16
        %v5113 = vrot.slane %v5111, 5
        %v5114 = vor.u32 %v5110, %v5113
        %v5116 = vshrl.u32 %v4926, 16
        %v5118 = vrot.slane %v5116, 4
        %v5119 = vshll.u32 %v4926, 16
        %v5121 = vrot.slane %v5119, 5
        %v5122 = vor.u32 %v5118, %v5121
        %v5123 = vsel %vm989, %v5114, %v5122
        %v5125 = vshrl.u32 %v4927, 16
        %v5127 = vrot.slane %v5125, 4
        %v5128 = vshll.u32 %v4927, 16
        %v5130 = vrot.slane %v5128, 5
        %v5131 = vor.u32 %v5127, %v5130
        %v5133 = vshrl.u32 %v4928, 16
        %v5135 = vrot.slane %v5133, 4
        %v5136 = vshll.u32 %v4928, 16
        %v5138 = vrot.slane %v5136, 5
        %v5139 = vor.u32 %v5135, %v5138
        %v5140 = vsel %vm989, %v5131, %v5139
        %v5142 = vshrl.u32 %v4929, 16
        %v5144 = vrot.slane %v5142, 4
        %v5145 = vshll.u32 %v4929, 16
        %v5147 = vrot.slane %v5145, 5
        %v5148 = vor.u32 %v5144, %v5147
        %v5150 = vshrl.u32 %v4930, 16
        %v5152 = vrot.slane %v5150, 4
        %v5153 = vshll.u32 %v4930, 16
        %v5155 = vrot.slane %v5153, 5
        %v5156 = vor.u32 %v5152, %v5155
        %v5157 = vsel %vm989, %v5148, %v5156
        %v5159 = vshrl.u32 %v4931, 16
        %v5161 = vrot.slane %v5159, 4
        %v5162 = vshll.u32 %v4931, 16
        %v5164 = vrot.slane %v5162, 5
        %v5165 = vor.u32 %v5161, %v5164
        %v5167 = vshrl.u32 %v4932, 16
        %v5169 = vrot.slane %v5167, 4
        %v5170 = vshll.u32 %v4932, 16
        %v5172 = vrot.slane %v5170, 5
        %v5173 = vor.u32 %v5169, %v5172
        %v5174 = vsel %vm989, %v5165, %v5173
        %v5176 = vshrl.u32 %v4933, 16
        %v5178 = vrot.slane %v5176, 4
        %v5179 = vshll.u32 %v4933, 16
        %v5181 = vrot.slane %v5179, 5
        %v5182 = vor.u32 %v5178, %v5181
        %v5184 = vshrl.u32 %v4934, 16
        %v5186 = vrot.slane %v5184, 4
        %v5187 = vshll.u32 %v4934, 16
        %v5189 = vrot.slane %v5187, 5
        %v5190 = vor.u32 %v5186, %v5189
        %v5191 = vsel %vm989, %v5182, %v5190
        %v5193 = vshrl.u32 %v4935, 16
        %v5195 = vrot.slane %v5193, 4
        %v5196 = vshll.u32 %v4935, 16
        %v5198 = vrot.slane %v5196, 5
        %v5199 = vor.u32 %v5195, %v5198
        %v5201 = vshrl.u32 %v4936, 16
        %v5203 = vrot.slane %v5201, 4
        %v5204 = vshll.u32 %v4936, 16
        %v5206 = vrot.slane %v5204, 5
        %v5207 = vor.u32 %v5203, %v5206
        %v5208 = vsel %vm989, %v5199, %v5207
        %5209 = vrot.lane.b32.xlu0 %v4953, 64
        %v5210 = vpop.permute.xlu0 %5209
        %5211 = vrot.lane.b32.xlu0 %v4970, 64
        %v5212 = vpop.permute.xlu0 %5211
        %5213 = vrot.lane.b32.xlu0 %v4987, 64
        %v5214 = vpop.permute.xlu0 %5213
        %5215 = vrot.lane.b32.xlu0 %v5004, 64
        %v5216 = vpop.permute.xlu0 %5215
        %5217 = vrot.lane.b32.xlu0 %v5021, 64
        %v5218 = vpop.permute.xlu0 %5217
        %5219 = vrot.lane.b32.xlu0 %v5038, 64
        %v5220 = vpop.permute.xlu0 %5219
        %5221 = vrot.lane.b32.xlu0 %v5055, 64
        %v5222 = vpop.permute.xlu0 %5221
        %5223 = vrot.lane.b32.xlu0 %v5072, 64
        %v5224 = vpop.permute.xlu0 %5223
        %5225 = vrot.lane.b32.xlu0 %v5089, 64
        %v5226 = vpop.permute.xlu0 %5225
        %5227 = vrot.lane.b32.xlu0 %v5106, 64
        %v5228 = vpop.permute.xlu0 %5227
        %5229 = vrot.lane.b32.xlu0 %v5123, 64
        %v5230 = vpop.permute.xlu0 %5229
        %5231 = vrot.lane.b32.xlu0 %v5140, 64
        %v5232 = vpop.permute.xlu0 %5231
        %5233 = vrot.lane.b32.xlu0 %v5157, 64
        %v5234 = vpop.permute.xlu0 %5233
        %5235 = vrot.lane.b32.xlu0 %v5174, 64
        %v5236 = vpop.permute.xlu0 %5235
        %5237 = vrot.lane.b32.xlu0 %v5191, 64
        %v5238 = vpop.permute.xlu0 %5237
        %5239 = vrot.lane.b32.xlu0 %v5208, 64
        %v5240 = vpop.permute.xlu0 %5239
        %5257 = vst.msk [vmem:[#allocation4 + $0x10] sm:$0xff] %vm4040, %v5210
        %5258 = vst.msk [vmem:[#allocation4 + $0x38] sm:$0xff] %vm4040, %v5212
        %5259 = vst.msk [vmem:[#allocation4 + $0x60] sm:$0xff] %vm4040, %v5214
        %5260 = vst.msk [vmem:[#allocation4 + $0x88] sm:$0xff] %vm4040, %v5216
        %5261 = vst.msk [vmem:[#allocation4 + $0xb0] sm:$0xff] %vm4040, %v5218
        %5262 = vst.msk [vmem:[#allocation4 + $0xd8] sm:$0xff] %vm4040, %v5220
        %5263 = vst.msk [vmem:[#allocation4 + $0x100] sm:$0xff] %vm4040, %v5222
        %5264 = vst.msk [vmem:[#allocation4 + $0x128] sm:$0xff] %vm4040, %v5224
        %5265 = vst.msk [vmem:[#allocation4 + $0x150] sm:$0xff] %vm4040, %v5226
        %5266 = vst.msk [vmem:[#allocation4 + $0x178] sm:$0xff] %vm4040, %v5228
        %5267 = vst.msk [vmem:[#allocation4 + $0x1a0] sm:$0xff] %vm4040, %v5230
        %5268 = vst.msk [vmem:[#allocation4 + $0x1c8] sm:$0xff] %vm4040, %v5232
        %5269 = vst.msk [vmem:[#allocation4 + $0x1f0] sm:$0xff] %vm4040, %v5234
        %5270 = vst.msk [vmem:[#allocation4 + $0x218] sm:$0xff] %vm4040, %v5236
        %5271 = vst.msk [vmem:[#allocation4 + $0x240] sm:$0xff] %vm4040, %v5238
        %5272 = vst.msk [vmem:[#allocation4 + $0x268] sm:$0xff] %vm4040, %v5240
        %s5273 = scalar_lea.vmem [#allocation3], 32
        %v5274 = vld [vmem:[%s5273] sm:$0xf8]
        %v5275 = vld [vmem:[%s5273 + $0x8] sm:$0xf]
        %v5276 = vld [vmem:[%s5273 + $0x10] sm:$0xf8]
        %v5277 = vld [vmem:[%s5273 + $0x18] sm:$0xf]
        %v5278 = vld [vmem:[%s5273 + $0x20] sm:$0xf8]
        %v5279 = vld [vmem:[%s5273 + $0x28] sm:$0xf]
        %v5280 = vld [vmem:[%s5273 + $0x30] sm:$0xf8]
        %v5281 = vld [vmem:[%s5273 + $0x38] sm:$0xf]
        %v5282 = vld [vmem:[%s5273 + $0x40] sm:$0xf8]
        %v5283 = vld [vmem:[%s5273 + $0x48] sm:$0xf]
        %v5284 = vld [vmem:[%s5273 + $0x50] sm:$0xf8]
        %v5285 = vld [vmem:[%s5273 + $0x58] sm:$0xf]
        %v5286 = vld [vmem:[%s5273 + $0x60] sm:$0xf8]
        %v5287 = vld [vmem:[%s5273 + $0x68] sm:$0xf]
        %v5288 = vld [vmem:[%s5273 + $0x70] sm:$0xf8]
        %v5289 = vld [vmem:[%s5273 + $0x78] sm:$0xf]
        %v5290 = vld [vmem:[%s5273 + $0x80] sm:$0xf8]
        %v5291 = vld [vmem:[%s5273 + $0x88] sm:$0xf]
        %v5292 = vld [vmem:[%s5273 + $0x90] sm:$0xf8]
        %v5293 = vld [vmem:[%s5273 + $0x98] sm:$0xf]
        %v5294 = vld [vmem:[%s5273 + $0xa0] sm:$0xf8]
        %v5295 = vld [vmem:[%s5273 + $0xa8] sm:$0xf]
        %v5296 = vld [vmem:[%s5273 + $0xb0] sm:$0xf8]
        %v5297 = vld [vmem:[%s5273 + $0xb8] sm:$0xf]
        %v5298 = vld [vmem:[%s5273 + $0xc0] sm:$0xf8]
        %v5299 = vld [vmem:[%s5273 + $0xc8] sm:$0xf]
        %v5300 = vld [vmem:[%s5273 + $0xd0] sm:$0xf8]
        %v5301 = vld [vmem:[%s5273 + $0xd8] sm:$0xf]
        %v5302 = vld [vmem:[%s5273 + $0xe0] sm:$0xf8]
        %v5303 = vld [vmem:[%s5273 + $0xe8] sm:$0xf]
        %v5304 = vld [vmem:[%s5273 + $0xf0] sm:$0xf8]
        %v5305 = vld [vmem:[%s5273 + $0xf8] sm:$0xf]
        %v5307 = vshrl.u32 %v5274, 16
        %v5309 = vrot.slane %v5307, 3
        %v5310 = vshll.u32 %v5274, 16
        %v5312 = vrot.slane %v5310, 4
        %v5313 = vor.u32 %v5309, %v5312
        %v5315 = vshrl.u32 %v5275, 16
        %v5317 = vrot.slane %v5315, 3
        %v5318 = vshll.u32 %v5275, 16
        %v5320 = vrot.slane %v5318, 4
        %v5321 = vor.u32 %v5317, %v5320
        %v5322 = vsel %vm473, %v5313, %v5321
        %v5324 = vshrl.u32 %v5276, 16
        %v5326 = vrot.slane %v5324, 3
        %v5327 = vshll.u32 %v5276, 16
        %v5329 = vrot.slane %v5327, 4
        %v5330 = vor.u32 %v5326, %v5329
        %v5332 = vshrl.u32 %v5277, 16
        %v5334 = vrot.slane %v5332, 3
        %v5335 = vshll.u32 %v5277, 16
        %v5337 = vrot.slane %v5335, 4
        %v5338 = vor.u32 %v5334, %v5337
        %v5339 = vsel %vm473, %v5330, %v5338
        %v5341 = vshrl.u32 %v5278, 16
        %v5343 = vrot.slane %v5341, 3
        %v5344 = vshll.u32 %v5278, 16
        %v5346 = vrot.slane %v5344, 4
        %v5347 = vor.u32 %v5343, %v5346
        %v5349 = vshrl.u32 %v5279, 16
        %v5351 = vrot.slane %v5349, 3
        %v5352 = vshll.u32 %v5279, 16
        %v5354 = vrot.slane %v5352, 4
        %v5355 = vor.u32 %v5351, %v5354
        %v5356 = vsel %vm473, %v5347, %v5355
        %v5358 = vshrl.u32 %v5280, 16
        %v5360 = vrot.slane %v5358, 3
        %v5361 = vshll.u32 %v5280, 16
        %v5363 = vrot.slane %v5361, 4
        %v5364 = vor.u32 %v5360, %v5363
        %v5366 = vshrl.u32 %v5281, 16
        %v5368 = vrot.slane %v5366, 3
        %v5369 = vshll.u32 %v5281, 16
        %v5371 = vrot.slane %v5369, 4
        %v5372 = vor.u32 %v5368, %v5371
        %v5373 = vsel %vm473, %v5364, %v5372
        %v5375 = vshrl.u32 %v5282, 16
        %v5377 = vrot.slane %v5375, 3
        %v5378 = vshll.u32 %v5282, 16
        %v5380 = vrot.slane %v5378, 4
        %v5381 = vor.u32 %v5377, %v5380
        %v5383 = vshrl.u32 %v5283, 16
        %v5385 = vrot.slane %v5383, 3
        %v5386 = vshll.u32 %v5283, 16
        %v5388 = vrot.slane %v5386, 4
        %v5389 = vor.u32 %v5385, %v5388
        %v5390 = vsel %vm473, %v5381, %v5389
        %v5392 = vshrl.u32 %v5284, 16
        %v5394 = vrot.slane %v5392, 3
        %v5395 = vshll.u32 %v5284, 16
        %v5397 = vrot.slane %v5395, 4
        %v5398 = vor.u32 %v5394, %v5397
        %v5400 = vshrl.u32 %v5285, 16
        %v5402 = vrot.slane %v5400, 3
        %v5403 = vshll.u32 %v5285, 16
        %v5405 = vrot.slane %v5403, 4
        %v5406 = vor.u32 %v5402, %v5405
        %v5407 = vsel %vm473, %v5398, %v5406
        %v5409 = vshrl.u32 %v5286, 16
        %v5411 = vrot.slane %v5409, 3
        %v5412 = vshll.u32 %v5286, 16
        %v5414 = vrot.slane %v5412, 4
        %v5415 = vor.u32 %v5411, %v5414
        %v5417 = vshrl.u32 %v5287, 16
        %v5419 = vrot.slane %v5417, 3
        %v5420 = vshll.u32 %v5287, 16
        %v5422 = vrot.slane %v5420, 4
        %v5423 = vor.u32 %v5419, %v5422
        %v5424 = vsel %vm473, %v5415, %v5423
        %v5426 = vshrl.u32 %v5288, 16
        %v5428 = vrot.slane %v5426, 3
        %v5429 = vshll.u32 %v5288, 16
        %v5431 = vrot.slane %v5429, 4
        %v5432 = vor.u32 %v5428, %v5431
        %v5434 = vshrl.u32 %v5289, 16
        %v5436 = vrot.slane %v5434, 3
        %v5437 = vshll.u32 %v5289, 16
        %v5439 = vrot.slane %v5437, 4
        %v5440 = vor.u32 %v5436, %v5439
        %v5441 = vsel %vm473, %v5432, %v5440
        %v5443 = vshrl.u32 %v5290, 16
        %v5445 = vrot.slane %v5443, 3
        %v5446 = vshll.u32 %v5290, 16
        %v5448 = vrot.slane %v5446, 4
        %v5449 = vor.u32 %v5445, %v5448
        %v5451 = vshrl.u32 %v5291, 16
        %v5453 = vrot.slane %v5451, 3
        %v5454 = vshll.u32 %v5291, 16
        %v5456 = vrot.slane %v5454, 4
        %v5457 = vor.u32 %v5453, %v5456
        %v5458 = vsel %vm473, %v5449, %v5457
        %v5460 = vshrl.u32 %v5292, 16
        %v5462 = vrot.slane %v5460, 3
        %v5463 = vshll.u32 %v5292, 16
        %v5465 = vrot.slane %v5463, 4
        %v5466 = vor.u32 %v5462, %v5465
        %v5468 = vshrl.u32 %v5293, 16
        %v5470 = vrot.slane %v5468, 3
        %v5471 = vshll.u32 %v5293, 16
        %v5473 = vrot.slane %v5471, 4
        %v5474 = vor.u32 %v5470, %v5473
        %v5475 = vsel %vm473, %v5466, %v5474
        %v5477 = vshrl.u32 %v5294, 16
        %v5479 = vrot.slane %v5477, 3
        %v5480 = vshll.u32 %v5294, 16
        %v5482 = vrot.slane %v5480, 4
        %v5483 = vor.u32 %v5479, %v5482
        %v5485 = vshrl.u32 %v5295, 16
        %v5487 = vrot.slane %v5485, 3
        %v5488 = vshll.u32 %v5295, 16
        %v5490 = vrot.slane %v5488, 4
        %v5491 = vor.u32 %v5487, %v5490
        %v5492 = vsel %vm473, %v5483, %v5491
        %v5494 = vshrl.u32 %v5296, 16
        %v5496 = vrot.slane %v5494, 3
        %v5497 = vshll.u32 %v5296, 16
        %v5499 = vrot.slane %v5497, 4
        %v5500 = vor.u32 %v5496, %v5499
        %v5502 = vshrl.u32 %v5297, 16
        %v5504 = vrot.slane %v5502, 3
        %v5505 = vshll.u32 %v5297, 16
        %v5507 = vrot.slane %v5505, 4
        %v5508 = vor.u32 %v5504, %v5507
        %v5509 = vsel %vm473, %v5500, %v5508
        %v5511 = vshrl.u32 %v5298, 16
        %v5513 = vrot.slane %v5511, 3
        %v5514 = vshll.u32 %v5298, 16
        %v5516 = vrot.slane %v5514, 4
        %v5517 = vor.u32 %v5513, %v5516
        %v5519 = vshrl.u32 %v5299, 16
        %v5521 = vrot.slane %v5519, 3
        %v5522 = vshll.u32 %v5299, 16
        %v5524 = vrot.slane %v5522, 4
        %v5525 = vor.u32 %v5521, %v5524
        %v5526 = vsel %vm473, %v5517, %v5525
        %v5528 = vshrl.u32 %v5300, 16
        %v5530 = vrot.slane %v5528, 3
        %v5531 = vshll.u32 %v5300, 16
        %v5533 = vrot.slane %v5531, 4
        %v5534 = vor.u32 %v5530, %v5533
        %v5536 = vshrl.u32 %v5301, 16
        %v5538 = vrot.slane %v5536, 3
        %v5539 = vshll.u32 %v5301, 16
        %v5541 = vrot.slane %v5539, 4
        %v5542 = vor.u32 %v5538, %v5541
        %v5543 = vsel %vm473, %v5534, %v5542
        %v5545 = vshrl.u32 %v5302, 16
        %v5547 = vrot.slane %v5545, 3
        %v5548 = vshll.u32 %v5302, 16
        %v5550 = vrot.slane %v5548, 4
        %v5551 = vor.u32 %v5547, %v5550
        %v5553 = vshrl.u32 %v5303, 16
        %v5555 = vrot.slane %v5553, 3
        %v5556 = vshll.u32 %v5303, 16
        %v5558 = vrot.slane %v5556, 4
        %v5559 = vor.u32 %v5555, %v5558
        %v5560 = vsel %vm473, %v5551, %v5559
        %v5562 = vshrl.u32 %v5304, 16
        %v5564 = vrot.slane %v5562, 3
        %v5565 = vshll.u32 %v5304, 16
        %v5567 = vrot.slane %v5565, 4
        %v5568 = vor.u32 %v5564, %v5567
        %v5570 = vshrl.u32 %v5305, 16
        %v5572 = vrot.slane %v5570, 3
        %v5573 = vshll.u32 %v5305, 16
        %v5575 = vrot.slane %v5573, 4
        %v5576 = vor.u32 %v5572, %v5575
        %v5577 = vsel %vm473, %v5568, %v5576
        %5594 = vst.msk [vmem:[#allocation4 + $0x18] sm:$0xff] %vm3863, %v5322
        %5595 = vst.msk [vmem:[#allocation4 + $0x40] sm:$0xff] %vm3863, %v5339
        %5596 = vst.msk [vmem:[#allocation4 + $0x68] sm:$0xff] %vm3863, %v5356
        %5597 = vst.msk [vmem:[#allocation4 + $0x90] sm:$0xff] %vm3863, %v5373
        %5598 = vst.msk [vmem:[#allocation4 + $0xb8] sm:$0xff] %vm3863, %v5390
        %5599 = vst.msk [vmem:[#allocation4 + $0xe0] sm:$0xff] %vm3863, %v5407
        %5600 = vst.msk [vmem:[#allocation4 + $0x108] sm:$0xff] %vm3863, %v5424
        %5601 = vst.msk [vmem:[#allocation4 + $0x130] sm:$0xff] %vm3863, %v5441
        %5602 = vst.msk [vmem:[#allocation4 + $0x158] sm:$0xff] %vm3863, %v5458
        %5603 = vst.msk [vmem:[#allocation4 + $0x180] sm:$0xff] %vm3863, %v5475
        %5604 = vst.msk [vmem:[#allocation4 + $0x1a8] sm:$0xff] %vm3863, %v5492
        %5605 = vst.msk [vmem:[#allocation4 + $0x1d0] sm:$0xff] %vm3863, %v5509
        %5606 = vst.msk [vmem:[#allocation4 + $0x1f8] sm:$0xff] %vm3863, %v5526
        %5607 = vst.msk [vmem:[#allocation4 + $0x220] sm:$0xff] %vm3863, %v5543
        %5608 = vst.msk [vmem:[#allocation4 + $0x248] sm:$0xff] %vm3863, %v5560
        %5609 = vst.msk [vmem:[#allocation4 + $0x270] sm:$0xff] %vm3863, %v5577
        %v5610 = vld [vmem:[%s5273] sm:$0xf0]
        %v5611 = vld [vmem:[%s5273 + $0x8] sm:$0xf]
        %v5612 = vld [vmem:[%s5273 + $0x10] sm:$0xf0]
        %v5613 = vld [vmem:[%s5273 + $0x18] sm:$0xf]
        %v5614 = vld [vmem:[%s5273 + $0x20] sm:$0xf0]
        %v5615 = vld [vmem:[%s5273 + $0x28] sm:$0xf]
        %v5616 = vld [vmem:[%s5273 + $0x30] sm:$0xf0]
        %v5617 = vld [vmem:[%s5273 + $0x38] sm:$0xf]
        %v5618 = vld [vmem:[%s5273 + $0x40] sm:$0xf0]
        %v5619 = vld [vmem:[%s5273 + $0x48] sm:$0xf]
        %v5620 = vld [vmem:[%s5273 + $0x50] sm:$0xf0]
        %v5621 = vld [vmem:[%s5273 + $0x58] sm:$0xf]
        %v5622 = vld [vmem:[%s5273 + $0x60] sm:$0xf0]
        %v5623 = vld [vmem:[%s5273 + $0x68] sm:$0xf]
        %v5624 = vld [vmem:[%s5273 + $0x70] sm:$0xf0]
        %v5625 = vld [vmem:[%s5273 + $0x78] sm:$0xf]
        %v5626 = vld [vmem:[%s5273 + $0x80] sm:$0xf0]
        %v5627 = vld [vmem:[%s5273 + $0x88] sm:$0xf]
        %v5628 = vld [vmem:[%s5273 + $0x90] sm:$0xf0]
        %v5629 = vld [vmem:[%s5273 + $0x98] sm:$0xf]
        %v5630 = vld [vmem:[%s5273 + $0xa0] sm:$0xf0]
        %v5631 = vld [vmem:[%s5273 + $0xa8] sm:$0xf]
        %v5632 = vld [vmem:[%s5273 + $0xb0] sm:$0xf0]
        %v5633 = vld [vmem:[%s5273 + $0xb8] sm:$0xf]
        %v5634 = vld [vmem:[%s5273 + $0xc0] sm:$0xf0]
        %v5635 = vld [vmem:[%s5273 + $0xc8] sm:$0xf]
        %v5636 = vld [vmem:[%s5273 + $0xd0] sm:$0xf0]
        %v5637 = vld [vmem:[%s5273 + $0xd8] sm:$0xf]
        %v5638 = vld [vmem:[%s5273 + $0xe0] sm:$0xf0]
        %v5639 = vld [vmem:[%s5273 + $0xe8] sm:$0xf]
        %v5640 = vld [vmem:[%s5273 + $0xf0] sm:$0xf0]
        %v5641 = vld [vmem:[%s5273 + $0xf8] sm:$0xf]
        %v5674 = vrot.slane %v5610, 4
        %v5675 = vrot.slane %v5611, 4
        %v5676 = vsel %vm843, %v5674, %v5675
        %v5677 = vrot.slane %v5612, 4
        %v5678 = vrot.slane %v5613, 4
        %v5679 = vsel %vm843, %v5677, %v5678
        %v5680 = vrot.slane %v5614, 4
        %v5681 = vrot.slane %v5615, 4
        %v5682 = vsel %vm843, %v5680, %v5681
        %v5683 = vrot.slane %v5616, 4
        %v5684 = vrot.slane %v5617, 4
        %v5685 = vsel %vm843, %v5683, %v5684
        %v5686 = vrot.slane %v5618, 4
        %v5687 = vrot.slane %v5619, 4
        %v5688 = vsel %vm843, %v5686, %v5687
        %v5689 = vrot.slane %v5620, 4
        %v5690 = vrot.slane %v5621, 4
        %v5691 = vsel %vm843, %v5689, %v5690
        %v5692 = vrot.slane %v5622, 4
        %v5693 = vrot.slane %v5623, 4
        %v5694 = vsel %vm843, %v5692, %v5693
        %v5695 = vrot.slane %v5624, 4
        %v5696 = vrot.slane %v5625, 4
        %v5697 = vsel %vm843, %v5695, %v5696
        %v5698 = vrot.slane %v5626, 4
        %v5699 = vrot.slane %v5627, 4
        %v5700 = vsel %vm843, %v5698, %v5699
        %v5701 = vrot.slane %v5628, 4
        %v5702 = vrot.slane %v5629, 4
        %v5703 = vsel %vm843, %v5701, %v5702
        %v5704 = vrot.slane %v5630, 4
        %v5705 = vrot.slane %v5631, 4
        %v5706 = vsel %vm843, %v5704, %v5705
        %v5707 = vrot.slane %v5632, 4
        %v5708 = vrot.slane %v5633, 4
        %v5709 = vsel %vm843, %v5707, %v5708
        %v5710 = vrot.slane %v5634, 4
        %v5711 = vrot.slane %v5635, 4
        %v5712 = vsel %vm843, %v5710, %v5711
        %v5713 = vrot.slane %v5636, 4
        %v5714 = vrot.slane %v5637, 4
        %v5715 = vsel %vm843, %v5713, %v5714
        %v5716 = vrot.slane %v5638, 4
        %v5717 = vrot.slane %v5639, 4
        %v5718 = vsel %vm843, %v5716, %v5717
        %v5719 = vrot.slane %v5640, 4
        %v5720 = vrot.slane %v5641, 4
        %v5721 = vsel %vm843, %v5719, %v5720
        %5722 = vrot.lane.b32.xlu0 %v5676, 64
        %v5723 = vpop.permute.xlu0 %5722
        %5724 = vrot.lane.b32.xlu0 %v5679, 64
        %v5725 = vpop.permute.xlu0 %5724
        %5726 = vrot.lane.b32.xlu0 %v5682, 64
        %v5727 = vpop.permute.xlu0 %5726
        %5728 = vrot.lane.b32.xlu0 %v5685, 64
        %v5729 = vpop.permute.xlu0 %5728
        %5730 = vrot.lane.b32.xlu0 %v5688, 64
        %v5731 = vpop.permute.xlu0 %5730
        %5732 = vrot.lane.b32.xlu0 %v5691, 64
        %v5733 = vpop.permute.xlu0 %5732
        %5734 = vrot.lane.b32.xlu0 %v5694, 64
        %v5735 = vpop.permute.xlu0 %5734
        %5736 = vrot.lane.b32.xlu0 %v5697, 64
        %v5737 = vpop.permute.xlu0 %5736
        %5738 = vrot.lane.b32.xlu0 %v5700, 64
        %v5739 = vpop.permute.xlu0 %5738
        %5740 = vrot.lane.b32.xlu0 %v5703, 64
        %v5741 = vpop.permute.xlu0 %5740
        %5742 = vrot.lane.b32.xlu0 %v5706, 64
        %v5743 = vpop.permute.xlu0 %5742
        %5744 = vrot.lane.b32.xlu0 %v5709, 64
        %v5745 = vpop.permute.xlu0 %5744
        %5746 = vrot.lane.b32.xlu0 %v5712, 64
        %v5747 = vpop.permute.xlu0 %5746
        %5748 = vrot.lane.b32.xlu0 %v5715, 64
        %v5749 = vpop.permute.xlu0 %5748
        %5750 = vrot.lane.b32.xlu0 %v5718, 64
        %v5751 = vpop.permute.xlu0 %5750
        %5752 = vrot.lane.b32.xlu0 %v5721, 64
        %v5753 = vpop.permute.xlu0 %5752
        %5770 = vst.msk [vmem:[#allocation4 + $0x18] sm:$0xff] %vm4040, %v5723
        %5771 = vst.msk [vmem:[#allocation4 + $0x40] sm:$0xff] %vm4040, %v5725
        %5772 = vst.msk [vmem:[#allocation4 + $0x68] sm:$0xff] %vm4040, %v5727
        %5773 = vst.msk [vmem:[#allocation4 + $0x90] sm:$0xff] %vm4040, %v5729
        %5774 = vst.msk [vmem:[#allocation4 + $0xb8] sm:$0xff] %vm4040, %v5731
        %5775 = vst.msk [vmem:[#allocation4 + $0xe0] sm:$0xff] %vm4040, %v5733
        %5776 = vst.msk [vmem:[#allocation4 + $0x108] sm:$0xff] %vm4040, %v5735
        %5777 = vst.msk [vmem:[#allocation4 + $0x130] sm:$0xff] %vm4040, %v5737
        %5778 = vst.msk [vmem:[#allocation4 + $0x158] sm:$0xff] %vm4040, %v5739
        %5779 = vst.msk [vmem:[#allocation4 + $0x180] sm:$0xff] %vm4040, %v5741
        %5780 = vst.msk [vmem:[#allocation4 + $0x1a8] sm:$0xff] %vm4040, %v5743
        %5781 = vst.msk [vmem:[#allocation4 + $0x1d0] sm:$0xff] %vm4040, %v5745
        %5782 = vst.msk [vmem:[#allocation4 + $0x1f8] sm:$0xff] %vm4040, %v5747
        %5783 = vst.msk [vmem:[#allocation4 + $0x220] sm:$0xff] %vm4040, %v5749
        %5784 = vst.msk [vmem:[#allocation4 + $0x248] sm:$0xff] %vm4040, %v5751
        %5785 = vst.msk [vmem:[#allocation4 + $0x270] sm:$0xff] %vm4040, %v5753
        %v5786 = vld [vmem:[%s5273] sm:$0xf0]
        %v5787 = vld [vmem:[%s5273 + $0x8] sm:$0x1f]
        %v5788 = vld [vmem:[%s5273 + $0x10] sm:$0xf0]
        %v5789 = vld [vmem:[%s5273 + $0x18] sm:$0x1f]
        %v5790 = vld [vmem:[%s5273 + $0x20] sm:$0xf0]
        %v5791 = vld [vmem:[%s5273 + $0x28] sm:$0x1f]
        %v5792 = vld [vmem:[%s5273 + $0x30] sm:$0xf0]
        %v5793 = vld [vmem:[%s5273 + $0x38] sm:$0x1f]
        %v5794 = vld [vmem:[%s5273 + $0x40] sm:$0xf0]
        %v5795 = vld [vmem:[%s5273 + $0x48] sm:$0x1f]
        %v5796 = vld [vmem:[%s5273 + $0x50] sm:$0xf0]
        %v5797 = vld [vmem:[%s5273 + $0x58] sm:$0x1f]
        %v5798 = vld [vmem:[%s5273 + $0x60] sm:$0xf0]
        %v5799 = vld [vmem:[%s5273 + $0x68] sm:$0x1f]
        %v5800 = vld [vmem:[%s5273 + $0x70] sm:$0xf0]
        %v5801 = vld [vmem:[%s5273 + $0x78] sm:$0x1f]
        %v5802 = vld [vmem:[%s5273 + $0x80] sm:$0xf0]
        %v5803 = vld [vmem:[%s5273 + $0x88] sm:$0x1f]
        %v5804 = vld [vmem:[%s5273 + $0x90] sm:$0xf0]
        %v5805 = vld [vmem:[%s5273 + $0x98] sm:$0x1f]
        %v5806 = vld [vmem:[%s5273 + $0xa0] sm:$0xf0]
        %v5807 = vld [vmem:[%s5273 + $0xa8] sm:$0x1f]
        %v5808 = vld [vmem:[%s5273 + $0xb0] sm:$0xf0]
        %v5809 = vld [vmem:[%s5273 + $0xb8] sm:$0x1f]
        %v5810 = vld [vmem:[%s5273 + $0xc0] sm:$0xf0]
        %v5811 = vld [vmem:[%s5273 + $0xc8] sm:$0x1f]
        %v5812 = vld [vmem:[%s5273 + $0xd0] sm:$0xf0]
        %v5813 = vld [vmem:[%s5273 + $0xd8] sm:$0x1f]
        %v5814 = vld [vmem:[%s5273 + $0xe0] sm:$0xf0]
        %v5815 = vld [vmem:[%s5273 + $0xe8] sm:$0x1f]
        %v5816 = vld [vmem:[%s5273 + $0xf0] sm:$0xf0]
        %v5817 = vld [vmem:[%s5273 + $0xf8] sm:$0x1f]
        %v5819 = vshrl.u32 %v5786, 16
        %v5821 = vrot.slane %v5819, 4
        %v5822 = vshll.u32 %v5786, 16
        %v5824 = vrot.slane %v5822, 5
        %v5825 = vor.u32 %v5821, %v5824
        %v5827 = vshrl.u32 %v5787, 16
        %v5829 = vrot.slane %v5827, 4
        %v5830 = vshll.u32 %v5787, 16
        %v5832 = vrot.slane %v5830, 5
        %v5833 = vor.u32 %v5829, %v5832
        %v5834 = vsel %vm989, %v5825, %v5833
        %v5836 = vshrl.u32 %v5788, 16
        %v5838 = vrot.slane %v5836, 4
        %v5839 = vshll.u32 %v5788, 16
        %v5841 = vrot.slane %v5839, 5
        %v5842 = vor.u32 %v5838, %v5841
        %v5844 = vshrl.u32 %v5789, 16
        %v5846 = vrot.slane %v5844, 4
        %v5847 = vshll.u32 %v5789, 16
        %v5849 = vrot.slane %v5847, 5
        %v5850 = vor.u32 %v5846, %v5849
        %v5851 = vsel %vm989, %v5842, %v5850
        %v5853 = vshrl.u32 %v5790, 16
        %v5855 = vrot.slane %v5853, 4
        %v5856 = vshll.u32 %v5790, 16
        %v5858 = vrot.slane %v5856, 5
        %v5859 = vor.u32 %v5855, %v5858
        %v5861 = vshrl.u32 %v5791, 16
        %v5863 = vrot.slane %v5861, 4
        %v5864 = vshll.u32 %v5791, 16
        %v5866 = vrot.slane %v5864, 5
        %v5867 = vor.u32 %v5863, %v5866
        %v5868 = vsel %vm989, %v5859, %v5867
        %v5870 = vshrl.u32 %v5792, 16
        %v5872 = vrot.slane %v5870, 4
        %v5873 = vshll.u32 %v5792, 16
        %v5875 = vrot.slane %v5873, 5
        %v5876 = vor.u32 %v5872, %v5875
        %v5878 = vshrl.u32 %v5793, 16
        %v5880 = vrot.slane %v5878, 4
        %v5881 = vshll.u32 %v5793, 16
        %v5883 = vrot.slane %v5881, 5
        %v5884 = vor.u32 %v5880, %v5883
        %v5885 = vsel %vm989, %v5876, %v5884
        %v5887 = vshrl.u32 %v5794, 16
        %v5889 = vrot.slane %v5887, 4
        %v5890 = vshll.u32 %v5794, 16
        %v5892 = vrot.slane %v5890, 5
        %v5893 = vor.u32 %v5889, %v5892
        %v5895 = vshrl.u32 %v5795, 16
        %v5897 = vrot.slane %v5895, 4
        %v5898 = vshll.u32 %v5795, 16
        %v5900 = vrot.slane %v5898, 5
        %v5901 = vor.u32 %v5897, %v5900
        %v5902 = vsel %vm989, %v5893, %v5901
        %v5904 = vshrl.u32 %v5796, 16
        %v5906 = vrot.slane %v5904, 4
        %v5907 = vshll.u32 %v5796, 16
        %v5909 = vrot.slane %v5907, 5
        %v5910 = vor.u32 %v5906, %v5909
        %v5912 = vshrl.u32 %v5797, 16
        %v5914 = vrot.slane %v5912, 4
        %v5915 = vshll.u32 %v5797, 16
        %v5917 = vrot.slane %v5915, 5
        %v5918 = vor.u32 %v5914, %v5917
        %v5919 = vsel %vm989, %v5910, %v5918
        %v5921 = vshrl.u32 %v5798, 16
        %v5923 = vrot.slane %v5921, 4
        %v5924 = vshll.u32 %v5798, 16
        %v5926 = vrot.slane %v5924, 5
        %v5927 = vor.u32 %v5923, %v5926
        %v5929 = vshrl.u32 %v5799, 16
        %v5931 = vrot.slane %v5929, 4
        %v5932 = vshll.u32 %v5799, 16
        %v5934 = vrot.slane %v5932, 5
        %v5935 = vor.u32 %v5931, %v5934
        %v5936 = vsel %vm989, %v5927, %v5935
        %v5938 = vshrl.u32 %v5800, 16
        %v5940 = vrot.slane %v5938, 4
        %v5941 = vshll.u32 %v5800, 16
        %v5943 = vrot.slane %v5941, 5
        %v5944 = vor.u32 %v5940, %v5943
        %v5946 = vshrl.u32 %v5801, 16
        %v5948 = vrot.slane %v5946, 4
        %v5949 = vshll.u32 %v5801, 16
        %v5951 = vrot.slane %v5949, 5
        %v5952 = vor.u32 %v5948, %v5951
        %v5953 = vsel %vm989, %v5944, %v5952
        %v5955 = vshrl.u32 %v5802, 16
        %v5957 = vrot.slane %v5955, 4
        %v5958 = vshll.u32 %v5802, 16
        %v5960 = vrot.slane %v5958, 5
        %v5961 = vor.u32 %v5957, %v5960
        %v5963 = vshrl.u32 %v5803, 16
        %v5965 = vrot.slane %v5963, 4
        %v5966 = vshll.u32 %v5803, 16
        %v5968 = vrot.slane %v5966, 5
        %v5969 = vor.u32 %v5965, %v5968
        %v5970 = vsel %vm989, %v5961, %v5969
        %v5972 = vshrl.u32 %v5804, 16
        %v5974 = vrot.slane %v5972, 4
        %v5975 = vshll.u32 %v5804, 16
        %v5977 = vrot.slane %v5975, 5
        %v5978 = vor.u32 %v5974, %v5977
        %v5980 = vshrl.u32 %v5805, 16
        %v5982 = vrot.slane %v5980, 4
        %v5983 = vshll.u32 %v5805, 16
        %v5985 = vrot.slane %v5983, 5
        %v5986 = vor.u32 %v5982, %v5985
        %v5987 = vsel %vm989, %v5978, %v5986
        %v5989 = vshrl.u32 %v5806, 16
        %v5991 = vrot.slane %v5989, 4
        %v5992 = vshll.u32 %v5806, 16
        %v5994 = vrot.slane %v5992, 5
        %v5995 = vor.u32 %v5991, %v5994
        %v5997 = vshrl.u32 %v5807, 16
        %v5999 = vrot.slane %v5997, 4
        %v6000 = vshll.u32 %v5807, 16
        %v6002 = vrot.slane %v6000, 5
        %v6003 = vor.u32 %v5999, %v6002
        %v6004 = vsel %vm989, %v5995, %v6003
        %v6006 = vshrl.u32 %v5808, 16
        %v6008 = vrot.slane %v6006, 4
        %v6009 = vshll.u32 %v5808, 16
        %v6011 = vrot.slane %v6009, 5
        %v6012 = vor.u32 %v6008, %v6011
        %v6014 = vshrl.u32 %v5809, 16
        %v6016 = vrot.slane %v6014, 4
        %v6017 = vshll.u32 %v5809, 16
        %v6019 = vrot.slane %v6017, 5
        %v6020 = vor.u32 %v6016, %v6019
        %v6021 = vsel %vm989, %v6012, %v6020
        %v6023 = vshrl.u32 %v5810, 16
        %v6025 = vrot.slane %v6023, 4
        %v6026 = vshll.u32 %v5810, 16
        %v6028 = vrot.slane %v6026, 5
        %v6029 = vor.u32 %v6025, %v6028
        %v6031 = vshrl.u32 %v5811, 16
        %v6033 = vrot.slane %v6031, 4
        %v6034 = vshll.u32 %v5811, 16
        %v6036 = vrot.slane %v6034, 5
        %v6037 = vor.u32 %v6033, %v6036
        %v6038 = vsel %vm989, %v6029, %v6037
        %v6040 = vshrl.u32 %v5812, 16
        %v6042 = vrot.slane %v6040, 4
        %v6043 = vshll.u32 %v5812, 16
        %v6045 = vrot.slane %v6043, 5
        %v6046 = vor.u32 %v6042, %v6045
        %v6048 = vshrl.u32 %v5813, 16
        %v6050 = vrot.slane %v6048, 4
        %v6051 = vshll.u32 %v5813, 16
        %v6053 = vrot.slane %v6051, 5
        %v6054 = vor.u32 %v6050, %v6053
        %v6055 = vsel %vm989, %v6046, %v6054
        %v6057 = vshrl.u32 %v5814, 16
        %v6059 = vrot.slane %v6057, 4
        %v6060 = vshll.u32 %v5814, 16
        %v6062 = vrot.slane %v6060, 5
        %v6063 = vor.u32 %v6059, %v6062
        %v6065 = vshrl.u32 %v5815, 16
        %v6067 = vrot.slane %v6065, 4
        %v6068 = vshll.u32 %v5815, 16
        %v6070 = vrot.slane %v6068, 5
        %v6071 = vor.u32 %v6067, %v6070
        %v6072 = vsel %vm989, %v6063, %v6071
        %v6074 = vshrl.u32 %v5816, 16
        %v6076 = vrot.slane %v6074, 4
        %v6077 = vshll.u32 %v5816, 16
        %v6079 = vrot.slane %v6077, 5
        %v6080 = vor.u32 %v6076, %v6079
        %v6082 = vshrl.u32 %v5817, 16
        %v6084 = vrot.slane %v6082, 4
        %v6085 = vshll.u32 %v5817, 16
        %v6087 = vrot.slane %v6085, 5
        %v6088 = vor.u32 %v6084, %v6087
        %v6089 = vsel %vm989, %v6080, %v6088
        %6106 = vst.msk [vmem:[#allocation4 + $0x20] sm:$0xff] %vm3863, %v5834
        %6107 = vst.msk [vmem:[#allocation4 + $0x48] sm:$0xff] %vm3863, %v5851
        %6108 = vst.msk [vmem:[#allocation4 + $0x70] sm:$0xff] %vm3863, %v5868
        %6109 = vst.msk [vmem:[#allocation4 + $0x98] sm:$0xff] %vm3863, %v5885
        %6110 = vst.msk [vmem:[#allocation4 + $0xc0] sm:$0xff] %vm3863, %v5902
        %6111 = vst.msk [vmem:[#allocation4 + $0xe8] sm:$0xff] %vm3863, %v5919
        %6112 = vst.msk [vmem:[#allocation4 + $0x110] sm:$0xff] %vm3863, %v5936
        %6113 = vst.msk [vmem:[#allocation4 + $0x138] sm:$0xff] %vm3863, %v5953
        %6114 = vst.msk [vmem:[#allocation4 + $0x160] sm:$0xff] %vm3863, %v5970
        %6115 = vst.msk [vmem:[#allocation4 + $0x188] sm:$0xff] %vm3863, %v5987
        %6116 = vst.msk [vmem:[#allocation4 + $0x1b0] sm:$0xff] %vm3863, %v6004
        %6117 = vst.msk [vmem:[#allocation4 + $0x1d8] sm:$0xff] %vm3863, %v6021
        %6118 = vst.msk [vmem:[#allocation4 + $0x200] sm:$0xff] %vm3863, %v6038
        %6119 = vst.msk [vmem:[#allocation4 + $0x228] sm:$0xff] %vm3863, %v6055
        %6120 = vst.msk [vmem:[#allocation4 + $0x250] sm:$0xff] %vm3863, %v6072
        %6121 = vst.msk [vmem:[#allocation4 + $0x278] sm:$0xff] %vm3863, %v6089
        %v6122 = vld [vmem:[#allocation4] sm:$0xff]
        %v6123 = vld [vmem:[#allocation4 + $0x8] sm:$0xff]
        %v6124 = vld [vmem:[#allocation4 + $0x10] sm:$0xff]
        %v6125 = vld [vmem:[#allocation4 + $0x18] sm:$0xff]
        %v6126 = vld [vmem:[#allocation4 + $0x20] sm:$0xff]
        %v6127 = vld [vmem:[#allocation4 + $0x28] sm:$0xff]
        %v6128 = vld [vmem:[#allocation4 + $0x30] sm:$0xff]
        %v6129 = vld [vmem:[#allocation4 + $0x38] sm:$0xff]
        %v6130 = vld [vmem:[#allocation4 + $0x40] sm:$0xff]
        %v6131 = vld [vmem:[#allocation4 + $0x48] sm:$0xff]
        %v6132 = vld [vmem:[#allocation4 + $0x50] sm:$0xff]
        %v6133 = vld [vmem:[#allocation4 + $0x58] sm:$0xff]
        %v6134 = vld [vmem:[#allocation4 + $0x60] sm:$0xff]
        %v6135 = vld [vmem:[#allocation4 + $0x68] sm:$0xff]
        %v6136 = vld [vmem:[#allocation4 + $0x70] sm:$0xff]
        %v6137 = vld [vmem:[#allocation4 + $0x78] sm:$0xff]
        %v6138 = vld [vmem:[#allocation4 + $0x80] sm:$0xff]
        %v6139 = vld [vmem:[#allocation4 + $0x88] sm:$0xff]
        %v6140 = vld [vmem:[#allocation4 + $0x90] sm:$0xff]
        %v6141 = vld [vmem:[#allocation4 + $0x98] sm:$0xff]
        %v6142 = vld [vmem:[#allocation4 + $0xa0] sm:$0xff]
        %v6143 = vld [vmem:[#allocation4 + $0xa8] sm:$0xff]
        %v6144 = vld [vmem:[#allocation4 + $0xb0] sm:$0xff]
        %v6145 = vld [vmem:[#allocation4 + $0xb8] sm:$0xff]
        %v6146 = vld [vmem:[#allocation4 + $0xc0] sm:$0xff]
        %v6147 = vld [vmem:[#allocation4 + $0xc8] sm:$0xff]
        %v6148 = vld [vmem:[#allocation4 + $0xd0] sm:$0xff]
        %v6149 = vld [vmem:[#allocation4 + $0xd8] sm:$0xff]
        %v6150 = vld [vmem:[#allocation4 + $0xe0] sm:$0xff]
        %v6151 = vld [vmem:[#allocation4 + $0xe8] sm:$0xff]
        %v6152 = vld [vmem:[#allocation4 + $0xf0] sm:$0xff]
        %v6153 = vld [vmem:[#allocation4 + $0xf8] sm:$0xff]
        %v6154 = vld [vmem:[#allocation4 + $0x100] sm:$0xff]
        %v6155 = vld [vmem:[#allocation4 + $0x108] sm:$0xff]
        %v6156 = vld [vmem:[#allocation4 + $0x110] sm:$0xff]
        %v6157 = vld [vmem:[#allocation4 + $0x118] sm:$0xff]
        %v6158 = vld [vmem:[#allocation4 + $0x120] sm:$0xff]
        %v6159 = vld [vmem:[#allocation4 + $0x128] sm:$0xff]
        %v6160 = vld [vmem:[#allocation4 + $0x130] sm:$0xff]
        %v6161 = vld [vmem:[#allocation4 + $0x138] sm:$0xff]
        %v6162 = vld [vmem:[#allocation4 + $0x140] sm:$0xff]
        %v6163 = vld [vmem:[#allocation4 + $0x148] sm:$0xff]
        %v6164 = vld [vmem:[#allocation4 + $0x150] sm:$0xff]
        %v6165 = vld [vmem:[#allocation4 + $0x158] sm:$0xff]
        %v6166 = vld [vmem:[#allocation4 + $0x160] sm:$0xff]
        %v6167 = vld [vmem:[#allocation4 + $0x168] sm:$0xff]
        %v6168 = vld [vmem:[#allocation4 + $0x170] sm:$0xff]
        %v6169 = vld [vmem:[#allocation4 + $0x178] sm:$0xff]
        %v6170 = vld [vmem:[#allocation4 + $0x180] sm:$0xff]
        %v6171 = vld [vmem:[#allocation4 + $0x188] sm:$0xff]
        %v6172 = vld [vmem:[#allocation4 + $0x190] sm:$0xff]
        %v6173 = vld [vmem:[#allocation4 + $0x198] sm:$0xff]
        %v6174 = vld [vmem:[#allocation4 + $0x1a0] sm:$0xff]
        %v6175 = vld [vmem:[#allocation4 + $0x1a8] sm:$0xff]
        %v6176 = vld [vmem:[#allocation4 + $0x1b0] sm:$0xff]
        %v6177 = vld [vmem:[#allocation4 + $0x1b8] sm:$0xff]
        %v6178 = vld [vmem:[#allocation4 + $0x1c0] sm:$0xff]
        %v6179 = vld [vmem:[#allocation4 + $0x1c8] sm:$0xff]
        %v6180 = vld [vmem:[#allocation4 + $0x1d0] sm:$0xff]
        %v6181 = vld [vmem:[#allocation4 + $0x1d8] sm:$0xff]
        %v6182 = vld [vmem:[#allocation4 + $0x1e0] sm:$0xff]
        %v6183 = vld [vmem:[#allocation4 + $0x1e8] sm:$0xff]
        %v6184 = vld [vmem:[#allocation4 + $0x1f0] sm:$0xff]
        %v6185 = vld [vmem:[#allocation4 + $0x1f8] sm:$0xff]
        %v6186 = vld [vmem:[#allocation4 + $0x200] sm:$0xff]
        %v6187 = vld [vmem:[#allocation4 + $0x208] sm:$0xff]
        %v6188 = vld [vmem:[#allocation4 + $0x210] sm:$0xff]
        %v6189 = vld [vmem:[#allocation4 + $0x218] sm:$0xff]
        %v6190 = vld [vmem:[#allocation4 + $0x220] sm:$0xff]
        %v6191 = vld [vmem:[#allocation4 + $0x228] sm:$0xff]
        %v6192 = vld [vmem:[#allocation4 + $0x230] sm:$0xff]
        %v6193 = vld [vmem:[#allocation4 + $0x238] sm:$0xff]
        %v6194 = vld [vmem:[#allocation4 + $0x240] sm:$0xff]
        %v6195 = vld [vmem:[#allocation4 + $0x248] sm:$0xff]
        %v6196 = vld [vmem:[#allocation4 + $0x250] sm:$0xff]
        %v6197 = vld [vmem:[#allocation4 + $0x258] sm:$0xff]
        %v6198 = vld [vmem:[#allocation4 + $0x260] sm:$0xff]
        %v6199 = vld [vmem:[#allocation4 + $0x268] sm:$0xff]
        %v6200 = vld [vmem:[#allocation4 + $0x270] sm:$0xff]
        %v6201 = vld [vmem:[#allocation4 + $0x278] sm:$0xff]
        %s6202 = smul.u32 %s3538, 72
        %s6203 = smul.addr %s6202, 4
        %s6204 = scalar_lea.vmem %s2, %s6203
        %v6205 = vld [vmem:[%s6204] sm:$0xf]
        %v6206 = vld [vmem:[%s6204 + $0x4] sm:$0xf]
        %v6207 = vld [vmem:[%s6204 + $0x8] sm:$0xf]
        %v6208 = vld [vmem:[%s6204 + $0xc] sm:$0xf]
        %v6209 = vld [vmem:[%s6204 + $0x10] sm:$0xf]
        %v6210 = vld [vmem:[%s6204 + $0x14] sm:$0xf]
        %v6211 = vld [vmem:[%s6204 + $0x18] sm:$0xf]
        %v6212 = vld [vmem:[%s6204 + $0x1c] sm:$0xf]
        %v6213 = vld [vmem:[%s6204 + $0x20] sm:$0xf]
        %v6214 = vld [vmem:[%s6204 + $0x24] sm:$0xf]
        %v6215 = vld [vmem:[%s6204 + $0x28] sm:$0xf]
        %v6216 = vld [vmem:[%s6204 + $0x2c] sm:$0xf]
        %v6217 = vld [vmem:[%s6204 + $0x30] sm:$0xf]
        %v6218 = vld [vmem:[%s6204 + $0x34] sm:$0xf]
        %v6219 = vld [vmem:[%s6204 + $0x38] sm:$0xf]
        %v6220 = vld [vmem:[%s6204 + $0x3c] sm:$0xf]
        %v6221 = vld [vmem:[%s6204 + $0x40] sm:$0xf]
        %v6222 = vld [vmem:[%s6204 + $0x44] sm:$0xf]
        %v6223 = vld [vmem:[%s6204 + $0x48] sm:$0xf]
        %v6224 = vld [vmem:[%s6204 + $0x4c] sm:$0xf]
        %v6225 = vld [vmem:[%s6204 + $0x50] sm:$0xf]
        %v6226 = vld [vmem:[%s6204 + $0x54] sm:$0xf]
        %v6227 = vld [vmem:[%s6204 + $0x58] sm:$0xf]
        %v6228 = vld [vmem:[%s6204 + $0x5c] sm:$0xf]
        %v6229 = vld [vmem:[%s6204 + $0x60] sm:$0xf]
        %v6230 = vld [vmem:[%s6204 + $0x64] sm:$0xf]
        %v6231 = vld [vmem:[%s6204 + $0x68] sm:$0xf]
        %v6232 = vld [vmem:[%s6204 + $0x6c] sm:$0xf]
        %v6233 = vld [vmem:[%s6204 + $0x70] sm:$0xf]
        %v6234 = vld [vmem:[%s6204 + $0x74] sm:$0xf]
        %v6235 = vld [vmem:[%s6204 + $0x78] sm:$0xf]
        %v6236 = vld [vmem:[%s6204 + $0x7c] sm:$0xf]
        %v6237 = vld [vmem:[%s6204 + $0x80] sm:$0xf]
        %v6238 = vld [vmem:[%s6204 + $0x84] sm:$0xf]
        %v6239 = vld [vmem:[%s6204 + $0x88] sm:$0xf]
        %v6240 = vld [vmem:[%s6204 + $0x8c] sm:$0xf]
        %v6241 = vld [vmem:[%s6204 + $0x90] sm:$0xf]
        %v6242 = vld [vmem:[%s6204 + $0x94] sm:$0xf]
        %v6243 = vld [vmem:[%s6204 + $0x98] sm:$0xf]
        %v6244 = vld [vmem:[%s6204 + $0x9c] sm:$0xf]
        %v6245 = vld [vmem:[%s6204 + $0xa0] sm:$0xf]
        %v6246 = vld [vmem:[%s6204 + $0xa4] sm:$0xf]
        %v6247 = vld [vmem:[%s6204 + $0xa8] sm:$0xf]
        %v6248 = vld [vmem:[%s6204 + $0xac] sm:$0xf]
        %v6249 = vld [vmem:[%s6204 + $0xb0] sm:$0xf]
        %v6250 = vld [vmem:[%s6204 + $0xb4] sm:$0xf]
        %v6251 = vld [vmem:[%s6204 + $0xb8] sm:$0xf]
        %v6252 = vld [vmem:[%s6204 + $0xbc] sm:$0xf]
        %v6253 = vld [vmem:[%s6204 + $0xc0] sm:$0xf]
        %v6254 = vld [vmem:[%s6204 + $0xc4] sm:$0xf]
        %v6255 = vld [vmem:[%s6204 + $0xc8] sm:$0xf]
        %v6256 = vld [vmem:[%s6204 + $0xcc] sm:$0xf]
        %v6257 = vld [vmem:[%s6204 + $0xd0] sm:$0xf]
        %v6258 = vld [vmem:[%s6204 + $0xd4] sm:$0xf]
        %v6259 = vld [vmem:[%s6204 + $0xd8] sm:$0xf]
        %v6260 = vld [vmem:[%s6204 + $0xdc] sm:$0xf]
        %v6261 = vld [vmem:[%s6204 + $0xe0] sm:$0xf]
        %v6262 = vld [vmem:[%s6204 + $0xe4] sm:$0xf]
        %v6263 = vld [vmem:[%s6204 + $0xe8] sm:$0xf]
        %v6264 = vld [vmem:[%s6204 + $0xec] sm:$0xf]
        %v6265 = vld [vmem:[%s6204 + $0xf0] sm:$0xf]
        %v6266 = vld [vmem:[%s6204 + $0xf4] sm:$0xf]
        %v6267 = vld [vmem:[%s6204 + $0xf8] sm:$0xf]
        %v6268 = vld [vmem:[%s6204 + $0xfc] sm:$0xf]
        %v6269 = vld [vmem:[%s6204 + $0x100] sm:$0xf]
        %v6270 = vld [vmem:[%s6204 + $0x104] sm:$0xf]
        %v6271 = vld [vmem:[%s6204 + $0x108] sm:$0xf]
        %v6272 = vld [vmem:[%s6204 + $0x10c] sm:$0xf]
        %v6273 = vld [vmem:[%s6204 + $0x110] sm:$0xf]
        %v6274 = vld [vmem:[%s6204 + $0x114] sm:$0xf]
        %v6275 = vld [vmem:[%s6204 + $0x118] sm:$0xf]
        %v6276 = vld [vmem:[%s6204 + $0x11c] sm:$0xf]
        %s6277 = scalar_lea.vmem %s3, %s3538
        %v6278 = vld [vmem:[%s6277] sm:$0x1]
        %v6280 = vlaneseq
        %v6281 = vshrl.u32 %v6280, 7
        %v6282 = vsub.s32 0, %v6281
        %v6283 = vrot.slane %v6278, %v6282
        %v6357 = vunpack.c.l.b16 %v6205
        %v6358 = vunpack.c.l.b16 %v6206
        %v6359 = vunpack.c.l.b16 %v6207
        %v6360 = vunpack.c.l.b16 %v6208
        %v6361 = vunpack.c.l.b16 %v6209
        %v6362 = vunpack.c.l.b16 %v6210
        %v6363 = vunpack.c.l.b16 %v6211
        %v6364 = vunpack.c.l.b16 %v6212
        %v6365 = vunpack.c.l.b16 %v6213
        %v6366 = vunpack.c.l.b16 %v6214
        %v6367 = vunpack.c.l.b16 %v6215
        %v6368 = vunpack.c.l.b16 %v6216
        %v6369 = vunpack.c.l.b16 %v6217
        %v6370 = vunpack.c.l.b16 %v6218
        %v6371 = vunpack.c.l.b16 %v6219
        %v6372 = vunpack.c.l.b16 %v6220
        %v6373 = vunpack.c.l.b16 %v6221
        %v6374 = vunpack.c.l.b16 %v6222
        %v6375 = vunpack.c.l.b16 %v6223
        %v6376 = vunpack.c.l.b16 %v6224
        %v6377 = vunpack.c.l.b16 %v6225
        %v6378 = vunpack.c.l.b16 %v6226
        %v6379 = vunpack.c.l.b16 %v6227
        %v6380 = vunpack.c.l.b16 %v6228
        %v6381 = vunpack.c.l.b16 %v6229
        %v6382 = vunpack.c.l.b16 %v6230
        %v6383 = vunpack.c.l.b16 %v6231
        %v6384 = vunpack.c.l.b16 %v6232
        %v6385 = vunpack.c.l.b16 %v6233
        %v6386 = vunpack.c.l.b16 %v6234
        %v6387 = vunpack.c.l.b16 %v6235
        %v6388 = vunpack.c.l.b16 %v6236
        %v6389 = vunpack.c.l.b16 %v6237
        %v6390 = vunpack.c.l.b16 %v6238
        %v6391 = vunpack.c.l.b16 %v6239
        %v6392 = vunpack.c.l.b16 %v6240
        %v6393 = vunpack.c.l.b16 %v6241
        %v6394 = vunpack.c.l.b16 %v6242
        %v6395 = vunpack.c.l.b16 %v6243
        %v6396 = vunpack.c.l.b16 %v6244
        %v6397 = vunpack.c.l.b16 %v6245
        %v6398 = vunpack.c.l.b16 %v6246
        %v6399 = vunpack.c.l.b16 %v6247
        %v6400 = vunpack.c.l.b16 %v6248
        %v6401 = vunpack.c.l.b16 %v6249
        %v6402 = vunpack.c.l.b16 %v6250
        %v6403 = vunpack.c.l.b16 %v6251
        %v6404 = vunpack.c.l.b16 %v6252
        %v6405 = vunpack.c.l.b16 %v6253
        %v6406 = vunpack.c.l.b16 %v6254
        %v6407 = vunpack.c.l.b16 %v6255
        %v6408 = vunpack.c.l.b16 %v6256
        %v6409 = vunpack.c.l.b16 %v6257
        %v6410 = vunpack.c.l.b16 %v6258
        %v6411 = vunpack.c.l.b16 %v6259
        %v6412 = vunpack.c.l.b16 %v6260
        %v6413 = vunpack.c.l.b16 %v6261
        %v6414 = vunpack.c.l.b16 %v6262
        %v6415 = vunpack.c.l.b16 %v6263
        %v6416 = vunpack.c.l.b16 %v6264
        %v6417 = vunpack.c.l.b16 %v6265
        %v6418 = vunpack.c.l.b16 %v6266
        %v6419 = vunpack.c.l.b16 %v6267
        %v6420 = vunpack.c.l.b16 %v6268
        %v6421 = vunpack.c.l.b16 %v6269
        %v6422 = vunpack.c.l.b16 %v6270
        %v6423 = vunpack.c.l.b16 %v6271
        %v6424 = vunpack.c.l.b16 %v6272
        %v6425 = vunpack.c.l.b16 %v6273
        %v6426 = vunpack.c.l.b16 %v6274
        %v6427 = vunpack.c.l.b16 %v6275
        %v6428 = vunpack.c.l.b16 %v6276
        %v6429 = vpack.c.b16 %v6358, %v6357
        %v6430 = vpack.c.b16 %v6360, %v6359
        %v6431 = vpack.c.b16 %v6362, %v6361
        %v6432 = vpack.c.b16 %v6364, %v6363
        %v6433 = vpack.c.b16 %v6366, %v6365
        %v6434 = vpack.c.b16 %v6368, %v6367
        %v6435 = vpack.c.b16 %v6370, %v6369
        %v6436 = vpack.c.b16 %v6372, %v6371
        %v6437 = vpack.c.b16 %v6374, %v6373
        %v6438 = vpack.c.b16 %v6376, %v6375
        %v6439 = vpack.c.b16 %v6378, %v6377
        %v6440 = vpack.c.b16 %v6380, %v6379
        %v6441 = vpack.c.b16 %v6382, %v6381
        %v6442 = vpack.c.b16 %v6384, %v6383
        %v6443 = vpack.c.b16 %v6386, %v6385
        %v6444 = vpack.c.b16 %v6388, %v6387
        %v6445 = vpack.c.b16 %v6390, %v6389
        %v6446 = vpack.c.b16 %v6392, %v6391
        %v6447 = vpack.c.b16 %v6394, %v6393
        %v6448 = vpack.c.b16 %v6396, %v6395
        %v6449 = vpack.c.b16 %v6398, %v6397
        %v6450 = vpack.c.b16 %v6400, %v6399
        %v6451 = vpack.c.b16 %v6402, %v6401
        %v6452 = vpack.c.b16 %v6404, %v6403
        %v6453 = vpack.c.b16 %v6406, %v6405
        %v6454 = vpack.c.b16 %v6408, %v6407
        %v6455 = vpack.c.b16 %v6410, %v6409
        %v6456 = vpack.c.b16 %v6412, %v6411
        %v6457 = vpack.c.b16 %v6414, %v6413
        %v6458 = vpack.c.b16 %v6416, %v6415
        %v6459 = vpack.c.b16 %v6418, %v6417
        %v6460 = vpack.c.b16 %v6420, %v6419
        %v6461 = vpack.c.b16 %v6422, %v6421
        %v6462 = vpack.c.b16 %v6424, %v6423
        %v6463 = vpack.c.b16 %v6426, %v6425
        %v6464 = vpack.c.b16 %v6428, %v6427
        %v6502 = vsel %vm3863, %v6126, 0
        %v6505 = vsel %vm3863, %v6131, 0
        %v6508 = vsel %vm3863, %v6136, 0
        %v6511 = vsel %vm3863, %v6141, 0
        %v6514 = vsel %vm3863, %v6146, 0
        %v6517 = vsel %vm3863, %v6151, 0
        %v6520 = vsel %vm3863, %v6156, 0
        %v6523 = vsel %vm3863, %v6161, 0
        %v6526 = vsel %vm3863, %v6166, 0
        %v6529 = vsel %vm3863, %v6171, 0
        %v6532 = vsel %vm3863, %v6176, 0
        %v6535 = vsel %vm3863, %v6181, 0
        %v6538 = vsel %vm3863, %v6186, 0
        %v6541 = vsel %vm3863, %v6191, 0
        %v6544 = vsel %vm3863, %v6196, 0
        %v6547 = vsel %vm3863, %v6201, 0
        %6549 = vmatprep.subr.bf16.mxu0 0
        %6550 = vmatpush1.bf16.msra.mxu0 %v6429
        %6551 = vmatprep.subr.bf16.mxu0 0
        %6552 = vmatpush1.bf16.msra.mxu0 %v6430
        %6553 = vmatprep.subr.bf16.mxu0 0
        %6554 = vmatpush1.bf16.msra.mxu0 %v6431
        %6555 = vmatprep.subr.bf16.mxu0 0
        %6556 = vmatpush1.bf16.msra.mxu0 %v6432
        %6557 = vmatprep.subr.bf16.mxu0 0
        %6558 = vmatpush1.bf16.msra.mxu0 %v6433
        %6559 = vmatprep.subr.bf16.mxu0 0
        %6560 = vmatpush1.bf16.msra.mxu0 %v6434
        %6561 = vmatprep.subr.bf16.mxu0 0
        %6562 = vmatpush1.bf16.msra.mxu0 %v6435
        %6563 = vmatprep.subr.bf16.mxu0 0
        %6564 = vmatpush1.bf16.msra.mxu0 %v6436
        %6565 = vmatprep.subr.bf16.mxu0 0
        %6566 = vmatpush1.bf16.msra.mxu0 %v6437
        %6567 = vmatprep.subr.bf16.mxu0 0
        %6568 = vmatpush1.bf16.msra.mxu0 %v6438
        %6569 = vmatprep.subr.bf16.mxu0 0
        %6570 = vmatpush1.bf16.msra.mxu0 %v6439
        %6571 = vmatprep.subr.bf16.mxu0 0
        %6572 = vmatpush1.bf16.msra.mxu0 %v6440
        %6573 = vmatprep.subr.bf16.mxu0 0
        %6574 = vmatpush1.bf16.msra.mxu0 %v6441
        %6575 = vmatprep.subr.bf16.mxu0 0
        %6576 = vmatpush1.bf16.msra.mxu0 %v6442
        %6577 = vmatprep.subr.bf16.mxu0 0
        %6578 = vmatpush1.bf16.msra.mxu0 %v6443
        %6579 = vmatprep.subr.bf16.mxu0 0
        %6580 = vmatpush1.bf16.msra.mxu0 %v6444
        %6581 = vmatprep.mubr.bf16.mxu0 %v6123
        %6582 = vmatmul.mubr.bf16.gmra.mrb[0].mxu0 %v6122
        %v6583 = vpop.f32.mrb[0].mxu0
        %v6584 = vadd.f32 %v6283, %v6583
        %v6585 = vpop.f32.mrb[0].mxu0
        %v6586 = vpop.f32.mrb[0].mxu0
        %v6587 = vadd.f32 %v6283, %v6586
        %v6588 = vpop.f32.mrb[0].mxu0
        %6589 = vmatprep.mubr.bf16.mxu0 %v6128
        %6590 = vmatmul.mubr.bf16.gmra.mrb[0].mxu0 %v6127
        %v6591 = vpop.f32.mrb[0].mxu0
        %v6592 = vadd.f32 %v6283, %v6591
        %v6593 = vpop.f32.mrb[0].mxu0
        %v6594 = vpop.f32.mrb[0].mxu0
        %v6595 = vadd.f32 %v6283, %v6594
        %v6596 = vpop.f32.mrb[0].mxu0
        %6597 = vmatprep.mubr.bf16.mxu0 %v6133
        %6598 = vmatmul.mubr.bf16.gmra.mrb[0].mxu0 %v6132
        %v6599 = vpop.f32.mrb[0].mxu0
        %v6600 = vadd.f32 %v6283, %v6599
        %v6601 = vpop.f32.mrb[0].mxu0
        %v6602 = vpop.f32.mrb[0].mxu0
        %v6603 = vadd.f32 %v6283, %v6602
        %v6604 = vpop.f32.mrb[0].mxu0
        %6605 = vmatprep.mubr.bf16.mxu0 %v6138
        %6606 = vmatmul.mubr.bf16.gmra.mrb[0].mxu0 %v6137
        %v6607 = vpop.f32.mrb[0].mxu0
        %v6608 = vadd.f32 %v6283, %v6607
        %v6609 = vpop.f32.mrb[0].mxu0
        %v6610 = vpop.f32.mrb[0].mxu0
        %v6611 = vadd.f32 %v6283, %v6610
        %v6612 = vpop.f32.mrb[0].mxu0
        %6613 = vmatprep.mubr.bf16.mxu0 %v6143
        %6614 = vmatmul.mubr.bf16.gmra.mrb[0].mxu0 %v6142
        %v6615 = vpop.f32.mrb[0].mxu0
        %v6616 = vadd.f32 %v6283, %v6615
        %v6617 = vpop.f32.mrb[0].mxu0
        %v6618 = vpop.f32.mrb[0].mxu0
        %v6619 = vadd.f32 %v6283, %v6618
        %v6620 = vpop.f32.mrb[0].mxu0
        %6621 = vmatprep.mubr.bf16.mxu0 %v6148
        %6622 = vmatmul.mubr.bf16.gmra.mrb[0].mxu0 %v6147
        %v6623 = vpop.f32.mrb[0].mxu0
        %v6624 = vadd.f32 %v6283, %v6623
        %v6625 = vpop.f32.mrb[0].mxu0
        %v6626 = vpop.f32.mrb[0].mxu0
        %v6627 = vadd.f32 %v6283, %v6626
        %v6628 = vpop.f32.mrb[0].mxu0
        %6629 = vmatprep.mubr.bf16.mxu0 %v6153
        %6630 = vmatmul.mubr.bf16.gmra.mrb[0].mxu0 %v6152
        %v6631 = vpop.f32.mrb[0].mxu0
        %v6632 = vadd.f32 %v6283, %v6631
        %v6633 = vpop.f32.mrb[0].mxu0
        %v6634 = vpop.f32.mrb[0].mxu0
        %v6635 = vadd.f32 %v6283, %v6634
        %v6636 = vpop.f32.mrb[0].mxu0
        %6637 = vmatprep.mubr.bf16.mxu0 %v6158
        %6638 = vmatmul.mubr.bf16.gmra.mrb[0].mxu0 %v6157
        %v6639 = vpop.f32.mrb[0].mxu0
        %v6640 = vadd.f32 %v6283, %v6639
        %v6641 = vpop.f32.mrb[0].mxu0
        %v6642 = vpop.f32.mrb[0].mxu0
        %v6643 = vadd.f32 %v6283, %v6642
        %v6644 = vpop.f32.mrb[0].mxu0
        %6645 = vmatprep.mubr.bf16.mxu0 %v6163
        %6646 = vmatmul.mubr.bf16.gmra.mrb[0].mxu0 %v6162
        %v6647 = vpop.f32.mrb[0].mxu0
        %v6648 = vadd.f32 %v6283, %v6647
        %v6649 = vpop.f32.mrb[0].mxu0
        %v6650 = vpop.f32.mrb[0].mxu0
        %v6651 = vadd.f32 %v6283, %v6650
        %v6652 = vpop.f32.mrb[0].mxu0
        %6653 = vmatprep.mubr.bf16.mxu0 %v6168
        %6654 = vmatmul.mubr.bf16.gmra.mrb[0].mxu0 %v6167
        %v6655 = vpop.f32.mrb[0].mxu0
        %v6656 = vadd.f32 %v6283, %v6655
        %v6657 = vpop.f32.mrb[0].mxu0
        %v6658 = vpop.f32.mrb[0].mxu0
        %v6659 = vadd.f32 %v6283, %v6658
        %v6660 = vpop.f32.mrb[0].mxu0
        %6661 = vmatprep.mubr.bf16.mxu0 %v6173
        %6662 = vmatmul.mubr.bf16.gmra.mrb[0].mxu0 %v6172
        %v6663 = vpop.f32.mrb[0].mxu0
        %v6664 = vadd.f32 %v6283, %v6663
        %v6665 = vpop.f32.mrb[0].mxu0
        %v6666 = vpop.f32.mrb[0].mxu0
        %v6667 = vadd.f32 %v6283, %v6666
        %v6668 = vpop.f32.mrb[0].mxu0
        %6669 = vmatprep.mubr.bf16.mxu0 %v6178
        %6670 = vmatmul.mubr.bf16.gmra.mrb[0].mxu0 %v6177
        %v6671 = vpop.f32.mrb[0].mxu0
        %v6672 = vadd.f32 %v6283, %v6671
        %v6673 = vpop.f32.mrb[0].mxu0
        %v6674 = vpop.f32.mrb[0].mxu0
        %v6675 = vadd.f32 %v6283, %v6674
        %v6676 = vpop.f32.mrb[0].mxu0
        %6677 = vmatprep.mubr.bf16.mxu0 %v6183
        %6678 = vmatmul.mubr.bf16.gmra.mrb[0].mxu0 %v6182
        %v6679 = vpop.f32.mrb[0].mxu0
        %v6680 = vadd.f32 %v6283, %v6679
        %v6681 = vpop.f32.mrb[0].mxu0
        %v6682 = vpop.f32.mrb[0].mxu0
        %v6683 = vadd.f32 %v6283, %v6682
        %v6684 = vpop.f32.mrb[0].mxu0
        %6685 = vmatprep.mubr.bf16.mxu0 %v6188
        %6686 = vmatmul.mubr.bf16.gmra.mrb[0].mxu0 %v6187
        %v6687 = vpop.f32.mrb[0].mxu0
        %v6688 = vadd.f32 %v6283, %v6687
        %v6689 = vpop.f32.mrb[0].mxu0
        %v6690 = vpop.f32.mrb[0].mxu0
        %v6691 = vadd.f32 %v6283, %v6690
        %v6692 = vpop.f32.mrb[0].mxu0
        %6693 = vmatprep.mubr.bf16.mxu0 %v6193
        %6694 = vmatmul.mubr.bf16.gmra.mrb[0].mxu0 %v6192
        %v6695 = vpop.f32.mrb[0].mxu0
        %v6696 = vadd.f32 %v6283, %v6695
        %v6697 = vpop.f32.mrb[0].mxu0
        %v6698 = vpop.f32.mrb[0].mxu0
        %v6699 = vadd.f32 %v6283, %v6698
        %v6700 = vpop.f32.mrb[0].mxu0
        %6701 = vmatprep.mubr.bf16.mxu0 %v6198
        %6702 = vmatmul.mubr.bf16.gmra.mrb[0].mxu0 %v6197
        %v6703 = vpop.f32.mrb[0].mxu0
        %v6704 = vadd.f32 %v6283, %v6703
        %v6705 = vpop.f32.mrb[0].mxu0
        %v6706 = vpop.f32.mrb[0].mxu0
        %v6707 = vadd.f32 %v6283, %v6706
        %v6708 = vpop.f32.mrb[0].mxu0
        %6709 = vdwg.mxu0
        %6710 = vmatprep.subr.bf16.mxu0 0
        %6711 = vmatpush1.bf16.msra.mxu0 %v6445
        %6712 = vmatprep.subr.bf16.mxu0 0
        %6713 = vmatpush1.bf16.msra.mxu0 %v6446
        %6714 = vmatprep.subr.bf16.mxu0 0
        %6715 = vmatpush1.bf16.msra.mxu0 %v6447
        %6716 = vmatprep.subr.bf16.mxu0 0
        %6717 = vmatpush1.bf16.msra.mxu0 %v6448
        %6718 = vmatprep.subr.bf16.mxu0 0
        %6719 = vmatpush1.bf16.msra.mxu0 %v6449
        %6720 = vmatprep.subr.bf16.mxu0 0
        %6721 = vmatpush1.bf16.msra.mxu0 %v6450
        %6722 = vmatprep.subr.bf16.mxu0 0
        %6723 = vmatpush1.bf16.msra.mxu0 %v6451
        %6724 = vmatprep.subr.bf16.mxu0 0
        %6725 = vmatpush1.bf16.msra.mxu0 %v6452
        %6726 = vmatprep.subr.bf16.mxu0 0
        %6727 = vmatpush1.bf16.msra.mxu0 %v6453
        %6728 = vmatprep.subr.bf16.mxu0 0
        %6729 = vmatpush1.bf16.msra.mxu0 %v6454
        %6730 = vmatprep.subr.bf16.mxu0 0
        %6731 = vmatpush1.bf16.msra.mxu0 %v6455
        %6732 = vmatprep.subr.bf16.mxu0 0
        %6733 = vmatpush1.bf16.msra.mxu0 %v6456
        %6734 = vmatprep.subr.bf16.mxu0 0
        %6735 = vmatpush1.bf16.msra.mxu0 %v6457
        %6736 = vmatprep.subr.bf16.mxu0 0
        %6737 = vmatpush1.bf16.msra.mxu0 %v6458
        %6738 = vmatprep.subr.bf16.mxu0 0
        %6739 = vmatpush1.bf16.msra.mxu0 %v6459
        %6740 = vmatprep.subr.bf16.mxu0 0
        %6741 = vmatpush1.bf16.msra.mxu0 %v6460
        %6742 = vmatprep.mubr.bf16.mxu0 %v6125
        %6743 = vmatmul.mubr.bf16.gmra.mrb[0].mxu0 %v6124
        %v6744 = vpop.f32.mrb[0].mxu0
        %v6745 = vadd.f32 %v6584, %v6744
        %v6746 = vpop.f32.mrb[0].mxu0
        %v6747 = vpop.f32.mrb[0].mxu0
        %v6748 = vadd.f32 %v6587, %v6747
        %v6749 = vpop.f32.mrb[0].mxu0
        %6750 = vmatprep.mubr.bf16.mxu0 %v6130
        %6751 = vmatmul.mubr.bf16.gmra.mrb[0].mxu0 %v6129
        %v6752 = vpop.f32.mrb[0].mxu0
        %v6753 = vadd.f32 %v6592, %v6752
        %v6754 = vpop.f32.mrb[0].mxu0
        %v6755 = vpop.f32.mrb[0].mxu0
        %v6756 = vadd.f32 %v6595, %v6755
        %v6757 = vpop.f32.mrb[0].mxu0
        %6758 = vmatprep.mubr.bf16.mxu0 %v6135
        %6759 = vmatmul.mubr.bf16.gmra.mrb[0].mxu0 %v6134
        %v6760 = vpop.f32.mrb[0].mxu0
        %v6761 = vadd.f32 %v6600, %v6760
        %v6762 = vpop.f32.mrb[0].mxu0
        %v6763 = vpop.f32.mrb[0].mxu0
        %v6764 = vadd.f32 %v6603, %v6763
        %v6765 = vpop.f32.mrb[0].mxu0
        %6766 = vmatprep.mubr.bf16.mxu0 %v6140
        %6767 = vmatmul.mubr.bf16.gmra.mrb[0].mxu0 %v6139
        %v6768 = vpop.f32.mrb[0].mxu0
        %v6769 = vadd.f32 %v6608, %v6768
        %v6770 = vpop.f32.mrb[0].mxu0
        %v6771 = vpop.f32.mrb[0].mxu0
        %v6772 = vadd.f32 %v6611, %v6771
        %v6773 = vpop.f32.mrb[0].mxu0
        %6774 = vmatprep.mubr.bf16.mxu0 %v6145
        %6775 = vmatmul.mubr.bf16.gmra.mrb[0].mxu0 %v6144
        %v6776 = vpop.f32.mrb[0].mxu0
        %v6777 = vadd.f32 %v6616, %v6776
        %v6778 = vpop.f32.mrb[0].mxu0
        %v6779 = vpop.f32.mrb[0].mxu0
        %v6780 = vadd.f32 %v6619, %v6779
        %v6781 = vpop.f32.mrb[0].mxu0
        %6782 = vmatprep.mubr.bf16.mxu0 %v6150
        %6783 = vmatmul.mubr.bf16.gmra.mrb[0].mxu0 %v6149
        %v6784 = vpop.f32.mrb[0].mxu0
        %v6785 = vadd.f32 %v6624, %v6784
        %v6786 = vpop.f32.mrb[0].mxu0
        %v6787 = vpop.f32.mrb[0].mxu0
        %v6788 = vadd.f32 %v6627, %v6787
        %v6789 = vpop.f32.mrb[0].mxu0
        %6790 = vmatprep.mubr.bf16.mxu0 %v6155
        %6791 = vmatmul.mubr.bf16.gmra.mrb[0].mxu0 %v6154
        %v6792 = vpop.f32.mrb[0].mxu0
        %v6793 = vadd.f32 %v6632, %v6792
        %v6794 = vpop.f32.mrb[0].mxu0
        %v6795 = vpop.f32.mrb[0].mxu0
        %v6796 = vadd.f32 %v6635, %v6795
        %v6797 = vpop.f32.mrb[0].mxu0
        %6798 = vmatprep.mubr.bf16.mxu0 %v6160
        %6799 = vmatmul.mubr.bf16.gmra.mrb[0].mxu0 %v6159
        %v6800 = vpop.f32.mrb[0].mxu0
        %v6801 = vadd.f32 %v6640, %v6800
        %v6802 = vpop.f32.mrb[0].mxu0
        %v6803 = vpop.f32.mrb[0].mxu0
        %v6804 = vadd.f32 %v6643, %v6803
        %v6805 = vpop.f32.mrb[0].mxu0
        %6806 = vmatprep.mubr.bf16.mxu0 %v6165
        %6807 = vmatmul.mubr.bf16.gmra.mrb[0].mxu0 %v6164
        %v6808 = vpop.f32.mrb[0].mxu0
        %v6809 = vadd.f32 %v6648, %v6808
        %v6810 = vpop.f32.mrb[0].mxu0
        %v6811 = vpop.f32.mrb[0].mxu0
        %v6812 = vadd.f32 %v6651, %v6811
        %v6813 = vpop.f32.mrb[0].mxu0
        %6814 = vmatprep.mubr.bf16.mxu0 %v6170
        %6815 = vmatmul.mubr.bf16.gmra.mrb[0].mxu0 %v6169
        %v6816 = vpop.f32.mrb[0].mxu0
        %v6817 = vadd.f32 %v6656, %v6816
        %v6818 = vpop.f32.mrb[0].mxu0
        %v6819 = vpop.f32.mrb[0].mxu0
        %v6820 = vadd.f32 %v6659, %v6819
        %v6821 = vpop.f32.mrb[0].mxu0
        %6822 = vmatprep.mubr.bf16.mxu0 %v6175
        %6823 = vmatmul.mubr.bf16.gmra.mrb[0].mxu0 %v6174
        %v6824 = vpop.f32.mrb[0].mxu0
        %v6825 = vadd.f32 %v6664, %v6824
        %v6826 = vpop.f32.mrb[0].mxu0
        %v6827 = vpop.f32.mrb[0].mxu0
        %v6828 = vadd.f32 %v6667, %v6827
        %v6829 = vpop.f32.mrb[0].mxu0
        %6830 = vmatprep.mubr.bf16.mxu0 %v6180
        %6831 = vmatmul.mubr.bf16.gmra.mrb[0].mxu0 %v6179
        %v6832 = vpop.f32.mrb[0].mxu0
        %v6833 = vadd.f32 %v6672, %v6832
        %v6834 = vpop.f32.mrb[0].mxu0
        %v6835 = vpop.f32.mrb[0].mxu0
        %v6836 = vadd.f32 %v6675, %v6835
        %v6837 = vpop.f32.mrb[0].mxu0
        %6838 = vmatprep.mubr.bf16.mxu0 %v6185
        %6839 = vmatmul.mubr.bf16.gmra.mrb[0].mxu0 %v6184
        %v6840 = vpop.f32.mrb[0].mxu0
        %v6841 = vadd.f32 %v6680, %v6840
        %v6842 = vpop.f32.mrb[0].mxu0
        %v6843 = vpop.f32.mrb[0].mxu0
        %v6844 = vadd.f32 %v6683, %v6843
        %v6845 = vpop.f32.mrb[0].mxu0
        %6846 = vmatprep.mubr.bf16.mxu0 %v6190
        %6847 = vmatmul.mubr.bf16.gmra.mrb[0].mxu0 %v6189
        %v6848 = vpop.f32.mrb[0].mxu0
        %v6849 = vadd.f32 %v6688, %v6848
        %v6850 = vpop.f32.mrb[0].mxu0
        %v6851 = vpop.f32.mrb[0].mxu0
        %v6852 = vadd.f32 %v6691, %v6851
        %v6853 = vpop.f32.mrb[0].mxu0
        %6854 = vmatprep.mubr.bf16.mxu0 %v6195
        %6855 = vmatmul.mubr.bf16.gmra.mrb[0].mxu0 %v6194
        %v6856 = vpop.f32.mrb[0].mxu0
        %v6857 = vadd.f32 %v6696, %v6856
        %v6858 = vpop.f32.mrb[0].mxu0
        %v6859 = vpop.f32.mrb[0].mxu0
        %v6860 = vadd.f32 %v6699, %v6859
        %v6861 = vpop.f32.mrb[0].mxu0
        %6862 = vmatprep.mubr.bf16.mxu0 %v6200
        %6863 = vmatmul.mubr.bf16.gmra.mrb[0].mxu0 %v6199
        %v6864 = vpop.f32.mrb[0].mxu0
        %v6865 = vadd.f32 %v6704, %v6864
        %v6866 = vpop.f32.mrb[0].mxu0
        %v6867 = vpop.f32.mrb[0].mxu0
        %v6868 = vadd.f32 %v6707, %v6867
        %v6869 = vpop.f32.mrb[0].mxu0
        %6870 = vdwg.mxu0
        %6871 = vmatprep.subr.bf16.mxu0 0
        %6872 = vmatpush1.bf16.msra.mxu0 %v6461
        %6873 = vmatprep.subr.bf16.mxu0 0
        %6874 = vmatpush1.bf16.msra.mxu0 %v6462
        %6875 = vmatprep.subr.bf16.mxu0 0
        %6876 = vmatpush1.bf16.msra.mxu0 %v6463
        %6877 = vmatprep.subr.bf16.mxu0 0
        %6878 = vmatpush1.bf16.msra.mxu0 %v6464
        %6879 = vmatprep.subr.bf16.mxu0 0
        %6880 = vmatpush1.bf16.msra.mxu0 0
        %6881 = vmatprep.subr.bf16.mxu0 0
        %6882 = vmatpush1.bf16.msra.mxu0 0
        %6883 = vmatprep.subr.bf16.mxu0 0
        %6884 = vmatpush1.bf16.msra.mxu0 0
        %6885 = vmatprep.subr.bf16.mxu0 0
        %6886 = vmatpush1.bf16.msra.mxu0 0
        %6887 = vmatprep.subr.bf16.mxu0 0
        %6888 = vmatpush1.bf16.msra.mxu0 0
        %6889 = vmatprep.subr.bf16.mxu0 0
        %6890 = vmatpush1.bf16.msra.mxu0 0
        %6891 = vmatprep.subr.bf16.mxu0 0
        %6892 = vmatpush1.bf16.msra.mxu0 0
        %6893 = vmatprep.subr.bf16.mxu0 0
        %6894 = vmatpush1.bf16.msra.mxu0 0
        %6895 = vmatprep.subr.bf16.mxu0 0
        %6896 = vmatpush1.bf16.msra.mxu0 0
        %6897 = vmatprep.subr.bf16.mxu0 0
        %6898 = vmatpush1.bf16.msra.mxu0 0
        %6899 = vmatprep.subr.bf16.mxu0 0
        %6900 = vmatpush1.bf16.msra.mxu0 0
        %6901 = vmatprep.subr.bf16.mxu0 0
        %6902 = vmatpush1.bf16.msra.mxu0 0
        %6903 = vmatprep.mubr.bf16.mxu0 0
        %6904 = vmatmul.mubr.bf16.gmra.mrb[0].mxu0 %v6502
        %v6905 = vpop.f32.mrb[0].mxu0
        %v6906 = vadd.f32 %v6745, %v6905
        %v6907 = vpop.f32.mrb[0].mxu0
        %v6908 = vpop.f32.mrb[0].mxu0
        %v6909 = vadd.f32 %v6748, %v6908
        %v6910 = vpop.f32.mrb[0].mxu0
        %6911 = vmatprep.mubr.bf16.mxu0 0
        %6912 = vmatmul.mubr.bf16.gmra.mrb[0].mxu0 %v6505
        %v6913 = vpop.f32.mrb[0].mxu0
        %v6914 = vadd.f32 %v6753, %v6913
        %v6915 = vpop.f32.mrb[0].mxu0
        %v6916 = vpop.f32.mrb[0].mxu0
        %v6917 = vadd.f32 %v6756, %v6916
        %v6918 = vpop.f32.mrb[0].mxu0
        %6919 = vmatprep.mubr.bf16.mxu0 0
        %6920 = vmatmul.mubr.bf16.gmra.mrb[0].mxu0 %v6508
        %v6921 = vpop.f32.mrb[0].mxu0
        %v6922 = vadd.f32 %v6761, %v6921
        %v6923 = vpop.f32.mrb[0].mxu0
        %v6924 = vpop.f32.mrb[0].mxu0
        %v6925 = vadd.f32 %v6764, %v6924
        %v6926 = vpop.f32.mrb[0].mxu0
        %6927 = vmatprep.mubr.bf16.mxu0 0
        %6928 = vmatmul.mubr.bf16.gmra.mrb[0].mxu0 %v6511
        %v6929 = vpop.f32.mrb[0].mxu0
        %v6930 = vadd.f32 %v6769, %v6929
        %v6931 = vpop.f32.mrb[0].mxu0
        %v6932 = vpop.f32.mrb[0].mxu0
        %v6933 = vadd.f32 %v6772, %v6932
        %v6934 = vpop.f32.mrb[0].mxu0
        %6935 = vmatprep.mubr.bf16.mxu0 0
        %6936 = vmatmul.mubr.bf16.gmra.mrb[0].mxu0 %v6514
        %v6937 = vpop.f32.mrb[0].mxu0
        %v6938 = vadd.f32 %v6777, %v6937
        %v6939 = vpop.f32.mrb[0].mxu0
        %v6940 = vpop.f32.mrb[0].mxu0
        %v6941 = vadd.f32 %v6780, %v6940
        %v6942 = vpop.f32.mrb[0].mxu0
        %6943 = vmatprep.mubr.bf16.mxu0 0
        %6944 = vmatmul.mubr.bf16.gmra.mrb[0].mxu0 %v6517
        %v6945 = vpop.f32.mrb[0].mxu0
        %v6946 = vadd.f32 %v6785, %v6945
        %v6947 = vpop.f32.mrb[0].mxu0
        %v6948 = vpop.f32.mrb[0].mxu0
        %v6949 = vadd.f32 %v6788, %v6948
        %v6950 = vpop.f32.mrb[0].mxu0
        %6951 = vmatprep.mubr.bf16.mxu0 0
        %6952 = vmatmul.mubr.bf16.gmra.mrb[0].mxu0 %v6520
        %v6953 = vpop.f32.mrb[0].mxu0
        %v6954 = vadd.f32 %v6793, %v6953
        %v6955 = vpop.f32.mrb[0].mxu0
        %v6956 = vpop.f32.mrb[0].mxu0
        %v6957 = vadd.f32 %v6796, %v6956
        %v6958 = vpop.f32.mrb[0].mxu0
        %6959 = vmatprep.mubr.bf16.mxu0 0
        %6960 = vmatmul.mubr.bf16.gmra.mrb[0].mxu0 %v6523
        %v6961 = vpop.f32.mrb[0].mxu0
        %v6962 = vadd.f32 %v6801, %v6961
        %v6963 = vpop.f32.mrb[0].mxu0
        %v6964 = vpop.f32.mrb[0].mxu0
        %v6965 = vadd.f32 %v6804, %v6964
        %v6966 = vpop.f32.mrb[0].mxu0
        %6967 = vmatprep.mubr.bf16.mxu0 0
        %6968 = vmatmul.mubr.bf16.gmra.mrb[0].mxu0 %v6526
        %v6969 = vpop.f32.mrb[0].mxu0
        %v6970 = vadd.f32 %v6809, %v6969
        %v6971 = vpop.f32.mrb[0].mxu0
        %v6972 = vpop.f32.mrb[0].mxu0
        %v6973 = vadd.f32 %v6812, %v6972
        %v6974 = vpop.f32.mrb[0].mxu0
        %6975 = vmatprep.mubr.bf16.mxu0 0
        %6976 = vmatmul.mubr.bf16.gmra.mrb[0].mxu0 %v6529
        %v6977 = vpop.f32.mrb[0].mxu0
        %v6978 = vadd.f32 %v6817, %v6977
        %v6979 = vpop.f32.mrb[0].mxu0
        %v6980 = vpop.f32.mrb[0].mxu0
        %v6981 = vadd.f32 %v6820, %v6980
        %v6982 = vpop.f32.mrb[0].mxu0
        %6983 = vmatprep.mubr.bf16.mxu0 0
        %6984 = vmatmul.mubr.bf16.gmra.mrb[0].mxu0 %v6532
        %v6985 = vpop.f32.mrb[0].mxu0
        %v6986 = vadd.f32 %v6825, %v6985
        %v6987 = vpop.f32.mrb[0].mxu0
        %v6988 = vpop.f32.mrb[0].mxu0
        %v6989 = vadd.f32 %v6828, %v6988
        %v6990 = vpop.f32.mrb[0].mxu0
        %6991 = vmatprep.mubr.bf16.mxu0 0
        %6992 = vmatmul.mubr.bf16.gmra.mrb[0].mxu0 %v6535
        %v6993 = vpop.f32.mrb[0].mxu0
        %v6994 = vadd.f32 %v6833, %v6993
        %v6995 = vpop.f32.mrb[0].mxu0
        %v6996 = vpop.f32.mrb[0].mxu0
        %v6997 = vadd.f32 %v6836, %v6996
        %v6998 = vpop.f32.mrb[0].mxu0
        %6999 = vmatprep.mubr.bf16.mxu0 0
        %7000 = vmatmul.mubr.bf16.gmra.mrb[0].mxu0 %v6538
        %v7001 = vpop.f32.mrb[0].mxu0
        %v7002 = vadd.f32 %v6841, %v7001
        %v7003 = vpop.f32.mrb[0].mxu0
        %v7004 = vpop.f32.mrb[0].mxu0
        %v7005 = vadd.f32 %v6844, %v7004
        %v7006 = vpop.f32.mrb[0].mxu0
        %7007 = vmatprep.mubr.bf16.mxu0 0
        %7008 = vmatmul.mubr.bf16.gmra.mrb[0].mxu0 %v6541
        %v7009 = vpop.f32.mrb[0].mxu0
        %v7010 = vadd.f32 %v6849, %v7009
        %v7011 = vpop.f32.mrb[0].mxu0
        %v7012 = vpop.f32.mrb[0].mxu0
        %v7013 = vadd.f32 %v6852, %v7012
        %v7014 = vpop.f32.mrb[0].mxu0
        %7015 = vmatprep.mubr.bf16.mxu0 0
        %7016 = vmatmul.mubr.bf16.gmra.mrb[0].mxu0 %v6544
        %v7017 = vpop.f32.mrb[0].mxu0
        %v7018 = vadd.f32 %v6857, %v7017
        %v7019 = vpop.f32.mrb[0].mxu0
        %v7020 = vpop.f32.mrb[0].mxu0
        %v7021 = vadd.f32 %v6860, %v7020
        %v7022 = vpop.f32.mrb[0].mxu0
        %7023 = vmatprep.mubr.bf16.mxu0 0
        %7024 = vmatmul.mubr.bf16.gmra.mrb[0].mxu0 %v6547
        %v7025 = vpop.f32.mrb[0].mxu0
        %v7026 = vadd.f32 %v6865, %v7025
        %v7027 = vpop.f32.mrb[0].mxu0
        %v7028 = vpop.f32.mrb[0].mxu0
        %v7029 = vadd.f32 %v6868, %v7028
        %v7030 = vpop.f32.mrb[0].mxu0
        %7031 = vdwg.mxu0
        %v7032 = vmax.f32 %v6906, 0.0
        %v7033 = vmax.f32 %v6909, 0.0
        %v7034 = vmax.f32 %v6914, 0.0
        %v7035 = vmax.f32 %v6917, 0.0
        %v7036 = vmax.f32 %v6922, 0.0
        %v7037 = vmax.f32 %v6925, 0.0
        %v7038 = vmax.f32 %v6930, 0.0
        %v7039 = vmax.f32 %v6933, 0.0
        %v7040 = vmax.f32 %v6938, 0.0
        %v7041 = vmax.f32 %v6941, 0.0
        %v7042 = vmax.f32 %v6946, 0.0
        %v7043 = vmax.f32 %v6949, 0.0
        %v7044 = vmax.f32 %v6954, 0.0
        %v7045 = vmax.f32 %v6957, 0.0
        %v7046 = vmax.f32 %v6962, 0.0
        %v7047 = vmax.f32 %v6965, 0.0
        %v7048 = vmax.f32 %v6970, 0.0
        %v7049 = vmax.f32 %v6973, 0.0
        %v7050 = vmax.f32 %v6978, 0.0
        %v7051 = vmax.f32 %v6981, 0.0
        %v7052 = vmax.f32 %v6986, 0.0
        %v7053 = vmax.f32 %v6989, 0.0
        %v7054 = vmax.f32 %v6994, 0.0
        %v7055 = vmax.f32 %v6997, 0.0
        %v7056 = vmax.f32 %v7002, 0.0
        %v7057 = vmax.f32 %v7005, 0.0
        %v7058 = vmax.f32 %v7010, 0.0
        %v7059 = vmax.f32 %v7013, 0.0
        %v7060 = vmax.f32 %v7018, 0.0
        %v7061 = vmax.f32 %v7021, 0.0
        %v7062 = vmax.f32 %v7026, 0.0
        %v7063 = vmax.f32 %v7029, 0.0
        %v7064 = vpack.c.bf16 %v7033, %v7032
        %v7065 = vpack.c.bf16 %v7035, %v7034
        %v7066 = vpack.c.bf16 %v7037, %v7036
        %v7067 = vpack.c.bf16 %v7039, %v7038
        %v7068 = vpack.c.bf16 %v7041, %v7040
        %v7069 = vpack.c.bf16 %v7043, %v7042
        %v7070 = vpack.c.bf16 %v7045, %v7044
        %v7071 = vpack.c.bf16 %v7047, %v7046
        %v7072 = vpack.c.bf16 %v7049, %v7048
        %v7073 = vpack.c.bf16 %v7051, %v7050
        %v7074 = vpack.c.bf16 %v7053, %v7052
        %v7075 = vpack.c.bf16 %v7055, %v7054
        %v7076 = vpack.c.bf16 %v7057, %v7056
        %v7077 = vpack.c.bf16 %v7059, %v7058
        %v7078 = vpack.c.bf16 %v7061, %v7060
        %v7079 = vpack.c.bf16 %v7063, %v7062
        %v7096 = vrot.slane %v7064, 4
        %v7097 = vrot.slane %v7065, 4
        %v7098 = vrot.slane %v7066, 4
        %v7099 = vrot.slane %v7067, 4
        %v7100 = vrot.slane %v7068, 4
        %v7101 = vrot.slane %v7069, 4
        %v7102 = vrot.slane %v7070, 4
        %v7103 = vrot.slane %v7071, 4
        %v7104 = vrot.slane %v7072, 4
        %v7105 = vrot.slane %v7073, 4
        %v7106 = vrot.slane %v7074, 4
        %v7107 = vrot.slane %v7075, 4
        %v7108 = vrot.slane %v7076, 4
        %v7109 = vrot.slane %v7077, 4
        %v7110 = vrot.slane %v7078, 4
        %v7111 = vrot.slane %v7079, 4
        %7128 = vst.msk [vmem:[%s3504] sm:$0xf0] %vm288, %v7096
        %7129 = vst.msk [vmem:[%s3504 + $0x8] sm:$0xf] %vm269, %v7096
        %7130 = vst.msk [vmem:[%s3504 + $0x10] sm:$0xf0] %vm288, %v7097
        %7131 = vst.msk [vmem:[%s3504 + $0x18] sm:$0xf] %vm269, %v7097
        %7132 = vst.msk [vmem:[%s3504 + $0x20] sm:$0xf0] %vm288, %v7098
        %7133 = vst.msk [vmem:[%s3504 + $0x28] sm:$0xf] %vm269, %v7098
        %7134 = vst.msk [vmem:[%s3504 + $0x30] sm:$0xf0] %vm288, %v7099
        %7135 = vst.msk [vmem:[%s3504 + $0x38] sm:$0xf] %vm269, %v7099
        %7136 = vst.msk [vmem:[%s3504 + $0x40] sm:$0xf0] %vm288, %v7100
        %7137 = vst.msk [vmem:[%s3504 + $0x48] sm:$0xf] %vm269, %v7100
        %7138 = vst.msk [vmem:[%s3504 + $0x50] sm:$0xf0] %vm288, %v7101
        %7139 = vst.msk [vmem:[%s3504 + $0x58] sm:$0xf] %vm269, %v7101
        %7140 = vst.msk [vmem:[%s3504 + $0x60] sm:$0xf0] %vm288, %v7102
        %7141 = vst.msk [vmem:[%s3504 + $0x68] sm:$0xf] %vm269, %v7102
        %7142 = vst.msk [vmem:[%s3504 + $0x70] sm:$0xf0] %vm288, %v7103
        %7143 = vst.msk [vmem:[%s3504 + $0x78] sm:$0xf] %vm269, %v7103
        %7144 = vst.msk [vmem:[%s3504 + $0x80] sm:$0xf0] %vm288, %v7104
        %7145 = vst.msk [vmem:[%s3504 + $0x88] sm:$0xf] %vm269, %v7104
        %7146 = vst.msk [vmem:[%s3504 + $0x90] sm:$0xf0] %vm288, %v7105
        %7147 = vst.msk [vmem:[%s3504 + $0x98] sm:$0xf] %vm269, %v7105
        %7148 = vst.msk [vmem:[%s3504 + $0xa0] sm:$0xf0] %vm288, %v7106
        %7149 = vst.msk [vmem:[%s3504 + $0xa8] sm:$0xf] %vm269, %v7106
        %7150 = vst.msk [vmem:[%s3504 + $0xb0] sm:$0xf0] %vm288, %v7107
        %7151 = vst.msk [vmem:[%s3504 + $0xb8] sm:$0xf] %vm269, %v7107
        %7152 = vst.msk [vmem:[%s3504 + $0xc0] sm:$0xf0] %vm288, %v7108
        %7153 = vst.msk [vmem:[%s3504 + $0xc8] sm:$0xf] %vm269, %v7108
        %7154 = vst.msk [vmem:[%s3504 + $0xd0] sm:$0xf0] %vm288, %v7109
        %7155 = vst.msk [vmem:[%s3504 + $0xd8] sm:$0xf] %vm269, %v7109
        %7156 = vst.msk [vmem:[%s3504 + $0xe0] sm:$0xf0] %vm288, %v7110
        %7157 = vst.msk [vmem:[%s3504 + $0xe8] sm:$0xf] %vm269, %v7110
        %7158 = vst.msk [vmem:[%s3504 + $0xf0] sm:$0xf0] %vm288, %v7111
        %7159 = vst.msk [vmem:[%s3504 + $0xf8] sm:$0xf] %vm269, %v7111
      $region45: #{dncnn_forward.1} parent=39 // loop_footer
        %s3542 = sadd.s32 1, %s3538
      $region46: #{dncnn_forward.1} parent=39 // loop_footer_branch
        %3537 = sbr.rel target = $region42
      $region47: #{dncnn_forward.1} parent=39 // loop_exit
        _
      %v7160 = vld [vmem:[#allocation3] sm:$0xf8]
      %v7161 = vld [vmem:[#allocation3 + $0x8] sm:$0xf]
      %v7162 = vld [vmem:[#allocation3 + $0x10] sm:$0xf8]
      %v7163 = vld [vmem:[#allocation3 + $0x18] sm:$0xf]
      %v7164 = vld [vmem:[#allocation3 + $0x20] sm:$0xf8]
      %v7165 = vld [vmem:[#allocation3 + $0x28] sm:$0xf]
      %v7166 = vld [vmem:[#allocation3 + $0x30] sm:$0xf8]
      %v7167 = vld [vmem:[#allocation3 + $0x38] sm:$0xf]
      %v7168 = vld [vmem:[#allocation3 + $0x40] sm:$0xf8]
      %v7169 = vld [vmem:[#allocation3 + $0x48] sm:$0xf]
      %v7170 = vld [vmem:[#allocation3 + $0x50] sm:$0xf8]
      %v7171 = vld [vmem:[#allocation3 + $0x58] sm:$0xf]
      %v7172 = vld [vmem:[#allocation3 + $0x60] sm:$0xf8]
      %v7173 = vld [vmem:[#allocation3 + $0x68] sm:$0xf]
      %v7174 = vld [vmem:[#allocation3 + $0x70] sm:$0xf8]
      %v7175 = vld [vmem:[#allocation3 + $0x78] sm:$0xf]
      %v7176 = vld [vmem:[#allocation3 + $0x80] sm:$0xf8]
      %v7177 = vld [vmem:[#allocation3 + $0x88] sm:$0xf]
      %v7178 = vld [vmem:[#allocation3 + $0x90] sm:$0xf8]
      %v7179 = vld [vmem:[#allocation3 + $0x98] sm:$0xf]
      %v7180 = vld [vmem:[#allocation3 + $0xa0] sm:$0xf8]
      %v7181 = vld [vmem:[#allocation3 + $0xa8] sm:$0xf]
      %v7182 = vld [vmem:[#allocation3 + $0xb0] sm:$0xf8]
      %v7183 = vld [vmem:[#allocation3 + $0xb8] sm:$0xf]
      %v7184 = vld [vmem:[#allocation3 + $0xc0] sm:$0xf8]
      %v7185 = vld [vmem:[#allocation3 + $0xc8] sm:$0xf]
      %v7186 = vld [vmem:[#allocation3 + $0xd0] sm:$0xf8]
      %v7187 = vld [vmem:[#allocation3 + $0xd8] sm:$0xf]
      %v7188 = vld [vmem:[#allocation3 + $0xe0] sm:$0xf8]
      %v7189 = vld [vmem:[#allocation3 + $0xe8] sm:$0xf]
      %v7190 = vld [vmem:[#allocation3 + $0xf0] sm:$0xf8]
      %v7191 = vld [vmem:[#allocation3 + $0xf8] sm:$0xf]
      %v7193 = vshrl.u32 %v7160, 16
      %v7195 = vrot.slane %v7193, 3
      %v7196 = vshll.u32 %v7160, 16
      %v7198 = vrot.slane %v7196, 4
      %v7199 = vor.u32 %v7195, %v7198
      %v7201 = vshrl.u32 %v7161, 16
      %v7203 = vrot.slane %v7201, 3
      %v7204 = vshll.u32 %v7161, 16
      %v7206 = vrot.slane %v7204, 4
      %v7207 = vor.u32 %v7203, %v7206
      %v7208 = vsel %vm473, %v7199, %v7207
      %v7210 = vshrl.u32 %v7162, 16
      %v7212 = vrot.slane %v7210, 3
      %v7213 = vshll.u32 %v7162, 16
      %v7215 = vrot.slane %v7213, 4
      %v7216 = vor.u32 %v7212, %v7215
      %v7218 = vshrl.u32 %v7163, 16
      %v7220 = vrot.slane %v7218, 3
      %v7221 = vshll.u32 %v7163, 16
      %v7223 = vrot.slane %v7221, 4
      %v7224 = vor.u32 %v7220, %v7223
      %v7225 = vsel %vm473, %v7216, %v7224
      %v7227 = vshrl.u32 %v7164, 16
      %v7229 = vrot.slane %v7227, 3
      %v7230 = vshll.u32 %v7164, 16
      %v7232 = vrot.slane %v7230, 4
      %v7233 = vor.u32 %v7229, %v7232
      %v7235 = vshrl.u32 %v7165, 16
      %v7237 = vrot.slane %v7235, 3
      %v7238 = vshll.u32 %v7165, 16
      %v7240 = vrot.slane %v7238, 4
      %v7241 = vor.u32 %v7237, %v7240
      %v7242 = vsel %vm473, %v7233, %v7241
      %v7244 = vshrl.u32 %v7166, 16
      %v7246 = vrot.slane %v7244, 3
      %v7247 = vshll.u32 %v7166, 16
      %v7249 = vrot.slane %v7247, 4
      %v7250 = vor.u32 %v7246, %v7249
      %v7252 = vshrl.u32 %v7167, 16
      %v7254 = vrot.slane %v7252, 3
      %v7255 = vshll.u32 %v7167, 16
      %v7257 = vrot.slane %v7255, 4
      %v7258 = vor.u32 %v7254, %v7257
      %v7259 = vsel %vm473, %v7250, %v7258
      %v7261 = vshrl.u32 %v7168, 16
      %v7263 = vrot.slane %v7261, 3
      %v7264 = vshll.u32 %v7168, 16
      %v7266 = vrot.slane %v7264, 4
      %v7267 = vor.u32 %v7263, %v7266
      %v7269 = vshrl.u32 %v7169, 16
      %v7271 = vrot.slane %v7269, 3
      %v7272 = vshll.u32 %v7169, 16
      %v7274 = vrot.slane %v7272, 4
      %v7275 = vor.u32 %v7271, %v7274
      %v7276 = vsel %vm473, %v7267, %v7275
      %v7278 = vshrl.u32 %v7170, 16
      %v7280 = vrot.slane %v7278, 3
      %v7281 = vshll.u32 %v7170, 16
      %v7283 = vrot.slane %v7281, 4
      %v7284 = vor.u32 %v7280, %v7283
      %v7286 = vshrl.u32 %v7171, 16
      %v7288 = vrot.slane %v7286, 3
      %v7289 = vshll.u32 %v7171, 16
      %v7291 = vrot.slane %v7289, 4
      %v7292 = vor.u32 %v7288, %v7291
      %v7293 = vsel %vm473, %v7284, %v7292
      %v7295 = vshrl.u32 %v7172, 16
      %v7297 = vrot.slane %v7295, 3
      %v7298 = vshll.u32 %v7172, 16
      %v7300 = vrot.slane %v7298, 4
      %v7301 = vor.u32 %v7297, %v7300
      %v7303 = vshrl.u32 %v7173, 16
      %v7305 = vrot.slane %v7303, 3
      %v7306 = vshll.u32 %v7173, 16
      %v7308 = vrot.slane %v7306, 4
      %v7309 = vor.u32 %v7305, %v7308
      %v7310 = vsel %vm473, %v7301, %v7309
      %v7312 = vshrl.u32 %v7174, 16
      %v7314 = vrot.slane %v7312, 3
      %v7315 = vshll.u32 %v7174, 16
      %v7317 = vrot.slane %v7315, 4
      %v7318 = vor.u32 %v7314, %v7317
      %v7320 = vshrl.u32 %v7175, 16
      %v7322 = vrot.slane %v7320, 3
      %v7323 = vshll.u32 %v7175, 16
      %v7325 = vrot.slane %v7323, 4
      %v7326 = vor.u32 %v7322, %v7325
      %v7327 = vsel %vm473, %v7318, %v7326
      %v7329 = vshrl.u32 %v7176, 16
      %v7331 = vrot.slane %v7329, 3
      %v7332 = vshll.u32 %v7176, 16
      %v7334 = vrot.slane %v7332, 4
      %v7335 = vor.u32 %v7331, %v7334
      %v7337 = vshrl.u32 %v7177, 16
      %v7339 = vrot.slane %v7337, 3
      %v7340 = vshll.u32 %v7177, 16
      %v7342 = vrot.slane %v7340, 4
      %v7343 = vor.u32 %v7339, %v7342
      %v7344 = vsel %vm473, %v7335, %v7343
      %v7346 = vshrl.u32 %v7178, 16
      %v7348 = vrot.slane %v7346, 3
      %v7349 = vshll.u32 %v7178, 16
      %v7351 = vrot.slane %v7349, 4
      %v7352 = vor.u32 %v7348, %v7351
      %v7354 = vshrl.u32 %v7179, 16
      %v7356 = vrot.slane %v7354, 3
      %v7357 = vshll.u32 %v7179, 16
      %v7359 = vrot.slane %v7357, 4
      %v7360 = vor.u32 %v7356, %v7359
      %v7361 = vsel %vm473, %v7352, %v7360
      %v7363 = vshrl.u32 %v7180, 16
      %v7365 = vrot.slane %v7363, 3
      %v7366 = vshll.u32 %v7180, 16
      %v7368 = vrot.slane %v7366, 4
      %v7369 = vor.u32 %v7365, %v7368
      %v7371 = vshrl.u32 %v7181, 16
      %v7373 = vrot.slane %v7371, 3
      %v7374 = vshll.u32 %v7181, 16
      %v7376 = vrot.slane %v7374, 4
      %v7377 = vor.u32 %v7373, %v7376
      %v7378 = vsel %vm473, %v7369, %v7377
      %v7380 = vshrl.u32 %v7182, 16
      %v7382 = vrot.slane %v7380, 3
      %v7383 = vshll.u32 %v7182, 16
      %v7385 = vrot.slane %v7383, 4
      %v7386 = vor.u32 %v7382, %v7385
      %v7388 = vshrl.u32 %v7183, 16
      %v7390 = vrot.slane %v7388, 3
      %v7391 = vshll.u32 %v7183, 16
      %v7393 = vrot.slane %v7391, 4
      %v7394 = vor.u32 %v7390, %v7393
      %v7395 = vsel %vm473, %v7386, %v7394
      %v7397 = vshrl.u32 %v7184, 16
      %v7399 = vrot.slane %v7397, 3
      %v7400 = vshll.u32 %v7184, 16
      %v7402 = vrot.slane %v7400, 4
      %v7403 = vor.u32 %v7399, %v7402
      %v7405 = vshrl.u32 %v7185, 16
      %v7407 = vrot.slane %v7405, 3
      %v7408 = vshll.u32 %v7185, 16
      %v7410 = vrot.slane %v7408, 4
      %v7411 = vor.u32 %v7407, %v7410
      %v7412 = vsel %vm473, %v7403, %v7411
      %v7414 = vshrl.u32 %v7186, 16
      %v7416 = vrot.slane %v7414, 3
      %v7417 = vshll.u32 %v7186, 16
      %v7419 = vrot.slane %v7417, 4
      %v7420 = vor.u32 %v7416, %v7419
      %v7422 = vshrl.u32 %v7187, 16
      %v7424 = vrot.slane %v7422, 3
      %v7425 = vshll.u32 %v7187, 16
      %v7427 = vrot.slane %v7425, 4
      %v7428 = vor.u32 %v7424, %v7427
      %v7429 = vsel %vm473, %v7420, %v7428
      %v7431 = vshrl.u32 %v7188, 16
      %v7433 = vrot.slane %v7431, 3
      %v7434 = vshll.u32 %v7188, 16
      %v7436 = vrot.slane %v7434, 4
      %v7437 = vor.u32 %v7433, %v7436
      %v7439 = vshrl.u32 %v7189, 16
      %v7441 = vrot.slane %v7439, 3
      %v7442 = vshll.u32 %v7189, 16
      %v7444 = vrot.slane %v7442, 4
      %v7445 = vor.u32 %v7441, %v7444
      %v7446 = vsel %vm473, %v7437, %v7445
      %v7448 = vshrl.u32 %v7190, 16
      %v7450 = vrot.slane %v7448, 3
      %v7451 = vshll.u32 %v7190, 16
      %v7453 = vrot.slane %v7451, 4
      %v7454 = vor.u32 %v7450, %v7453
      %v7456 = vshrl.u32 %v7191, 16
      %v7458 = vrot.slane %v7456, 3
      %v7459 = vshll.u32 %v7191, 16
      %v7461 = vrot.slane %v7459, 4
      %v7462 = vor.u32 %v7458, %v7461
      %v7463 = vsel %vm473, %v7454, %v7462
      %vm7480 = vcmask 523264
      %7481 = vst.msk [vmem:[#allocation4] sm:$0xff] %vm7480, %v7208
      %7482 = vst.msk [vmem:[#allocation4 + $0x28] sm:$0xff] %vm7480, %v7225
      %7483 = vst.msk [vmem:[#allocation4 + $0x50] sm:$0xff] %vm7480, %v7242
      %7484 = vst.msk [vmem:[#allocation4 + $0x78] sm:$0xff] %vm7480, %v7259
      %7485 = vst.msk [vmem:[#allocation4 + $0xa0] sm:$0xff] %vm7480, %v7276
      %7486 = vst.msk [vmem:[#allocation4 + $0xc8] sm:$0xff] %vm7480, %v7293
      %7487 = vst.msk [vmem:[#allocation4 + $0xf0] sm:$0xff] %vm7480, %v7310
      %7488 = vst.msk [vmem:[#allocation4 + $0x118] sm:$0xff] %vm7480, %v7327
      %7489 = vst.msk [vmem:[#allocation4 + $0x140] sm:$0xff] %vm7480, %v7344
      %7490 = vst.msk [vmem:[#allocation4 + $0x168] sm:$0xff] %vm7480, %v7361
      %7491 = vst.msk [vmem:[#allocation4 + $0x190] sm:$0xff] %vm7480, %v7378
      %7492 = vst.msk [vmem:[#allocation4 + $0x1b8] sm:$0xff] %vm7480, %v7395
      %7493 = vst.msk [vmem:[#allocation4 + $0x1e0] sm:$0xff] %vm7480, %v7412
      %7494 = vst.msk [vmem:[#allocation4 + $0x208] sm:$0xff] %vm7480, %v7429
      %7495 = vst.msk [vmem:[#allocation4 + $0x230] sm:$0xff] %vm7480, %v7446
      %7496 = vst.msk [vmem:[#allocation4 + $0x258] sm:$0xff] %vm7480, %v7463
      %v7497 = vld [vmem:[#allocation3] sm:$0xf0]
      %v7498 = vld [vmem:[#allocation3 + $0x8] sm:$0xf]
      %v7499 = vld [vmem:[#allocation3 + $0x10] sm:$0xf0]
      %v7500 = vld [vmem:[#allocation3 + $0x18] sm:$0xf]
      %v7501 = vld [vmem:[#allocation3 + $0x20] sm:$0xf0]
      %v7502 = vld [vmem:[#allocation3 + $0x28] sm:$0xf]
      %v7503 = vld [vmem:[#allocation3 + $0x30] sm:$0xf0]
      %v7504 = vld [vmem:[#allocation3 + $0x38] sm:$0xf]
      %v7505 = vld [vmem:[#allocation3 + $0x40] sm:$0xf0]
      %v7506 = vld [vmem:[#allocation3 + $0x48] sm:$0xf]
      %v7507 = vld [vmem:[#allocation3 + $0x50] sm:$0xf0]
      %v7508 = vld [vmem:[#allocation3 + $0x58] sm:$0xf]
      %v7509 = vld [vmem:[#allocation3 + $0x60] sm:$0xf0]
      %v7510 = vld [vmem:[#allocation3 + $0x68] sm:$0xf]
      %v7511 = vld [vmem:[#allocation3 + $0x70] sm:$0xf0]
      %v7512 = vld [vmem:[#allocation3 + $0x78] sm:$0xf]
      %v7513 = vld [vmem:[#allocation3 + $0x80] sm:$0xf0]
      %v7514 = vld [vmem:[#allocation3 + $0x88] sm:$0xf]
      %v7515 = vld [vmem:[#allocation3 + $0x90] sm:$0xf0]
      %v7516 = vld [vmem:[#allocation3 + $0x98] sm:$0xf]
      %v7517 = vld [vmem:[#allocation3 + $0xa0] sm:$0xf0]
      %v7518 = vld [vmem:[#allocation3 + $0xa8] sm:$0xf]
      %v7519 = vld [vmem:[#allocation3 + $0xb0] sm:$0xf0]
      %v7520 = vld [vmem:[#allocation3 + $0xb8] sm:$0xf]
      %v7521 = vld [vmem:[#allocation3 + $0xc0] sm:$0xf0]
      %v7522 = vld [vmem:[#allocation3 + $0xc8] sm:$0xf]
      %v7523 = vld [vmem:[#allocation3 + $0xd0] sm:$0xf0]
      %v7524 = vld [vmem:[#allocation3 + $0xd8] sm:$0xf]
      %v7525 = vld [vmem:[#allocation3 + $0xe0] sm:$0xf0]
      %v7526 = vld [vmem:[#allocation3 + $0xe8] sm:$0xf]
      %v7527 = vld [vmem:[#allocation3 + $0xf0] sm:$0xf0]
      %v7528 = vld [vmem:[#allocation3 + $0xf8] sm:$0xf]
      %v7561 = vrot.slane %v7497, 4
      %v7562 = vrot.slane %v7498, 4
      %v7563 = vsel %vm843, %v7561, %v7562
      %v7564 = vrot.slane %v7499, 4
      %v7565 = vrot.slane %v7500, 4
      %v7566 = vsel %vm843, %v7564, %v7565
      %v7567 = vrot.slane %v7501, 4
      %v7568 = vrot.slane %v7502, 4
      %v7569 = vsel %vm843, %v7567, %v7568
      %v7570 = vrot.slane %v7503, 4
      %v7571 = vrot.slane %v7504, 4
      %v7572 = vsel %vm843, %v7570, %v7571
      %v7573 = vrot.slane %v7505, 4
      %v7574 = vrot.slane %v7506, 4
      %v7575 = vsel %vm843, %v7573, %v7574
      %v7576 = vrot.slane %v7507, 4
      %v7577 = vrot.slane %v7508, 4
      %v7578 = vsel %vm843, %v7576, %v7577
      %v7579 = vrot.slane %v7509, 4
      %v7580 = vrot.slane %v7510, 4
      %v7581 = vsel %vm843, %v7579, %v7580
      %v7582 = vrot.slane %v7511, 4
      %v7583 = vrot.slane %v7512, 4
      %v7584 = vsel %vm843, %v7582, %v7583
      %v7585 = vrot.slane %v7513, 4
      %v7586 = vrot.slane %v7514, 4
      %v7587 = vsel %vm843, %v7585, %v7586
      %v7588 = vrot.slane %v7515, 4
      %v7589 = vrot.slane %v7516, 4
      %v7590 = vsel %vm843, %v7588, %v7589
      %v7591 = vrot.slane %v7517, 4
      %v7592 = vrot.slane %v7518, 4
      %v7593 = vsel %vm843, %v7591, %v7592
      %v7594 = vrot.slane %v7519, 4
      %v7595 = vrot.slane %v7520, 4
      %v7596 = vsel %vm843, %v7594, %v7595
      %v7597 = vrot.slane %v7521, 4
      %v7598 = vrot.slane %v7522, 4
      %v7599 = vsel %vm843, %v7597, %v7598
      %v7600 = vrot.slane %v7523, 4
      %v7601 = vrot.slane %v7524, 4
      %v7602 = vsel %vm843, %v7600, %v7601
      %v7603 = vrot.slane %v7525, 4
      %v7604 = vrot.slane %v7526, 4
      %v7605 = vsel %vm843, %v7603, %v7604
      %v7606 = vrot.slane %v7527, 4
      %v7607 = vrot.slane %v7528, 4
      %v7608 = vsel %vm843, %v7606, %v7607
      %7609 = vrot.lane.b32.xlu0 %v7563, 64
      %v7610 = vpop.permute.xlu0 %7609
      %7611 = vrot.lane.b32.xlu0 %v7566, 64
      %v7612 = vpop.permute.xlu0 %7611
      %7613 = vrot.lane.b32.xlu0 %v7569, 64
      %v7614 = vpop.permute.xlu0 %7613
      %7615 = vrot.lane.b32.xlu0 %v7572, 64
      %v7616 = vpop.permute.xlu0 %7615
      %7617 = vrot.lane.b32.xlu0 %v7575, 64
      %v7618 = vpop.permute.xlu0 %7617
      %7619 = vrot.lane.b32.xlu0 %v7578, 64
      %v7620 = vpop.permute.xlu0 %7619
      %7621 = vrot.lane.b32.xlu0 %v7581, 64
      %v7622 = vpop.permute.xlu0 %7621
      %7623 = vrot.lane.b32.xlu0 %v7584, 64
      %v7624 = vpop.permute.xlu0 %7623
      %7625 = vrot.lane.b32.xlu0 %v7587, 64
      %v7626 = vpop.permute.xlu0 %7625
      %7627 = vrot.lane.b32.xlu0 %v7590, 64
      %v7628 = vpop.permute.xlu0 %7627
      %7629 = vrot.lane.b32.xlu0 %v7593, 64
      %v7630 = vpop.permute.xlu0 %7629
      %7631 = vrot.lane.b32.xlu0 %v7596, 64
      %v7632 = vpop.permute.xlu0 %7631
      %7633 = vrot.lane.b32.xlu0 %v7599, 64
      %v7634 = vpop.permute.xlu0 %7633
      %7635 = vrot.lane.b32.xlu0 %v7602, 64
      %v7636 = vpop.permute.xlu0 %7635
      %7637 = vrot.lane.b32.xlu0 %v7605, 64
      %v7638 = vpop.permute.xlu0 %7637
      %7639 = vrot.lane.b32.xlu0 %v7608, 64
      %v7640 = vpop.permute.xlu0 %7639
      %vm7657 = vcmask 1048064
      %7658 = vst.msk [vmem:[#allocation4] sm:$0xff] %vm7657, %v7610
      %7659 = vst.msk [vmem:[#allocation4 + $0x28] sm:$0xff] %vm7657, %v7612
      %7660 = vst.msk [vmem:[#allocation4 + $0x50] sm:$0xff] %vm7657, %v7614
      %7661 = vst.msk [vmem:[#allocation4 + $0x78] sm:$0xff] %vm7657, %v7616
      %7662 = vst.msk [vmem:[#allocation4 + $0xa0] sm:$0xff] %vm7657, %v7618
      %7663 = vst.msk [vmem:[#allocation4 + $0xc8] sm:$0xff] %vm7657, %v7620
      %7664 = vst.msk [vmem:[#allocation4 + $0xf0] sm:$0xff] %vm7657, %v7622
      %7665 = vst.msk [vmem:[#allocation4 + $0x118] sm:$0xff] %vm7657, %v7624
      %7666 = vst.msk [vmem:[#allocation4 + $0x140] sm:$0xff] %vm7657, %v7626
      %7667 = vst.msk [vmem:[#allocation4 + $0x168] sm:$0xff] %vm7657, %v7628
      %7668 = vst.msk [vmem:[#allocation4 + $0x190] sm:$0xff] %vm7657, %v7630
      %7669 = vst.msk [vmem:[#allocation4 + $0x1b8] sm:$0xff] %vm7657, %v7632
      %7670 = vst.msk [vmem:[#allocation4 + $0x1e0] sm:$0xff] %vm7657, %v7634
      %7671 = vst.msk [vmem:[#allocation4 + $0x208] sm:$0xff] %vm7657, %v7636
      %7672 = vst.msk [vmem:[#allocation4 + $0x230] sm:$0xff] %vm7657, %v7638
      %7673 = vst.msk [vmem:[#allocation4 + $0x258] sm:$0xff] %vm7657, %v7640
      %v7674 = vld [vmem:[#allocation3] sm:$0xf0]
      %v7675 = vld [vmem:[#allocation3 + $0x8] sm:$0x1f]
      %v7676 = vld [vmem:[#allocation3 + $0x10] sm:$0xf0]
      %v7677 = vld [vmem:[#allocation3 + $0x18] sm:$0x1f]
      %v7678 = vld [vmem:[#allocation3 + $0x20] sm:$0xf0]
      %v7679 = vld [vmem:[#allocation3 + $0x28] sm:$0x1f]
      %v7680 = vld [vmem:[#allocation3 + $0x30] sm:$0xf0]
      %v7681 = vld [vmem:[#allocation3 + $0x38] sm:$0x1f]
      %v7682 = vld [vmem:[#allocation3 + $0x40] sm:$0xf0]
      %v7683 = vld [vmem:[#allocation3 + $0x48] sm:$0x1f]
      %v7684 = vld [vmem:[#allocation3 + $0x50] sm:$0xf0]
      %v7685 = vld [vmem:[#allocation3 + $0x58] sm:$0x1f]
      %v7686 = vld [vmem:[#allocation3 + $0x60] sm:$0xf0]
      %v7687 = vld [vmem:[#allocation3 + $0x68] sm:$0x1f]
      %v7688 = vld [vmem:[#allocation3 + $0x70] sm:$0xf0]
      %v7689 = vld [vmem:[#allocation3 + $0x78] sm:$0x1f]
      %v7690 = vld [vmem:[#allocation3 + $0x80] sm:$0xf0]
      %v7691 = vld [vmem:[#allocation3 + $0x88] sm:$0x1f]
      %v7692 = vld [vmem:[#allocation3 + $0x90] sm:$0xf0]
      %v7693 = vld [vmem:[#allocation3 + $0x98] sm:$0x1f]
      %v7694 = vld [vmem:[#allocation3 + $0xa0] sm:$0xf0]
      %v7695 = vld [vmem:[#allocation3 + $0xa8] sm:$0x1f]
      %v7696 = vld [vmem:[#allocation3 + $0xb0] sm:$0xf0]
      %v7697 = vld [vmem:[#allocation3 + $0xb8] sm:$0x1f]
      %v7698 = vld [vmem:[#allocation3 + $0xc0] sm:$0xf0]
      %v7699 = vld [vmem:[#allocation3 + $0xc8] sm:$0x1f]
      %v7700 = vld [vmem:[#allocation3 + $0xd0] sm:$0xf0]
      %v7701 = vld [vmem:[#allocation3 + $0xd8] sm:$0x1f]
      %v7702 = vld [vmem:[#allocation3 + $0xe0] sm:$0xf0]
      %v7703 = vld [vmem:[#allocation3 + $0xe8] sm:$0x1f]
      %v7704 = vld [vmem:[#allocation3 + $0xf0] sm:$0xf0]
      %v7705 = vld [vmem:[#allocation3 + $0xf8] sm:$0x1f]
      %v7707 = vshrl.u32 %v7674, 16
      %v7709 = vrot.slane %v7707, 4
      %v7710 = vshll.u32 %v7674, 16
      %v7712 = vrot.slane %v7710, 5
      %v7713 = vor.u32 %v7709, %v7712
      %v7715 = vshrl.u32 %v7675, 16
      %v7717 = vrot.slane %v7715, 4
      %v7718 = vshll.u32 %v7675, 16
      %v7720 = vrot.slane %v7718, 5
      %v7721 = vor.u32 %v7717, %v7720
      %v7722 = vsel %vm989, %v7713, %v7721
      %v7724 = vshrl.u32 %v7676, 16
      %v7726 = vrot.slane %v7724, 4
      %v7727 = vshll.u32 %v7676, 16
      %v7729 = vrot.slane %v7727, 5
      %v7730 = vor.u32 %v7726, %v7729
      %v7732 = vshrl.u32 %v7677, 16
      %v7734 = vrot.slane %v7732, 4
      %v7735 = vshll.u32 %v7677, 16
      %v7737 = vrot.slane %v7735, 5
      %v7738 = vor.u32 %v7734, %v7737
      %v7739 = vsel %vm989, %v7730, %v7738
      %v7741 = vshrl.u32 %v7678, 16
      %v7743 = vrot.slane %v7741, 4
      %v7744 = vshll.u32 %v7678, 16
      %v7746 = vrot.slane %v7744, 5
      %v7747 = vor.u32 %v7743, %v7746
      %v7749 = vshrl.u32 %v7679, 16
      %v7751 = vrot.slane %v7749, 4
      %v7752 = vshll.u32 %v7679, 16
      %v7754 = vrot.slane %v7752, 5
      %v7755 = vor.u32 %v7751, %v7754
      %v7756 = vsel %vm989, %v7747, %v7755
      %v7758 = vshrl.u32 %v7680, 16
      %v7760 = vrot.slane %v7758, 4
      %v7761 = vshll.u32 %v7680, 16
      %v7763 = vrot.slane %v7761, 5
      %v7764 = vor.u32 %v7760, %v7763
      %v7766 = vshrl.u32 %v7681, 16
      %v7768 = vrot.slane %v7766, 4
      %v7769 = vshll.u32 %v7681, 16
      %v7771 = vrot.slane %v7769, 5
      %v7772 = vor.u32 %v7768, %v7771
      %v7773 = vsel %vm989, %v7764, %v7772
      %v7775 = vshrl.u32 %v7682, 16
      %v7777 = vrot.slane %v7775, 4
      %v7778 = vshll.u32 %v7682, 16
      %v7780 = vrot.slane %v7778, 5
      %v7781 = vor.u32 %v7777, %v7780
      %v7783 = vshrl.u32 %v7683, 16
      %v7785 = vrot.slane %v7783, 4
      %v7786 = vshll.u32 %v7683, 16
      %v7788 = vrot.slane %v7786, 5
      %v7789 = vor.u32 %v7785, %v7788
      %v7790 = vsel %vm989, %v7781, %v7789
      %v7792 = vshrl.u32 %v7684, 16
      %v7794 = vrot.slane %v7792, 4
      %v7795 = vshll.u32 %v7684, 16
      %v7797 = vrot.slane %v7795, 5
      %v7798 = vor.u32 %v7794, %v7797
      %v7800 = vshrl.u32 %v7685, 16
      %v7802 = vrot.slane %v7800, 4
      %v7803 = vshll.u32 %v7685, 16
      %v7805 = vrot.slane %v7803, 5
      %v7806 = vor.u32 %v7802, %v7805
      %v7807 = vsel %vm989, %v7798, %v7806
      %v7809 = vshrl.u32 %v7686, 16
      %v7811 = vrot.slane %v7809, 4
      %v7812 = vshll.u32 %v7686, 16
      %v7814 = vrot.slane %v7812, 5
      %v7815 = vor.u32 %v7811, %v7814
      %v7817 = vshrl.u32 %v7687, 16
      %v7819 = vrot.slane %v7817, 4
      %v7820 = vshll.u32 %v7687, 16
      %v7822 = vrot.slane %v7820, 5
      %v7823 = vor.u32 %v7819, %v7822
      %v7824 = vsel %vm989, %v7815, %v7823
      %v7826 = vshrl.u32 %v7688, 16
      %v7828 = vrot.slane %v7826, 4
      %v7829 = vshll.u32 %v7688, 16
      %v7831 = vrot.slane %v7829, 5
      %v7832 = vor.u32 %v7828, %v7831
      %v7834 = vshrl.u32 %v7689, 16
      %v7836 = vrot.slane %v7834, 4
      %v7837 = vshll.u32 %v7689, 16
      %v7839 = vrot.slane %v7837, 5
      %v7840 = vor.u32 %v7836, %v7839
      %v7841 = vsel %vm989, %v7832, %v7840
      %v7843 = vshrl.u32 %v7690, 16
      %v7845 = vrot.slane %v7843, 4
      %v7846 = vshll.u32 %v7690, 16
      %v7848 = vrot.slane %v7846, 5
      %v7849 = vor.u32 %v7845, %v7848
      %v7851 = vshrl.u32 %v7691, 16
      %v7853 = vrot.slane %v7851, 4
      %v7854 = vshll.u32 %v7691, 16
      %v7856 = vrot.slane %v7854, 5
      %v7857 = vor.u32 %v7853, %v7856
      %v7858 = vsel %vm989, %v7849, %v7857
      %v7860 = vshrl.u32 %v7692, 16
      %v7862 = vrot.slane %v7860, 4
      %v7863 = vshll.u32 %v7692, 16
      %v7865 = vrot.slane %v7863, 5
      %v7866 = vor.u32 %v7862, %v7865
      %v7868 = vshrl.u32 %v7693, 16
      %v7870 = vrot.slane %v7868, 4
      %v7871 = vshll.u32 %v7693, 16
      %v7873 = vrot.slane %v7871, 5
      %v7874 = vor.u32 %v7870, %v7873
      %v7875 = vsel %vm989, %v7866, %v7874
      %v7877 = vshrl.u32 %v7694, 16
      %v7879 = vrot.slane %v7877, 4
      %v7880 = vshll.u32 %v7694, 16
      %v7882 = vrot.slane %v7880, 5
      %v7883 = vor.u32 %v7879, %v7882
      %v7885 = vshrl.u32 %v7695, 16
      %v7887 = vrot.slane %v7885, 4
      %v7888 = vshll.u32 %v7695, 16
      %v7890 = vrot.slane %v7888, 5
      %v7891 = vor.u32 %v7887, %v7890
      %v7892 = vsel %vm989, %v7883, %v7891
      %v7894 = vshrl.u32 %v7696, 16
      %v7896 = vrot.slane %v7894, 4
      %v7897 = vshll.u32 %v7696, 16
      %v7899 = vrot.slane %v7897, 5
      %v7900 = vor.u32 %v7896, %v7899
      %v7902 = vshrl.u32 %v7697, 16
      %v7904 = vrot.slane %v7902, 4
      %v7905 = vshll.u32 %v7697, 16
      %v7907 = vrot.slane %v7905, 5
      %v7908 = vor.u32 %v7904, %v7907
      %v7909 = vsel %vm989, %v7900, %v7908
      %v7911 = vshrl.u32 %v7698, 16
      %v7913 = vrot.slane %v7911, 4
      %v7914 = vshll.u32 %v7698, 16
      %v7916 = vrot.slane %v7914, 5
      %v7917 = vor.u32 %v7913, %v7916
      %v7919 = vshrl.u32 %v7699, 16
      %v7921 = vrot.slane %v7919, 4
      %v7922 = vshll.u32 %v7699, 16
      %v7924 = vrot.slane %v7922, 5
      %v7925 = vor.u32 %v7921, %v7924
      %v7926 = vsel %vm989, %v7917, %v7925
      %v7928 = vshrl.u32 %v7700, 16
      %v7930 = vrot.slane %v7928, 4
      %v7931 = vshll.u32 %v7700, 16
      %v7933 = vrot.slane %v7931, 5
      %v7934 = vor.u32 %v7930, %v7933
      %v7936 = vshrl.u32 %v7701, 16
      %v7938 = vrot.slane %v7936, 4
      %v7939 = vshll.u32 %v7701, 16
      %v7941 = vrot.slane %v7939, 5
      %v7942 = vor.u32 %v7938, %v7941
      %v7943 = vsel %vm989, %v7934, %v7942
      %v7945 = vshrl.u32 %v7702, 16
      %v7947 = vrot.slane %v7945, 4
      %v7948 = vshll.u32 %v7702, 16
      %v7950 = vrot.slane %v7948, 5
      %v7951 = vor.u32 %v7947, %v7950
      %v7953 = vshrl.u32 %v7703, 16
      %v7955 = vrot.slane %v7953, 4
      %v7956 = vshll.u32 %v7703, 16
      %v7958 = vrot.slane %v7956, 5
      %v7959 = vor.u32 %v7955, %v7958
      %v7960 = vsel %vm989, %v7951, %v7959
      %v7962 = vshrl.u32 %v7704, 16
      %v7964 = vrot.slane %v7962, 4
      %v7965 = vshll.u32 %v7704, 16
      %v7967 = vrot.slane %v7965, 5
      %v7968 = vor.u32 %v7964, %v7967
      %v7970 = vshrl.u32 %v7705, 16
      %v7972 = vrot.slane %v7970, 4
      %v7973 = vshll.u32 %v7705, 16
      %v7975 = vrot.slane %v7973, 5
      %v7976 = vor.u32 %v7972, %v7975
      %v7977 = vsel %vm989, %v7968, %v7976
      %7994 = vst.msk [vmem:[#allocation4 + $0x8] sm:$0xff] %vm7480, %v7722
      %7995 = vst.msk [vmem:[#allocation4 + $0x30] sm:$0xff] %vm7480, %v7739
      %7996 = vst.msk [vmem:[#allocation4 + $0x58] sm:$0xff] %vm7480, %v7756
      %7997 = vst.msk [vmem:[#allocation4 + $0x80] sm:$0xff] %vm7480, %v7773
      %7998 = vst.msk [vmem:[#allocation4 + $0xa8] sm:$0xff] %vm7480, %v7790
      %7999 = vst.msk [vmem:[#allocation4 + $0xd0] sm:$0xff] %vm7480, %v7807
      %8000 = vst.msk [vmem:[#allocation4 + $0xf8] sm:$0xff] %vm7480, %v7824
      %8001 = vst.msk [vmem:[#allocation4 + $0x120] sm:$0xff] %vm7480, %v7841
      %8002 = vst.msk [vmem:[#allocation4 + $0x148] sm:$0xff] %vm7480, %v7858
      %8003 = vst.msk [vmem:[#allocation4 + $0x170] sm:$0xff] %vm7480, %v7875
      %8004 = vst.msk [vmem:[#allocation4 + $0x198] sm:$0xff] %vm7480, %v7892
      %8005 = vst.msk [vmem:[#allocation4 + $0x1c0] sm:$0xff] %vm7480, %v7909
      %8006 = vst.msk [vmem:[#allocation4 + $0x1e8] sm:$0xff] %vm7480, %v7926
      %8007 = vst.msk [vmem:[#allocation4 + $0x210] sm:$0xff] %vm7480, %v7943
      %8008 = vst.msk [vmem:[#allocation4 + $0x238] sm:$0xff] %vm7480, %v7960
      %8009 = vst.msk [vmem:[#allocation4 + $0x260] sm:$0xff] %vm7480, %v7977
      %v8010 = vld [vmem:[%s3504] sm:$0xf8]
      %v8011 = vld [vmem:[%s3504 + $0x8] sm:$0xf]
      %v8012 = vld [vmem:[%s3504 + $0x10] sm:$0xf8]
      %v8013 = vld [vmem:[%s3504 + $0x18] sm:$0xf]
      %v8014 = vld [vmem:[%s3504 + $0x20] sm:$0xf8]
      %v8015 = vld [vmem:[%s3504 + $0x28] sm:$0xf]
      %v8016 = vld [vmem:[%s3504 + $0x30] sm:$0xf8]
      %v8017 = vld [vmem:[%s3504 + $0x38] sm:$0xf]
      %v8018 = vld [vmem:[%s3504 + $0x40] sm:$0xf8]
      %v8019 = vld [vmem:[%s3504 + $0x48] sm:$0xf]
      %v8020 = vld [vmem:[%s3504 + $0x50] sm:$0xf8]
      %v8021 = vld [vmem:[%s3504 + $0x58] sm:$0xf]
      %v8022 = vld [vmem:[%s3504 + $0x60] sm:$0xf8]
      %v8023 = vld [vmem:[%s3504 + $0x68] sm:$0xf]
      %v8024 = vld [vmem:[%s3504 + $0x70] sm:$0xf8]
      %v8025 = vld [vmem:[%s3504 + $0x78] sm:$0xf]
      %v8026 = vld [vmem:[%s3504 + $0x80] sm:$0xf8]
      %v8027 = vld [vmem:[%s3504 + $0x88] sm:$0xf]
      %v8028 = vld [vmem:[%s3504 + $0x90] sm:$0xf8]
      %v8029 = vld [vmem:[%s3504 + $0x98] sm:$0xf]
      %v8030 = vld [vmem:[%s3504 + $0xa0] sm:$0xf8]
      %v8031 = vld [vmem:[%s3504 + $0xa8] sm:$0xf]
      %v8032 = vld [vmem:[%s3504 + $0xb0] sm:$0xf8]
      %v8033 = vld [vmem:[%s3504 + $0xb8] sm:$0xf]
      %v8034 = vld [vmem:[%s3504 + $0xc0] sm:$0xf8]
      %v8035 = vld [vmem:[%s3504 + $0xc8] sm:$0xf]
      %v8036 = vld [vmem:[%s3504 + $0xd0] sm:$0xf8]
      %v8037 = vld [vmem:[%s3504 + $0xd8] sm:$0xf]
      %v8038 = vld [vmem:[%s3504 + $0xe0] sm:$0xf8]
      %v8039 = vld [vmem:[%s3504 + $0xe8] sm:$0xf]
      %v8040 = vld [vmem:[%s3504 + $0xf0] sm:$0xf8]
      %v8041 = vld [vmem:[%s3504 + $0xf8] sm:$0xf]
      %v8043 = vshrl.u32 %v8010, 16
      %v8045 = vrot.slane %v8043, 3
      %v8046 = vshll.u32 %v8010, 16
      %v8048 = vrot.slane %v8046, 4
      %v8049 = vor.u32 %v8045, %v8048
      %v8051 = vshrl.u32 %v8011, 16
      %v8053 = vrot.slane %v8051, 3
      %v8054 = vshll.u32 %v8011, 16
      %v8056 = vrot.slane %v8054, 4
      %v8057 = vor.u32 %v8053, %v8056
      %v8058 = vsel %vm473, %v8049, %v8057
      %v8060 = vshrl.u32 %v8012, 16
      %v8062 = vrot.slane %v8060, 3
      %v8063 = vshll.u32 %v8012, 16
      %v8065 = vrot.slane %v8063, 4
      %v8066 = vor.u32 %v8062, %v8065
      %v8068 = vshrl.u32 %v8013, 16
      %v8070 = vrot.slane %v8068, 3
      %v8071 = vshll.u32 %v8013, 16
      %v8073 = vrot.slane %v8071, 4
      %v8074 = vor.u32 %v8070, %v8073
      %v8075 = vsel %vm473, %v8066, %v8074
      %v8077 = vshrl.u32 %v8014, 16
      %v8079 = vrot.slane %v8077, 3
      %v8080 = vshll.u32 %v8014, 16
      %v8082 = vrot.slane %v8080, 4
      %v8083 = vor.u32 %v8079, %v8082
      %v8085 = vshrl.u32 %v8015, 16
      %v8087 = vrot.slane %v8085, 3
      %v8088 = vshll.u32 %v8015, 16
      %v8090 = vrot.slane %v8088, 4
      %v8091 = vor.u32 %v8087, %v8090
      %v8092 = vsel %vm473, %v8083, %v8091
      %v8094 = vshrl.u32 %v8016, 16
      %v8096 = vrot.slane %v8094, 3
      %v8097 = vshll.u32 %v8016, 16
      %v8099 = vrot.slane %v8097, 4
      %v8100 = vor.u32 %v8096, %v8099
      %v8102 = vshrl.u32 %v8017, 16
      %v8104 = vrot.slane %v8102, 3
      %v8105 = vshll.u32 %v8017, 16
      %v8107 = vrot.slane %v8105, 4
      %v8108 = vor.u32 %v8104, %v8107
      %v8109 = vsel %vm473, %v8100, %v8108
      %v8111 = vshrl.u32 %v8018, 16
      %v8113 = vrot.slane %v8111, 3
      %v8114 = vshll.u32 %v8018, 16
      %v8116 = vrot.slane %v8114, 4
      %v8117 = vor.u32 %v8113, %v8116
      %v8119 = vshrl.u32 %v8019, 16
      %v8121 = vrot.slane %v8119, 3
      %v8122 = vshll.u32 %v8019, 16
      %v8124 = vrot.slane %v8122, 4
      %v8125 = vor.u32 %v8121, %v8124
      %v8126 = vsel %vm473, %v8117, %v8125
      %v8128 = vshrl.u32 %v8020, 16
      %v8130 = vrot.slane %v8128, 3
      %v8131 = vshll.u32 %v8020, 16
      %v8133 = vrot.slane %v8131, 4
      %v8134 = vor.u32 %v8130, %v8133
      %v8136 = vshrl.u32 %v8021, 16
      %v8138 = vrot.slane %v8136, 3
      %v8139 = vshll.u32 %v8021, 16
      %v8141 = vrot.slane %v8139, 4
      %v8142 = vor.u32 %v8138, %v8141
      %v8143 = vsel %vm473, %v8134, %v8142
      %v8145 = vshrl.u32 %v8022, 16
      %v8147 = vrot.slane %v8145, 3
      %v8148 = vshll.u32 %v8022, 16
      %v8150 = vrot.slane %v8148, 4
      %v8151 = vor.u32 %v8147, %v8150
      %v8153 = vshrl.u32 %v8023, 16
      %v8155 = vrot.slane %v8153, 3
      %v8156 = vshll.u32 %v8023, 16
      %v8158 = vrot.slane %v8156, 4
      %v8159 = vor.u32 %v8155, %v8158
      %v8160 = vsel %vm473, %v8151, %v8159
      %v8162 = vshrl.u32 %v8024, 16
      %v8164 = vrot.slane %v8162, 3
      %v8165 = vshll.u32 %v8024, 16
      %v8167 = vrot.slane %v8165, 4
      %v8168 = vor.u32 %v8164, %v8167
      %v8170 = vshrl.u32 %v8025, 16
      %v8172 = vrot.slane %v8170, 3
      %v8173 = vshll.u32 %v8025, 16
      %v8175 = vrot.slane %v8173, 4
      %v8176 = vor.u32 %v8172, %v8175
      %v8177 = vsel %vm473, %v8168, %v8176
      %v8179 = vshrl.u32 %v8026, 16
      %v8181 = vrot.slane %v8179, 3
      %v8182 = vshll.u32 %v8026, 16
      %v8184 = vrot.slane %v8182, 4
      %v8185 = vor.u32 %v8181, %v8184
      %v8187 = vshrl.u32 %v8027, 16
      %v8189 = vrot.slane %v8187, 3
      %v8190 = vshll.u32 %v8027, 16
      %v8192 = vrot.slane %v8190, 4
      %v8193 = vor.u32 %v8189, %v8192
      %v8194 = vsel %vm473, %v8185, %v8193
      %v8196 = vshrl.u32 %v8028, 16
      %v8198 = vrot.slane %v8196, 3
      %v8199 = vshll.u32 %v8028, 16
      %v8201 = vrot.slane %v8199, 4
      %v8202 = vor.u32 %v8198, %v8201
      %v8204 = vshrl.u32 %v8029, 16
      %v8206 = vrot.slane %v8204, 3
      %v8207 = vshll.u32 %v8029, 16
      %v8209 = vrot.slane %v8207, 4
      %v8210 = vor.u32 %v8206, %v8209
      %v8211 = vsel %vm473, %v8202, %v8210
      %v8213 = vshrl.u32 %v8030, 16
      %v8215 = vrot.slane %v8213, 3
      %v8216 = vshll.u32 %v8030, 16
      %v8218 = vrot.slane %v8216, 4
      %v8219 = vor.u32 %v8215, %v8218
      %v8221 = vshrl.u32 %v8031, 16
      %v8223 = vrot.slane %v8221, 3
      %v8224 = vshll.u32 %v8031, 16
      %v8226 = vrot.slane %v8224, 4
      %v8227 = vor.u32 %v8223, %v8226
      %v8228 = vsel %vm473, %v8219, %v8227
      %v8230 = vshrl.u32 %v8032, 16
      %v8232 = vrot.slane %v8230, 3
      %v8233 = vshll.u32 %v8032, 16
      %v8235 = vrot.slane %v8233, 4
      %v8236 = vor.u32 %v8232, %v8235
      %v8238 = vshrl.u32 %v8033, 16
      %v8240 = vrot.slane %v8238, 3
      %v8241 = vshll.u32 %v8033, 16
      %v8243 = vrot.slane %v8241, 4
      %v8244 = vor.u32 %v8240, %v8243
      %v8245 = vsel %vm473, %v8236, %v8244
      %v8247 = vshrl.u32 %v8034, 16
      %v8249 = vrot.slane %v8247, 3
      %v8250 = vshll.u32 %v8034, 16
      %v8252 = vrot.slane %v8250, 4
      %v8253 = vor.u32 %v8249, %v8252
      %v8255 = vshrl.u32 %v8035, 16
      %v8257 = vrot.slane %v8255, 3
      %v8258 = vshll.u32 %v8035, 16
      %v8260 = vrot.slane %v8258, 4
      %v8261 = vor.u32 %v8257, %v8260
      %v8262 = vsel %vm473, %v8253, %v8261
      %v8264 = vshrl.u32 %v8036, 16
      %v8266 = vrot.slane %v8264, 3
      %v8267 = vshll.u32 %v8036, 16
      %v8269 = vrot.slane %v8267, 4
      %v8270 = vor.u32 %v8266, %v8269
      %v8272 = vshrl.u32 %v8037, 16
      %v8274 = vrot.slane %v8272, 3
      %v8275 = vshll.u32 %v8037, 16
      %v8277 = vrot.slane %v8275, 4
      %v8278 = vor.u32 %v8274, %v8277
      %v8279 = vsel %vm473, %v8270, %v8278
      %v8281 = vshrl.u32 %v8038, 16
      %v8283 = vrot.slane %v8281, 3
      %v8284 = vshll.u32 %v8038, 16
      %v8286 = vrot.slane %v8284, 4
      %v8287 = vor.u32 %v8283, %v8286
      %v8289 = vshrl.u32 %v8039, 16
      %v8291 = vrot.slane %v8289, 3
      %v8292 = vshll.u32 %v8039, 16
      %v8294 = vrot.slane %v8292, 4
      %v8295 = vor.u32 %v8291, %v8294
      %v8296 = vsel %vm473, %v8287, %v8295
      %v8298 = vshrl.u32 %v8040, 16
      %v8300 = vrot.slane %v8298, 3
      %v8301 = vshll.u32 %v8040, 16
      %v8303 = vrot.slane %v8301, 4
      %v8304 = vor.u32 %v8300, %v8303
      %v8306 = vshrl.u32 %v8041, 16
      %v8308 = vrot.slane %v8306, 3
      %v8309 = vshll.u32 %v8041, 16
      %v8311 = vrot.slane %v8309, 4
      %v8312 = vor.u32 %v8308, %v8311
      %v8313 = vsel %vm473, %v8304, %v8312
      %8314 = vrot.lane.b32.xlu0 %v8058, 64
      %v8315 = vpop.permute.xlu0 %8314
      %8316 = vrot.lane.b32.xlu0 %v8075, 64
      %v8317 = vpop.permute.xlu0 %8316
      %8318 = vrot.lane.b32.xlu0 %v8092, 64
      %v8319 = vpop.permute.xlu0 %8318
      %8320 = vrot.lane.b32.xlu0 %v8109, 64
      %v8321 = vpop.permute.xlu0 %8320
      %8322 = vrot.lane.b32.xlu0 %v8126, 64
      %v8323 = vpop.permute.xlu0 %8322
      %8324 = vrot.lane.b32.xlu0 %v8143, 64
      %v8325 = vpop.permute.xlu0 %8324
      %8326 = vrot.lane.b32.xlu0 %v8160, 64
      %v8327 = vpop.permute.xlu0 %8326
      %8328 = vrot.lane.b32.xlu0 %v8177, 64
      %v8329 = vpop.permute.xlu0 %8328
      %8330 = vrot.lane.b32.xlu0 %v8194, 64
      %v8331 = vpop.permute.xlu0 %8330
      %8332 = vrot.lane.b32.xlu0 %v8211, 64
      %v8333 = vpop.permute.xlu0 %8332
      %8334 = vrot.lane.b32.xlu0 %v8228, 64
      %v8335 = vpop.permute.xlu0 %8334
      %8336 = vrot.lane.b32.xlu0 %v8245, 64
      %v8337 = vpop.permute.xlu0 %8336
      %8338 = vrot.lane.b32.xlu0 %v8262, 64
      %v8339 = vpop.permute.xlu0 %8338
      %8340 = vrot.lane.b32.xlu0 %v8279, 64
      %v8341 = vpop.permute.xlu0 %8340
      %8342 = vrot.lane.b32.xlu0 %v8296, 64
      %v8343 = vpop.permute.xlu0 %8342
      %8344 = vrot.lane.b32.xlu0 %v8313, 64
      %v8345 = vpop.permute.xlu0 %8344
      %8362 = vst.msk [vmem:[#allocation4 + $0x8] sm:$0xff] %vm7657, %v8315
      %8363 = vst.msk [vmem:[#allocation4 + $0x30] sm:$0xff] %vm7657, %v8317
      %8364 = vst.msk [vmem:[#allocation4 + $0x58] sm:$0xff] %vm7657, %v8319
      %8365 = vst.msk [vmem:[#allocation4 + $0x80] sm:$0xff] %vm7657, %v8321
      %8366 = vst.msk [vmem:[#allocation4 + $0xa8] sm:$0xff] %vm7657, %v8323
      %8367 = vst.msk [vmem:[#allocation4 + $0xd0] sm:$0xff] %vm7657, %v8325
      %8368 = vst.msk [vmem:[#allocation4 + $0xf8] sm:$0xff] %vm7657, %v8327
      %8369 = vst.msk [vmem:[#allocation4 + $0x120] sm:$0xff] %vm7657, %v8329
      %8370 = vst.msk [vmem:[#allocation4 + $0x148] sm:$0xff] %vm7657, %v8331
      %8371 = vst.msk [vmem:[#allocation4 + $0x170] sm:$0xff] %vm7657, %v8333
      %8372 = vst.msk [vmem:[#allocation4 + $0x198] sm:$0xff] %vm7657, %v8335
      %8373 = vst.msk [vmem:[#allocation4 + $0x1c0] sm:$0xff] %vm7657, %v8337
      %8374 = vst.msk [vmem:[#allocation4 + $0x1e8] sm:$0xff] %vm7657, %v8339
      %8375 = vst.msk [vmem:[#allocation4 + $0x210] sm:$0xff] %vm7657, %v8341
      %8376 = vst.msk [vmem:[#allocation4 + $0x238] sm:$0xff] %vm7657, %v8343
      %8377 = vst.msk [vmem:[#allocation4 + $0x260] sm:$0xff] %vm7657, %v8345
      %v8378 = vld [vmem:[%s3504] sm:$0xf0]
      %v8379 = vld [vmem:[%s3504 + $0x8] sm:$0xf]
      %v8380 = vld [vmem:[%s3504 + $0x10] sm:$0xf0]
      %v8381 = vld [vmem:[%s3504 + $0x18] sm:$0xf]
      %v8382 = vld [vmem:[%s3504 + $0x20] sm:$0xf0]
      %v8383 = vld [vmem:[%s3504 + $0x28] sm:$0xf]
      %v8384 = vld [vmem:[%s3504 + $0x30] sm:$0xf0]
      %v8385 = vld [vmem:[%s3504 + $0x38] sm:$0xf]
      %v8386 = vld [vmem:[%s3504 + $0x40] sm:$0xf0]
      %v8387 = vld [vmem:[%s3504 + $0x48] sm:$0xf]
      %v8388 = vld [vmem:[%s3504 + $0x50] sm:$0xf0]
      %v8389 = vld [vmem:[%s3504 + $0x58] sm:$0xf]
      %v8390 = vld [vmem:[%s3504 + $0x60] sm:$0xf0]
      %v8391 = vld [vmem:[%s3504 + $0x68] sm:$0xf]
      %v8392 = vld [vmem:[%s3504 + $0x70] sm:$0xf0]
      %v8393 = vld [vmem:[%s3504 + $0x78] sm:$0xf]
      %v8394 = vld [vmem:[%s3504 + $0x80] sm:$0xf0]
      %v8395 = vld [vmem:[%s3504 + $0x88] sm:$0xf]
      %v8396 = vld [vmem:[%s3504 + $0x90] sm:$0xf0]
      %v8397 = vld [vmem:[%s3504 + $0x98] sm:$0xf]
      %v8398 = vld [vmem:[%s3504 + $0xa0] sm:$0xf0]
      %v8399 = vld [vmem:[%s3504 + $0xa8] sm:$0xf]
      %v8400 = vld [vmem:[%s3504 + $0xb0] sm:$0xf0]
      %v8401 = vld [vmem:[%s3504 + $0xb8] sm:$0xf]
      %v8402 = vld [vmem:[%s3504 + $0xc0] sm:$0xf0]
      %v8403 = vld [vmem:[%s3504 + $0xc8] sm:$0xf]
      %v8404 = vld [vmem:[%s3504 + $0xd0] sm:$0xf0]
      %v8405 = vld [vmem:[%s3504 + $0xd8] sm:$0xf]
      %v8406 = vld [vmem:[%s3504 + $0xe0] sm:$0xf0]
      %v8407 = vld [vmem:[%s3504 + $0xe8] sm:$0xf]
      %v8408 = vld [vmem:[%s3504 + $0xf0] sm:$0xf0]
      %v8409 = vld [vmem:[%s3504 + $0xf8] sm:$0xf]
      %v8442 = vrot.slane %v8378, 4
      %v8443 = vrot.slane %v8379, 4
      %v8444 = vsel %vm843, %v8442, %v8443
      %v8445 = vrot.slane %v8380, 4
      %v8446 = vrot.slane %v8381, 4
      %v8447 = vsel %vm843, %v8445, %v8446
      %v8448 = vrot.slane %v8382, 4
      %v8449 = vrot.slane %v8383, 4
      %v8450 = vsel %vm843, %v8448, %v8449
      %v8451 = vrot.slane %v8384, 4
      %v8452 = vrot.slane %v8385, 4
      %v8453 = vsel %vm843, %v8451, %v8452
      %v8454 = vrot.slane %v8386, 4
      %v8455 = vrot.slane %v8387, 4
      %v8456 = vsel %vm843, %v8454, %v8455
      %v8457 = vrot.slane %v8388, 4
      %v8458 = vrot.slane %v8389, 4
      %v8459 = vsel %vm843, %v8457, %v8458
      %v8460 = vrot.slane %v8390, 4
      %v8461 = vrot.slane %v8391, 4
      %v8462 = vsel %vm843, %v8460, %v8461
      %v8463 = vrot.slane %v8392, 4
      %v8464 = vrot.slane %v8393, 4
      %v8465 = vsel %vm843, %v8463, %v8464
      %v8466 = vrot.slane %v8394, 4
      %v8467 = vrot.slane %v8395, 4
      %v8468 = vsel %vm843, %v8466, %v8467
      %v8469 = vrot.slane %v8396, 4
      %v8470 = vrot.slane %v8397, 4
      %v8471 = vsel %vm843, %v8469, %v8470
      %v8472 = vrot.slane %v8398, 4
      %v8473 = vrot.slane %v8399, 4
      %v8474 = vsel %vm843, %v8472, %v8473
      %v8475 = vrot.slane %v8400, 4
      %v8476 = vrot.slane %v8401, 4
      %v8477 = vsel %vm843, %v8475, %v8476
      %v8478 = vrot.slane %v8402, 4
      %v8479 = vrot.slane %v8403, 4
      %v8480 = vsel %vm843, %v8478, %v8479
      %v8481 = vrot.slane %v8404, 4
      %v8482 = vrot.slane %v8405, 4
      %v8483 = vsel %vm843, %v8481, %v8482
      %v8484 = vrot.slane %v8406, 4
      %v8485 = vrot.slane %v8407, 4
      %v8486 = vsel %vm843, %v8484, %v8485
      %v8487 = vrot.slane %v8408, 4
      %v8488 = vrot.slane %v8409, 4
      %v8489 = vsel %vm843, %v8487, %v8488
      %8506 = vst.msk [vmem:[#allocation4 + $0x10] sm:$0xff] %vm7480, %v8444
      %8507 = vst.msk [vmem:[#allocation4 + $0x38] sm:$0xff] %vm7480, %v8447
      %8508 = vst.msk [vmem:[#allocation4 + $0x60] sm:$0xff] %vm7480, %v8450
      %8509 = vst.msk [vmem:[#allocation4 + $0x88] sm:$0xff] %vm7480, %v8453
      %8510 = vst.msk [vmem:[#allocation4 + $0xb0] sm:$0xff] %vm7480, %v8456
      %8511 = vst.msk [vmem:[#allocation4 + $0xd8] sm:$0xff] %vm7480, %v8459
      %8512 = vst.msk [vmem:[#allocation4 + $0x100] sm:$0xff] %vm7480, %v8462
      %8513 = vst.msk [vmem:[#allocation4 + $0x128] sm:$0xff] %vm7480, %v8465
      %8514 = vst.msk [vmem:[#allocation4 + $0x150] sm:$0xff] %vm7480, %v8468
      %8515 = vst.msk [vmem:[#allocation4 + $0x178] sm:$0xff] %vm7480, %v8471
      %8516 = vst.msk [vmem:[#allocation4 + $0x1a0] sm:$0xff] %vm7480, %v8474
      %8517 = vst.msk [vmem:[#allocation4 + $0x1c8] sm:$0xff] %vm7480, %v8477
      %8518 = vst.msk [vmem:[#allocation4 + $0x1f0] sm:$0xff] %vm7480, %v8480
      %8519 = vst.msk [vmem:[#allocation4 + $0x218] sm:$0xff] %vm7480, %v8483
      %8520 = vst.msk [vmem:[#allocation4 + $0x240] sm:$0xff] %vm7480, %v8486
      %8521 = vst.msk [vmem:[#allocation4 + $0x268] sm:$0xff] %vm7480, %v8489
      %v8522 = vld [vmem:[%s3504] sm:$0xf0]
      %v8523 = vld [vmem:[%s3504 + $0x8] sm:$0x1f]
      %v8524 = vld [vmem:[%s3504 + $0x10] sm:$0xf0]
      %v8525 = vld [vmem:[%s3504 + $0x18] sm:$0x1f]
      %v8526 = vld [vmem:[%s3504 + $0x20] sm:$0xf0]
      %v8527 = vld [vmem:[%s3504 + $0x28] sm:$0x1f]
      %v8528 = vld [vmem:[%s3504 + $0x30] sm:$0xf0]
      %v8529 = vld [vmem:[%s3504 + $0x38] sm:$0x1f]
      %v8530 = vld [vmem:[%s3504 + $0x40] sm:$0xf0]
      %v8531 = vld [vmem:[%s3504 + $0x48] sm:$0x1f]
      %v8532 = vld [vmem:[%s3504 + $0x50] sm:$0xf0]
      %v8533 = vld [vmem:[%s3504 + $0x58] sm:$0x1f]
      %v8534 = vld [vmem:[%s3504 + $0x60] sm:$0xf0]
      %v8535 = vld [vmem:[%s3504 + $0x68] sm:$0x1f]
      %v8536 = vld [vmem:[%s3504 + $0x70] sm:$0xf0]
      %v8537 = vld [vmem:[%s3504 + $0x78] sm:$0x1f]
      %v8538 = vld [vmem:[%s3504 + $0x80] sm:$0xf0]
      %v8539 = vld [vmem:[%s3504 + $0x88] sm:$0x1f]
      %v8540 = vld [vmem:[%s3504 + $0x90] sm:$0xf0]
      %v8541 = vld [vmem:[%s3504 + $0x98] sm:$0x1f]
      %v8542 = vld [vmem:[%s3504 + $0xa0] sm:$0xf0]
      %v8543 = vld [vmem:[%s3504 + $0xa8] sm:$0x1f]
      %v8544 = vld [vmem:[%s3504 + $0xb0] sm:$0xf0]
      %v8545 = vld [vmem:[%s3504 + $0xb8] sm:$0x1f]
      %v8546 = vld [vmem:[%s3504 + $0xc0] sm:$0xf0]
      %v8547 = vld [vmem:[%s3504 + $0xc8] sm:$0x1f]
      %v8548 = vld [vmem:[%s3504 + $0xd0] sm:$0xf0]
      %v8549 = vld [vmem:[%s3504 + $0xd8] sm:$0x1f]
      %v8550 = vld [vmem:[%s3504 + $0xe0] sm:$0xf0]
      %v8551 = vld [vmem:[%s3504 + $0xe8] sm:$0x1f]
      %v8552 = vld [vmem:[%s3504 + $0xf0] sm:$0xf0]
      %v8553 = vld [vmem:[%s3504 + $0xf8] sm:$0x1f]
      %v8555 = vshrl.u32 %v8522, 16
      %v8557 = vrot.slane %v8555, 4
      %v8558 = vshll.u32 %v8522, 16
      %v8560 = vrot.slane %v8558, 5
      %v8561 = vor.u32 %v8557, %v8560
      %v8563 = vshrl.u32 %v8523, 16
      %v8565 = vrot.slane %v8563, 4
      %v8566 = vshll.u32 %v8523, 16
      %v8568 = vrot.slane %v8566, 5
      %v8569 = vor.u32 %v8565, %v8568
      %v8570 = vsel %vm989, %v8561, %v8569
      %v8572 = vshrl.u32 %v8524, 16
      %v8574 = vrot.slane %v8572, 4
      %v8575 = vshll.u32 %v8524, 16
      %v8577 = vrot.slane %v8575, 5
      %v8578 = vor.u32 %v8574, %v8577
      %v8580 = vshrl.u32 %v8525, 16
      %v8582 = vrot.slane %v8580, 4
      %v8583 = vshll.u32 %v8525, 16
      %v8585 = vrot.slane %v8583, 5
      %v8586 = vor.u32 %v8582, %v8585
      %v8587 = vsel %vm989, %v8578, %v8586
      %v8589 = vshrl.u32 %v8526, 16
      %v8591 = vrot.slane %v8589, 4
      %v8592 = vshll.u32 %v8526, 16
      %v8594 = vrot.slane %v8592, 5
      %v8595 = vor.u32 %v8591, %v8594
      %v8597 = vshrl.u32 %v8527, 16
      %v8599 = vrot.slane %v8597, 4
      %v8600 = vshll.u32 %v8527, 16
      %v8602 = vrot.slane %v8600, 5
      %v8603 = vor.u32 %v8599, %v8602
      %v8604 = vsel %vm989, %v8595, %v8603
      %v8606 = vshrl.u32 %v8528, 16
      %v8608 = vrot.slane %v8606, 4
      %v8609 = vshll.u32 %v8528, 16
      %v8611 = vrot.slane %v8609, 5
      %v8612 = vor.u32 %v8608, %v8611
      %v8614 = vshrl.u32 %v8529, 16
      %v8616 = vrot.slane %v8614, 4
      %v8617 = vshll.u32 %v8529, 16
      %v8619 = vrot.slane %v8617, 5
      %v8620 = vor.u32 %v8616, %v8619
      %v8621 = vsel %vm989, %v8612, %v8620
      %v8623 = vshrl.u32 %v8530, 16
      %v8625 = vrot.slane %v8623, 4
      %v8626 = vshll.u32 %v8530, 16
      %v8628 = vrot.slane %v8626, 5
      %v8629 = vor.u32 %v8625, %v8628
      %v8631 = vshrl.u32 %v8531, 16
      %v8633 = vrot.slane %v8631, 4
      %v8634 = vshll.u32 %v8531, 16
      %v8636 = vrot.slane %v8634, 5
      %v8637 = vor.u32 %v8633, %v8636
      %v8638 = vsel %vm989, %v8629, %v8637
      %v8640 = vshrl.u32 %v8532, 16
      %v8642 = vrot.slane %v8640, 4
      %v8643 = vshll.u32 %v8532, 16
      %v8645 = vrot.slane %v8643, 5
      %v8646 = vor.u32 %v8642, %v8645
      %v8648 = vshrl.u32 %v8533, 16
      %v8650 = vrot.slane %v8648, 4
      %v8651 = vshll.u32 %v8533, 16
      %v8653 = vrot.slane %v8651, 5
      %v8654 = vor.u32 %v8650, %v8653
      %v8655 = vsel %vm989, %v8646, %v8654
      %v8657 = vshrl.u32 %v8534, 16
      %v8659 = vrot.slane %v8657, 4
      %v8660 = vshll.u32 %v8534, 16
      %v8662 = vrot.slane %v8660, 5
      %v8663 = vor.u32 %v8659, %v8662
      %v8665 = vshrl.u32 %v8535, 16
      %v8667 = vrot.slane %v8665, 4
      %v8668 = vshll.u32 %v8535, 16
      %v8670 = vrot.slane %v8668, 5
      %v8671 = vor.u32 %v8667, %v8670
      %v8672 = vsel %vm989, %v8663, %v8671
      %v8674 = vshrl.u32 %v8536, 16
      %v8676 = vrot.slane %v8674, 4
      %v8677 = vshll.u32 %v8536, 16
      %v8679 = vrot.slane %v8677, 5
      %v8680 = vor.u32 %v8676, %v8679
      %v8682 = vshrl.u32 %v8537, 16
      %v8684 = vrot.slane %v8682, 4
      %v8685 = vshll.u32 %v8537, 16
      %v8687 = vrot.slane %v8685, 5
      %v8688 = vor.u32 %v8684, %v8687
      %v8689 = vsel %vm989, %v8680, %v8688
      %v8691 = vshrl.u32 %v8538, 16
      %v8693 = vrot.slane %v8691, 4
      %v8694 = vshll.u32 %v8538, 16
      %v8696 = vrot.slane %v8694, 5
      %v8697 = vor.u32 %v8693, %v8696
      %v8699 = vshrl.u32 %v8539, 16
      %v8701 = vrot.slane %v8699, 4
      %v8702 = vshll.u32 %v8539, 16
      %v8704 = vrot.slane %v8702, 5
      %v8705 = vor.u32 %v8701, %v8704
      %v8706 = vsel %vm989, %v8697, %v8705
      %v8708 = vshrl.u32 %v8540, 16
      %v8710 = vrot.slane %v8708, 4
      %v8711 = vshll.u32 %v8540, 16
      %v8713 = vrot.slane %v8711, 5
      %v8714 = vor.u32 %v8710, %v8713
      %v8716 = vshrl.u32 %v8541, 16
      %v8718 = vrot.slane %v8716, 4
      %v8719 = vshll.u32 %v8541, 16
      %v8721 = vrot.slane %v8719, 5
      %v8722 = vor.u32 %v8718, %v8721
      %v8723 = vsel %vm989, %v8714, %v8722
      %v8725 = vshrl.u32 %v8542, 16
      %v8727 = vrot.slane %v8725, 4
      %v8728 = vshll.u32 %v8542, 16
      %v8730 = vrot.slane %v8728, 5
      %v8731 = vor.u32 %v8727, %v8730
      %v8733 = vshrl.u32 %v8543, 16
      %v8735 = vrot.slane %v8733, 4
      %v8736 = vshll.u32 %v8543, 16
      %v8738 = vrot.slane %v8736, 5
      %v8739 = vor.u32 %v8735, %v8738
      %v8740 = vsel %vm989, %v8731, %v8739
      %v8742 = vshrl.u32 %v8544, 16
      %v8744 = vrot.slane %v8742, 4
      %v8745 = vshll.u32 %v8544, 16
      %v8747 = vrot.slane %v8745, 5
      %v8748 = vor.u32 %v8744, %v8747
      %v8750 = vshrl.u32 %v8545, 16
      %v8752 = vrot.slane %v8750, 4
      %v8753 = vshll.u32 %v8545, 16
      %v8755 = vrot.slane %v8753, 5
      %v8756 = vor.u32 %v8752, %v8755
      %v8757 = vsel %vm989, %v8748, %v8756
      %v8759 = vshrl.u32 %v8546, 16
      %v8761 = vrot.slane %v8759, 4
      %v8762 = vshll.u32 %v8546, 16
      %v8764 = vrot.slane %v8762, 5
      %v8765 = vor.u32 %v8761, %v8764
      %v8767 = vshrl.u32 %v8547, 16
      %v8769 = vrot.slane %v8767, 4
      %v8770 = vshll.u32 %v8547, 16
      %v8772 = vrot.slane %v8770, 5
      %v8773 = vor.u32 %v8769, %v8772
      %v8774 = vsel %vm989, %v8765, %v8773
      %v8776 = vshrl.u32 %v8548, 16
      %v8778 = vrot.slane %v8776, 4
      %v8779 = vshll.u32 %v8548, 16
      %v8781 = vrot.slane %v8779, 5
      %v8782 = vor.u32 %v8778, %v8781
      %v8784 = vshrl.u32 %v8549, 16
      %v8786 = vrot.slane %v8784, 4
      %v8787 = vshll.u32 %v8549, 16
      %v8789 = vrot.slane %v8787, 5
      %v8790 = vor.u32 %v8786, %v8789
      %v8791 = vsel %vm989, %v8782, %v8790
      %v8793 = vshrl.u32 %v8550, 16
      %v8795 = vrot.slane %v8793, 4
      %v8796 = vshll.u32 %v8550, 16
      %v8798 = vrot.slane %v8796, 5
      %v8799 = vor.u32 %v8795, %v8798
      %v8801 = vshrl.u32 %v8551, 16
      %v8803 = vrot.slane %v8801, 4
      %v8804 = vshll.u32 %v8551, 16
      %v8806 = vrot.slane %v8804, 5
      %v8807 = vor.u32 %v8803, %v8806
      %v8808 = vsel %vm989, %v8799, %v8807
      %v8810 = vshrl.u32 %v8552, 16
      %v8812 = vrot.slane %v8810, 4
      %v8813 = vshll.u32 %v8552, 16
      %v8815 = vrot.slane %v8813, 5
      %v8816 = vor.u32 %v8812, %v8815
      %v8818 = vshrl.u32 %v8553, 16
      %v8820 = vrot.slane %v8818, 4
      %v8821 = vshll.u32 %v8553, 16
      %v8823 = vrot.slane %v8821, 5
      %v8824 = vor.u32 %v8820, %v8823
      %v8825 = vsel %vm989, %v8816, %v8824
      %8826 = vrot.lane.b32.xlu0 %v8570, 64
      %v8827 = vpop.permute.xlu0 %8826
      %8828 = vrot.lane.b32.xlu0 %v8587, 64
      %v8829 = vpop.permute.xlu0 %8828
      %8830 = vrot.lane.b32.xlu0 %v8604, 64
      %v8831 = vpop.permute.xlu0 %8830
      %8832 = vrot.lane.b32.xlu0 %v8621, 64
      %v8833 = vpop.permute.xlu0 %8832
      %8834 = vrot.lane.b32.xlu0 %v8638, 64
      %v8835 = vpop.permute.xlu0 %8834
      %8836 = vrot.lane.b32.xlu0 %v8655, 64
      %v8837 = vpop.permute.xlu0 %8836
      %8838 = vrot.lane.b32.xlu0 %v8672, 64
      %v8839 = vpop.permute.xlu0 %8838
      %8840 = vrot.lane.b32.xlu0 %v8689, 64
      %v8841 = vpop.permute.xlu0 %8840
      %8842 = vrot.lane.b32.xlu0 %v8706, 64
      %v8843 = vpop.permute.xlu0 %8842
      %8844 = vrot.lane.b32.xlu0 %v8723, 64
      %v8845 = vpop.permute.xlu0 %8844
      %8846 = vrot.lane.b32.xlu0 %v8740, 64
      %v8847 = vpop.permute.xlu0 %8846
      %8848 = vrot.lane.b32.xlu0 %v8757, 64
      %v8849 = vpop.permute.xlu0 %8848
      %8850 = vrot.lane.b32.xlu0 %v8774, 64
      %v8851 = vpop.permute.xlu0 %8850
      %8852 = vrot.lane.b32.xlu0 %v8791, 64
      %v8853 = vpop.permute.xlu0 %8852
      %8854 = vrot.lane.b32.xlu0 %v8808, 64
      %v8855 = vpop.permute.xlu0 %8854
      %8856 = vrot.lane.b32.xlu0 %v8825, 64
      %v8857 = vpop.permute.xlu0 %8856
      %8874 = vst.msk [vmem:[#allocation4 + $0x10] sm:$0xff] %vm7657, %v8827
      %8875 = vst.msk [vmem:[#allocation4 + $0x38] sm:$0xff] %vm7657, %v8829
      %8876 = vst.msk [vmem:[#allocation4 + $0x60] sm:$0xff] %vm7657, %v8831
      %8877 = vst.msk [vmem:[#allocation4 + $0x88] sm:$0xff] %vm7657, %v8833
      %8878 = vst.msk [vmem:[#allocation4 + $0xb0] sm:$0xff] %vm7657, %v8835
      %8879 = vst.msk [vmem:[#allocation4 + $0xd8] sm:$0xff] %vm7657, %v8837
      %8880 = vst.msk [vmem:[#allocation4 + $0x100] sm:$0xff] %vm7657, %v8839
      %8881 = vst.msk [vmem:[#allocation4 + $0x128] sm:$0xff] %vm7657, %v8841
      %8882 = vst.msk [vmem:[#allocation4 + $0x150] sm:$0xff] %vm7657, %v8843
      %8883 = vst.msk [vmem:[#allocation4 + $0x178] sm:$0xff] %vm7657, %v8845
      %8884 = vst.msk [vmem:[#allocation4 + $0x1a0] sm:$0xff] %vm7657, %v8847
      %8885 = vst.msk [vmem:[#allocation4 + $0x1c8] sm:$0xff] %vm7657, %v8849
      %8886 = vst.msk [vmem:[#allocation4 + $0x1f0] sm:$0xff] %vm7657, %v8851
      %8887 = vst.msk [vmem:[#allocation4 + $0x218] sm:$0xff] %vm7657, %v8853
      %8888 = vst.msk [vmem:[#allocation4 + $0x240] sm:$0xff] %vm7657, %v8855
      %8889 = vst.msk [vmem:[#allocation4 + $0x268] sm:$0xff] %vm7657, %v8857
      %s8890 = scalar_lea.vmem [#allocation3], 32
      %v8891 = vld [vmem:[%s8890] sm:$0xf8]
      %v8892 = vld [vmem:[%s8890 + $0x8] sm:$0xf]
      %v8893 = vld [vmem:[%s8890 + $0x10] sm:$0xf8]
      %v8894 = vld [vmem:[%s8890 + $0x18] sm:$0xf]
      %v8895 = vld [vmem:[%s8890 + $0x20] sm:$0xf8]
      %v8896 = vld [vmem:[%s8890 + $0x28] sm:$0xf]
      %v8897 = vld [vmem:[%s8890 + $0x30] sm:$0xf8]
      %v8898 = vld [vmem:[%s8890 + $0x38] sm:$0xf]
      %v8899 = vld [vmem:[%s8890 + $0x40] sm:$0xf8]
      %v8900 = vld [vmem:[%s8890 + $0x48] sm:$0xf]
      %v8901 = vld [vmem:[%s8890 + $0x50] sm:$0xf8]
      %v8902 = vld [vmem:[%s8890 + $0x58] sm:$0xf]
      %v8903 = vld [vmem:[%s8890 + $0x60] sm:$0xf8]
      %v8904 = vld [vmem:[%s8890 + $0x68] sm:$0xf]
      %v8905 = vld [vmem:[%s8890 + $0x70] sm:$0xf8]
      %v8906 = vld [vmem:[%s8890 + $0x78] sm:$0xf]
      %v8907 = vld [vmem:[%s8890 + $0x80] sm:$0xf8]
      %v8908 = vld [vmem:[%s8890 + $0x88] sm:$0xf]
      %v8909 = vld [vmem:[%s8890 + $0x90] sm:$0xf8]
      %v8910 = vld [vmem:[%s8890 + $0x98] sm:$0xf]
      %v8911 = vld [vmem:[%s8890 + $0xa0] sm:$0xf8]
      %v8912 = vld [vmem:[%s8890 + $0xa8] sm:$0xf]
      %v8913 = vld [vmem:[%s8890 + $0xb0] sm:$0xf8]
      %v8914 = vld [vmem:[%s8890 + $0xb8] sm:$0xf]
      %v8915 = vld [vmem:[%s8890 + $0xc0] sm:$0xf8]
      %v8916 = vld [vmem:[%s8890 + $0xc8] sm:$0xf]
      %v8917 = vld [vmem:[%s8890 + $0xd0] sm:$0xf8]
      %v8918 = vld [vmem:[%s8890 + $0xd8] sm:$0xf]
      %v8919 = vld [vmem:[%s8890 + $0xe0] sm:$0xf8]
      %v8920 = vld [vmem:[%s8890 + $0xe8] sm:$0xf]
      %v8921 = vld [vmem:[%s8890 + $0xf0] sm:$0xf8]
      %v8922 = vld [vmem:[%s8890 + $0xf8] sm:$0xf]
      %v8924 = vshrl.u32 %v8891, 16
      %v8926 = vrot.slane %v8924, 3
      %v8927 = vshll.u32 %v8891, 16
      %v8929 = vrot.slane %v8927, 4
      %v8930 = vor.u32 %v8926, %v8929
      %v8932 = vshrl.u32 %v8892, 16
      %v8934 = vrot.slane %v8932, 3
      %v8935 = vshll.u32 %v8892, 16
      %v8937 = vrot.slane %v8935, 4
      %v8938 = vor.u32 %v8934, %v8937
      %v8939 = vsel %vm473, %v8930, %v8938
      %v8941 = vshrl.u32 %v8893, 16
      %v8943 = vrot.slane %v8941, 3
      %v8944 = vshll.u32 %v8893, 16
      %v8946 = vrot.slane %v8944, 4
      %v8947 = vor.u32 %v8943, %v8946
      %v8949 = vshrl.u32 %v8894, 16
      %v8951 = vrot.slane %v8949, 3
      %v8952 = vshll.u32 %v8894, 16
      %v8954 = vrot.slane %v8952, 4
      %v8955 = vor.u32 %v8951, %v8954
      %v8956 = vsel %vm473, %v8947, %v8955
      %v8958 = vshrl.u32 %v8895, 16
      %v8960 = vrot.slane %v8958, 3
      %v8961 = vshll.u32 %v8895, 16
      %v8963 = vrot.slane %v8961, 4
      %v8964 = vor.u32 %v8960, %v8963
      %v8966 = vshrl.u32 %v8896, 16
      %v8968 = vrot.slane %v8966, 3
      %v8969 = vshll.u32 %v8896, 16
      %v8971 = vrot.slane %v8969, 4
      %v8972 = vor.u32 %v8968, %v8971
      %v8973 = vsel %vm473, %v8964, %v8972
      %v8975 = vshrl.u32 %v8897, 16
      %v8977 = vrot.slane %v8975, 3
      %v8978 = vshll.u32 %v8897, 16
      %v8980 = vrot.slane %v8978, 4
      %v8981 = vor.u32 %v8977, %v8980
      %v8983 = vshrl.u32 %v8898, 16
      %v8985 = vrot.slane %v8983, 3
      %v8986 = vshll.u32 %v8898, 16
      %v8988 = vrot.slane %v8986, 4
      %v8989 = vor.u32 %v8985, %v8988
      %v8990 = vsel %vm473, %v8981, %v8989
      %v8992 = vshrl.u32 %v8899, 16
      %v8994 = vrot.slane %v8992, 3
      %v8995 = vshll.u32 %v8899, 16
      %v8997 = vrot.slane %v8995, 4
      %v8998 = vor.u32 %v8994, %v8997
      %v9000 = vshrl.u32 %v8900, 16
      %v9002 = vrot.slane %v9000, 3
      %v9003 = vshll.u32 %v8900, 16
      %v9005 = vrot.slane %v9003, 4
      %v9006 = vor.u32 %v9002, %v9005
      %v9007 = vsel %vm473, %v8998, %v9006
      %v9009 = vshrl.u32 %v8901, 16
      %v9011 = vrot.slane %v9009, 3
      %v9012 = vshll.u32 %v8901, 16
      %v9014 = vrot.slane %v9012, 4
      %v9015 = vor.u32 %v9011, %v9014
      %v9017 = vshrl.u32 %v8902, 16
      %v9019 = vrot.slane %v9017, 3
      %v9020 = vshll.u32 %v8902, 16
      %v9022 = vrot.slane %v9020, 4
      %v9023 = vor.u32 %v9019, %v9022
      %v9024 = vsel %vm473, %v9015, %v9023
      %v9026 = vshrl.u32 %v8903, 16
      %v9028 = vrot.slane %v9026, 3
      %v9029 = vshll.u32 %v8903, 16
      %v9031 = vrot.slane %v9029, 4
      %v9032 = vor.u32 %v9028, %v9031
      %v9034 = vshrl.u32 %v8904, 16
      %v9036 = vrot.slane %v9034, 3
      %v9037 = vshll.u32 %v8904, 16
      %v9039 = vrot.slane %v9037, 4
      %v9040 = vor.u32 %v9036, %v9039
      %v9041 = vsel %vm473, %v9032, %v9040
      %v9043 = vshrl.u32 %v8905, 16
      %v9045 = vrot.slane %v9043, 3
      %v9046 = vshll.u32 %v8905, 16
      %v9048 = vrot.slane %v9046, 4
      %v9049 = vor.u32 %v9045, %v9048
      %v9051 = vshrl.u32 %v8906, 16
      %v9053 = vrot.slane %v9051, 3
      %v9054 = vshll.u32 %v8906, 16
      %v9056 = vrot.slane %v9054, 4
      %v9057 = vor.u32 %v9053, %v9056
      %v9058 = vsel %vm473, %v9049, %v9057
      %v9060 = vshrl.u32 %v8907, 16
      %v9062 = vrot.slane %v9060, 3
      %v9063 = vshll.u32 %v8907, 16
      %v9065 = vrot.slane %v9063, 4
      %v9066 = vor.u32 %v9062, %v9065
      %v9068 = vshrl.u32 %v8908, 16
      %v9070 = vrot.slane %v9068, 3
      %v9071 = vshll.u32 %v8908, 16
      %v9073 = vrot.slane %v9071, 4
      %v9074 = vor.u32 %v9070, %v9073
      %v9075 = vsel %vm473, %v9066, %v9074
      %v9077 = vshrl.u32 %v8909, 16
      %v9079 = vrot.slane %v9077, 3
      %v9080 = vshll.u32 %v8909, 16
      %v9082 = vrot.slane %v9080, 4
      %v9083 = vor.u32 %v9079, %v9082
      %v9085 = vshrl.u32 %v8910, 16
      %v9087 = vrot.slane %v9085, 3
      %v9088 = vshll.u32 %v8910, 16
      %v9090 = vrot.slane %v9088, 4
      %v9091 = vor.u32 %v9087, %v9090
      %v9092 = vsel %vm473, %v9083, %v9091
      %v9094 = vshrl.u32 %v8911, 16
      %v9096 = vrot.slane %v9094, 3
      %v9097 = vshll.u32 %v8911, 16
      %v9099 = vrot.slane %v9097, 4
      %v9100 = vor.u32 %v9096, %v9099
      %v9102 = vshrl.u32 %v8912, 16
      %v9104 = vrot.slane %v9102, 3
      %v9105 = vshll.u32 %v8912, 16
      %v9107 = vrot.slane %v9105, 4
      %v9108 = vor.u32 %v9104, %v9107
      %v9109 = vsel %vm473, %v9100, %v9108
      %v9111 = vshrl.u32 %v8913, 16
      %v9113 = vrot.slane %v9111, 3
      %v9114 = vshll.u32 %v8913, 16
      %v9116 = vrot.slane %v9114, 4
      %v9117 = vor.u32 %v9113, %v9116
      %v9119 = vshrl.u32 %v8914, 16
      %v9121 = vrot.slane %v9119, 3
      %v9122 = vshll.u32 %v8914, 16
      %v9124 = vrot.slane %v9122, 4
      %v9125 = vor.u32 %v9121, %v9124
      %v9126 = vsel %vm473, %v9117, %v9125
      %v9128 = vshrl.u32 %v8915, 16
      %v9130 = vrot.slane %v9128, 3
      %v9131 = vshll.u32 %v8915, 16
      %v9133 = vrot.slane %v9131, 4
      %v9134 = vor.u32 %v9130, %v9133
      %v9136 = vshrl.u32 %v8916, 16
      %v9138 = vrot.slane %v9136, 3
      %v9139 = vshll.u32 %v8916, 16
      %v9141 = vrot.slane %v9139, 4
      %v9142 = vor.u32 %v9138, %v9141
      %v9143 = vsel %vm473, %v9134, %v9142
      %v9145 = vshrl.u32 %v8917, 16
      %v9147 = vrot.slane %v9145, 3
      %v9148 = vshll.u32 %v8917, 16
      %v9150 = vrot.slane %v9148, 4
      %v9151 = vor.u32 %v9147, %v9150
      %v9153 = vshrl.u32 %v8918, 16
      %v9155 = vrot.slane %v9153, 3
      %v9156 = vshll.u32 %v8918, 16
      %v9158 = vrot.slane %v9156, 4
      %v9159 = vor.u32 %v9155, %v9158
      %v9160 = vsel %vm473, %v9151, %v9159
      %v9162 = vshrl.u32 %v8919, 16
      %v9164 = vrot.slane %v9162, 3
      %v9165 = vshll.u32 %v8919, 16
      %v9167 = vrot.slane %v9165, 4
      %v9168 = vor.u32 %v9164, %v9167
      %v9170 = vshrl.u32 %v8920, 16
      %v9172 = vrot.slane %v9170, 3
      %v9173 = vshll.u32 %v8920, 16
      %v9175 = vrot.slane %v9173, 4
      %v9176 = vor.u32 %v9172, %v9175
      %v9177 = vsel %vm473, %v9168, %v9176
      %v9179 = vshrl.u32 %v8921, 16
      %v9181 = vrot.slane %v9179, 3
      %v9182 = vshll.u32 %v8921, 16
      %v9184 = vrot.slane %v9182, 4
      %v9185 = vor.u32 %v9181, %v9184
      %v9187 = vshrl.u32 %v8922, 16
      %v9189 = vrot.slane %v9187, 3
      %v9190 = vshll.u32 %v8922, 16
      %v9192 = vrot.slane %v9190, 4
      %v9193 = vor.u32 %v9189, %v9192
      %v9194 = vsel %vm473, %v9185, %v9193
      %9211 = vst.msk [vmem:[#allocation4 + $0x18] sm:$0xff] %vm7480, %v8939
      %9212 = vst.msk [vmem:[#allocation4 + $0x40] sm:$0xff] %vm7480, %v8956
      %9213 = vst.msk [vmem:[#allocation4 + $0x68] sm:$0xff] %vm7480, %v8973
      %9214 = vst.msk [vmem:[#allocation4 + $0x90] sm:$0xff] %vm7480, %v8990
      %9215 = vst.msk [vmem:[#allocation4 + $0xb8] sm:$0xff] %vm7480, %v9007
      %9216 = vst.msk [vmem:[#allocation4 + $0xe0] sm:$0xff] %vm7480, %v9024
      %9217 = vst.msk [vmem:[#allocation4 + $0x108] sm:$0xff] %vm7480, %v9041
      %9218 = vst.msk [vmem:[#allocation4 + $0x130] sm:$0xff] %vm7480, %v9058
      %9219 = vst.msk [vmem:[#allocation4 + $0x158] sm:$0xff] %vm7480, %v9075
      %9220 = vst.msk [vmem:[#allocation4 + $0x180] sm:$0xff] %vm7480, %v9092
      %9221 = vst.msk [vmem:[#allocation4 + $0x1a8] sm:$0xff] %vm7480, %v9109
      %9222 = vst.msk [vmem:[#allocation4 + $0x1d0] sm:$0xff] %vm7480, %v9126
      %9223 = vst.msk [vmem:[#allocation4 + $0x1f8] sm:$0xff] %vm7480, %v9143
      %9224 = vst.msk [vmem:[#allocation4 + $0x220] sm:$0xff] %vm7480, %v9160
      %9225 = vst.msk [vmem:[#allocation4 + $0x248] sm:$0xff] %vm7480, %v9177
      %9226 = vst.msk [vmem:[#allocation4 + $0x270] sm:$0xff] %vm7480, %v9194
      %v9227 = vld [vmem:[%s8890] sm:$0xf0]
      %v9228 = vld [vmem:[%s8890 + $0x8] sm:$0xf]
      %v9229 = vld [vmem:[%s8890 + $0x10] sm:$0xf0]
      %v9230 = vld [vmem:[%s8890 + $0x18] sm:$0xf]
      %v9231 = vld [vmem:[%s8890 + $0x20] sm:$0xf0]
      %v9232 = vld [vmem:[%s8890 + $0x28] sm:$0xf]
      %v9233 = vld [vmem:[%s8890 + $0x30] sm:$0xf0]
      %v9234 = vld [vmem:[%s8890 + $0x38] sm:$0xf]
      %v9235 = vld [vmem:[%s8890 + $0x40] sm:$0xf0]
      %v9236 = vld [vmem:[%s8890 + $0x48] sm:$0xf]
      %v9237 = vld [vmem:[%s8890 + $0x50] sm:$0xf0]
      %v9238 = vld [vmem:[%s8890 + $0x58] sm:$0xf]
      %v9239 = vld [vmem:[%s8890 + $0x60] sm:$0xf0]
      %v9240 = vld [vmem:[%s8890 + $0x68] sm:$0xf]
      %v9241 = vld [vmem:[%s8890 + $0x70] sm:$0xf0]
      %v9242 = vld [vmem:[%s8890 + $0x78] sm:$0xf]
      %v9243 = vld [vmem:[%s8890 + $0x80] sm:$0xf0]
      %v9244 = vld [vmem:[%s8890 + $0x88] sm:$0xf]
      %v9245 = vld [vmem:[%s8890 + $0x90] sm:$0xf0]
      %v9246 = vld [vmem:[%s8890 + $0x98] sm:$0xf]
      %v9247 = vld [vmem:[%s8890 + $0xa0] sm:$0xf0]
      %v9248 = vld [vmem:[%s8890 + $0xa8] sm:$0xf]
      %v9249 = vld [vmem:[%s8890 + $0xb0] sm:$0xf0]
      %v9250 = vld [vmem:[%s8890 + $0xb8] sm:$0xf]
      %v9251 = vld [vmem:[%s8890 + $0xc0] sm:$0xf0]
      %v9252 = vld [vmem:[%s8890 + $0xc8] sm:$0xf]
      %v9253 = vld [vmem:[%s8890 + $0xd0] sm:$0xf0]
      %v9254 = vld [vmem:[%s8890 + $0xd8] sm:$0xf]
      %v9255 = vld [vmem:[%s8890 + $0xe0] sm:$0xf0]
      %v9256 = vld [vmem:[%s8890 + $0xe8] sm:$0xf]
      %v9257 = vld [vmem:[%s8890 + $0xf0] sm:$0xf0]
      %v9258 = vld [vmem:[%s8890 + $0xf8] sm:$0xf]
      %v9291 = vrot.slane %v9227, 4
      %v9292 = vrot.slane %v9228, 4
      %v9293 = vsel %vm843, %v9291, %v9292
      %v9294 = vrot.slane %v9229, 4
      %v9295 = vrot.slane %v9230, 4
      %v9296 = vsel %vm843, %v9294, %v9295
      %v9297 = vrot.slane %v9231, 4
      %v9298 = vrot.slane %v9232, 4
      %v9299 = vsel %vm843, %v9297, %v9298
      %v9300 = vrot.slane %v9233, 4
      %v9301 = vrot.slane %v9234, 4
      %v9302 = vsel %vm843, %v9300, %v9301
      %v9303 = vrot.slane %v9235, 4
      %v9304 = vrot.slane %v9236, 4
      %v9305 = vsel %vm843, %v9303, %v9304
      %v9306 = vrot.slane %v9237, 4
      %v9307 = vrot.slane %v9238, 4
      %v9308 = vsel %vm843, %v9306, %v9307
      %v9309 = vrot.slane %v9239, 4
      %v9310 = vrot.slane %v9240, 4
      %v9311 = vsel %vm843, %v9309, %v9310
      %v9312 = vrot.slane %v9241, 4
      %v9313 = vrot.slane %v9242, 4
      %v9314 = vsel %vm843, %v9312, %v9313
      %v9315 = vrot.slane %v9243, 4
      %v9316 = vrot.slane %v9244, 4
      %v9317 = vsel %vm843, %v9315, %v9316
      %v9318 = vrot.slane %v9245, 4
      %v9319 = vrot.slane %v9246, 4
      %v9320 = vsel %vm843, %v9318, %v9319
      %v9321 = vrot.slane %v9247, 4
      %v9322 = vrot.slane %v9248, 4
      %v9323 = vsel %vm843, %v9321, %v9322
      %v9324 = vrot.slane %v9249, 4
      %v9325 = vrot.slane %v9250, 4
      %v9326 = vsel %vm843, %v9324, %v9325
      %v9327 = vrot.slane %v9251, 4
      %v9328 = vrot.slane %v9252, 4
      %v9329 = vsel %vm843, %v9327, %v9328
      %v9330 = vrot.slane %v9253, 4
      %v9331 = vrot.slane %v9254, 4
      %v9332 = vsel %vm843, %v9330, %v9331
      %v9333 = vrot.slane %v9255, 4
      %v9334 = vrot.slane %v9256, 4
      %v9335 = vsel %vm843, %v9333, %v9334
      %v9336 = vrot.slane %v9257, 4
      %v9337 = vrot.slane %v9258, 4
      %v9338 = vsel %vm843, %v9336, %v9337
      %9339 = vrot.lane.b32.xlu0 %v9293, 64
      %v9340 = vpop.permute.xlu0 %9339
      %9341 = vrot.lane.b32.xlu0 %v9296, 64
      %v9342 = vpop.permute.xlu0 %9341
      %9343 = vrot.lane.b32.xlu0 %v9299, 64
      %v9344 = vpop.permute.xlu0 %9343
      %9345 = vrot.lane.b32.xlu0 %v9302, 64
      %v9346 = vpop.permute.xlu0 %9345
      %9347 = vrot.lane.b32.xlu0 %v9305, 64
      %v9348 = vpop.permute.xlu0 %9347
      %9349 = vrot.lane.b32.xlu0 %v9308, 64
      %v9350 = vpop.permute.xlu0 %9349
      %9351 = vrot.lane.b32.xlu0 %v9311, 64
      %v9352 = vpop.permute.xlu0 %9351
      %9353 = vrot.lane.b32.xlu0 %v9314, 64
      %v9354 = vpop.permute.xlu0 %9353
      %9355 = vrot.lane.b32.xlu0 %v9317, 64
      %v9356 = vpop.permute.xlu0 %9355
      %9357 = vrot.lane.b32.xlu0 %v9320, 64
      %v9358 = vpop.permute.xlu0 %9357
      %9359 = vrot.lane.b32.xlu0 %v9323, 64
      %v9360 = vpop.permute.xlu0 %9359
      %9361 = vrot.lane.b32.xlu0 %v9326, 64
      %v9362 = vpop.permute.xlu0 %9361
      %9363 = vrot.lane.b32.xlu0 %v9329, 64
      %v9364 = vpop.permute.xlu0 %9363
      %9365 = vrot.lane.b32.xlu0 %v9332, 64
      %v9366 = vpop.permute.xlu0 %9365
      %9367 = vrot.lane.b32.xlu0 %v9335, 64
      %v9368 = vpop.permute.xlu0 %9367
      %9369 = vrot.lane.b32.xlu0 %v9338, 64
      %v9370 = vpop.permute.xlu0 %9369
      %9387 = vst.msk [vmem:[#allocation4 + $0x18] sm:$0xff] %vm7657, %v9340
      %9388 = vst.msk [vmem:[#allocation4 + $0x40] sm:$0xff] %vm7657, %v9342
      %9389 = vst.msk [vmem:[#allocation4 + $0x68] sm:$0xff] %vm7657, %v9344
      %9390 = vst.msk [vmem:[#allocation4 + $0x90] sm:$0xff] %vm7657, %v9346
      %9391 = vst.msk [vmem:[#allocation4 + $0xb8] sm:$0xff] %vm7657, %v9348
      %9392 = vst.msk [vmem:[#allocation4 + $0xe0] sm:$0xff] %vm7657, %v9350
      %9393 = vst.msk [vmem:[#allocation4 + $0x108] sm:$0xff] %vm7657, %v9352
      %9394 = vst.msk [vmem:[#allocation4 + $0x130] sm:$0xff] %vm7657, %v9354
      %9395 = vst.msk [vmem:[#allocation4 + $0x158] sm:$0xff] %vm7657, %v9356
      %9396 = vst.msk [vmem:[#allocation4 + $0x180] sm:$0xff] %vm7657, %v9358
      %9397 = vst.msk [vmem:[#allocation4 + $0x1a8] sm:$0xff] %vm7657, %v9360
      %9398 = vst.msk [vmem:[#allocation4 + $0x1d0] sm:$0xff] %vm7657, %v9362
      %9399 = vst.msk [vmem:[#allocation4 + $0x1f8] sm:$0xff] %vm7657, %v9364
      %9400 = vst.msk [vmem:[#allocation4 + $0x220] sm:$0xff] %vm7657, %v9366
      %9401 = vst.msk [vmem:[#allocation4 + $0x248] sm:$0xff] %vm7657, %v9368
      %9402 = vst.msk [vmem:[#allocation4 + $0x270] sm:$0xff] %vm7657, %v9370
      %v9403 = vld [vmem:[%s8890] sm:$0xf0]
      %v9404 = vld [vmem:[%s8890 + $0x8] sm:$0x1f]
      %v9405 = vld [vmem:[%s8890 + $0x10] sm:$0xf0]
      %v9406 = vld [vmem:[%s8890 + $0x18] sm:$0x1f]
      %v9407 = vld [vmem:[%s8890 + $0x20] sm:$0xf0]
      %v9408 = vld [vmem:[%s8890 + $0x28] sm:$0x1f]
      %v9409 = vld [vmem:[%s8890 + $0x30] sm:$0xf0]
      %v9410 = vld [vmem:[%s8890 + $0x38] sm:$0x1f]
      %v9411 = vld [vmem:[%s8890 + $0x40] sm:$0xf0]
      %v9412 = vld [vmem:[%s8890 + $0x48] sm:$0x1f]
      %v9413 = vld [vmem:[%s8890 + $0x50] sm:$0xf0]
      %v9414 = vld [vmem:[%s8890 + $0x58] sm:$0x1f]
      %v9415 = vld [vmem:[%s8890 + $0x60] sm:$0xf0]
      %v9416 = vld [vmem:[%s8890 + $0x68] sm:$0x1f]
      %v9417 = vld [vmem:[%s8890 + $0x70] sm:$0xf0]
      %v9418 = vld [vmem:[%s8890 + $0x78] sm:$0x1f]
      %v9419 = vld [vmem:[%s8890 + $0x80] sm:$0xf0]
      %v9420 = vld [vmem:[%s8890 + $0x88] sm:$0x1f]
      %v9421 = vld [vmem:[%s8890 + $0x90] sm:$0xf0]
      %v9422 = vld [vmem:[%s8890 + $0x98] sm:$0x1f]
      %v9423 = vld [vmem:[%s8890 + $0xa0] sm:$0xf0]
      %v9424 = vld [vmem:[%s8890 + $0xa8] sm:$0x1f]
      %v9425 = vld [vmem:[%s8890 + $0xb0] sm:$0xf0]
      %v9426 = vld [vmem:[%s8890 + $0xb8] sm:$0x1f]
      %v9427 = vld [vmem:[%s8890 + $0xc0] sm:$0xf0]
      %v9428 = vld [vmem:[%s8890 + $0xc8] sm:$0x1f]
      %v9429 = vld [vmem:[%s8890 + $0xd0] sm:$0xf0]
      %v9430 = vld [vmem:[%s8890 + $0xd8] sm:$0x1f]
      %v9431 = vld [vmem:[%s8890 + $0xe0] sm:$0xf0]
      %v9432 = vld [vmem:[%s8890 + $0xe8] sm:$0x1f]
      %v9433 = vld [vmem:[%s8890 + $0xf0] sm:$0xf0]
      %v9434 = vld [vmem:[%s8890 + $0xf8] sm:$0x1f]
      %v9436 = vshrl.u32 %v9403, 16
      %v9438 = vrot.slane %v9436, 4
      %v9439 = vshll.u32 %v9403, 16
      %v9441 = vrot.slane %v9439, 5
      %v9442 = vor.u32 %v9438, %v9441
      %v9444 = vshrl.u32 %v9404, 16
      %v9446 = vrot.slane %v9444, 4
      %v9447 = vshll.u32 %v9404, 16
      %v9449 = vrot.slane %v9447, 5
      %v9450 = vor.u32 %v9446, %v9449
      %v9451 = vsel %vm989, %v9442, %v9450
      %v9453 = vshrl.u32 %v9405, 16
      %v9455 = vrot.slane %v9453, 4
      %v9456 = vshll.u32 %v9405, 16
      %v9458 = vrot.slane %v9456, 5
      %v9459 = vor.u32 %v9455, %v9458
      %v9461 = vshrl.u32 %v9406, 16
      %v9463 = vrot.slane %v9461, 4
      %v9464 = vshll.u32 %v9406, 16
      %v9466 = vrot.slane %v9464, 5
      %v9467 = vor.u32 %v9463, %v9466
      %v9468 = vsel %vm989, %v9459, %v9467
      %v9470 = vshrl.u32 %v9407, 16
      %v9472 = vrot.slane %v9470, 4
      %v9473 = vshll.u32 %v9407, 16
      %v9475 = vrot.slane %v9473, 5
      %v9476 = vor.u32 %v9472, %v9475
      %v9478 = vshrl.u32 %v9408, 16
      %v9480 = vrot.slane %v9478, 4
      %v9481 = vshll.u32 %v9408, 16
      %v9483 = vrot.slane %v9481, 5
      %v9484 = vor.u32 %v9480, %v9483
      %v9485 = vsel %vm989, %v9476, %v9484
      %v9487 = vshrl.u32 %v9409, 16
      %v9489 = vrot.slane %v9487, 4
      %v9490 = vshll.u32 %v9409, 16
      %v9492 = vrot.slane %v9490, 5
      %v9493 = vor.u32 %v9489, %v9492
      %v9495 = vshrl.u32 %v9410, 16
      %v9497 = vrot.slane %v9495, 4
      %v9498 = vshll.u32 %v9410, 16
      %v9500 = vrot.slane %v9498, 5
      %v9501 = vor.u32 %v9497, %v9500
      %v9502 = vsel %vm989, %v9493, %v9501
      %v9504 = vshrl.u32 %v9411, 16
      %v9506 = vrot.slane %v9504, 4
      %v9507 = vshll.u32 %v9411, 16
      %v9509 = vrot.slane %v9507, 5
      %v9510 = vor.u32 %v9506, %v9509
      %v9512 = vshrl.u32 %v9412, 16
      %v9514 = vrot.slane %v9512, 4
      %v9515 = vshll.u32 %v9412, 16
      %v9517 = vrot.slane %v9515, 5
      %v9518 = vor.u32 %v9514, %v9517
      %v9519 = vsel %vm989, %v9510, %v9518
      %v9521 = vshrl.u32 %v9413, 16
      %v9523 = vrot.slane %v9521, 4
      %v9524 = vshll.u32 %v9413, 16
      %v9526 = vrot.slane %v9524, 5
      %v9527 = vor.u32 %v9523, %v9526
      %v9529 = vshrl.u32 %v9414, 16
      %v9531 = vrot.slane %v9529, 4
      %v9532 = vshll.u32 %v9414, 16
      %v9534 = vrot.slane %v9532, 5
      %v9535 = vor.u32 %v9531, %v9534
      %v9536 = vsel %vm989, %v9527, %v9535
      %v9538 = vshrl.u32 %v9415, 16
      %v9540 = vrot.slane %v9538, 4
      %v9541 = vshll.u32 %v9415, 16
      %v9543 = vrot.slane %v9541, 5
      %v9544 = vor.u32 %v9540, %v9543
      %v9546 = vshrl.u32 %v9416, 16
      %v9548 = vrot.slane %v9546, 4
      %v9549 = vshll.u32 %v9416, 16
      %v9551 = vrot.slane %v9549, 5
      %v9552 = vor.u32 %v9548, %v9551
      %v9553 = vsel %vm989, %v9544, %v9552
      %v9555 = vshrl.u32 %v9417, 16
      %v9557 = vrot.slane %v9555, 4
      %v9558 = vshll.u32 %v9417, 16
      %v9560 = vrot.slane %v9558, 5
      %v9561 = vor.u32 %v9557, %v9560
      %v9563 = vshrl.u32 %v9418, 16
      %v9565 = vrot.slane %v9563, 4
      %v9566 = vshll.u32 %v9418, 16
      %v9568 = vrot.slane %v9566, 5
      %v9569 = vor.u32 %v9565, %v9568
      %v9570 = vsel %vm989, %v9561, %v9569
      %v9572 = vshrl.u32 %v9419, 16
      %v9574 = vrot.slane %v9572, 4
      %v9575 = vshll.u32 %v9419, 16
      %v9577 = vrot.slane %v9575, 5
      %v9578 = vor.u32 %v9574, %v9577
      %v9580 = vshrl.u32 %v9420, 16
      %v9582 = vrot.slane %v9580, 4
      %v9583 = vshll.u32 %v9420, 16
      %v9585 = vrot.slane %v9583, 5
      %v9586 = vor.u32 %v9582, %v9585
      %v9587 = vsel %vm989, %v9578, %v9586
      %v9589 = vshrl.u32 %v9421, 16
      %v9591 = vrot.slane %v9589, 4
      %v9592 = vshll.u32 %v9421, 16
      %v9594 = vrot.slane %v9592, 5
      %v9595 = vor.u32 %v9591, %v9594
      %v9597 = vshrl.u32 %v9422, 16
      %v9599 = vrot.slane %v9597, 4
      %v9600 = vshll.u32 %v9422, 16
      %v9602 = vrot.slane %v9600, 5
      %v9603 = vor.u32 %v9599, %v9602
      %v9604 = vsel %vm989, %v9595, %v9603
      %v9606 = vshrl.u32 %v9423, 16
      %v9608 = vrot.slane %v9606, 4
      %v9609 = vshll.u32 %v9423, 16
      %v9611 = vrot.slane %v9609, 5
      %v9612 = vor.u32 %v9608, %v9611
      %v9614 = vshrl.u32 %v9424, 16
      %v9616 = vrot.slane %v9614, 4
      %v9617 = vshll.u32 %v9424, 16
      %v9619 = vrot.slane %v9617, 5
      %v9620 = vor.u32 %v9616, %v9619
      %v9621 = vsel %vm989, %v9612, %v9620
      %v9623 = vshrl.u32 %v9425, 16
      %v9625 = vrot.slane %v9623, 4
      %v9626 = vshll.u32 %v9425, 16
      %v9628 = vrot.slane %v9626, 5
      %v9629 = vor.u32 %v9625, %v9628
      %v9631 = vshrl.u32 %v9426, 16
      %v9633 = vrot.slane %v9631, 4
      %v9634 = vshll.u32 %v9426, 16
      %v9636 = vrot.slane %v9634, 5
      %v9637 = vor.u32 %v9633, %v9636
      %v9638 = vsel %vm989, %v9629, %v9637
      %v9640 = vshrl.u32 %v9427, 16
      %v9642 = vrot.slane %v9640, 4
      %v9643 = vshll.u32 %v9427, 16
      %v9645 = vrot.slane %v9643, 5
      %v9646 = vor.u32 %v9642, %v9645
      %v9648 = vshrl.u32 %v9428, 16
      %v9650 = vrot.slane %v9648, 4
      %v9651 = vshll.u32 %v9428, 16
      %v9653 = vrot.slane %v9651, 5
      %v9654 = vor.u32 %v9650, %v9653
      %v9655 = vsel %vm989, %v9646, %v9654
      %v9657 = vshrl.u32 %v9429, 16
      %v9659 = vrot.slane %v9657, 4
      %v9660 = vshll.u32 %v9429, 16
      %v9662 = vrot.slane %v9660, 5
      %v9663 = vor.u32 %v9659, %v9662
      %v9665 = vshrl.u32 %v9430, 16
      %v9667 = vrot.slane %v9665, 4
      %v9668 = vshll.u32 %v9430, 16
      %v9670 = vrot.slane %v9668, 5
      %v9671 = vor.u32 %v9667, %v9670
      %v9672 = vsel %vm989, %v9663, %v9671
      %v9674 = vshrl.u32 %v9431, 16
      %v9676 = vrot.slane %v9674, 4
      %v9677 = vshll.u32 %v9431, 16
      %v9679 = vrot.slane %v9677, 5
      %v9680 = vor.u32 %v9676, %v9679
      %v9682 = vshrl.u32 %v9432, 16
      %v9684 = vrot.slane %v9682, 4
      %v9685 = vshll.u32 %v9432, 16
      %v9687 = vrot.slane %v9685, 5
      %v9688 = vor.u32 %v9684, %v9687
      %v9689 = vsel %vm989, %v9680, %v9688
      %v9691 = vshrl.u32 %v9433, 16
      %v9693 = vrot.slane %v9691, 4
      %v9694 = vshll.u32 %v9433, 16
      %v9696 = vrot.slane %v9694, 5
      %v9697 = vor.u32 %v9693, %v9696
      %v9699 = vshrl.u32 %v9434, 16
      %v9701 = vrot.slane %v9699, 4
      %v9702 = vshll.u32 %v9434, 16
      %v9704 = vrot.slane %v9702, 5
      %v9705 = vor.u32 %v9701, %v9704
      %v9706 = vsel %vm989, %v9697, %v9705
      %9723 = vst.msk [vmem:[#allocation4 + $0x20] sm:$0xff] %vm7480, %v9451
      %9724 = vst.msk [vmem:[#allocation4 + $0x48] sm:$0xff] %vm7480, %v9468
      %9725 = vst.msk [vmem:[#allocation4 + $0x70] sm:$0xff] %vm7480, %v9485
      %9726 = vst.msk [vmem:[#allocation4 + $0x98] sm:$0xff] %vm7480, %v9502
      %9727 = vst.msk [vmem:[#allocation4 + $0xc0] sm:$0xff] %vm7480, %v9519
      %9728 = vst.msk [vmem:[#allocation4 + $0xe8] sm:$0xff] %vm7480, %v9536
      %9729 = vst.msk [vmem:[#allocation4 + $0x110] sm:$0xff] %vm7480, %v9553
      %9730 = vst.msk [vmem:[#allocation4 + $0x138] sm:$0xff] %vm7480, %v9570
      %9731 = vst.msk [vmem:[#allocation4 + $0x160] sm:$0xff] %vm7480, %v9587
      %9732 = vst.msk [vmem:[#allocation4 + $0x188] sm:$0xff] %vm7480, %v9604
      %9733 = vst.msk [vmem:[#allocation4 + $0x1b0] sm:$0xff] %vm7480, %v9621
      %9734 = vst.msk [vmem:[#allocation4 + $0x1d8] sm:$0xff] %vm7480, %v9638
      %9735 = vst.msk [vmem:[#allocation4 + $0x200] sm:$0xff] %vm7480, %v9655
      %9736 = vst.msk [vmem:[#allocation4 + $0x228] sm:$0xff] %vm7480, %v9672
      %9737 = vst.msk [vmem:[#allocation4 + $0x250] sm:$0xff] %vm7480, %v9689
      %9738 = vst.msk [vmem:[#allocation4 + $0x278] sm:$0xff] %vm7480, %v9706
      %v9739 = vld [vmem:[#allocation4] sm:$0xff]
      %v9740 = vld [vmem:[#allocation4 + $0x8] sm:$0xff]
      %v9741 = vld [vmem:[#allocation4 + $0x10] sm:$0xff]
      %v9742 = vld [vmem:[#allocation4 + $0x18] sm:$0xff]
      %v9743 = vld [vmem:[#allocation4 + $0x20] sm:$0xff]
      %v9744 = vld [vmem:[#allocation4 + $0x28] sm:$0xff]
      %v9745 = vld [vmem:[#allocation4 + $0x30] sm:$0xff]
      %v9746 = vld [vmem:[#allocation4 + $0x38] sm:$0xff]
      %v9747 = vld [vmem:[#allocation4 + $0x40] sm:$0xff]
      %v9748 = vld [vmem:[#allocation4 + $0x48] sm:$0xff]
      %v9749 = vld [vmem:[#allocation4 + $0x50] sm:$0xff]
      %v9750 = vld [vmem:[#allocation4 + $0x58] sm:$0xff]
      %v9751 = vld [vmem:[#allocation4 + $0x60] sm:$0xff]
      %v9752 = vld [vmem:[#allocation4 + $0x68] sm:$0xff]
      %v9753 = vld [vmem:[#allocation4 + $0x70] sm:$0xff]
      %v9754 = vld [vmem:[#allocation4 + $0x78] sm:$0xff]
      %v9755 = vld [vmem:[#allocation4 + $0x80] sm:$0xff]
      %v9756 = vld [vmem:[#allocation4 + $0x88] sm:$0xff]
      %v9757 = vld [vmem:[#allocation4 + $0x90] sm:$0xff]
      %v9758 = vld [vmem:[#allocation4 + $0x98] sm:$0xff]
      %v9759 = vld [vmem:[#allocation4 + $0xa0] sm:$0xff]
      %v9760 = vld [vmem:[#allocation4 + $0xa8] sm:$0xff]
      %v9761 = vld [vmem:[#allocation4 + $0xb0] sm:$0xff]
      %v9762 = vld [vmem:[#allocation4 + $0xb8] sm:$0xff]
      %v9763 = vld [vmem:[#allocation4 + $0xc0] sm:$0xff]
      %v9764 = vld [vmem:[#allocation4 + $0xc8] sm:$0xff]
      %v9765 = vld [vmem:[#allocation4 + $0xd0] sm:$0xff]
      %v9766 = vld [vmem:[#allocation4 + $0xd8] sm:$0xff]
      %v9767 = vld [vmem:[#allocation4 + $0xe0] sm:$0xff]
      %v9768 = vld [vmem:[#allocation4 + $0xe8] sm:$0xff]
      %v9769 = vld [vmem:[#allocation4 + $0xf0] sm:$0xff]
      %v9770 = vld [vmem:[#allocation4 + $0xf8] sm:$0xff]
      %v9771 = vld [vmem:[#allocation4 + $0x100] sm:$0xff]
      %v9772 = vld [vmem:[#allocation4 + $0x108] sm:$0xff]
      %v9773 = vld [vmem:[#allocation4 + $0x110] sm:$0xff]
      %v9774 = vld [vmem:[#allocation4 + $0x118] sm:$0xff]
      %v9775 = vld [vmem:[#allocation4 + $0x120] sm:$0xff]
      %v9776 = vld [vmem:[#allocation4 + $0x128] sm:$0xff]
      %v9777 = vld [vmem:[#allocation4 + $0x130] sm:$0xff]
      %v9778 = vld [vmem:[#allocation4 + $0x138] sm:$0xff]
      %v9779 = vld [vmem:[#allocation4 + $0x140] sm:$0xff]
      %v9780 = vld [vmem:[#allocation4 + $0x148] sm:$0xff]
      %v9781 = vld [vmem:[#allocation4 + $0x150] sm:$0xff]
      %v9782 = vld [vmem:[#allocation4 + $0x158] sm:$0xff]
      %v9783 = vld [vmem:[#allocation4 + $0x160] sm:$0xff]
      %v9784 = vld [vmem:[#allocation4 + $0x168] sm:$0xff]
      %v9785 = vld [vmem:[#allocation4 + $0x170] sm:$0xff]
      %v9786 = vld [vmem:[#allocation4 + $0x178] sm:$0xff]
      %v9787 = vld [vmem:[#allocation4 + $0x180] sm:$0xff]
      %v9788 = vld [vmem:[#allocation4 + $0x188] sm:$0xff]
      %v9789 = vld [vmem:[#allocation4 + $0x190] sm:$0xff]
      %v9790 = vld [vmem:[#allocation4 + $0x198] sm:$0xff]
      %v9791 = vld [vmem:[#allocation4 + $0x1a0] sm:$0xff]
      %v9792 = vld [vmem:[#allocation4 + $0x1a8] sm:$0xff]
      %v9793 = vld [vmem:[#allocation4 + $0x1b0] sm:$0xff]
      %v9794 = vld [vmem:[#allocation4 + $0x1b8] sm:$0xff]
      %v9795 = vld [vmem:[#allocation4 + $0x1c0] sm:$0xff]
      %v9796 = vld [vmem:[#allocation4 + $0x1c8] sm:$0xff]
      %v9797 = vld [vmem:[#allocation4 + $0x1d0] sm:$0xff]
      %v9798 = vld [vmem:[#allocation4 + $0x1d8] sm:$0xff]
      %v9799 = vld [vmem:[#allocation4 + $0x1e0] sm:$0xff]
      %v9800 = vld [vmem:[#allocation4 + $0x1e8] sm:$0xff]
      %v9801 = vld [vmem:[#allocation4 + $0x1f0] sm:$0xff]
      %v9802 = vld [vmem:[#allocation4 + $0x1f8] sm:$0xff]
      %v9803 = vld [vmem:[#allocation4 + $0x200] sm:$0xff]
      %v9804 = vld [vmem:[#allocation4 + $0x208] sm:$0xff]
      %v9805 = vld [vmem:[#allocation4 + $0x210] sm:$0xff]
      %v9806 = vld [vmem:[#allocation4 + $0x218] sm:$0xff]
      %v9807 = vld [vmem:[#allocation4 + $0x220] sm:$0xff]
      %v9808 = vld [vmem:[#allocation4 + $0x228] sm:$0xff]
      %v9809 = vld [vmem:[#allocation4 + $0x230] sm:$0xff]
      %v9810 = vld [vmem:[#allocation4 + $0x238] sm:$0xff]
      %v9811 = vld [vmem:[#allocation4 + $0x240] sm:$0xff]
      %v9812 = vld [vmem:[#allocation4 + $0x248] sm:$0xff]
      %v9813 = vld [vmem:[#allocation4 + $0x250] sm:$0xff]
      %v9814 = vld [vmem:[#allocation4 + $0x258] sm:$0xff]
      %v9815 = vld [vmem:[#allocation4 + $0x260] sm:$0xff]
      %v9816 = vld [vmem:[#allocation4 + $0x268] sm:$0xff]
      %v9817 = vld [vmem:[#allocation4 + $0x270] sm:$0xff]
      %v9818 = vld [vmem:[#allocation4 + $0x278] sm:$0xff]
      %v9819 = vld [vmem:[%s4] sm:$0xf]
      %v9820 = vld [vmem:[%s4 + $0x4] sm:$0xf]
      %v9821 = vld [vmem:[%s4 + $0x8] sm:$0xf]
      %v9822 = vld [vmem:[%s4 + $0xc] sm:$0xf]
      %v9823 = vld [vmem:[%s4 + $0x10] sm:$0xf]
      %v9824 = vld [vmem:[%s4 + $0x14] sm:$0xf]
      %v9825 = vld [vmem:[%s4 + $0x18] sm:$0xf]
      %v9826 = vld [vmem:[%s4 + $0x1c] sm:$0xf]
      %v9827 = vld [vmem:[%s4 + $0x20] sm:$0xf]
      %v9828 = vld [vmem:[%s4 + $0x24] sm:$0xf]
      %v9829 = vld [vmem:[%s4 + $0x28] sm:$0xf]
      %v9830 = vld [vmem:[%s4 + $0x2c] sm:$0xf]
      %v9831 = vld [vmem:[%s4 + $0x30] sm:$0xf]
      %v9832 = vld [vmem:[%s4 + $0x34] sm:$0xf]
      %v9833 = vld [vmem:[%s4 + $0x38] sm:$0xf]
      %v9834 = vld [vmem:[%s4 + $0x3c] sm:$0xf]
      %v9835 = vld [vmem:[%s4 + $0x40] sm:$0xf]
      %v9836 = vld [vmem:[%s4 + $0x44] sm:$0xf]
      %v9837 = vld [vmem:[%s4 + $0x48] sm:$0xf]
      %v9838 = vld [vmem:[%s4 + $0x4c] sm:$0xf]
      %v9839 = vld [vmem:[%s4 + $0x50] sm:$0xf]
      %v9840 = vld [vmem:[%s4 + $0x54] sm:$0xf]
      %v9841 = vld [vmem:[%s4 + $0x58] sm:$0xf]
      %v9842 = vld [vmem:[%s4 + $0x5c] sm:$0xf]
      %v9843 = vld [vmem:[%s4 + $0x60] sm:$0xf]
      %v9844 = vld [vmem:[%s4 + $0x64] sm:$0xf]
      %v9845 = vld [vmem:[%s4 + $0x68] sm:$0xf]
      %v9846 = vld [vmem:[%s4 + $0x6c] sm:$0xf]
      %v9847 = vld [vmem:[%s4 + $0x70] sm:$0xf]
      %v9848 = vld [vmem:[%s4 + $0x74] sm:$0xf]
      %v9849 = vld [vmem:[%s4 + $0x78] sm:$0xf]
      %v9850 = vld [vmem:[%s4 + $0x7c] sm:$0xf]
      %v9851 = vld [vmem:[%s4 + $0x80] sm:$0xf]
      %v9852 = vld [vmem:[%s4 + $0x84] sm:$0xf]
      %v9853 = vld [vmem:[%s4 + $0x88] sm:$0xf]
      %v9854 = vld [vmem:[%s4 + $0x8c] sm:$0xf]
      %v9855 = vld [vmem:[%s4 + $0x90] sm:$0xf]
      %v9856 = vld [vmem:[%s4 + $0x94] sm:$0xf]
      %v9857 = vld [vmem:[%s4 + $0x98] sm:$0xf]
      %v9858 = vld [vmem:[%s4 + $0x9c] sm:$0xf]
      %v9859 = vld [vmem:[%s4 + $0xa0] sm:$0xf]
      %v9860 = vld [vmem:[%s4 + $0xa4] sm:$0xf]
      %v9861 = vld [vmem:[%s4 + $0xa8] sm:$0xf]
      %v9862 = vld [vmem:[%s4 + $0xac] sm:$0xf]
      %v9863 = vld [vmem:[%s4 + $0xb0] sm:$0xf]
      %v9864 = vld [vmem:[%s4 + $0xb4] sm:$0xf]
      %v9865 = vld [vmem:[%s4 + $0xb8] sm:$0xf]
      %v9866 = vld [vmem:[%s4 + $0xbc] sm:$0xf]
      %v9867 = vld [vmem:[%s4 + $0xc0] sm:$0xf]
      %v9868 = vld [vmem:[%s4 + $0xc4] sm:$0xf]
      %v9869 = vld [vmem:[%s4 + $0xc8] sm:$0xf]
      %v9870 = vld [vmem:[%s4 + $0xcc] sm:$0xf]
      %v9871 = vld [vmem:[%s4 + $0xd0] sm:$0xf]
      %v9872 = vld [vmem:[%s4 + $0xd4] sm:$0xf]
      %v9873 = vld [vmem:[%s4 + $0xd8] sm:$0xf]
      %v9874 = vld [vmem:[%s4 + $0xdc] sm:$0xf]
      %v9875 = vld [vmem:[%s4 + $0xe0] sm:$0xf]
      %v9876 = vld [vmem:[%s4 + $0xe4] sm:$0xf]
      %v9877 = vld [vmem:[%s4 + $0xe8] sm:$0xf]
      %v9878 = vld [vmem:[%s4 + $0xec] sm:$0xf]
      %v9879 = vld [vmem:[%s4 + $0xf0] sm:$0xf]
      %v9880 = vld [vmem:[%s4 + $0xf4] sm:$0xf]
      %v9881 = vld [vmem:[%s4 + $0xf8] sm:$0xf]
      %v9882 = vld [vmem:[%s4 + $0xfc] sm:$0xf]
      %v9883 = vld [vmem:[%s4 + $0x100] sm:$0xf]
      %v9884 = vld [vmem:[%s4 + $0x104] sm:$0xf]
      %v9885 = vld [vmem:[%s4 + $0x108] sm:$0xf]
      %v9886 = vld [vmem:[%s4 + $0x10c] sm:$0xf]
      %v9887 = vld [vmem:[%s4 + $0x110] sm:$0xf]
      %v9888 = vld [vmem:[%s4 + $0x114] sm:$0xf]
      %v9889 = vld [vmem:[%s4 + $0x118] sm:$0xf]
      %v9890 = vld [vmem:[%s4 + $0x11c] sm:$0xf]
      %v9963 = vunpack.c.l.b16 %v9819
      %v9964 = vunpack.c.l.b16 %v9820
      %v9965 = vunpack.c.l.b16 %v9821
      %v9966 = vunpack.c.l.b16 %v9822
      %v9967 = vunpack.c.l.b16 %v9823
      %v9968 = vunpack.c.l.b16 %v9824
      %v9969 = vunpack.c.l.b16 %v9825
      %v9970 = vunpack.c.l.b16 %v9826
      %v9971 = vunpack.c.l.b16 %v9827
      %v9972 = vunpack.c.l.b16 %v9828
      %v9973 = vunpack.c.l.b16 %v9829
      %v9974 = vunpack.c.l.b16 %v9830
      %v9975 = vunpack.c.l.b16 %v9831
      %v9976 = vunpack.c.l.b16 %v9832
      %v9977 = vunpack.c.l.b16 %v9833
      %v9978 = vunpack.c.l.b16 %v9834
      %v9979 = vunpack.c.l.b16 %v9835
      %v9980 = vunpack.c.l.b16 %v9836
      %v9981 = vunpack.c.l.b16 %v9837
      %v9982 = vunpack.c.l.b16 %v9838
      %v9983 = vunpack.c.l.b16 %v9839
      %v9984 = vunpack.c.l.b16 %v9840
      %v9985 = vunpack.c.l.b16 %v9841
      %v9986 = vunpack.c.l.b16 %v9842
      %v9987 = vunpack.c.l.b16 %v9843
      %v9988 = vunpack.c.l.b16 %v9844
      %v9989 = vunpack.c.l.b16 %v9845
      %v9990 = vunpack.c.l.b16 %v9846
      %v9991 = vunpack.c.l.b16 %v9847
      %v9992 = vunpack.c.l.b16 %v9848
      %v9993 = vunpack.c.l.b16 %v9849
      %v9994 = vunpack.c.l.b16 %v9850
      %v9995 = vunpack.c.l.b16 %v9851
      %v9996 = vunpack.c.l.b16 %v9852
      %v9997 = vunpack.c.l.b16 %v9853
      %v9998 = vunpack.c.l.b16 %v9854
      %v9999 = vunpack.c.l.b16 %v9855
      %v10000 = vunpack.c.l.b16 %v9856
      %v10001 = vunpack.c.l.b16 %v9857
      %v10002 = vunpack.c.l.b16 %v9858
      %v10003 = vunpack.c.l.b16 %v9859
      %v10004 = vunpack.c.l.b16 %v9860
      %v10005 = vunpack.c.l.b16 %v9861
      %v10006 = vunpack.c.l.b16 %v9862
      %v10007 = vunpack.c.l.b16 %v9863
      %v10008 = vunpack.c.l.b16 %v9864
      %v10009 = vunpack.c.l.b16 %v9865
      %v10010 = vunpack.c.l.b16 %v9866
      %v10011 = vunpack.c.l.b16 %v9867
      %v10012 = vunpack.c.l.b16 %v9868
      %v10013 = vunpack.c.l.b16 %v9869
      %v10014 = vunpack.c.l.b16 %v9870
      %v10015 = vunpack.c.l.b16 %v9871
      %v10016 = vunpack.c.l.b16 %v9872
      %v10017 = vunpack.c.l.b16 %v9873
      %v10018 = vunpack.c.l.b16 %v9874
      %v10019 = vunpack.c.l.b16 %v9875
      %v10020 = vunpack.c.l.b16 %v9876
      %v10021 = vunpack.c.l.b16 %v9877
      %v10022 = vunpack.c.l.b16 %v9878
      %v10023 = vunpack.c.l.b16 %v9879
      %v10024 = vunpack.c.l.b16 %v9880
      %v10025 = vunpack.c.l.b16 %v9881
      %v10026 = vunpack.c.l.b16 %v9882
      %v10027 = vunpack.c.l.b16 %v9883
      %v10028 = vunpack.c.l.b16 %v9884
      %v10029 = vunpack.c.l.b16 %v9885
      %v10030 = vunpack.c.l.b16 %v9886
      %v10031 = vunpack.c.l.b16 %v9887
      %v10032 = vunpack.c.l.b16 %v9888
      %v10033 = vunpack.c.l.b16 %v9889
      %v10034 = vunpack.c.l.b16 %v9890
      %v10035 = vpack.c.b16 %v9964, %v9963
      %v10036 = vpack.c.b16 %v9966, %v9965
      %v10037 = vpack.c.b16 %v9968, %v9967
      %v10038 = vpack.c.b16 %v9970, %v9969
      %v10039 = vpack.c.b16 %v9972, %v9971
      %v10040 = vpack.c.b16 %v9974, %v9973
      %v10041 = vpack.c.b16 %v9976, %v9975
      %v10042 = vpack.c.b16 %v9978, %v9977
      %v10043 = vpack.c.b16 %v9980, %v9979
      %v10044 = vpack.c.b16 %v9982, %v9981
      %v10045 = vpack.c.b16 %v9984, %v9983
      %v10046 = vpack.c.b16 %v9986, %v9985
      %v10047 = vpack.c.b16 %v9988, %v9987
      %v10048 = vpack.c.b16 %v9990, %v9989
      %v10049 = vpack.c.b16 %v9992, %v9991
      %v10050 = vpack.c.b16 %v9994, %v9993
      %v10051 = vpack.c.b16 %v9996, %v9995
      %v10052 = vpack.c.b16 %v9998, %v9997
      %v10053 = vpack.c.b16 %v10000, %v9999
      %v10054 = vpack.c.b16 %v10002, %v10001
      %v10055 = vpack.c.b16 %v10004, %v10003
      %v10056 = vpack.c.b16 %v10006, %v10005
      %v10057 = vpack.c.b16 %v10008, %v10007
      %v10058 = vpack.c.b16 %v10010, %v10009
      %v10059 = vpack.c.b16 %v10012, %v10011
      %v10060 = vpack.c.b16 %v10014, %v10013
      %v10061 = vpack.c.b16 %v10016, %v10015
      %v10062 = vpack.c.b16 %v10018, %v10017
      %v10063 = vpack.c.b16 %v10020, %v10019
      %v10064 = vpack.c.b16 %v10022, %v10021
      %v10065 = vpack.c.b16 %v10024, %v10023
      %v10066 = vpack.c.b16 %v10026, %v10025
      %v10067 = vpack.c.b16 %v10028, %v10027
      %v10068 = vpack.c.b16 %v10030, %v10029
      %v10069 = vpack.c.b16 %v10032, %v10031
      %v10070 = vpack.c.b16 %v10034, %v10033
      %v10108 = vsel %vm7480, %v9743, 0
      %v10111 = vsel %vm7480, %v9748, 0
      %v10114 = vsel %vm7480, %v9753, 0
      %v10117 = vsel %vm7480, %v9758, 0
      %v10120 = vsel %vm7480, %v9763, 0
      %v10123 = vsel %vm7480, %v9768, 0
      %v10126 = vsel %vm7480, %v9773, 0
      %v10129 = vsel %vm7480, %v9778, 0
      %v10132 = vsel %vm7480, %v9783, 0
      %v10135 = vsel %vm7480, %v9788, 0
      %v10138 = vsel %vm7480, %v9793, 0
      %v10141 = vsel %vm7480, %v9798, 0
      %v10144 = vsel %vm7480, %v9803, 0
      %v10147 = vsel %vm7480, %v9808, 0
      %v10150 = vsel %vm7480, %v9813, 0
      %v10153 = vsel %vm7480, %v9818, 0
      %10155 = vmatprep.subr.bf16.mxu0 0
      %10156 = vmatpush1.bf16.msra.mxu0 %v10035
      %10157 = vmatprep.subr.bf16.mxu0 0
      %10158 = vmatpush1.bf16.msra.mxu0 %v10036
      %10159 = vmatprep.subr.bf16.mxu0 0
      %10160 = vmatpush1.bf16.msra.mxu0 %v10037
      %10161 = vmatprep.subr.bf16.mxu0 0
      %10162 = vmatpush1.bf16.msra.mxu0 %v10038
      %10163 = vmatprep.subr.bf16.mxu0 0
      %10164 = vmatpush1.bf16.msra.mxu0 %v10039
      %10165 = vmatprep.subr.bf16.mxu0 0
      %10166 = vmatpush1.bf16.msra.mxu0 %v10040
      %10167 = vmatprep.subr.bf16.mxu0 0
      %10168 = vmatpush1.bf16.msra.mxu0 %v10041
      %10169 = vmatprep.subr.bf16.mxu0 0
      %10170 = vmatpush1.bf16.msra.mxu0 %v10042
      %10171 = vmatprep.subr.bf16.mxu0 0
      %10172 = vmatpush1.bf16.msra.mxu0 %v10043
      %10173 = vmatprep.subr.bf16.mxu0 0
      %10174 = vmatpush1.bf16.msra.mxu0 %v10044
      %10175 = vmatprep.subr.bf16.mxu0 0
      %10176 = vmatpush1.bf16.msra.mxu0 %v10045
      %10177 = vmatprep.subr.bf16.mxu0 0
      %10178 = vmatpush1.bf16.msra.mxu0 %v10046
      %10179 = vmatprep.subr.bf16.mxu0 0
      %10180 = vmatpush1.bf16.msra.mxu0 %v10047
      %10181 = vmatprep.subr.bf16.mxu0 0
      %10182 = vmatpush1.bf16.msra.mxu0 %v10048
      %10183 = vmatprep.subr.bf16.mxu0 0
      %10184 = vmatpush1.bf16.msra.mxu0 %v10049
      %10185 = vmatprep.subr.bf16.mxu0 0
      %10186 = vmatpush1.bf16.msra.mxu0 %v10050
      %10187 = vmatprep.mubr.bf16.mxu0 %v9740
      %10188 = vmatmul.mubr.bf16.gmra.mrb[0].mxu0 %v9739
      %v10189 = vpop.f32.mrb[0].mxu0
      %v10190 = vadd.f32 0.0, %v10189
      %v10191 = vpop.f32.mrb[0].mxu0
      %v10192 = vpop.f32.mrb[0].mxu0
      %v10193 = vadd.f32 0.0, %v10192
      %v10194 = vpop.f32.mrb[0].mxu0
      %10195 = vmatprep.mubr.bf16.mxu0 %v9745
      %10196 = vmatmul.mubr.bf16.gmra.mrb[0].mxu0 %v9744
      %v10197 = vpop.f32.mrb[0].mxu0
      %v10198 = vadd.f32 0.0, %v10197
      %v10199 = vpop.f32.mrb[0].mxu0
      %v10200 = vpop.f32.mrb[0].mxu0
      %v10201 = vadd.f32 0.0, %v10200
      %v10202 = vpop.f32.mrb[0].mxu0
      %10203 = vmatprep.mubr.bf16.mxu0 %v9750
      %10204 = vmatmul.mubr.bf16.gmra.mrb[0].mxu0 %v9749
      %v10205 = vpop.f32.mrb[0].mxu0
      %v10206 = vadd.f32 0.0, %v10205
      %v10207 = vpop.f32.mrb[0].mxu0
      %v10208 = vpop.f32.mrb[0].mxu0
      %v10209 = vadd.f32 0.0, %v10208
      %v10210 = vpop.f32.mrb[0].mxu0
      %10211 = vmatprep.mubr.bf16.mxu0 %v9755
      %10212 = vmatmul.mubr.bf16.gmra.mrb[0].mxu0 %v9754
      %v10213 = vpop.f32.mrb[0].mxu0
      %v10214 = vadd.f32 0.0, %v10213
      %v10215 = vpop.f32.mrb[0].mxu0
      %v10216 = vpop.f32.mrb[0].mxu0
      %v10217 = vadd.f32 0.0, %v10216
      %v10218 = vpop.f32.mrb[0].mxu0
      %10219 = vmatprep.mubr.bf16.mxu0 %v9760
      %10220 = vmatmul.mubr.bf16.gmra.mrb[0].mxu0 %v9759
      %v10221 = vpop.f32.mrb[0].mxu0
      %v10222 = vadd.f32 0.0, %v10221
      %v10223 = vpop.f32.mrb[0].mxu0
      %v10224 = vpop.f32.mrb[0].mxu0
      %v10225 = vadd.f32 0.0, %v10224
      %v10226 = vpop.f32.mrb[0].mxu0
      %10227 = vmatprep.mubr.bf16.mxu0 %v9765
      %10228 = vmatmul.mubr.bf16.gmra.mrb[0].mxu0 %v9764
      %v10229 = vpop.f32.mrb[0].mxu0
      %v10230 = vadd.f32 0.0, %v10229
      %v10231 = vpop.f32.mrb[0].mxu0
      %v10232 = vpop.f32.mrb[0].mxu0
      %v10233 = vadd.f32 0.0, %v10232
      %v10234 = vpop.f32.mrb[0].mxu0
      %10235 = vmatprep.mubr.bf16.mxu0 %v9770
      %10236 = vmatmul.mubr.bf16.gmra.mrb[0].mxu0 %v9769
      %v10237 = vpop.f32.mrb[0].mxu0
      %v10238 = vadd.f32 0.0, %v10237
      %v10239 = vpop.f32.mrb[0].mxu0
      %v10240 = vpop.f32.mrb[0].mxu0
      %v10241 = vadd.f32 0.0, %v10240
      %v10242 = vpop.f32.mrb[0].mxu0
      %10243 = vmatprep.mubr.bf16.mxu0 %v9775
      %10244 = vmatmul.mubr.bf16.gmra.mrb[0].mxu0 %v9774
      %v10245 = vpop.f32.mrb[0].mxu0
      %v10246 = vadd.f32 0.0, %v10245
      %v10247 = vpop.f32.mrb[0].mxu0
      %v10248 = vpop.f32.mrb[0].mxu0
      %v10249 = vadd.f32 0.0, %v10248
      %v10250 = vpop.f32.mrb[0].mxu0
      %10251 = vmatprep.mubr.bf16.mxu0 %v9780
      %10252 = vmatmul.mubr.bf16.gmra.mrb[0].mxu0 %v9779
      %v10253 = vpop.f32.mrb[0].mxu0
      %v10254 = vadd.f32 0.0, %v10253
      %v10255 = vpop.f32.mrb[0].mxu0
      %v10256 = vpop.f32.mrb[0].mxu0
      %v10257 = vadd.f32 0.0, %v10256
      %v10258 = vpop.f32.mrb[0].mxu0
      %10259 = vmatprep.mubr.bf16.mxu0 %v9785
      %10260 = vmatmul.mubr.bf16.gmra.mrb[0].mxu0 %v9784
      %v10261 = vpop.f32.mrb[0].mxu0
      %v10262 = vadd.f32 0.0, %v10261
      %v10263 = vpop.f32.mrb[0].mxu0
      %v10264 = vpop.f32.mrb[0].mxu0
      %v10265 = vadd.f32 0.0, %v10264
      %v10266 = vpop.f32.mrb[0].mxu0
      %10267 = vmatprep.mubr.bf16.mxu0 %v9790
      %10268 = vmatmul.mubr.bf16.gmra.mrb[0].mxu0 %v9789
      %v10269 = vpop.f32.mrb[0].mxu0
      %v10270 = vadd.f32 0.0, %v10269
      %v10271 = vpop.f32.mrb[0].mxu0
      %v10272 = vpop.f32.mrb[0].mxu0
      %v10273 = vadd.f32 0.0, %v10272
      %v10274 = vpop.f32.mrb[0].mxu0
      %10275 = vmatprep.mubr.bf16.mxu0 %v9795
      %10276 = vmatmul.mubr.bf16.gmra.mrb[0].mxu0 %v9794
      %v10277 = vpop.f32.mrb[0].mxu0
      %v10278 = vadd.f32 0.0, %v10277
      %v10279 = vpop.f32.mrb[0].mxu0
      %v10280 = vpop.f32.mrb[0].mxu0
      %v10281 = vadd.f32 0.0, %v10280
      %v10282 = vpop.f32.mrb[0].mxu0
      %10283 = vmatprep.mubr.bf16.mxu0 %v9800
      %10284 = vmatmul.mubr.bf16.gmra.mrb[0].mxu0 %v9799
      %v10285 = vpop.f32.mrb[0].mxu0
      %v10286 = vadd.f32 0.0, %v10285
      %v10287 = vpop.f32.mrb[0].mxu0
      %v10288 = vpop.f32.mrb[0].mxu0
      %v10289 = vadd.f32 0.0, %v10288
      %v10290 = vpop.f32.mrb[0].mxu0
      %10291 = vmatprep.mubr.bf16.mxu0 %v9805
      %10292 = vmatmul.mubr.bf16.gmra.mrb[0].mxu0 %v9804
      %v10293 = vpop.f32.mrb[0].mxu0
      %v10294 = vadd.f32 0.0, %v10293
      %v10295 = vpop.f32.mrb[0].mxu0
      %v10296 = vpop.f32.mrb[0].mxu0
      %v10297 = vadd.f32 0.0, %v10296
      %v10298 = vpop.f32.mrb[0].mxu0
      %10299 = vmatprep.mubr.bf16.mxu0 %v9810
      %10300 = vmatmul.mubr.bf16.gmra.mrb[0].mxu0 %v9809
      %v10301 = vpop.f32.mrb[0].mxu0
      %v10302 = vadd.f32 0.0, %v10301
      %v10303 = vpop.f32.mrb[0].mxu0
      %v10304 = vpop.f32.mrb[0].mxu0
      %v10305 = vadd.f32 0.0, %v10304
      %v10306 = vpop.f32.mrb[0].mxu0
      %10307 = vmatprep.mubr.bf16.mxu0 %v9815
      %10308 = vmatmul.mubr.bf16.gmra.mrb[0].mxu0 %v9814
      %v10309 = vpop.f32.mrb[0].mxu0
      %v10310 = vadd.f32 0.0, %v10309
      %v10311 = vpop.f32.mrb[0].mxu0
      %v10312 = vpop.f32.mrb[0].mxu0
      %v10313 = vadd.f32 0.0, %v10312
      %v10314 = vpop.f32.mrb[0].mxu0
      %10315 = vdwg.mxu0
      %10316 = vmatprep.subr.bf16.mxu0 0
      %10317 = vmatpush1.bf16.msra.mxu0 %v10051
      %10318 = vmatprep.subr.bf16.mxu0 0
      %10319 = vmatpush1.bf16.msra.mxu0 %v10052
      %10320 = vmatprep.subr.bf16.mxu0 0
      %10321 = vmatpush1.bf16.msra.mxu0 %v10053
      %10322 = vmatprep.subr.bf16.mxu0 0
      %10323 = vmatpush1.bf16.msra.mxu0 %v10054
      %10324 = vmatprep.subr.bf16.mxu0 0
      %10325 = vmatpush1.bf16.msra.mxu0 %v10055
      %10326 = vmatprep.subr.bf16.mxu0 0
      %10327 = vmatpush1.bf16.msra.mxu0 %v10056
      %10328 = vmatprep.subr.bf16.mxu0 0
      %10329 = vmatpush1.bf16.msra.mxu0 %v10057
      %10330 = vmatprep.subr.bf16.mxu0 0
      %10331 = vmatpush1.bf16.msra.mxu0 %v10058
      %10332 = vmatprep.subr.bf16.mxu0 0
      %10333 = vmatpush1.bf16.msra.mxu0 %v10059
      %10334 = vmatprep.subr.bf16.mxu0 0
      %10335 = vmatpush1.bf16.msra.mxu0 %v10060
      %10336 = vmatprep.subr.bf16.mxu0 0
      %10337 = vmatpush1.bf16.msra.mxu0 %v10061
      %10338 = vmatprep.subr.bf16.mxu0 0
      %10339 = vmatpush1.bf16.msra.mxu0 %v10062
      %10340 = vmatprep.subr.bf16.mxu0 0
      %10341 = vmatpush1.bf16.msra.mxu0 %v10063
      %10342 = vmatprep.subr.bf16.mxu0 0
      %10343 = vmatpush1.bf16.msra.mxu0 %v10064
      %10344 = vmatprep.subr.bf16.mxu0 0
      %10345 = vmatpush1.bf16.msra.mxu0 %v10065
      %10346 = vmatprep.subr.bf16.mxu0 0
      %10347 = vmatpush1.bf16.msra.mxu0 %v10066
      %10348 = vmatprep.mubr.bf16.mxu0 %v9742
      %10349 = vmatmul.mubr.bf16.gmra.mrb[0].mxu0 %v9741
      %v10350 = vpop.f32.mrb[0].mxu0
      %v10351 = vadd.f32 %v10190, %v10350
      %v10352 = vpop.f32.mrb[0].mxu0
      %v10353 = vpop.f32.mrb[0].mxu0
      %v10354 = vadd.f32 %v10193, %v10353
      %v10355 = vpop.f32.mrb[0].mxu0
      %10356 = vmatprep.mubr.bf16.mxu0 %v9747
      %10357 = vmatmul.mubr.bf16.gmra.mrb[0].mxu0 %v9746
      %v10358 = vpop.f32.mrb[0].mxu0
      %v10359 = vadd.f32 %v10198, %v10358
      %v10360 = vpop.f32.mrb[0].mxu0
      %v10361 = vpop.f32.mrb[0].mxu0
      %v10362 = vadd.f32 %v10201, %v10361
      %v10363 = vpop.f32.mrb[0].mxu0
      %10364 = vmatprep.mubr.bf16.mxu0 %v9752
      %10365 = vmatmul.mubr.bf16.gmra.mrb[0].mxu0 %v9751
      %v10366 = vpop.f32.mrb[0].mxu0
      %v10367 = vadd.f32 %v10206, %v10366
      %v10368 = vpop.f32.mrb[0].mxu0
      %v10369 = vpop.f32.mrb[0].mxu0
      %v10370 = vadd.f32 %v10209, %v10369
      %v10371 = vpop.f32.mrb[0].mxu0
      %10372 = vmatprep.mubr.bf16.mxu0 %v9757
      %10373 = vmatmul.mubr.bf16.gmra.mrb[0].mxu0 %v9756
      %v10374 = vpop.f32.mrb[0].mxu0
      %v10375 = vadd.f32 %v10214, %v10374
      %v10376 = vpop.f32.mrb[0].mxu0
      %v10377 = vpop.f32.mrb[0].mxu0
      %v10378 = vadd.f32 %v10217, %v10377
      %v10379 = vpop.f32.mrb[0].mxu0
      %10380 = vmatprep.mubr.bf16.mxu0 %v9762
      %10381 = vmatmul.mubr.bf16.gmra.mrb[0].mxu0 %v9761
      %v10382 = vpop.f32.mrb[0].mxu0
      %v10383 = vadd.f32 %v10222, %v10382
      %v10384 = vpop.f32.mrb[0].mxu0
      %v10385 = vpop.f32.mrb[0].mxu0
      %v10386 = vadd.f32 %v10225, %v10385
      %v10387 = vpop.f32.mrb[0].mxu0
      %10388 = vmatprep.mubr.bf16.mxu0 %v9767
      %10389 = vmatmul.mubr.bf16.gmra.mrb[0].mxu0 %v9766
      %v10390 = vpop.f32.mrb[0].mxu0
      %v10391 = vadd.f32 %v10230, %v10390
      %v10392 = vpop.f32.mrb[0].mxu0
      %v10393 = vpop.f32.mrb[0].mxu0
      %v10394 = vadd.f32 %v10233, %v10393
      %v10395 = vpop.f32.mrb[0].mxu0
      %10396 = vmatprep.mubr.bf16.mxu0 %v9772
      %10397 = vmatmul.mubr.bf16.gmra.mrb[0].mxu0 %v9771
      %v10398 = vpop.f32.mrb[0].mxu0
      %v10399 = vadd.f32 %v10238, %v10398
      %v10400 = vpop.f32.mrb[0].mxu0
      %v10401 = vpop.f32.mrb[0].mxu0
      %v10402 = vadd.f32 %v10241, %v10401
      %v10403 = vpop.f32.mrb[0].mxu0
      %10404 = vmatprep.mubr.bf16.mxu0 %v9777
      %10405 = vmatmul.mubr.bf16.gmra.mrb[0].mxu0 %v9776
      %v10406 = vpop.f32.mrb[0].mxu0
      %v10407 = vadd.f32 %v10246, %v10406
      %v10408 = vpop.f32.mrb[0].mxu0
      %v10409 = vpop.f32.mrb[0].mxu0
      %v10410 = vadd.f32 %v10249, %v10409
      %v10411 = vpop.f32.mrb[0].mxu0
      %10412 = vmatprep.mubr.bf16.mxu0 %v9782
      %10413 = vmatmul.mubr.bf16.gmra.mrb[0].mxu0 %v9781
      %v10414 = vpop.f32.mrb[0].mxu0
      %v10415 = vadd.f32 %v10254, %v10414
      %v10416 = vpop.f32.mrb[0].mxu0
      %v10417 = vpop.f32.mrb[0].mxu0
      %v10418 = vadd.f32 %v10257, %v10417
      %v10419 = vpop.f32.mrb[0].mxu0
      %10420 = vmatprep.mubr.bf16.mxu0 %v9787
      %10421 = vmatmul.mubr.bf16.gmra.mrb[0].mxu0 %v9786
      %v10422 = vpop.f32.mrb[0].mxu0
      %v10423 = vadd.f32 %v10262, %v10422
      %v10424 = vpop.f32.mrb[0].mxu0
      %v10425 = vpop.f32.mrb[0].mxu0
      %v10426 = vadd.f32 %v10265, %v10425
      %v10427 = vpop.f32.mrb[0].mxu0
      %10428 = vmatprep.mubr.bf16.mxu0 %v9792
      %10429 = vmatmul.mubr.bf16.gmra.mrb[0].mxu0 %v9791
      %v10430 = vpop.f32.mrb[0].mxu0
      %v10431 = vadd.f32 %v10270, %v10430
      %v10432 = vpop.f32.mrb[0].mxu0
      %v10433 = vpop.f32.mrb[0].mxu0
      %v10434 = vadd.f32 %v10273, %v10433
      %v10435 = vpop.f32.mrb[0].mxu0
      %10436 = vmatprep.mubr.bf16.mxu0 %v9797
      %10437 = vmatmul.mubr.bf16.gmra.mrb[0].mxu0 %v9796
      %v10438 = vpop.f32.mrb[0].mxu0
      %v10439 = vadd.f32 %v10278, %v10438
      %v10440 = vpop.f32.mrb[0].mxu0
      %v10441 = vpop.f32.mrb[0].mxu0
      %v10442 = vadd.f32 %v10281, %v10441
      %v10443 = vpop.f32.mrb[0].mxu0
      %10444 = vmatprep.mubr.bf16.mxu0 %v9802
      %10445 = vmatmul.mubr.bf16.gmra.mrb[0].mxu0 %v9801
      %v10446 = vpop.f32.mrb[0].mxu0
      %v10447 = vadd.f32 %v10286, %v10446
      %v10448 = vpop.f32.mrb[0].mxu0
      %v10449 = vpop.f32.mrb[0].mxu0
      %v10450 = vadd.f32 %v10289, %v10449
      %v10451 = vpop.f32.mrb[0].mxu0
      %10452 = vmatprep.mubr.bf16.mxu0 %v9807
      %10453 = vmatmul.mubr.bf16.gmra.mrb[0].mxu0 %v9806
      %v10454 = vpop.f32.mrb[0].mxu0
      %v10455 = vadd.f32 %v10294, %v10454
      %v10456 = vpop.f32.mrb[0].mxu0
      %v10457 = vpop.f32.mrb[0].mxu0
      %v10458 = vadd.f32 %v10297, %v10457
      %v10459 = vpop.f32.mrb[0].mxu0
      %10460 = vmatprep.mubr.bf16.mxu0 %v9812
      %10461 = vmatmul.mubr.bf16.gmra.mrb[0].mxu0 %v9811
      %v10462 = vpop.f32.mrb[0].mxu0
      %v10463 = vadd.f32 %v10302, %v10462
      %v10464 = vpop.f32.mrb[0].mxu0
      %v10465 = vpop.f32.mrb[0].mxu0
      %v10466 = vadd.f32 %v10305, %v10465
      %v10467 = vpop.f32.mrb[0].mxu0
      %10468 = vmatprep.mubr.bf16.mxu0 %v9817
      %10469 = vmatmul.mubr.bf16.gmra.mrb[0].mxu0 %v9816
      %v10470 = vpop.f32.mrb[0].mxu0
      %v10471 = vadd.f32 %v10310, %v10470
      %v10472 = vpop.f32.mrb[0].mxu0
      %v10473 = vpop.f32.mrb[0].mxu0
      %v10474 = vadd.f32 %v10313, %v10473
      %v10475 = vpop.f32.mrb[0].mxu0
      %10476 = vdwg.mxu0
      %10477 = vmatprep.subr.bf16.mxu0 0
      %10478 = vmatpush1.bf16.msra.mxu0 %v10067
      %10479 = vmatprep.subr.bf16.mxu0 0
      %10480 = vmatpush1.bf16.msra.mxu0 %v10068
      %10481 = vmatprep.subr.bf16.mxu0 0
      %10482 = vmatpush1.bf16.msra.mxu0 %v10069
      %10483 = vmatprep.subr.bf16.mxu0 0
      %10484 = vmatpush1.bf16.msra.mxu0 %v10070
      %10485 = vmatprep.subr.bf16.mxu0 0
      %10486 = vmatpush1.bf16.msra.mxu0 0
      %10487 = vmatprep.subr.bf16.mxu0 0
      %10488 = vmatpush1.bf16.msra.mxu0 0
      %10489 = vmatprep.subr.bf16.mxu0 0
      %10490 = vmatpush1.bf16.msra.mxu0 0
      %10491 = vmatprep.subr.bf16.mxu0 0
      %10492 = vmatpush1.bf16.msra.mxu0 0
      %10493 = vmatprep.subr.bf16.mxu0 0
      %10494 = vmatpush1.bf16.msra.mxu0 0
      %10495 = vmatprep.subr.bf16.mxu0 0
      %10496 = vmatpush1.bf16.msra.mxu0 0
      %10497 = vmatprep.subr.bf16.mxu0 0
      %10498 = vmatpush1.bf16.msra.mxu0 0
      %10499 = vmatprep.subr.bf16.mxu0 0
      %10500 = vmatpush1.bf16.msra.mxu0 0
      %10501 = vmatprep.subr.bf16.mxu0 0
      %10502 = vmatpush1.bf16.msra.mxu0 0
      %10503 = vmatprep.subr.bf16.mxu0 0
      %10504 = vmatpush1.bf16.msra.mxu0 0
      %10505 = vmatprep.subr.bf16.mxu0 0
      %10506 = vmatpush1.bf16.msra.mxu0 0
      %10507 = vmatprep.subr.bf16.mxu0 0
      %10508 = vmatpush1.bf16.msra.mxu0 0
      %10509 = vmatprep.mubr.bf16.mxu0 0
      %10510 = vmatmul.mubr.bf16.gmra.mrb[0].mxu0 %v10108
      %v10511 = vpop.f32.mrb[0].mxu0
      %v10512 = vadd.f32 %v10351, %v10511
      %v10513 = vpop.f32.mrb[0].mxu0
      %v10514 = vpop.f32.mrb[0].mxu0
      %v10515 = vadd.f32 %v10354, %v10514
      %v10516 = vpop.f32.mrb[0].mxu0
      %10517 = vmatprep.mubr.bf16.mxu0 0
      %10518 = vmatmul.mubr.bf16.gmra.mrb[0].mxu0 %v10111
      %v10519 = vpop.f32.mrb[0].mxu0
      %v10520 = vadd.f32 %v10359, %v10519
      %v10521 = vpop.f32.mrb[0].mxu0
      %v10522 = vpop.f32.mrb[0].mxu0
      %v10523 = vadd.f32 %v10362, %v10522
      %v10524 = vpop.f32.mrb[0].mxu0
      %10525 = vmatprep.mubr.bf16.mxu0 0
      %10526 = vmatmul.mubr.bf16.gmra.mrb[0].mxu0 %v10114
      %v10527 = vpop.f32.mrb[0].mxu0
      %v10528 = vadd.f32 %v10367, %v10527
      %v10529 = vpop.f32.mrb[0].mxu0
      %v10530 = vpop.f32.mrb[0].mxu0
      %v10531 = vadd.f32 %v10370, %v10530
      %v10532 = vpop.f32.mrb[0].mxu0
      %10533 = vmatprep.mubr.bf16.mxu0 0
      %10534 = vmatmul.mubr.bf16.gmra.mrb[0].mxu0 %v10117
      %v10535 = vpop.f32.mrb[0].mxu0
      %v10536 = vadd.f32 %v10375, %v10535
      %v10537 = vpop.f32.mrb[0].mxu0
      %v10538 = vpop.f32.mrb[0].mxu0
      %v10539 = vadd.f32 %v10378, %v10538
      %v10540 = vpop.f32.mrb[0].mxu0
      %10541 = vmatprep.mubr.bf16.mxu0 0
      %10542 = vmatmul.mubr.bf16.gmra.mrb[0].mxu0 %v10120
      %v10543 = vpop.f32.mrb[0].mxu0
      %v10544 = vadd.f32 %v10383, %v10543
      %v10545 = vpop.f32.mrb[0].mxu0
      %v10546 = vpop.f32.mrb[0].mxu0
      %v10547 = vadd.f32 %v10386, %v10546
      %v10548 = vpop.f32.mrb[0].mxu0
      %10549 = vmatprep.mubr.bf16.mxu0 0
      %10550 = vmatmul.mubr.bf16.gmra.mrb[0].mxu0 %v10123
      %v10551 = vpop.f32.mrb[0].mxu0
      %v10552 = vadd.f32 %v10391, %v10551
      %v10553 = vpop.f32.mrb[0].mxu0
      %v10554 = vpop.f32.mrb[0].mxu0
      %v10555 = vadd.f32 %v10394, %v10554
      %v10556 = vpop.f32.mrb[0].mxu0
      %10557 = vmatprep.mubr.bf16.mxu0 0
      %10558 = vmatmul.mubr.bf16.gmra.mrb[0].mxu0 %v10126
      %v10559 = vpop.f32.mrb[0].mxu0
      %v10560 = vadd.f32 %v10399, %v10559
      %v10561 = vpop.f32.mrb[0].mxu0
      %v10562 = vpop.f32.mrb[0].mxu0
      %v10563 = vadd.f32 %v10402, %v10562
      %v10564 = vpop.f32.mrb[0].mxu0
      %10565 = vmatprep.mubr.bf16.mxu0 0
      %10566 = vmatmul.mubr.bf16.gmra.mrb[0].mxu0 %v10129
      %v10567 = vpop.f32.mrb[0].mxu0
      %v10568 = vadd.f32 %v10407, %v10567
      %v10569 = vpop.f32.mrb[0].mxu0
      %v10570 = vpop.f32.mrb[0].mxu0
      %v10571 = vadd.f32 %v10410, %v10570
      %v10572 = vpop.f32.mrb[0].mxu0
      %10573 = vmatprep.mubr.bf16.mxu0 0
      %10574 = vmatmul.mubr.bf16.gmra.mrb[0].mxu0 %v10132
      %v10575 = vpop.f32.mrb[0].mxu0
      %v10576 = vadd.f32 %v10415, %v10575
      %v10577 = vpop.f32.mrb[0].mxu0
      %v10578 = vpop.f32.mrb[0].mxu0
      %v10579 = vadd.f32 %v10418, %v10578
      %v10580 = vpop.f32.mrb[0].mxu0
      %10581 = vmatprep.mubr.bf16.mxu0 0
      %10582 = vmatmul.mubr.bf16.gmra.mrb[0].mxu0 %v10135
      %v10583 = vpop.f32.mrb[0].mxu0
      %v10584 = vadd.f32 %v10423, %v10583
      %v10585 = vpop.f32.mrb[0].mxu0
      %v10586 = vpop.f32.mrb[0].mxu0
      %v10587 = vadd.f32 %v10426, %v10586
      %v10588 = vpop.f32.mrb[0].mxu0
      %10589 = vmatprep.mubr.bf16.mxu0 0
      %10590 = vmatmul.mubr.bf16.gmra.mrb[0].mxu0 %v10138
      %v10591 = vpop.f32.mrb[0].mxu0
      %v10592 = vadd.f32 %v10431, %v10591
      %v10593 = vpop.f32.mrb[0].mxu0
      %v10594 = vpop.f32.mrb[0].mxu0
      %v10595 = vadd.f32 %v10434, %v10594
      %v10596 = vpop.f32.mrb[0].mxu0
      %10597 = vmatprep.mubr.bf16.mxu0 0
      %10598 = vmatmul.mubr.bf16.gmra.mrb[0].mxu0 %v10141
      %v10599 = vpop.f32.mrb[0].mxu0
      %v10600 = vadd.f32 %v10439, %v10599
      %v10601 = vpop.f32.mrb[0].mxu0
      %v10602 = vpop.f32.mrb[0].mxu0
      %v10603 = vadd.f32 %v10442, %v10602
      %v10604 = vpop.f32.mrb[0].mxu0
      %10605 = vmatprep.mubr.bf16.mxu0 0
      %10606 = vmatmul.mubr.bf16.gmra.mrb[0].mxu0 %v10144
      %v10607 = vpop.f32.mrb[0].mxu0
      %v10608 = vadd.f32 %v10447, %v10607
      %v10609 = vpop.f32.mrb[0].mxu0
      %v10610 = vpop.f32.mrb[0].mxu0
      %v10611 = vadd.f32 %v10450, %v10610
      %v10612 = vpop.f32.mrb[0].mxu0
      %10613 = vmatprep.mubr.bf16.mxu0 0
      %10614 = vmatmul.mubr.bf16.gmra.mrb[0].mxu0 %v10147
      %v10615 = vpop.f32.mrb[0].mxu0
      %v10616 = vadd.f32 %v10455, %v10615
      %v10617 = vpop.f32.mrb[0].mxu0
      %v10618 = vpop.f32.mrb[0].mxu0
      %v10619 = vadd.f32 %v10458, %v10618
      %v10620 = vpop.f32.mrb[0].mxu0
      %10621 = vmatprep.mubr.bf16.mxu0 0
      %10622 = vmatmul.mubr.bf16.gmra.mrb[0].mxu0 %v10150
      %v10623 = vpop.f32.mrb[0].mxu0
      %v10624 = vadd.f32 %v10463, %v10623
      %v10625 = vpop.f32.mrb[0].mxu0
      %v10626 = vpop.f32.mrb[0].mxu0
      %v10627 = vadd.f32 %v10466, %v10626
      %v10628 = vpop.f32.mrb[0].mxu0
      %10629 = vmatprep.mubr.bf16.mxu0 0
      %10630 = vmatmul.mubr.bf16.gmra.mrb[0].mxu0 %v10153
      %v10631 = vpop.f32.mrb[0].mxu0
      %v10632 = vadd.f32 %v10471, %v10631
      %v10633 = vpop.f32.mrb[0].mxu0
      %v10634 = vpop.f32.mrb[0].mxu0
      %v10635 = vadd.f32 %v10474, %v10634
      %v10636 = vpop.f32.mrb[0].mxu0
      %10637 = vdwg.mxu0
      %v10638 = vsub.f32 %v312, %v10512
      %v10639 = vsub.f32 %v313, %v10515
      %v10640 = vsub.f32 %v314, %v10520
      %v10641 = vsub.f32 %v315, %v10523
      %v10642 = vsub.f32 %v316, %v10528
      %v10643 = vsub.f32 %v317, %v10531
      %v10644 = vsub.f32 %v318, %v10536
      %v10645 = vsub.f32 %v319, %v10539
      %v10646 = vsub.f32 %v320, %v10544
      %v10647 = vsub.f32 %v321, %v10547
      %v10648 = vsub.f32 %v322, %v10552
      %v10649 = vsub.f32 %v323, %v10555
      %v10650 = vsub.f32 %v324, %v10560
      %v10651 = vsub.f32 %v325, %v10563
      %v10652 = vsub.f32 %v326, %v10568
      %v10653 = vsub.f32 %v327, %v10571
      %v10654 = vsub.f32 %v328, %v10576
      %v10655 = vsub.f32 %v329, %v10579
      %v10656 = vsub.f32 %v330, %v10584
      %v10657 = vsub.f32 %v331, %v10587
      %v10658 = vsub.f32 %v332, %v10592
      %v10659 = vsub.f32 %v333, %v10595
      %v10660 = vsub.f32 %v334, %v10600
      %v10661 = vsub.f32 %v335, %v10603
      %v10662 = vsub.f32 %v336, %v10608
      %v10663 = vsub.f32 %v337, %v10611
      %v10664 = vsub.f32 %v338, %v10616
      %v10665 = vsub.f32 %v339, %v10619
      %v10666 = vsub.f32 %v340, %v10624
      %v10667 = vsub.f32 %v341, %v10627
      %v10668 = vsub.f32 %v342, %v10632
      %v10669 = vsub.f32 %v343, %v10635
      %10670 = vst.msk [vmem:[%s224] sm:$0xff] %vm762, %v10638
      %10671 = vst.msk [vmem:[%s224 + $0x8] sm:$0xff] %vm762, %v10639
      %10672 = vst.msk [vmem:[%s224 + $0x10] sm:$0xff] %vm762, %v10640
      %10673 = vst.msk [vmem:[%s224 + $0x18] sm:$0xff] %vm762, %v10641
      %10674 = vst.msk [vmem:[%s224 + $0x20] sm:$0xff] %vm762, %v10642
      %10675 = vst.msk [vmem:[%s224 + $0x28] sm:$0xff] %vm762, %v10643
      %10676 = vst.msk [vmem:[%s224 + $0x30] sm:$0xff] %vm762, %v10644
      %10677 = vst.msk [vmem:[%s224 + $0x38] sm:$0xff] %vm762, %v10645
      %10678 = vst.msk [vmem:[%s224 + $0x40] sm:$0xff] %vm762, %v10646
      %10679 = vst.msk [vmem:[%s224 + $0x48] sm:$0xff] %vm762, %v10647
      %10680 = vst.msk [vmem:[%s224 + $0x50] sm:$0xff] %vm762, %v10648
      %10681 = vst.msk [vmem:[%s224 + $0x58] sm:$0xff] %vm762, %v10649
      %10682 = vst.msk [vmem:[%s224 + $0x60] sm:$0xff] %vm762, %v10650
      %10683 = vst.msk [vmem:[%s224 + $0x68] sm:$0xff] %vm762, %v10651
      %10684 = vst.msk [vmem:[%s224 + $0x70] sm:$0xff] %vm762, %v10652
      %10685 = vst.msk [vmem:[%s224 + $0x78] sm:$0xff] %vm762, %v10653
      %10686 = vst.msk [vmem:[%s224 + $0x80] sm:$0xff] %vm762, %v10654
      %10687 = vst.msk [vmem:[%s224 + $0x88] sm:$0xff] %vm762, %v10655
      %10688 = vst.msk [vmem:[%s224 + $0x90] sm:$0xff] %vm762, %v10656
      %10689 = vst.msk [vmem:[%s224 + $0x98] sm:$0xff] %vm762, %v10657
      %10690 = vst.msk [vmem:[%s224 + $0xa0] sm:$0xff] %vm762, %v10658
      %10691 = vst.msk [vmem:[%s224 + $0xa8] sm:$0xff] %vm762, %v10659
      %10692 = vst.msk [vmem:[%s224 + $0xb0] sm:$0xff] %vm762, %v10660
      %10693 = vst.msk [vmem:[%s224 + $0xb8] sm:$0xff] %vm762, %v10661
      %10694 = vst.msk [vmem:[%s224 + $0xc0] sm:$0xff] %vm762, %v10662
      %10695 = vst.msk [vmem:[%s224 + $0xc8] sm:$0xff] %vm762, %v10663
      %10696 = vst.msk [vmem:[%s224 + $0xd0] sm:$0xff] %vm762, %v10664
      %10697 = vst.msk [vmem:[%s224 + $0xd8] sm:$0xff] %vm762, %v10665
      %10698 = vst.msk [vmem:[%s224 + $0xe0] sm:$0xff] %vm762, %v10666
      %10699 = vst.msk [vmem:[%s224 + $0xe8] sm:$0xff] %vm762, %v10667
      %10700 = vst.msk [vmem:[%s224 + $0xf0] sm:$0xff] %vm762, %v10668
      %10701 = vst.msk [vmem:[%s224 + $0xf8] sm:$0xff] %vm762, %v10669
      %p10702 = scmp.lt.s32.totalorder %s16, 1
      %s10703 = scalar_select %p10702, %s16, 1
      %s10704 = smul.addr %s10703, 32
      %s10705 = smul.addr %s10704, 8
      %s10706 = scalar_lea.vmem %s5, %s10705
      // Predicated region
      $region48: #{dncnn_forward.1} parent=39 // pred_check
        %p10707 = pneg %p144
      $region49: #{dncnn_forward.1} parent=39 // pred_check_branch
        %10709 = sbr.rel (%p10707) target = $region51
      $region50: #{dncnn_forward.1} parent=39 // pred_region
        _
      $region51: #{dncnn_forward.1} parent=39 // pred_fallthru
        _
    $region40: #{dncnn_forward.1} parent=5 // pred_fallthru
      _
    %p10710 = scmp.le.s32.totalorder 2, %s11
    // Predicated region
    $region52: #{dncnn_forward.1} parent=5 // pred_check
      %p10711 = pneg %p10710
    $region53: #{dncnn_forward.1} parent=5 // pred_check_branch
      %10713 = sbr.rel (%p10711) target = $region55
    $region54: #{dncnn_forward.1} parent=5 // pred_region
      %s10714 = ssub.s32 %s11, 2
      // Predicated region
      $region56: #{dncnn_forward.1} parent=54 // pred_check
        %p10715 = pneg %p150
      $region57: #{dncnn_forward.1} parent=54 // pred_check_branch
        %10717 = sbr.rel (%p10715) target = $region59
      $region58: #{dncnn_forward.1} parent=54 // pred_region
        %p10718 = scmp.lt.s32.totalorder %s17, 1
        %s10719 = scalar_select %p10718, %s17, 1
        %s10720 = smul.addr %s10719, 32
        %s10721 = smul.addr %s10720, 8
        %s10722 = scalar_lea.vmem %s5, %s10721
      $region59: #{dncnn_forward.1} parent=54 // pred_fallthru
        _
    $region55: #{dncnn_forward.1} parent=5 // pred_fallthru
      _
  $region6: #{dncnn_forward.1} parent=0 // loop_footer
    %s15 = sadd.s32 1, %s11
  $region7: #{dncnn_forward.1} parent=0 // loop_footer_branch
    %10 = sbr.rel target = $region3
  $region8: #{dncnn_forward.1} parent=0 // loop_exit
    _

</llo_original>
